<compile_context>
chip_gen: v7x
topology: tpu7x:2x2x1
jax: 0.10.0
libtpu: 0.0.40
codegen_flags: <defaults>
</compile_context>

<pallas_src>
import functools

import jax
import jax.numpy as jnp
from jax.experimental import pallas as pl
from jax.experimental.pallas import tpu as pltpu

EPS = 1e-5
LANE = 128
MXU_DTYPE = jnp.float32   # set to jnp.bfloat16 on v6e/v7x for 2x MXU throughput

_CPARAMS = pltpu.CompilerParams(
    dimension_semantics=("parallel",),
    vmem_limit_bytes=32 * 1024 * 1024,
)


def _round_up(x, m):
    return (x + m - 1) // m * m


# ---------------------------------------------------------------------------
# Fused kernel: input affine (previous BN) -> 3x3 conv (9 accumulated shifted
# matmuls over a zero halo) -> +bias -> ReLU -> activation + BN partial stats.
# One grid step == one image.
# ---------------------------------------------------------------------------
def _conv3x3_fused_kernel(xp_ref, a_ref, c_ref, w_ref, b_ref,
                          y_ref, stats_ref, *, H, W):
    cin = xp_ref.shape[-1]
    cout = y_ref.shape[-1]

    xp = xp_ref[0]                                       # (H+2, W+2, Cin)

    # Apply the previous stage's BatchNorm as an affine, keeping the conv's
    # zero padding (halo) exactly zero so the affine does not leak into it.
    rows = jax.lax.broadcasted_iota(jnp.int32, (H + 2, W + 2, cin), 0)
    cols = jax.lax.broadcasted_iota(jnp.int32, (H + 2, W + 2, cin), 1)
    interior = (rows >= 1) & (rows <= H) & (cols >= 1) & (cols <= W)
    z = jnp.where(interior, xp * a_ref[...] + c_ref[...], 0.0)

    # 9 shifted matmuls accumulated in f32 (no im2col slab in HBM).
    acc = jnp.zeros((H * W, cout), jnp.float32)
    t = 0
    for dy in range(3):
        for dx in range(3):
            patch = z[dy:dy + H, dx:dx + W, :].reshape(H * W, cin)
            acc = acc + jnp.dot(patch.astype(MXU_DTYPE),
                                w_ref[t].astype(MXU_DTYPE),
                                preferred_element_type=jnp.float32)
            t += 1

    y = jnp.maximum(acc + b_ref[...], 0.0)               # conv -> bias -> ReLU
    y_ref[0] = y                                         # lane-dense (H*W, Cp)

    # Per-image BN partial statistics (row 0: sum, row 1: sum of squares).
    s1 = jnp.sum(y, axis=0, keepdims=True)
    s2 = jnp.sum(y * y, axis=0, keepdims=True)
    stats_ref[0] = jnp.concatenate(
        [s1, s2, jnp.zeros((6, cout), jnp.float32)], axis=0)


def conv3x3_relu_stats(xp, a, c, w9, b, *, H, W):
    """xp: (N, H+2, W+2, Cin) zero-padded input.  Returns
       y = relu(conv3x3(a*x+c) + b) as (N, H*W, Cp) and per-image BN partial
       stats (N, 8, Cp)."""
    N, _, _, Cin = xp.shape
    Cp = w9.shape[-1]
    kernel = functools.partial(_conv3x3_fused_kernel, H=H, W=W)
    return pl.pallas_call(
        kernel,
        out_shape=(
            jax.ShapeDtypeStruct((N, H * W, Cp), jnp.float32),
            jax.ShapeDtypeStruct((N, 8, Cp), jnp.float32),
        ),
        grid=(N,),
        in_specs=[
            pl.BlockSpec((1, H + 2, W + 2, Cin), lambda n: (n, 0, 0, 0)),
            pl.BlockSpec((1, Cin), lambda n: (0, 0)),
            pl.BlockSpec((1, Cin), lambda n: (0, 0)),
            pl.BlockSpec((9, Cin, Cp), lambda n: (0, 0, 0)),
            pl.BlockSpec((1, Cp), lambda n: (0, 0)),
        ],
        out_specs=(
            pl.BlockSpec((1, H * W, Cp), lambda n: (n, 0, 0)),
            pl.BlockSpec((1, 8, Cp), lambda n: (n, 0, 0)),
        ),
        compiler_params=_CPARAMS,
    )(xp, a, c, w9, b)


# ---------------------------------------------------------------------------
# Final BatchNorm apply: row-tiled elementwise affine y*a + c.
# ---------------------------------------------------------------------------
def _affine_kernel(y_ref, a_ref, c_ref, o_ref):
    o_ref[...] = y_ref[...] * a_ref[...] + c_ref[...]


def bn_apply(y2d, a, c):
    M, C = y2d.shape
    tm = next((t for t in (256, 128, 64, 32, 16, 8) if M % t == 0), M)
    return pl.pallas_call(
        _affine_kernel,
        out_shape=jax.ShapeDtypeStruct((M, C), jnp.float32),
        grid=(M // tm,),
        in_specs=[
            pl.BlockSpec((tm, C), lambda i: (i, 0)),
            pl.BlockSpec((1, C), lambda i: (0, 0)),
            pl.BlockSpec((1, C), lambda i: (0, 0)),
        ],
        out_specs=pl.BlockSpec((tm, C), lambda i: (i, 0)),
        compiler_params=_CPARAMS,
    )(y2d, a, c)


# ---------------------------------------------------------------------------
# Tiny JAX glue (parameter re-layout and (Cp,)-sized stat reductions only).
# ---------------------------------------------------------------------------
def _bn_affine_from_stats(stats, gamma, beta, count):
    s = jnp.sum(stats[:, 0, :], axis=0)                    # (Cp,)
    sq = jnp.sum(stats[:, 1, :], axis=0)                   # (Cp,)
    mean = s / count
    var = jnp.maximum(sq / count - mean * mean, 0.0)       # biased var (PyTorch BN)
    inv = jax.lax.rsqrt(var + EPS)
    a = gamma * inv
    c = beta - mean * a
    return a.reshape(1, -1), c.reshape(1, -1)


def _prep_conv_weight(w, cin_pad, cout_pad):
    """PyTorch (Cout, Cin, 3, 3) -> (9, cin_pad, cout_pad), tap-major (dy, dx)."""
    co, ci = w.shape[0], w.shape[1]
    wt = jnp.transpose(w, (2, 3, 1, 0)).reshape(9, ci, co)
    return jnp.pad(wt, ((0, 0), (0, cin_pad - ci), (0, cout_pad - co)))


def _pad_vec(v, n):
    return jnp.pad(v, (0, n - v.shape[0]))


# ---------------------------------------------------------------------------
# double_conv forward (NCHW in / NCHW out, like the PyTorch module).
# ---------------------------------------------------------------------------
def double_conv_forward(x_nchw, params):
    N, Cin, H, W = x_nchw.shape
    out_ch = params["w1"].shape[0]
    Cp = _round_up(out_ch, LANE)                 # lane-dense padded channel count
    count = N * H * W

    x = jnp.transpose(x_nchw, (0, 2, 3, 1)).astype(jnp.float32)   # NHWC

    # ---- stage 1: conv1 -> ReLU (+ BN1 partial stats) ----
    w1 = _prep_conv_weight(params["w1"], Cin, Cp)
    b1 = _pad_vec(params["b1"], Cp).reshape(1, Cp)
    a_id = jnp.ones((1, Cin), jnp.float32)       # identity affine for stage 1
    c_id = jnp.zeros((1, Cin), jnp.float32)
    xp = jnp.pad(x, ((0, 0), (1, 1), (1, 1), (0, 0)))   # 1-pixel conv halo only
    y1, st1 = conv3x3_relu_stats(xp, a_id, c_id, w1, b1, H=H, W=W)

    a1, c1 = _bn_affine_from_stats(
        st1, _pad_vec(params["g1"], Cp), _pad_vec(params["be1"], Cp), count)

    # ---- stage 2: BN1 fused as input affine -> conv2 -> ReLU (+ BN2 stats) ----
    w2 = _prep_conv_weight(params["w2"], Cp, Cp)
    b2 = _pad_vec(params["b2"], Cp).reshape(1, Cp)
    y1p = jnp.pad(y1.reshape(N, H, W, Cp), ((0, 0), (1, 1), (1, 1), (0, 0)))
    y2, st2 = conv3x3_relu_stats(y1p, a1, c1, w2, b2, H=H, W=W)

    a2, c2 = _bn_affine_from_stats(
        st2, _pad_vec(params["g2"], Cp), _pad_vec(params["be2"], Cp), count)

    # ---- final BN2 apply ----
    out = bn_apply(y2.reshape(N * H * W, Cp), a2, c2)
    out = out.reshape(N, H, W, Cp)[..., :out_ch]
    return jnp.transpose(out, (0, 3, 1, 2))


# ---------------------------------------------------------------------------
# Pure-JAX reference (matches the nn.Sequential: Conv -> ReLU -> BN, twice).
# ---------------------------------------------------------------------------
def _reference_double_conv(x_nchw, p):
    x = jnp.transpose(x_nchw, (0, 2, 3, 1))

    def stage(x, w, b, g, be):
        wt = jnp.transpose(w, (2, 3, 1, 0))      # HWIO
        y = jax.lax.conv_general_dilated(
            x, wt, window_strides=(1, 1), padding="SAME",
            dimension_numbers=("NHWC", "HWIO", "NHWC"))
        y = jnp.maximum(y + b, 0.0)
        mean = jnp.mean(y, axis=(0, 1, 2))
        var = jnp.var(y, axis=(0, 1, 2))
        return (y - mean) * jax.lax.rsqrt(var + EPS) * g + be

    y = stage(x, p["w1"], p["b1"], p["g1"], p["be1"])
    y = stage(y, p["w2"], p["b2"], p["g2"], p["be2"])
    return jnp.transpose(y, (0, 3, 1, 2))


# ---------------------------------------------------------------------------
if __name__ == "__main__":
    N, in_ch, out_ch, H, W = 2, 4, 8, 16, 16

    key = jax.random.PRNGKey(0)
    kx, kw1, kb1, kg1, kbe1, kw2, kb2, kg2, kbe2 = jax.random.split(key, 9)
    params = dict(
        w1=jax.random.normal(kw1, (out_ch, in_ch, 3, 3), jnp.float32) * 0.2,
        b1=jax.random.normal(kb1, (out_ch,), jnp.float32) * 0.05,
        g1=1.0 + 0.1 * jax.random.normal(kg1, (out_ch,), jnp.float32),
        be1=0.1 * jax.random.normal(kbe1, (out_ch,), jnp.float32),
        w2=jax.random.normal(kw2, (out_ch, out_ch, 3, 3), jnp.float32) * 0.2,
        b2=jax.random.normal(kb2, (out_ch,), jnp.float32) * 0.05,
        g2=1.0 + 0.1 * jax.random.normal(kg2, (out_ch,), jnp.float32),
        be2=0.1 * jax.random.normal(kbe2, (out_ch,), jnp.float32),
    )
    x = jax.random.normal(kx, (N, in_ch, H, W), jnp.float32)

    fwd = jax.jit(double_conv_forward)
    out = fwd(x, params)
    jax.block_until_ready(out)

    assert out.shape == (N, out_ch, H, W), out.shape
    assert bool(jnp.all(jnp.isfinite(out)))

    ref = _reference_double_conv(x, params)
    err = float(jnp.max(jnp.abs(out - ref)))
    assert err < 2e-3, f"max abs error vs reference: {err}"

    print("KERNEL_OK")
</pallas_src>

<mosaic_0001>
module attributes {stable_mosaic.version = 11 : i64} {
  func.func @_conv3x3_fused_kernel(%arg0: i32, %arg1: memref<1x18x18x4xf32, #tpu.memory_space<vmem>>, %arg2: memref<1x4xf32, #tpu.memory_space<vmem>>, %arg3: memref<1x4xf32, #tpu.memory_space<vmem>>, %arg4: memref<9x4x128xf32, #tpu.memory_space<vmem>>, %arg5: memref<1x128xf32, #tpu.memory_space<vmem>>, %arg6: memref<1x256x128xf32, #tpu.memory_space<vmem>>, %arg7: memref<1x8x128xf32, #tpu.memory_space<vmem>>) attributes {dimension_semantics = [#tpu.dimension_semantics<parallel>], iteration_bounds = array<i64: 2>, scalar_prefetch = 0 : i64, scratch_operands = 0 : i64, tpu.core_type = #tpu.core_type<tc>, window_params = [{transform_indices = @transform_0, window_bounds = array<i64: 1, 18, 18, 4>}, {pipeline_mode = #tpu.pipeline_mode<synchronous>, transform_indices = @transform_1, window_bounds = array<i64: 1, 4>}, {pipeline_mode = #tpu.pipeline_mode<synchronous>, transform_indices = @transform_2, window_bounds = array<i64: 1, 4>}, {pipeline_mode = #tpu.pipeline_mode<synchronous>, transform_indices = @transform_3, window_bounds = array<i64: 9, 4, 128>}, {pipeline_mode = #tpu.pipeline_mode<synchronous>, transform_indices = @transform_4, window_bounds = array<i64: 1, 128>}, {transform_indices = @transform_5, window_bounds = array<i64: 1, 256, 128>}, {transform_indices = @transform_6, window_bounds = array<i64: 1, 8, 128>}]} {
    %c0 = arith.constant 0 : index
    %c0_0 = arith.constant 0 : index
    %c0_1 = arith.constant 0 : index
    %c0_2 = arith.constant 0 : index
    %0 = vector.load %arg1[%c0, %c0_0, %c0_1, %c0_2] : memref<1x18x18x4xf32, #tpu.memory_space<vmem>>, vector<1x18x18x4xf32>
    %1 = vector.shape_cast %0 : vector<1x18x18x4xf32> to vector<18x18x4xf32>
    %2 = tpu.iota {dimensions = array<i32: 0>} : vector<18x18x4xi32>
    %3 = tpu.iota {dimensions = array<i32: 1>} : vector<18x18x4xi32>
    %c1_i32 = arith.constant 1 : i32
    %4 = vector.broadcast %c1_i32 : i32 to vector<18x18x4xi32>
    %5 = arith.cmpi sge, %2, %4 : vector<18x18x4xi32>
    %c16_i32 = arith.constant 16 : i32
    %6 = vector.broadcast %c16_i32 : i32 to vector<18x18x4xi32>
    %7 = arith.cmpi sle, %2, %6 : vector<18x18x4xi32>
    %8 = arith.andi %5, %7 : vector<18x18x4xi1>
    %c1_i32_3 = arith.constant 1 : i32
    %9 = vector.broadcast %c1_i32_3 : i32 to vector<18x18x4xi32>
    %10 = arith.cmpi sge, %3, %9 : vector<18x18x4xi32>
    %11 = arith.andi %8, %10 : vector<18x18x4xi1>
    %c16_i32_4 = arith.constant 16 : i32
    %12 = vector.broadcast %c16_i32_4 : i32 to vector<18x18x4xi32>
    %13 = arith.cmpi sle, %3, %12 : vector<18x18x4xi32>
    %14 = arith.andi %11, %13 : vector<18x18x4xi1>
    %c0_5 = arith.constant 0 : index
    %c0_6 = arith.constant 0 : index
    %15 = vector.load %arg2[%c0_5, %c0_6] : memref<1x4xf32, #tpu.memory_space<vmem>>, vector<1x4xf32>
    %16 = vector.shape_cast %15 : vector<1x4xf32> to vector<1x1x4xf32>
    %17 = vector.broadcast %16 : vector<1x1x4xf32> to vector<18x18x4xf32>
    %18 = arith.mulf %1, %17 : vector<18x18x4xf32>
    %c0_7 = arith.constant 0 : index
    %c0_8 = arith.constant 0 : index
    %19 = vector.load %arg3[%c0_7, %c0_8] : memref<1x4xf32, #tpu.memory_space<vmem>>, vector<1x4xf32>
    %20 = vector.shape_cast %19 : vector<1x4xf32> to vector<1x1x4xf32>
    %21 = vector.broadcast %20 : vector<1x1x4xf32> to vector<18x18x4xf32>
    %22 = arith.addf %18, %21 : vector<18x18x4xf32>
    %cst = arith.constant 0.000000e+00 : f32
    %23 = vector.broadcast %cst : f32 to vector<18x18x4xf32>
    %24 = arith.select %14, %22, %23 : vector<18x18x4xi1>, vector<18x18x4xf32>
    %cst_9 = arith.constant 0.000000e+00 : f32
    %25 = vector.broadcast %cst_9 : f32 to vector<256x128xf32>
    %26 = vector.extract_strided_slice %24 {offsets = [0, 0, 0], sizes = [16, 16, 4], strides = [1, 1, 1]} : vector<18x18x4xf32> to vector<16x16x4xf32>
    %27 = vector.shape_cast %26 : vector<16x16x4xf32> to vector<256x4xf32>
    %c0_10 = arith.constant 0 : index
    %c0_11 = arith.constant 0 : index
    %c0_12 = arith.constant 0 : index
    %28 = vector.load %arg4[%c0_10, %c0_11, %c0_12] : memref<9x4x128xf32, #tpu.memory_space<vmem>>, vector<1x4x128xf32>
    %29 = vector.shape_cast %28 : vector<1x4x128xf32> to vector<4x128xf32>
    %cst_13 = arith.constant dense<0.000000e+00> : vector<256x128xf32>
    %30 = tpu.matmul %27, %29, %cst_13 {dimension_numbers = #tpu.dot_dimension_numbers<[1], [0], [0], [1], [0, 0, 1, 1], [], []>} : vector<256x4xf32>, vector<4x128xf32>, vector<256x128xf32> -> vector<256x128xf32>
    %31 = arith.addf %25, %30 : vector<256x128xf32>
    %32 = vector.extract_strided_slice %24 {offsets = [0, 1, 0], sizes = [16, 16, 4], strides = [1, 1, 1]} : vector<18x18x4xf32> to vector<16x16x4xf32>
    %33 = vector.shape_cast %32 : vector<16x16x4xf32> to vector<256x4xf32>
    %c1 = arith.constant 1 : index
    %c0_14 = arith.constant 0 : index
    %c0_15 = arith.constant 0 : index
    %34 = vector.load %arg4[%c1, %c0_14, %c0_15] : memref<9x4x128xf32, #tpu.memory_space<vmem>>, vector<1x4x128xf32>
    %35 = vector.shape_cast %34 : vector<1x4x128xf32> to vector<4x128xf32>
    %cst_16 = arith.constant dense<0.000000e+00> : vector<256x128xf32>
    %36 = tpu.matmul %33, %35, %cst_16 {dimension_numbers = #tpu.dot_dimension_numbers<[1], [0], [0], [1], [0, 0, 1, 1], [], []>} : vector<256x4xf32>, vector<4x128xf32>, vector<256x128xf32> -> vector<256x128xf32>
    %37 = arith.addf %31, %36 : vector<256x128xf32>
    %38 = vector.extract_strided_slice %24 {offsets = [0, 2, 0], sizes = [16, 16, 4], strides = [1, 1, 1]} : vector<18x18x4xf32> to vector<16x16x4xf32>
    %39 = vector.shape_cast %38 : vector<16x16x4xf32> to vector<256x4xf32>
    %c2 = arith.constant 2 : index
    %c0_17 = arith.constant 0 : index
    %c0_18 = arith.constant 0 : index
    %40 = vector.load %arg4[%c2, %c0_17, %c0_18] : memref<9x4x128xf32, #tpu.memory_space<vmem>>, vector<1x4x128xf32>
    %41 = vector.shape_cast %40 : vector<1x4x128xf32> to vector<4x128xf32>
    %cst_19 = arith.constant dense<0.000000e+00> : vector<256x128xf32>
    %42 = tpu.matmul %39, %41, %cst_19 {dimension_numbers = #tpu.dot_dimension_numbers<[1], [0], [0], [1], [0, 0, 1, 1], [], []>} : vector<256x4xf32>, vector<4x128xf32>, vector<256x128xf32> -> vector<256x128xf32>
    %43 = arith.addf %37, %42 : vector<256x128xf32>
    %44 = vector.extract_strided_slice %24 {offsets = [1, 0, 0], sizes = [16, 16, 4], strides = [1, 1, 1]} : vector<18x18x4xf32> to vector<16x16x4xf32>
    %45 = vector.shape_cast %44 : vector<16x16x4xf32> to vector<256x4xf32>
    %c3 = arith.constant 3 : index
    %c0_20 = arith.constant 0 : index
    %c0_21 = arith.constant 0 : index
    %46 = vector.load %arg4[%c3, %c0_20, %c0_21] : memref<9x4x128xf32, #tpu.memory_space<vmem>>, vector<1x4x128xf32>
    %47 = vector.shape_cast %46 : vector<1x4x128xf32> to vector<4x128xf32>
    %cst_22 = arith.constant dense<0.000000e+00> : vector<256x128xf32>
    %48 = tpu.matmul %45, %47, %cst_22 {dimension_numbers = #tpu.dot_dimension_numbers<[1], [0], [0], [1], [0, 0, 1, 1], [], []>} : vector<256x4xf32>, vector<4x128xf32>, vector<256x128xf32> -> vector<256x128xf32>
    %49 = arith.addf %43, %48 : vector<256x128xf32>
    %50 = vector.extract_strided_slice %24 {offsets = [1, 1, 0], sizes = [16, 16, 4], strides = [1, 1, 1]} : vector<18x18x4xf32> to vector<16x16x4xf32>
    %51 = vector.shape_cast %50 : vector<16x16x4xf32> to vector<256x4xf32>
    %c4 = arith.constant 4 : index
    %c0_23 = arith.constant 0 : index
    %c0_24 = arith.constant 0 : index
    %52 = vector.load %arg4[%c4, %c0_23, %c0_24] : memref<9x4x128xf32, #tpu.memory_space<vmem>>, vector<1x4x128xf32>
    %53 = vector.shape_cast %52 : vector<1x4x128xf32> to vector<4x128xf32>
    %cst_25 = arith.constant dense<0.000000e+00> : vector<256x128xf32>
    %54 = tpu.matmul %51, %53, %cst_25 {dimension_numbers = #tpu.dot_dimension_numbers<[1], [0], [0], [1], [0, 0, 1, 1], [], []>} : vector<256x4xf32>, vector<4x128xf32>, vector<256x128xf32> -> vector<256x128xf32>
    %55 = arith.addf %49, %54 : vector<256x128xf32>
    %56 = vector.extract_strided_slice %24 {offsets = [1, 2, 0], sizes = [16, 16, 4], strides = [1, 1, 1]} : vector<18x18x4xf32> to vector<16x16x4xf32>
    %57 = vector.shape_cast %56 : vector<16x16x4xf32> to vector<256x4xf32>
    %c5 = arith.constant 5 : index
    %c0_26 = arith.constant 0 : index
    %c0_27 = arith.constant 0 : index
    %58 = vector.load %arg4[%c5, %c0_26, %c0_27] : memref<9x4x128xf32, #tpu.memory_space<vmem>>, vector<1x4x128xf32>
    %59 = vector.shape_cast %58 : vector<1x4x128xf32> to vector<4x128xf32>
    %cst_28 = arith.constant dense<0.000000e+00> : vector<256x128xf32>
    %60 = tpu.matmul %57, %59, %cst_28 {dimension_numbers = #tpu.dot_dimension_numbers<[1], [0], [0], [1], [0, 0, 1, 1], [], []>} : vector<256x4xf32>, vector<4x128xf32>, vector<256x128xf32> -> vector<256x128xf32>
    %61 = arith.addf %55, %60 : vector<256x128xf32>
    %62 = vector.extract_strided_slice %24 {offsets = [2, 0, 0], sizes = [16, 16, 4], strides = [1, 1, 1]} : vector<18x18x4xf32> to vector<16x16x4xf32>
    %63 = vector.shape_cast %62 : vector<16x16x4xf32> to vector<256x4xf32>
    %c6 = arith.constant 6 : index
    %c0_29 = arith.constant 0 : index
    %c0_30 = arith.constant 0 : index
    %64 = vector.load %arg4[%c6, %c0_29, %c0_30] : memref<9x4x128xf32, #tpu.memory_space<vmem>>, vector<1x4x128xf32>
    %65 = vector.shape_cast %64 : vector<1x4x128xf32> to vector<4x128xf32>
    %cst_31 = arith.constant dense<0.000000e+00> : vector<256x128xf32>
    %66 = tpu.matmul %63, %65, %cst_31 {dimension_numbers = #tpu.dot_dimension_numbers<[1], [0], [0], [1], [0, 0, 1, 1], [], []>} : vector<256x4xf32>, vector<4x128xf32>, vector<256x128xf32> -> vector<256x128xf32>
    %67 = arith.addf %61, %66 : vector<256x128xf32>
    %68 = vector.extract_strided_slice %24 {offsets = [2, 1, 0], sizes = [16, 16, 4], strides = [1, 1, 1]} : vector<18x18x4xf32> to vector<16x16x4xf32>
    %69 = vector.shape_cast %68 : vector<16x16x4xf32> to vector<256x4xf32>
    %c7 = arith.constant 7 : index
    %c0_32 = arith.constant 0 : index
    %c0_33 = arith.constant 0 : index
    %70 = vector.load %arg4[%c7, %c0_32, %c0_33] : memref<9x4x128xf32, #tpu.memory_space<vmem>>, vector<1x4x128xf32>
    %71 = vector.shape_cast %70 : vector<1x4x128xf32> to vector<4x128xf32>
    %cst_34 = arith.constant dense<0.000000e+00> : vector<256x128xf32>
    %72 = tpu.matmul %69, %71, %cst_34 {dimension_numbers = #tpu.dot_dimension_numbers<[1], [0], [0], [1], [0, 0, 1, 1], [], []>} : vector<256x4xf32>, vector<4x128xf32>, vector<256x128xf32> -> vector<256x128xf32>
    %73 = arith.addf %67, %72 : vector<256x128xf32>
    %74 = vector.extract_strided_slice %24 {offsets = [2, 2, 0], sizes = [16, 16, 4], strides = [1, 1, 1]} : vector<18x18x4xf32> to vector<16x16x4xf32>
    %75 = vector.shape_cast %74 : vector<16x16x4xf32> to vector<256x4xf32>
    %c8 = arith.constant 8 : index
    %c0_35 = arith.constant 0 : index
    %c0_36 = arith.constant 0 : index
    %76 = vector.load %arg4[%c8, %c0_35, %c0_36] : memref<9x4x128xf32, #tpu.memory_space<vmem>>, vector<1x4x128xf32>
    %77 = vector.shape_cast %76 : vector<1x4x128xf32> to vector<4x128xf32>
    %cst_37 = arith.constant dense<0.000000e+00> : vector<256x128xf32>
    %78 = tpu.matmul %75, %77, %cst_37 {dimension_numbers = #tpu.dot_dimension_numbers<[1], [0], [0], [1], [0, 0, 1, 1], [], []>} : vector<256x4xf32>, vector<4x128xf32>, vector<256x128xf32> -> vector<256x128xf32>
    %79 = arith.addf %73, %78 : vector<256x128xf32>
    %c0_38 = arith.constant 0 : index
    %c0_39 = arith.constant 0 : index
    %80 = vector.load %arg5[%c0_38, %c0_39] : memref<1x128xf32, #tpu.memory_space<vmem>>, vector<1x128xf32>
    %81 = vector.broadcast %80 : vector<1x128xf32> to vector<256x128xf32>
    %82 = arith.addf %79, %81 : vector<256x128xf32>
    %cst_40 = arith.constant 0.000000e+00 : f32
    %83 = vector.broadcast %cst_40 : f32 to vector<256x128xf32>
    %84 = arith.maximumf %82, %83 : vector<256x128xf32>
    %c0_41 = arith.constant 0 : index
    %c0_42 = arith.constant 0 : index
    %c0_43 = arith.constant 0 : index
    %85 = vector.load %arg6[%c0_41, %c0_42, %c0_43] : memref<1x256x128xf32, #tpu.memory_space<vmem>>, vector<1x256x128xf32>
    %86 = vector.shape_cast %85 : vector<1x256x128xf32> to vector<256x128xf32>
    %87 = vector.shape_cast %84 : vector<256x128xf32> to vector<1x256x128xf32>
    tpu.vector_store %arg6[%c0_41, %c0_42, %c0_43], %87 {strides = array<i32>} : memref<1x256x128xf32, #tpu.memory_space<vmem>>, vector<1x256x128xf32>,
    %cst_44 = arith.constant dense<0.000000e+00> : vector<128xf32>
    %88 = vector.multi_reduction <add>, %84, %cst_44 [0] : vector<256x128xf32> to vector<128xf32>
    %89 = vector.shape_cast %88 : vector<128xf32> to vector<1x128xf32>
    %90 = arith.mulf %84, %84 : vector<256x128xf32>
    %cst_45 = arith.constant dense<0.000000e+00> : vector<128xf32>
    %91 = vector.multi_reduction <add>, %90, %cst_45 [0] : vector<256x128xf32> to vector<128xf32>
    %92 = vector.shape_cast %91 : vector<128xf32> to vector<1x128xf32>
    %cst_46 = arith.constant 0.000000e+00 : f32
    %93 = vector.broadcast %cst_46 : f32 to vector<6x128xf32>
    %94 = tpu.concatenate %89, %92, %93 in 0 : vector<1x128xf32>, vector<1x128xf32>, vector<6x128xf32> -> vector<8x128xf32>
    %c0_47 = arith.constant 0 : index
    %c0_48 = arith.constant 0 : index
    %c0_49 = arith.constant 0 : index
    %95 = vector.load %arg7[%c0_47, %c0_48, %c0_49] : memref<1x8x128xf32, #tpu.memory_space<vmem>>, vector<1x8x128xf32>
    %96 = vector.shape_cast %95 : vector<1x8x128xf32> to vector<8x128xf32>
    %97 = vector.shape_cast %94 : vector<8x128xf32> to vector<1x8x128xf32>
    tpu.vector_store %arg7[%c0_47, %c0_48, %c0_49], %97 {strides = array<i32>} : memref<1x8x128xf32, #tpu.memory_space<vmem>>, vector<1x8x128xf32>,
    return
  }
  func.func @transform_0(%arg0: i32) -> (i32, i32, i32, i32) {
    %c0_i32 = arith.constant 0 : i32
    %c0_i32_0 = arith.constant 0 : i32
    %c0_i32_1 = arith.constant 0 : i32
    %c0_i32_2 = arith.constant 0 : i32
    return %arg0, %c0_i32, %c0_i32_0, %c0_i32_1 : i32, i32, i32, i32
  }
  func.func @transform_1(%arg0: i32) -> (i32, i32) {
    %c0_i32 = arith.constant 0 : i32
    %c0_i32_0 = arith.constant 0 : i32
    %c0_i32_1 = arith.constant 0 : i32
    return %c0_i32, %c0_i32_0 : i32, i32
  }
  func.func @transform_2(%arg0: i32) -> (i32, i32) {
    %c0_i32 = arith.constant 0 : i32
    %c0_i32_0 = arith.constant 0 : i32
    %c0_i32_1 = arith.constant 0 : i32
    return %c0_i32, %c0_i32_0 : i32, i32
  }
  func.func @transform_3(%arg0: i32) -> (i32, i32, i32) {
    %c0_i32 = arith.constant 0 : i32
    %c0_i32_0 = arith.constant 0 : i32
    %c0_i32_1 = arith.constant 0 : i32
    %c0_i32_2 = arith.constant 0 : i32
    return %c0_i32, %c0_i32_0, %c0_i32_1 : i32, i32, i32
  }
  func.func @transform_4(%arg0: i32) -> (i32, i32) {
    %c0_i32 = arith.constant 0 : i32
    %c0_i32_0 = arith.constant 0 : i32
    %c0_i32_1 = arith.constant 0 : i32
    return %c0_i32, %c0_i32_0 : i32, i32
  }
  func.func @transform_5(%arg0: i32) -> (i32, i32, i32) {
    %c0_i32 = arith.constant 0 : i32
    %c0_i32_0 = arith.constant 0 : i32
    %c0_i32_1 = arith.constant 0 : i32
    return %arg0, %c0_i32, %c0_i32_0 : i32, i32, i32
  }
  func.func @transform_6(%arg0: i32) -> (i32, i32, i32) {
    %c0_i32 = arith.constant 0 : i32
    %c0_i32_0 = arith.constant 0 : i32
    %c0_i32_1 = arith.constant 0 : i32
    return %arg0, %c0_i32, %c0_i32_0 : i32, i32, i32
  }
}

module attributes {stable_mosaic.version = 11 : i64} {
  func.func @_conv3x3_fused_kernel(%arg0: i32, %arg1: memref<1x18x18x128xf32, #tpu.memory_space<vmem>>, %arg2: memref<1x128xf32, #tpu.memory_space<vmem>>, %arg3: memref<1x128xf32, #tpu.memory_space<vmem>>, %arg4: memref<9x128x128xf32, #tpu.memory_space<vmem>>, %arg5: memref<1x128xf32, #tpu.memory_space<vmem>>, %arg6: memref<1x256x128xf32, #tpu.memory_space<vmem>>, %arg7: memref<1x8x128xf32, #tpu.memory_space<vmem>>) attributes {dimension_semantics = [#tpu.dimension_semantics<parallel>], iteration_bounds = array<i64: 2>, scalar_prefetch = 0 : i64, scratch_operands = 0 : i64, tpu.core_type = #tpu.core_type<tc>, window_params = [{transform_indices = @transform_0, window_bounds = array<i64: 1, 18, 18, 128>}, {pipeline_mode = #tpu.pipeline_mode<synchronous>, transform_indices = @transform_1, window_bounds = array<i64: 1, 128>}, {pipeline_mode = #tpu.pipeline_mode<synchronous>, transform_indices = @transform_2, window_bounds = array<i64: 1, 128>}, {pipeline_mode = #tpu.pipeline_mode<synchronous>, transform_indices = @transform_3, window_bounds = array<i64: 9, 128, 128>}, {pipeline_mode = #tpu.pipeline_mode<synchronous>, transform_indices = @transform_4, window_bounds = array<i64: 1, 128>}, {transform_indices = @transform_5, window_bounds = array<i64: 1, 256, 128>}, {transform_indices = @transform_6, window_bounds = array<i64: 1, 8, 128>}]} {
    %c0 = arith.constant 0 : index
    %c0_0 = arith.constant 0 : index
    %c0_1 = arith.constant 0 : index
    %c0_2 = arith.constant 0 : index
    %0 = vector.load %arg1[%c0, %c0_0, %c0_1, %c0_2] : memref<1x18x18x128xf32, #tpu.memory_space<vmem>>, vector<1x18x18x128xf32>
    %1 = vector.shape_cast %0 : vector<1x18x18x128xf32> to vector<18x18x128xf32>
    %2 = tpu.iota {dimensions = array<i32: 0>} : vector<18x18x128xi32>
    %3 = tpu.iota {dimensions = array<i32: 1>} : vector<18x18x128xi32>
    %c1_i32 = arith.constant 1 : i32
    %4 = vector.broadcast %c1_i32 : i32 to vector<18x18x128xi32>
    %5 = arith.cmpi sge, %2, %4 : vector<18x18x128xi32>
    %c16_i32 = arith.constant 16 : i32
    %6 = vector.broadcast %c16_i32 : i32 to vector<18x18x128xi32>
    %7 = arith.cmpi sle, %2, %6 : vector<18x18x128xi32>
    %8 = arith.andi %5, %7 : vector<18x18x128xi1>
    %c1_i32_3 = arith.constant 1 : i32
    %9 = vector.broadcast %c1_i32_3 : i32 to vector<18x18x128xi32>
    %10 = arith.cmpi sge, %3, %9 : vector<18x18x128xi32>
    %11 = arith.andi %8, %10 : vector<18x18x128xi1>
    %c16_i32_4 = arith.constant 16 : i32
    %12 = vector.broadcast %c16_i32_4 : i32 to vector<18x18x128xi32>
    %13 = arith.cmpi sle, %3, %12 : vector<18x18x128xi32>
    %14 = arith.andi %11, %13 : vector<18x18x128xi1>
    %c0_5 = arith.constant 0 : index
    %c0_6 = arith.constant 0 : index
    %15 = vector.load %arg2[%c0_5, %c0_6] : memref<1x128xf32, #tpu.memory_space<vmem>>, vector<1x128xf32>
    %16 = vector.shape_cast %15 : vector<1x128xf32> to vector<1x1x128xf32>
    %17 = vector.broadcast %16 : vector<1x1x128xf32> to vector<18x18x128xf32>
    %18 = arith.mulf %1, %17 : vector<18x18x128xf32>
    %c0_7 = arith.constant 0 : index
    %c0_8 = arith.constant 0 : index
    %19 = vector.load %arg3[%c0_7, %c0_8] : memref<1x128xf32, #tpu.memory_space<vmem>>, vector<1x128xf32>
    %20 = vector.shape_cast %19 : vector<1x128xf32> to vector<1x1x128xf32>
    %21 = vector.broadcast %20 : vector<1x1x128xf32> to vector<18x18x128xf32>
    %22 = arith.addf %18, %21 : vector<18x18x128xf32>
    %cst = arith.constant 0.000000e+00 : f32
    %23 = vector.broadcast %cst : f32 to vector<18x18x128xf32>
    %24 = arith.select %14, %22, %23 : vector<18x18x128xi1>, vector<18x18x128xf32>
    %cst_9 = arith.constant 0.000000e+00 : f32
    %25 = vector.broadcast %cst_9 : f32 to vector<256x128xf32>
    %26 = vector.extract_strided_slice %24 {offsets = [0, 0, 0], sizes = [16, 16, 128], strides = [1, 1, 1]} : vector<18x18x128xf32> to vector<16x16x128xf32>
    %27 = vector.shape_cast %26 : vector<16x16x128xf32> to vector<256x128xf32>
    %c0_10 = arith.constant 0 : index
    %c0_11 = arith.constant 0 : index
    %c0_12 = arith.constant 0 : index
    %28 = vector.load %arg4[%c0_10, %c0_11, %c0_12] : memref<9x128x128xf32, #tpu.memory_space<vmem>>, vector<1x128x128xf32>
    %29 = vector.shape_cast %28 : vector<1x128x128xf32> to vector<128x128xf32>
    %cst_13 = arith.constant dense<0.000000e+00> : vector<256x128xf32>
    %30 = tpu.matmul %27, %29, %cst_13 {dimension_numbers = #tpu.dot_dimension_numbers<[1], [0], [0], [1], [0, 0, 1, 1], [], []>} : vector<256x128xf32>, vector<128x128xf32>, vector<256x128xf32> -> vector<256x128xf32>
    %31 = arith.addf %25, %30 : vector<256x128xf32>
    %32 = vector.extract_strided_slice %24 {offsets = [0, 1, 0], sizes = [16, 16, 128], strides = [1, 1, 1]} : vector<18x18x128xf32> to vector<16x16x128xf32>
    %33 = vector.shape_cast %32 : vector<16x16x128xf32> to vector<256x128xf32>
    %c1 = arith.constant 1 : index
    %c0_14 = arith.constant 0 : index
    %c0_15 = arith.constant 0 : index
    %34 = vector.load %arg4[%c1, %c0_14, %c0_15] : memref<9x128x128xf32, #tpu.memory_space<vmem>>, vector<1x128x128xf32>
    %35 = vector.shape_cast %34 : vector<1x128x128xf32> to vector<128x128xf32>
    %cst_16 = arith.constant dense<0.000000e+00> : vector<256x128xf32>
    %36 = tpu.matmul %33, %35, %cst_16 {dimension_numbers = #tpu.dot_dimension_numbers<[1], [0], [0], [1], [0, 0, 1, 1], [], []>} : vector<256x128xf32>, vector<128x128xf32>, vector<256x128xf32> -> vector<256x128xf32>
    %37 = arith.addf %31, %36 : vector<256x128xf32>
    %38 = vector.extract_strided_slice %24 {offsets = [0, 2, 0], sizes = [16, 16, 128], strides = [1, 1, 1]} : vector<18x18x128xf32> to vector<16x16x128xf32>
    %39 = vector.shape_cast %38 : vector<16x16x128xf32> to vector<256x128xf32>
    %c2 = arith.constant 2 : index
    %c0_17 = arith.constant 0 : index
    %c0_18 = arith.constant 0 : index
    %40 = vector.load %arg4[%c2, %c0_17, %c0_18] : memref<9x128x128xf32, #tpu.memory_space<vmem>>, vector<1x128x128xf32>
    %41 = vector.shape_cast %40 : vector<1x128x128xf32> to vector<128x128xf32>
    %cst_19 = arith.constant dense<0.000000e+00> : vector<256x128xf32>
    %42 = tpu.matmul %39, %41, %cst_19 {dimension_numbers = #tpu.dot_dimension_numbers<[1], [0], [0], [1], [0, 0, 1, 1], [], []>} : vector<256x128xf32>, vector<128x128xf32>, vector<256x128xf32> -> vector<256x128xf32>
    %43 = arith.addf %37, %42 : vector<256x128xf32>
    %44 = vector.extract_strided_slice %24 {offsets = [1, 0, 0], sizes = [16, 16, 128], strides = [1, 1, 1]} : vector<18x18x128xf32> to vector<16x16x128xf32>
    %45 = vector.shape_cast %44 : vector<16x16x128xf32> to vector<256x128xf32>
    %c3 = arith.constant 3 : index
    %c0_20 = arith.constant 0 : index
    %c0_21 = arith.constant 0 : index
    %46 = vector.load %arg4[%c3, %c0_20, %c0_21] : memref<9x128x128xf32, #tpu.memory_space<vmem>>, vector<1x128x128xf32>
    %47 = vector.shape_cast %46 : vector<1x128x128xf32> to vector<128x128xf32>
    %cst_22 = arith.constant dense<0.000000e+00> : vector<256x128xf32>
    %48 = tpu.matmul %45, %47, %cst_22 {dimension_numbers = #tpu.dot_dimension_numbers<[1], [0], [0], [1], [0, 0, 1, 1], [], []>} : vector<256x128xf32>, vector<128x128xf32>, vector<256x128xf32> -> vector<256x128xf32>
    %49 = arith.addf %43, %48 : vector<256x128xf32>
    %50 = vector.extract_strided_slice %24 {offsets = [1, 1, 0], sizes = [16, 16, 128], strides = [1, 1, 1]} : vector<18x18x128xf32> to vector<16x16x128xf32>
    %51 = vector.shape_cast %50 : vector<16x16x128xf32> to vector<256x128xf32>
    %c4 = arith.constant 4 : index
    %c0_23 = arith.constant 0 : index
    %c0_24 = arith.constant 0 : index
    %52 = vector.load %arg4[%c4, %c0_23, %c0_24] : memref<9x128x128xf32, #tpu.memory_space<vmem>>, vector<1x128x128xf32>
    %53 = vector.shape_cast %52 : vector<1x128x128xf32> to vector<128x128xf32>
    %cst_25 = arith.constant dense<0.000000e+00> : vector<256x128xf32>
    %54 = tpu.matmul %51, %53, %cst_25 {dimension_numbers = #tpu.dot_dimension_numbers<[1], [0], [0], [1], [0, 0, 1, 1], [], []>} : vector<256x128xf32>, vector<128x128xf32>, vector<256x128xf32> -> vector<256x128xf32>
    %55 = arith.addf %49, %54 : vector<256x128xf32>
    %56 = vector.extract_strided_slice %24 {offsets = [1, 2, 0], sizes = [16, 16, 128], strides = [1, 1, 1]} : vector<18x18x128xf32> to vector<16x16x128xf32>
    %57 = vector.shape_cast %56 : vector<16x16x128xf32> to vector<256x128xf32>
    %c5 = arith.constant 5 : index
    %c0_26 = arith.constant 0 : index
    %c0_27 = arith.constant 0 : index
    %58 = vector.load %arg4[%c5, %c0_26, %c0_27] : memref<9x128x128xf32, #tpu.memory_space<vmem>>, vector<1x128x128xf32>
    %59 = vector.shape_cast %58 : vector<1x128x128xf32> to vector<128x128xf32>
    %cst_28 = arith.constant dense<0.000000e+00> : vector<256x128xf32>
    %60 = tpu.matmul %57, %59, %cst_28 {dimension_numbers = #tpu.dot_dimension_numbers<[1], [0], [0], [1], [0, 0, 1, 1], [], []>} : vector<256x128xf32>, vector<128x128xf32>, vector<256x128xf32> -> vector<256x128xf32>
    %61 = arith.addf %55, %60 : vector<256x128xf32>
    %62 = vector.extract_strided_slice %24 {offsets = [2, 0, 0], sizes = [16, 16, 128], strides = [1, 1, 1]} : vector<18x18x128xf32> to vector<16x16x128xf32>
    %63 = vector.shape_cast %62 : vector<16x16x128xf32> to vector<256x128xf32>
    %c6 = arith.constant 6 : index
    %c0_29 = arith.constant 0 : index
    %c0_30 = arith.constant 0 : index
    %64 = vector.load %arg4[%c6, %c0_29, %c0_30] : memref<9x128x128xf32, #tpu.memory_space<vmem>>, vector<1x128x128xf32>
    %65 = vector.shape_cast %64 : vector<1x128x128xf32> to vector<128x128xf32>
    %cst_31 = arith.constant dense<0.000000e+00> : vector<256x128xf32>
    %66 = tpu.matmul %63, %65, %cst_31 {dimension_numbers = #tpu.dot_dimension_numbers<[1], [0], [0], [1], [0, 0, 1, 1], [], []>} : vector<256x128xf32>, vector<128x128xf32>, vector<256x128xf32> -> vector<256x128xf32>
    %67 = arith.addf %61, %66 : vector<256x128xf32>
    %68 = vector.extract_strided_slice %24 {offsets = [2, 1, 0], sizes = [16, 16, 128], strides = [1, 1, 1]} : vector<18x18x128xf32> to vector<16x16x128xf32>
    %69 = vector.shape_cast %68 : vector<16x16x128xf32> to vector<256x128xf32>
    %c7 = arith.constant 7 : index
    %c0_32 = arith.constant 0 : index
    %c0_33 = arith.constant 0 : index
    %70 = vector.load %arg4[%c7, %c0_32, %c0_33] : memref<9x128x128xf32, #tpu.memory_space<vmem>>, vector<1x128x128xf32>
    %71 = vector.shape_cast %70 : vector<1x128x128xf32> to vector<128x128xf32>
    %cst_34 = arith.constant dense<0.000000e+00> : vector<256x128xf32>
    %72 = tpu.matmul %69, %71, %cst_34 {dimension_numbers = #tpu.dot_dimension_numbers<[1], [0], [0], [1], [0, 0, 1, 1], [], []>} : vector<256x128xf32>, vector<128x128xf32>, vector<256x128xf32> -> vector<256x128xf32>
    %73 = arith.addf %67, %72 : vector<256x128xf32>
    %74 = vector.extract_strided_slice %24 {offsets = [2, 2, 0], sizes = [16, 16, 128], strides = [1, 1, 1]} : vector<18x18x128xf32> to vector<16x16x128xf32>
    %75 = vector.shape_cast %74 : vector<16x16x128xf32> to vector<256x128xf32>
    %c8 = arith.constant 8 : index
    %c0_35 = arith.constant 0 : index
    %c0_36 = arith.constant 0 : index
    %76 = vector.load %arg4[%c8, %c0_35, %c0_36] : memref<9x128x128xf32, #tpu.memory_space<vmem>>, vector<1x128x128xf32>
    %77 = vector.shape_cast %76 : vector<1x128x128xf32> to vector<128x128xf32>
    %cst_37 = arith.constant dense<0.000000e+00> : vector<256x128xf32>
    %78 = tpu.matmul %75, %77, %cst_37 {dimension_numbers = #tpu.dot_dimension_numbers<[1], [0], [0], [1], [0, 0, 1, 1], [], []>} : vector<256x128xf32>, vector<128x128xf32>, vector<256x128xf32> -> vector<256x128xf32>
    %79 = arith.addf %73, %78 : vector<256x128xf32>
    %c0_38 = arith.constant 0 : index
    %c0_39 = arith.constant 0 : index
    %80 = vector.load %arg5[%c0_38, %c0_39] : memref<1x128xf32, #tpu.memory_space<vmem>>, vector<1x128xf32>
    %81 = vector.broadcast %80 : vector<1x128xf32> to vector<256x128xf32>
    %82 = arith.addf %79, %81 : vector<256x128xf32>
    %cst_40 = arith.constant 0.000000e+00 : f32
    %83 = vector.broadcast %cst_40 : f32 to vector<256x128xf32>
    %84 = arith.maximumf %82, %83 : vector<256x128xf32>
    %c0_41 = arith.constant 0 : index
    %c0_42 = arith.constant 0 : index
    %c0_43 = arith.constant 0 : index
    %85 = vector.load %arg6[%c0_41, %c0_42, %c0_43] : memref<1x256x128xf32, #tpu.memory_space<vmem>>, vector<1x256x128xf32>
    %86 = vector.shape_cast %85 : vector<1x256x128xf32> to vector<256x128xf32>
    %87 = vector.shape_cast %84 : vector<256x128xf32> to vector<1x256x128xf32>
    tpu.vector_store %arg6[%c0_41, %c0_42, %c0_43], %87 {strides = array<i32>} : memref<1x256x128xf32, #tpu.memory_space<vmem>>, vector<1x256x128xf32>,
    %cst_44 = arith.constant dense<0.000000e+00> : vector<128xf32>
    %88 = vector.multi_reduction <add>, %84, %cst_44 [0] : vector<256x128xf32> to vector<128xf32>
    %89 = vector.shape_cast %88 : vector<128xf32> to vector<1x128xf32>
    %90 = arith.mulf %84, %84 : vector<256x128xf32>
    %cst_45 = arith.constant dense<0.000000e+00> : vector<128xf32>
    %91 = vector.multi_reduction <add>, %90, %cst_45 [0] : vector<256x128xf32> to vector<128xf32>
    %92 = vector.shape_cast %91 : vector<128xf32> to vector<1x128xf32>
    %cst_46 = arith.constant 0.000000e+00 : f32
    %93 = vector.broadcast %cst_46 : f32 to vector<6x128xf32>
    %94 = tpu.concatenate %89, %92, %93 in 0 : vector<1x128xf32>, vector<1x128xf32>, vector<6x128xf32> -> vector<8x128xf32>
    %c0_47 = arith.constant 0 : index
    %c0_48 = arith.constant 0 : index
    %c0_49 = arith.constant 0 : index
    %95 = vector.load %arg7[%c0_47, %c0_48, %c0_49] : memref<1x8x128xf32, #tpu.memory_space<vmem>>, vector<1x8x128xf32>
    %96 = vector.shape_cast %95 : vector<1x8x128xf32> to vector<8x128xf32>
    %97 = vector.shape_cast %94 : vector<8x128xf32> to vector<1x8x128xf32>
    tpu.vector_store %arg7[%c0_47, %c0_48, %c0_49], %97 {strides = array<i32>} : memref<1x8x128xf32, #tpu.memory_space<vmem>>, vector<1x8x128xf32>,
    return
  }
  func.func @transform_0(%arg0: i32) -> (i32, i32, i32, i32) {
    %c0_i32 = arith.constant 0 : i32
    %c0_i32_0 = arith.constant 0 : i32
    %c0_i32_1 = arith.constant 0 : i32
    %c0_i32_2 = arith.constant 0 : i32
    return %arg0, %c0_i32, %c0_i32_0, %c0_i32_1 : i32, i32, i32, i32
  }
  func.func @transform_1(%arg0: i32) -> (i32, i32) {
    %c0_i32 = arith.constant 0 : i32
    %c0_i32_0 = arith.constant 0 : i32
    %c0_i32_1 = arith.constant 0 : i32
    return %c0_i32, %c0_i32_0 : i32, i32
  }
  func.func @transform_2(%arg0: i32) -> (i32, i32) {
    %c0_i32 = arith.constant 0 : i32
    %c0_i32_0 = arith.constant 0 : i32
    %c0_i32_1 = arith.constant 0 : i32
    return %c0_i32, %c0_i32_0 : i32, i32
  }
  func.func @transform_3(%arg0: i32) -> (i32, i32, i32) {
    %c0_i32 = arith.constant 0 : i32
    %c0_i32_0 = arith.constant 0 : i32
    %c0_i32_1 = arith.constant 0 : i32
    %c0_i32_2 = arith.constant 0 : i32
    return %c0_i32, %c0_i32_0, %c0_i32_1 : i32, i32, i32
  }
  func.func @transform_4(%arg0: i32) -> (i32, i32) {
    %c0_i32 = arith.constant 0 : i32
    %c0_i32_0 = arith.constant 0 : i32
    %c0_i32_1 = arith.constant 0 : i32
    return %c0_i32, %c0_i32_0 : i32, i32
  }
  func.func @transform_5(%arg0: i32) -> (i32, i32, i32) {
    %c0_i32 = arith.constant 0 : i32
    %c0_i32_0 = arith.constant 0 : i32
    %c0_i32_1 = arith.constant 0 : i32
    return %arg0, %c0_i32, %c0_i32_0 : i32, i32, i32
  }
  func.func @transform_6(%arg0: i32) -> (i32, i32, i32) {
    %c0_i32 = arith.constant 0 : i32
    %c0_i32_0 = arith.constant 0 : i32
    %c0_i32_1 = arith.constant 0 : i32
    return %arg0, %c0_i32, %c0_i32_0 : i32, i32, i32
  }
}

module attributes {stable_mosaic.version = 11 : i64} {
  func.func @_affine_kernel(%arg0: i32, %arg1: memref<256x128xf32, #tpu.memory_space<vmem>>, %arg2: memref<1x128xf32, #tpu.memory_space<vmem>>, %arg3: memref<1x128xf32, #tpu.memory_space<vmem>>, %arg4: memref<256x128xf32, #tpu.memory_space<vmem>>) attributes {dimension_semantics = [#tpu.dimension_semantics<parallel>], iteration_bounds = array<i64: 2>, scalar_prefetch = 0 : i64, scratch_operands = 0 : i64, tpu.core_type = #tpu.core_type<tc>, window_params = [{transform_indices = @transform_0, window_bounds = array<i64: 256, 128>}, {pipeline_mode = #tpu.pipeline_mode<synchronous>, transform_indices = @transform_1, window_bounds = array<i64: 1, 128>}, {pipeline_mode = #tpu.pipeline_mode<synchronous>, transform_indices = @transform_2, window_bounds = array<i64: 1, 128>}, {transform_indices = @transform_3, window_bounds = array<i64: 256, 128>}]} {
    %c0 = arith.constant 0 : index
    %c0_0 = arith.constant 0 : index
    %0 = vector.load %arg1[%c0, %c0_0] : memref<256x128xf32, #tpu.memory_space<vmem>>, vector<256x128xf32>
    %c0_1 = arith.constant 0 : index
    %c0_2 = arith.constant 0 : index
    %1 = vector.load %arg2[%c0_1, %c0_2] : memref<1x128xf32, #tpu.memory_space<vmem>>, vector<1x128xf32>
    %2 = vector.broadcast %1 : vector<1x128xf32> to vector<256x128xf32>
    %3 = arith.mulf %0, %2 : vector<256x128xf32>
    %c0_3 = arith.constant 0 : index
    %c0_4 = arith.constant 0 : index
    %4 = vector.load %arg3[%c0_3, %c0_4] : memref<1x128xf32, #tpu.memory_space<vmem>>, vector<1x128xf32>
    %5 = vector.broadcast %4 : vector<1x128xf32> to vector<256x128xf32>
    %6 = arith.addf %3, %5 : vector<256x128xf32>
    %c0_5 = arith.constant 0 : index
    %c0_6 = arith.constant 0 : index
    %7 = vector.load %arg4[%c0_5, %c0_6] : memref<256x128xf32, #tpu.memory_space<vmem>>, vector<256x128xf32>
    tpu.vector_store %arg4[%c0_5, %c0_6], %6 {strides = array<i32>} : memref<256x128xf32, #tpu.memory_space<vmem>>, vector<256x128xf32>,
    return
  }
  func.func @transform_0(%arg0: i32) -> (i32, i32) {
    %c0_i32 = arith.constant 0 : i32
    %c0_i32_0 = arith.constant 0 : i32
    return %arg0, %c0_i32 : i32, i32
  }
  func.func @transform_1(%arg0: i32) -> (i32, i32) {
    %c0_i32 = arith.constant 0 : i32
    %c0_i32_0 = arith.constant 0 : i32
    %c0_i32_1 = arith.constant 0 : i32
    return %c0_i32, %c0_i32_0 : i32, i32
  }
  func.func @transform_2(%arg0: i32) -> (i32, i32) {
    %c0_i32 = arith.constant 0 : i32
    %c0_i32_0 = arith.constant 0 : i32
    %c0_i32_1 = arith.constant 0 : i32
    return %c0_i32, %c0_i32_0 : i32, i32
  }
  func.func @transform_3(%arg0: i32) -> (i32, i32) {
    %c0_i32 = arith.constant 0 : i32
    %c0_i32_0 = arith.constant 0 : i32
    return %arg0, %c0_i32 : i32, i32
  }
}

</mosaic_0001>

<llo_original>
// kernel: double_conv_forward.5
$region0: #{double_conv_forward.5}
  #allocation0 [shape = 'u32[]', space=smem, size = 0x4, offset = 0x4, fixed_abs, tag = 'smem constant byte address 0x4 - core index']
  #allocation1 [shape = 'u32[144,128]{1,0:T(1,128)}', space=vmem, size = 0x12000, scoped, tag = 'internal scratch']
  %s0 = inlined_call_operand.vmem [shape: f32[512,128], index: 0, kind: input, shape index: {}]
  %s1 = inlined_call_operand.vmem [shape: f32[1,128], index: 1, kind: input, shape index: {}]
  %s2 = inlined_call_operand.vmem [shape: f32[1,128], index: 2, kind: input, shape index: {}]
  %s3 = inlined_call_operand.vmem [shape: f32[512,128], index: 3, kind: output, shape index: {}]
  %s4 = sld [smem:[#allocation0]]
  $region45: #{double_conv_forward.5} parent=0
    _
  %s6 = ssub.s32 1, %s4
  %s7 = scalar_select 0, %s6, %s4
  loop: start=0, step=1, limit=4
  $region2: #{double_conv_forward.5} parent=0 // loop_pre_header
    _
  $region3: #{double_conv_forward.5} parent=0 // loop_header
    %s9 = sphi 0, %s13
    %p10 = scmp.ge.s32.totalorder %s9, 4
    %s19 = sphi 0, %s21
    %s22 = sphi 0, %s19
    %s23 = sphi 0, %s22
    %s39 = sphi 0, %s23
    %s43 = sphi 0, %s43
    %s45 = sphi 0, %s43
    %s46 = sphi 0, %s45
    %s60 = sphi 0, %s46
    %s64 = sphi 0, %s64
    %s66 = sphi 0, %s64
    %s67 = sphi 0, %s66
    %s81 = sphi 0, %s67
    %s87 = sphi 0, %s89
    %s90 = sphi 0, %s87
    %s91 = sphi 0, %s90
    %s107 = sphi 0, %s91
  $region4: #{double_conv_forward.5} parent=0 // loop_header_branch
    %12 = sbr.rel (%p10) target = $region8
  $region5: #{double_conv_forward.5} parent=0 // loop_body
    %s14 = ssub.s32 %s9, 1
    %s15 = ssub.s32 %s9, 2
    %s16 = sadd.s32 %s9, 1
    %s17 = ssub.s32 %s9, %s16
    %p18 = scmp.eq.s32.totalorder %s17, 0
    %s20 = sadd.s32 %s19, 1
    %s21 = scalar_select %p18, %s19, %s20
    %p24 = pneg %p18
    %p25 = scmp.eq.s32.totalorder %s9, 1
    %p26 = por %p24, %p25
    %p27 = scmp.ne.s32.totalorder %s19, %s22
    %p28 = scmp.eq.s32.totalorder %s9, 0
    %p29 = por %p27, %p28
    %p30 = scmp.ne.s32.totalorder %s19, %s22
    %p31 = scmp.eq.s32.totalorder %s14, 1
    %p32 = por %p30, %p31
    %p33 = scmp.ne.s32.totalorder %s22, %s23
    %p34 = scmp.eq.s32.totalorder %s14, 0
    %p35 = por %p33, %p34
    %p36 = scmp.ne.s32.totalorder %s22, %s23
    %p37 = scmp.eq.s32.totalorder %s15, 1
    %p38 = por %p36, %p37
    %p40 = scmp.ne.s32.totalorder %s23, %s39
    %p41 = scmp.eq.s32.totalorder %s15, 0
    %p42 = por %p40, %p41
    %s44 = sadd.s32 %s43, 1
    %p47 = scmp.eq.s32.totalorder %s9, 1
    %p48 = scmp.ne.s32.totalorder %s43, %s45
    %p49 = scmp.eq.s32.totalorder %s9, 0
    %p50 = por %p48, %p49
    %p51 = scmp.ne.s32.totalorder %s43, %s45
    %p52 = scmp.eq.s32.totalorder %s14, 1
    %p53 = por %p51, %p52
    %p54 = scmp.ne.s32.totalorder %s45, %s46
    %p55 = scmp.eq.s32.totalorder %s14, 0
    %p56 = por %p54, %p55
    %p57 = scmp.ne.s32.totalorder %s45, %s46
    %p58 = scmp.eq.s32.totalorder %s15, 1
    %p59 = por %p57, %p58
    %p61 = scmp.ne.s32.totalorder %s46, %s60
    %p62 = scmp.eq.s32.totalorder %s15, 0
    %p63 = por %p61, %p62
    %s65 = sadd.s32 %s64, 1
    %p68 = scmp.eq.s32.totalorder %s9, 1
    %p69 = scmp.ne.s32.totalorder %s64, %s66
    %p70 = scmp.eq.s32.totalorder %s9, 0
    %p71 = por %p69, %p70
    %p72 = scmp.ne.s32.totalorder %s64, %s66
    %p73 = scmp.eq.s32.totalorder %s14, 1
    %p74 = por %p72, %p73
    %p75 = scmp.ne.s32.totalorder %s66, %s67
    %p76 = scmp.eq.s32.totalorder %s14, 0
    %p77 = por %p75, %p76
    %p78 = scmp.ne.s32.totalorder %s66, %s67
    %p79 = scmp.eq.s32.totalorder %s15, 1
    %p80 = por %p78, %p79
    %p82 = scmp.ne.s32.totalorder %s67, %s81
    %p83 = scmp.eq.s32.totalorder %s15, 0
    %p84 = por %p82, %p83
    %s85 = ssub.s32 %s9, %s16
    %p86 = scmp.eq.s32.totalorder %s85, 0
    %s88 = sadd.s32 %s87, 1
    %s89 = scalar_select %p86, %s87, %s88
    %p92 = pneg %p86
    %p93 = scmp.eq.s32.totalorder %s9, 1
    %p94 = por %p92, %p93
    %p95 = scmp.ne.s32.totalorder %s87, %s90
    %p96 = scmp.eq.s32.totalorder %s9, 0
    %p97 = por %p95, %p96
    %p98 = scmp.ne.s32.totalorder %s87, %s90
    %p99 = scmp.eq.s32.totalorder %s14, 1
    %p100 = por %p98, %p99
    %p101 = scmp.ne.s32.totalorder %s90, %s91
    %p102 = scmp.eq.s32.totalorder %s14, 0
    %p103 = por %p101, %p102
    %p104 = scmp.ne.s32.totalorder %s90, %s91
    %p105 = scmp.eq.s32.totalorder %s15, 1
    %p106 = por %p104, %p105
    %p108 = scmp.ne.s32.totalorder %s91, %s107
    %p109 = scmp.eq.s32.totalorder %s15, 0
    %p110 = por %p108, %p109
    %p111 = scmp.le.s32.totalorder 1, %s9
    %p112 = scmp.lt.s32.totalorder %s9, 3
    %p113 = pnand %p111, %p112
    %p114 = pneg %p113
    // Predicated region
    $region9: #{double_conv_forward.5} parent=5 // pred_check
      _
    $region10: #{double_conv_forward.5} parent=5 // pred_check_branch
      %116 = sbr.rel (%p113) target = $region12
    $region11: #{double_conv_forward.5} parent=5 // pred_region
      %s117 = ssub.s32 %s9, 1
      // Predicated region
      $region13: #{double_conv_forward.5} parent=11 // pred_check
        %p118 = pneg %p56
      $region14: #{double_conv_forward.5} parent=11 // pred_check_branch
        %120 = sbr.rel (%p118) target = $region16
      $region15: #{double_conv_forward.5} parent=11 // pred_region
        _
      $region16: #{double_conv_forward.5} parent=11 // pred_fallthru
        _
      // Predicated region
      $region17: #{double_conv_forward.5} parent=11 // pred_check
        %p121 = pneg %p77
      $region18: #{double_conv_forward.5} parent=11 // pred_check_branch
        %123 = sbr.rel (%p121) target = $region20
      $region19: #{double_conv_forward.5} parent=11 // pred_region
        _
      $region20: #{double_conv_forward.5} parent=11 // pred_fallthru
        _
    $region12: #{double_conv_forward.5} parent=5 // pred_fallthru
      _
    %p124 = scmp.lt.s32.totalorder %s9, 2
    // Predicated region
    $region21: #{double_conv_forward.5} parent=5 // pred_check
      %p125 = pneg %p124
    $region22: #{double_conv_forward.5} parent=5 // pred_check_branch
      %127 = sbr.rel (%p125) target = $region24
    $region23: #{double_conv_forward.5} parent=5 // pred_region
      // Predicated region
      $region25: #{double_conv_forward.5} parent=23 // pred_check
        %p128 = pneg %p29
      $region26: #{double_conv_forward.5} parent=23 // pred_check_branch
        %130 = sbr.rel (%p128) target = $region28
      $region27: #{double_conv_forward.5} parent=23 // pred_region
        %s131 = smul.u32 32, %s9
        %p132 = scmp.lt.s32.totalorder %s131, 63
        %s133 = scalar_select %p132, %s131, 63
        %s134 = smul.addr %s133, 8
        %s135 = scalar_lea.vmem %s0, %s134
        %s136 = smul.u32 32, %s9
      $region28: #{double_conv_forward.5} parent=23 // pred_fallthru
        _
    $region24: #{double_conv_forward.5} parent=5 // pred_fallthru
      _
    %p137 = scmp.le.s32.totalorder 1, %s9
    %p138 = scmp.lt.s32.totalorder %s9, 3
    %p139 = pnand %p137, %p138
    %p140 = pneg %p139
    // Predicated region
    $region29: #{double_conv_forward.5} parent=5 // pred_check
      _
    $region30: #{double_conv_forward.5} parent=5 // pred_check_branch
      %142 = sbr.rel (%p139) target = $region32
    $region31: #{double_conv_forward.5} parent=5 // pred_region
      %s143 = ssub.s32 %s9, 1
      %s144 = smul.u32 32, %s14
      %p145 = scmp.lt.s32.totalorder %s144, 63
      %s146 = scalar_select %p145, %s144, 63
      %s147 = smul.addr %s146, 8
      %s148 = scalar_lea.vmem %s0, %s147
      %p149 = pneg %p35
      %p150 = pneg %p32
      %p151 = pneg %p56
      %p152 = pneg %p53
      %p153 = pneg %p77
      %p154 = pneg %p74
      %p155 = pneg %p103
      %p156 = pneg %p100
      %s157 = smul.u32 32, %s14
      %p158 = scmp.lt.s32.totalorder %s157, 63
      %s159 = scalar_select %p158, %s157, 63
      %s160 = smul.addr %s159, 8
      %s161 = scalar_lea.vmem %s3, %s160
      %s162 = smul.u32 32, %s14
      %p163 = scmp.lt.s32.totalorder %s162, 63
      %s164 = scalar_select %p163, %s162, 63
      %s165 = smul.addr %s164, 8
      %s166 = scalar_lea.vmem %s0, %s165
      %s167 = smul.u32 32, %s14
      %s168 = smul.u32 32, %s14
      %p169 = scmp.lt.s32.totalorder %s168, 63
      %s170 = scalar_select %p169, %s168, 63
      %s171 = smul.addr %s170, 8
      %s172 = scalar_lea.vmem %s3, %s171
      %s173 = smul.u32 32, %s14
      %v174 = vld [vmem:[%s166] sm:$0xff]
      %v175 = vld [vmem:[%s166 + $0x8] sm:$0xff]
      %v176 = vld [vmem:[%s166 + $0x10] sm:$0xff]
      %v177 = vld [vmem:[%s166 + $0x18] sm:$0xff]
      %v178 = vld [vmem:[%s166 + $0x20] sm:$0xff]
      %v179 = vld [vmem:[%s166 + $0x28] sm:$0xff]
      %v180 = vld [vmem:[%s166 + $0x30] sm:$0xff]
      %v181 = vld [vmem:[%s166 + $0x38] sm:$0xff]
      %v182 = vld [vmem:[%s166 + $0x40] sm:$0xff]
      %v183 = vld [vmem:[%s166 + $0x48] sm:$0xff]
      %v184 = vld [vmem:[%s166 + $0x50] sm:$0xff]
      %v185 = vld [vmem:[%s166 + $0x58] sm:$0xff]
      %v186 = vld [vmem:[%s166 + $0x60] sm:$0xff]
      %v187 = vld [vmem:[%s166 + $0x68] sm:$0xff]
      %v188 = vld [vmem:[%s166 + $0x70] sm:$0xff]
      %v189 = vld [vmem:[%s166 + $0x78] sm:$0xff]
      %v190 = vld [vmem:[%s166 + $0x80] sm:$0xff]
      %v191 = vld [vmem:[%s166 + $0x88] sm:$0xff]
      %v192 = vld [vmem:[%s166 + $0x90] sm:$0xff]
      %v193 = vld [vmem:[%s166 + $0x98] sm:$0xff]
      %v194 = vld [vmem:[%s166 + $0xa0] sm:$0xff]
      %v195 = vld [vmem:[%s166 + $0xa8] sm:$0xff]
      %v196 = vld [vmem:[%s166 + $0xb0] sm:$0xff]
      %v197 = vld [vmem:[%s166 + $0xb8] sm:$0xff]
      %v198 = vld [vmem:[%s166 + $0xc0] sm:$0xff]
      %v199 = vld [vmem:[%s166 + $0xc8] sm:$0xff]
      %v200 = vld [vmem:[%s166 + $0xd0] sm:$0xff]
      %v201 = vld [vmem:[%s166 + $0xd8] sm:$0xff]
      %v202 = vld [vmem:[%s166 + $0xe0] sm:$0xff]
      %v203 = vld [vmem:[%s166 + $0xe8] sm:$0xff]
      %v204 = vld [vmem:[%s166 + $0xf0] sm:$0xff]
      %v205 = vld [vmem:[%s166 + $0xf8] sm:$0xff]
      %v206 = vld [vmem:[%s1] sm:$0x1]
      %v208 = vlaneseq
      %v209 = vshrl.u32 %v208, 7
      %v210 = vsub.s32 0, %v209
      %v211 = vrot.slane %v206, %v210
      %v213 = vmul.f32 %v174, %v211
      %v214 = vmul.f32 %v175, %v211
      %v215 = vmul.f32 %v176, %v211
      %v216 = vmul.f32 %v177, %v211
      %v217 = vmul.f32 %v178, %v211
      %v218 = vmul.f32 %v179, %v211
      %v219 = vmul.f32 %v180, %v211
      %v220 = vmul.f32 %v181, %v211
      %v221 = vmul.f32 %v182, %v211
      %v222 = vmul.f32 %v183, %v211
      %v223 = vmul.f32 %v184, %v211
      %v224 = vmul.f32 %v185, %v211
      %v225 = vmul.f32 %v186, %v211
      %v226 = vmul.f32 %v187, %v211
      %v227 = vmul.f32 %v188, %v211
      %v228 = vmul.f32 %v189, %v211
      %v229 = vmul.f32 %v190, %v211
      %v230 = vmul.f32 %v191, %v211
      %v231 = vmul.f32 %v192, %v211
      %v232 = vmul.f32 %v193, %v211
      %v233 = vmul.f32 %v194, %v211
      %v234 = vmul.f32 %v195, %v211
      %v235 = vmul.f32 %v196, %v211
      %v236 = vmul.f32 %v197, %v211
      %v237 = vmul.f32 %v198, %v211
      %v238 = vmul.f32 %v199, %v211
      %v239 = vmul.f32 %v200, %v211
      %v240 = vmul.f32 %v201, %v211
      %v241 = vmul.f32 %v202, %v211
      %v242 = vmul.f32 %v203, %v211
      %v243 = vmul.f32 %v204, %v211
      %v244 = vmul.f32 %v205, %v211
      %v245 = vld [vmem:[%s2] sm:$0x1]
      %v247 = vlaneseq
      %v248 = vshrl.u32 %v247, 7
      %v249 = vsub.s32 0, %v248
      %v250 = vrot.slane %v245, %v249
      %v252 = vadd.f32 %v213, %v250
      %v253 = vadd.f32 %v214, %v250
      %v254 = vadd.f32 %v215, %v250
      %v255 = vadd.f32 %v216, %v250
      %v256 = vadd.f32 %v217, %v250
      %v257 = vadd.f32 %v218, %v250
      %v258 = vadd.f32 %v219, %v250
      %v259 = vadd.f32 %v220, %v250
      %v260 = vadd.f32 %v221, %v250
      %v261 = vadd.f32 %v222, %v250
      %v262 = vadd.f32 %v223, %v250
      %v263 = vadd.f32 %v224, %v250
      %v264 = vadd.f32 %v225, %v250
      %v265 = vadd.f32 %v226, %v250
      %v266 = vadd.f32 %v227, %v250
      %v267 = vadd.f32 %v228, %v250
      %v268 = vadd.f32 %v229, %v250
      %v269 = vadd.f32 %v230, %v250
      %v270 = vadd.f32 %v231, %v250
      %v271 = vadd.f32 %v232, %v250
      %v272 = vadd.f32 %v233, %v250
      %v273 = vadd.f32 %v234, %v250
      %v274 = vadd.f32 %v235, %v250
      %v275 = vadd.f32 %v236, %v250
      %v276 = vadd.f32 %v237, %v250
      %v277 = vadd.f32 %v238, %v250
      %v278 = vadd.f32 %v239, %v250
      %v279 = vadd.f32 %v240, %v250
      %v280 = vadd.f32 %v241, %v250
      %v281 = vadd.f32 %v242, %v250
      %v282 = vadd.f32 %v243, %v250
      %v283 = vadd.f32 %v244, %v250
      %284 = vst [vmem:[%s172] sm:$0xff] %v252
      %285 = vst [vmem:[%s172 + $0x8] sm:$0xff] %v253
      %286 = vst [vmem:[%s172 + $0x10] sm:$0xff] %v254
      %287 = vst [vmem:[%s172 + $0x18] sm:$0xff] %v255
      %288 = vst [vmem:[%s172 + $0x20] sm:$0xff] %v256
      %289 = vst [vmem:[%s172 + $0x28] sm:$0xff] %v257
      %290 = vst [vmem:[%s172 + $0x30] sm:$0xff] %v258
      %291 = vst [vmem:[%s172 + $0x38] sm:$0xff] %v259
      %292 = vst [vmem:[%s172 + $0x40] sm:$0xff] %v260
      %293 = vst [vmem:[%s172 + $0x48] sm:$0xff] %v261
      %294 = vst [vmem:[%s172 + $0x50] sm:$0xff] %v262
      %295 = vst [vmem:[%s172 + $0x58] sm:$0xff] %v263
      %296 = vst [vmem:[%s172 + $0x60] sm:$0xff] %v264
      %297 = vst [vmem:[%s172 + $0x68] sm:$0xff] %v265
      %298 = vst [vmem:[%s172 + $0x70] sm:$0xff] %v266
      %299 = vst [vmem:[%s172 + $0x78] sm:$0xff] %v267
      %300 = vst [vmem:[%s172 + $0x80] sm:$0xff] %v268
      %301 = vst [vmem:[%s172 + $0x88] sm:$0xff] %v269
      %302 = vst [vmem:[%s172 + $0x90] sm:$0xff] %v270
      %303 = vst [vmem:[%s172 + $0x98] sm:$0xff] %v271
      %304 = vst [vmem:[%s172 + $0xa0] sm:$0xff] %v272
      %305 = vst [vmem:[%s172 + $0xa8] sm:$0xff] %v273
      %306 = vst [vmem:[%s172 + $0xb0] sm:$0xff] %v274
      %307 = vst [vmem:[%s172 + $0xb8] sm:$0xff] %v275
      %308 = vst [vmem:[%s172 + $0xc0] sm:$0xff] %v276
      %309 = vst [vmem:[%s172 + $0xc8] sm:$0xff] %v277
      %310 = vst [vmem:[%s172 + $0xd0] sm:$0xff] %v278
      %311 = vst [vmem:[%s172 + $0xd8] sm:$0xff] %v279
      %312 = vst [vmem:[%s172 + $0xe0] sm:$0xff] %v280
      %313 = vst [vmem:[%s172 + $0xe8] sm:$0xff] %v281
      %314 = vst [vmem:[%s172 + $0xf0] sm:$0xff] %v282
      %315 = vst [vmem:[%s172 + $0xf8] sm:$0xff] %v283
      %s316 = smul.u32 32, %s14
      %p317 = scmp.lt.s32.totalorder %s316, 63
      %s318 = scalar_select %p317, %s316, 63
      %s319 = smul.addr %s318, 8
      %s320 = scalar_lea.vmem %s3, %s319
      // Predicated region
      $region33: #{double_conv_forward.5} parent=31 // pred_check
        %p321 = pneg %p100
      $region34: #{double_conv_forward.5} parent=31 // pred_check_branch
        %323 = sbr.rel (%p321) target = $region36
      $region35: #{double_conv_forward.5} parent=31 // pred_region
        %s324 = smul.u32 32, %s14
      $region36: #{double_conv_forward.5} parent=31 // pred_fallthru
        _
    $region32: #{double_conv_forward.5} parent=5 // pred_fallthru
      _
    %p325 = scmp.le.s32.totalorder 2, %s9
    // Predicated region
    $region37: #{double_conv_forward.5} parent=5 // pred_check
      %p326 = pneg %p325
    $region38: #{double_conv_forward.5} parent=5 // pred_check_branch
      %328 = sbr.rel (%p326) target = $region40
    $region39: #{double_conv_forward.5} parent=5 // pred_region
      %s329 = ssub.s32 %s9, 2
      // Predicated region
      $region41: #{double_conv_forward.5} parent=39 // pred_check
        %p330 = pneg %p106
      $region42: #{double_conv_forward.5} parent=39 // pred_check_branch
        %332 = sbr.rel (%p330) target = $region44
      $region43: #{double_conv_forward.5} parent=39 // pred_region
        %s333 = smul.u32 32, %s15
        %p334 = scmp.lt.s32.totalorder %s333, 63
        %s335 = scalar_select %p334, %s333, 63
        %s336 = smul.addr %s335, 8
        %s337 = scalar_lea.vmem %s3, %s336
      $region44: #{double_conv_forward.5} parent=39 // pred_fallthru
        _
    $region40: #{double_conv_forward.5} parent=5 // pred_fallthru
      _
  $region6: #{double_conv_forward.5} parent=0 // loop_footer
    %s13 = sadd.s32 1, %s9
  $region7: #{double_conv_forward.5} parent=0 // loop_footer_branch
    %8 = sbr.rel target = $region3
  $region8: #{double_conv_forward.5} parent=0 // loop_exit
    _

// kernel: double_conv_forward.3
$region0: #{double_conv_forward.3}
  #allocation0 [shape = 'u32[]', space=smem, size = 0x4, offset = 0x4, fixed_abs, tag = 'smem constant byte address 0x4 - core index']
  #allocation1 [shape = 'u32[144,128]{1,0:T(1,128)}', space=vmem, size = 0x12000, scoped, tag = 'internal scratch']
  %s0 = inlined_call_operand.vmem [shape: f32[2,18,18,4], index: 0, kind: input, shape index: {}]
  %s1 = inlined_call_operand.vmem [shape: f32[1,4], index: 1, kind: input, shape index: {}]
  %s2 = inlined_call_operand.vmem [shape: f32[1,4], index: 2, kind: input, shape index: {}]
  %s3 = inlined_call_operand.vmem [shape: f32[9,4,128], index: 3, kind: input, shape index: {}]
  %s4 = inlined_call_operand.vmem [shape: f32[1,128], index: 4, kind: input, shape index: {}]
  %s5 = inlined_call_operand.vmem [shape: f32[2,256,128], index: 5, kind: output, shape index: {0}]
  %s6 = inlined_call_operand.vmem [shape: f32[2,8,128], index: 6, kind: output, shape index: {1}]
  %7 = xla_tuple %s5, %s6
  %s8 = sld [smem:[#allocation0]]
  $region61: #{double_conv_forward.3} parent=0
    _
  %s10 = ssub.s32 1, %s8
  %s11 = scalar_select 0, %s10, %s8
  loop: start=0, step=1, limit=4
  $region2: #{double_conv_forward.3} parent=0 // loop_pre_header
    _
  $region3: #{double_conv_forward.3} parent=0 // loop_header
    %s13 = sphi 0, %s17
    %p14 = scmp.ge.s32.totalorder %s13, 4
    %s23 = sphi 0, %s25
    %s26 = sphi 0, %s23
    %s27 = sphi 0, %s26
    %s43 = sphi 0, %s27
    %s47 = sphi 0, %s47
    %s49 = sphi 0, %s47
    %s50 = sphi 0, %s49
    %s64 = sphi 0, %s50
    %s68 = sphi 0, %s68
    %s70 = sphi 0, %s68
    %s71 = sphi 0, %s70
    %s85 = sphi 0, %s71
    %s89 = sphi 0, %s89
    %s91 = sphi 0, %s89
    %s92 = sphi 0, %s91
    %s106 = sphi 0, %s92
    %s110 = sphi 0, %s110
    %s112 = sphi 0, %s110
    %s113 = sphi 0, %s112
    %s127 = sphi 0, %s113
    %s133 = sphi 0, %s135
    %s136 = sphi 0, %s133
    %s137 = sphi 0, %s136
    %s153 = sphi 0, %s137
    %s159 = sphi 0, %s161
    %s162 = sphi 0, %s159
    %s163 = sphi 0, %s162
    %s179 = sphi 0, %s163
  $region4: #{double_conv_forward.3} parent=0 // loop_header_branch
    %16 = sbr.rel (%p14) target = $region8
  $region5: #{double_conv_forward.3} parent=0 // loop_body
    %s18 = ssub.s32 %s13, 1
    %s19 = ssub.s32 %s13, 2
    %s20 = sadd.s32 %s13, 1
    %s21 = ssub.s32 %s13, %s20
    %p22 = scmp.eq.s32.totalorder %s21, 0
    %s24 = sadd.s32 %s23, 1
    %s25 = scalar_select %p22, %s23, %s24
    %p28 = pneg %p22
    %p29 = scmp.eq.s32.totalorder %s13, 1
    %p30 = por %p28, %p29
    %p31 = scmp.ne.s32.totalorder %s23, %s26
    %p32 = scmp.eq.s32.totalorder %s13, 0
    %p33 = por %p31, %p32
    %p34 = scmp.ne.s32.totalorder %s23, %s26
    %p35 = scmp.eq.s32.totalorder %s18, 1
    %p36 = por %p34, %p35
    %p37 = scmp.ne.s32.totalorder %s26, %s27
    %p38 = scmp.eq.s32.totalorder %s18, 0
    %p39 = por %p37, %p38
    %p40 = scmp.ne.s32.totalorder %s26, %s27
    %p41 = scmp.eq.s32.totalorder %s19, 1
    %p42 = por %p40, %p41
    %p44 = scmp.ne.s32.totalorder %s27, %s43
    %p45 = scmp.eq.s32.totalorder %s19, 0
    %p46 = por %p44, %p45
    %s48 = sadd.s32 %s47, 1
    %p51 = scmp.eq.s32.totalorder %s13, 1
    %p52 = scmp.ne.s32.totalorder %s47, %s49
    %p53 = scmp.eq.s32.totalorder %s13, 0
    %p54 = por %p52, %p53
    %p55 = scmp.ne.s32.totalorder %s47, %s49
    %p56 = scmp.eq.s32.totalorder %s18, 1
    %p57 = por %p55, %p56
    %p58 = scmp.ne.s32.totalorder %s49, %s50
    %p59 = scmp.eq.s32.totalorder %s18, 0
    %p60 = por %p58, %p59
    %p61 = scmp.ne.s32.totalorder %s49, %s50
    %p62 = scmp.eq.s32.totalorder %s19, 1
    %p63 = por %p61, %p62
    %p65 = scmp.ne.s32.totalorder %s50, %s64
    %p66 = scmp.eq.s32.totalorder %s19, 0
    %p67 = por %p65, %p66
    %s69 = sadd.s32 %s68, 1
    %p72 = scmp.eq.s32.totalorder %s13, 1
    %p73 = scmp.ne.s32.totalorder %s68, %s70
    %p74 = scmp.eq.s32.totalorder %s13, 0
    %p75 = por %p73, %p74
    %p76 = scmp.ne.s32.totalorder %s68, %s70
    %p77 = scmp.eq.s32.totalorder %s18, 1
    %p78 = por %p76, %p77
    %p79 = scmp.ne.s32.totalorder %s70, %s71
    %p80 = scmp.eq.s32.totalorder %s18, 0
    %p81 = por %p79, %p80
    %p82 = scmp.ne.s32.totalorder %s70, %s71
    %p83 = scmp.eq.s32.totalorder %s19, 1
    %p84 = por %p82, %p83
    %p86 = scmp.ne.s32.totalorder %s71, %s85
    %p87 = scmp.eq.s32.totalorder %s19, 0
    %p88 = por %p86, %p87
    %s90 = sadd.s32 %s89, 1
    %p93 = scmp.eq.s32.totalorder %s13, 1
    %p94 = scmp.ne.s32.totalorder %s89, %s91
    %p95 = scmp.eq.s32.totalorder %s13, 0
    %p96 = por %p94, %p95
    %p97 = scmp.ne.s32.totalorder %s89, %s91
    %p98 = scmp.eq.s32.totalorder %s18, 1
    %p99 = por %p97, %p98
    %p100 = scmp.ne.s32.totalorder %s91, %s92
    %p101 = scmp.eq.s32.totalorder %s18, 0
    %p102 = por %p100, %p101
    %p103 = scmp.ne.s32.totalorder %s91, %s92
    %p104 = scmp.eq.s32.totalorder %s19, 1
    %p105 = por %p103, %p104
    %p107 = scmp.ne.s32.totalorder %s92, %s106
    %p108 = scmp.eq.s32.totalorder %s19, 0
    %p109 = por %p107, %p108
    %s111 = sadd.s32 %s110, 1
    %p114 = scmp.eq.s32.totalorder %s13, 1
    %p115 = scmp.ne.s32.totalorder %s110, %s112
    %p116 = scmp.eq.s32.totalorder %s13, 0
    %p117 = por %p115, %p116
    %p118 = scmp.ne.s32.totalorder %s110, %s112
    %p119 = scmp.eq.s32.totalorder %s18, 1
    %p120 = por %p118, %p119
    %p121 = scmp.ne.s32.totalorder %s112, %s113
    %p122 = scmp.eq.s32.totalorder %s18, 0
    %p123 = por %p121, %p122
    %p124 = scmp.ne.s32.totalorder %s112, %s113
    %p125 = scmp.eq.s32.totalorder %s19, 1
    %p126 = por %p124, %p125
    %p128 = scmp.ne.s32.totalorder %s113, %s127
    %p129 = scmp.eq.s32.totalorder %s19, 0
    %p130 = por %p128, %p129
    %s131 = ssub.s32 %s13, %s20
    %p132 = scmp.eq.s32.totalorder %s131, 0
    %s134 = sadd.s32 %s133, 1
    %s135 = scalar_select %p132, %s133, %s134
    %p138 = pneg %p132
    %p139 = scmp.eq.s32.totalorder %s13, 1
    %p140 = por %p138, %p139
    %p141 = scmp.ne.s32.totalorder %s133, %s136
    %p142 = scmp.eq.s32.totalorder %s13, 0
    %p143 = por %p141, %p142
    %p144 = scmp.ne.s32.totalorder %s133, %s136
    %p145 = scmp.eq.s32.totalorder %s18, 1
    %p146 = por %p144, %p145
    %p147 = scmp.ne.s32.totalorder %s136, %s137
    %p148 = scmp.eq.s32.totalorder %s18, 0
    %p149 = por %p147, %p148
    %p150 = scmp.ne.s32.totalorder %s136, %s137
    %p151 = scmp.eq.s32.totalorder %s19, 1
    %p152 = por %p150, %p151
    %p154 = scmp.ne.s32.totalorder %s137, %s153
    %p155 = scmp.eq.s32.totalorder %s19, 0
    %p156 = por %p154, %p155
    %s157 = ssub.s32 %s13, %s20
    %p158 = scmp.eq.s32.totalorder %s157, 0
    %s160 = sadd.s32 %s159, 1
    %s161 = scalar_select %p158, %s159, %s160
    %p164 = pneg %p158
    %p165 = scmp.eq.s32.totalorder %s13, 1
    %p166 = por %p164, %p165
    %p167 = scmp.ne.s32.totalorder %s159, %s162
    %p168 = scmp.eq.s32.totalorder %s13, 0
    %p169 = por %p167, %p168
    %p170 = scmp.ne.s32.totalorder %s159, %s162
    %p171 = scmp.eq.s32.totalorder %s18, 1
    %p172 = por %p170, %p171
    %p173 = scmp.ne.s32.totalorder %s162, %s163
    %p174 = scmp.eq.s32.totalorder %s18, 0
    %p175 = por %p173, %p174
    %p176 = scmp.ne.s32.totalorder %s162, %s163
    %p177 = scmp.eq.s32.totalorder %s19, 1
    %p178 = por %p176, %p177
    %p180 = scmp.ne.s32.totalorder %s163, %s179
    %p181 = scmp.eq.s32.totalorder %s19, 0
    %p182 = por %p180, %p181
    %p183 = scmp.le.s32.totalorder 1, %s13
    %p184 = scmp.lt.s32.totalorder %s13, 3
    %p185 = pnand %p183, %p184
    %p186 = pneg %p185
    // Predicated region
    $region9: #{double_conv_forward.3} parent=5 // pred_check
      _
    $region10: #{double_conv_forward.3} parent=5 // pred_check_branch
      %188 = sbr.rel (%p185) target = $region12
    $region11: #{double_conv_forward.3} parent=5 // pred_region
      %s189 = ssub.s32 %s13, 1
      // Predicated region
      $region13: #{double_conv_forward.3} parent=11 // pred_check
        %p190 = pneg %p60
      $region14: #{double_conv_forward.3} parent=11 // pred_check_branch
        %192 = sbr.rel (%p190) target = $region16
      $region15: #{double_conv_forward.3} parent=11 // pred_region
        _
      $region16: #{double_conv_forward.3} parent=11 // pred_fallthru
        _
      // Predicated region
      $region17: #{double_conv_forward.3} parent=11 // pred_check
        %p193 = pneg %p81
      $region18: #{double_conv_forward.3} parent=11 // pred_check_branch
        %195 = sbr.rel (%p193) target = $region20
      $region19: #{double_conv_forward.3} parent=11 // pred_region
        _
      $region20: #{double_conv_forward.3} parent=11 // pred_fallthru
        _
      // Predicated region
      $region21: #{double_conv_forward.3} parent=11 // pred_check
        %p196 = pneg %p102
      $region22: #{double_conv_forward.3} parent=11 // pred_check_branch
        %198 = sbr.rel (%p196) target = $region24
      $region23: #{double_conv_forward.3} parent=11 // pred_region
        _
      $region24: #{double_conv_forward.3} parent=11 // pred_fallthru
        _
      // Predicated region
      $region25: #{double_conv_forward.3} parent=11 // pred_check
        %p199 = pneg %p123
      $region26: #{double_conv_forward.3} parent=11 // pred_check_branch
        %201 = sbr.rel (%p199) target = $region28
      $region27: #{double_conv_forward.3} parent=11 // pred_region
        _
      $region28: #{double_conv_forward.3} parent=11 // pred_fallthru
        _
    $region12: #{double_conv_forward.3} parent=5 // pred_fallthru
      _
    %p202 = scmp.lt.s32.totalorder %s13, 2
    // Predicated region
    $region29: #{double_conv_forward.3} parent=5 // pred_check
      %p203 = pneg %p202
    $region30: #{double_conv_forward.3} parent=5 // pred_check_branch
      %205 = sbr.rel (%p203) target = $region32
    $region31: #{double_conv_forward.3} parent=5 // pred_region
      // Predicated region
      $region33: #{double_conv_forward.3} parent=31 // pred_check
        %p206 = pneg %p33
      $region34: #{double_conv_forward.3} parent=31 // pred_check_branch
        %208 = sbr.rel (%p206) target = $region36
      $region35: #{double_conv_forward.3} parent=31 // pred_region
        %p209 = scmp.lt.s32.totalorder %s13, 1
        %s210 = scalar_select %p209, %s13, 1
        %s211 = smul.addr %s210, 54
        %s212 = smul.addr %s211, 8
        %s213 = scalar_lea.vmem %s0, %s212
      $region36: #{double_conv_forward.3} parent=31 // pred_fallthru
        _
    $region32: #{double_conv_forward.3} parent=5 // pred_fallthru
      _
    %p214 = scmp.le.s32.totalorder 1, %s13
    %p215 = scmp.lt.s32.totalorder %s13, 3
    %p216 = pnand %p214, %p215
    %p217 = pneg %p216
    // Predicated region
    $region37: #{double_conv_forward.3} parent=5 // pred_check
      _
    $region38: #{double_conv_forward.3} parent=5 // pred_check_branch
      %219 = sbr.rel (%p216) target = $region40
    $region39: #{double_conv_forward.3} parent=5 // pred_region
      %s220 = ssub.s32 %s13, 1
      %p221 = scmp.lt.s32.totalorder %s18, 1
      %s222 = scalar_select %p221, %s18, 1
      %s223 = smul.addr %s222, 54
      %s224 = smul.addr %s223, 8
      %s225 = scalar_lea.vmem %s0, %s224
      %p226 = pneg %p39
      %p227 = pneg %p36
      %p228 = pneg %p60
      %p229 = pneg %p57
      %p230 = pneg %p81
      %p231 = pneg %p78
      %p232 = pneg %p102
      %p233 = pneg %p99
      %p234 = pneg %p123
      %p235 = pneg %p120
      %p236 = pneg %p149
      %p237 = pneg %p146
      %p238 = scmp.lt.s32.totalorder %s18, 1
      %s239 = scalar_select %p238, %s18, 1
      %s240 = smul.addr %s239, 32
      %s241 = smul.addr %s240, 8
      %s242 = scalar_lea.vmem %s5, %s241
      %p243 = pneg %p175
      %p244 = pneg %p172
      %p245 = scmp.lt.s32.totalorder %s18, 1
      %s246 = scalar_select %p245, %s18, 1
      %s247 = smul.addr %s246, 8
      %s248 = scalar_lea.vmem %s6, %s247
      %p249 = scmp.lt.s32.totalorder %s18, 1
      %s250 = scalar_select %p249, %s18, 1
      %s251 = smul.addr %s250, 54
      %s252 = smul.addr %s251, 8
      %s253 = scalar_lea.vmem %s0, %s252
      %p254 = scmp.lt.s32.totalorder %s18, 1
      %s255 = scalar_select %p254, %s18, 1
      %s256 = smul.addr %s255, 32
      %s257 = smul.addr %s256, 8
      %s258 = scalar_lea.vmem %s5, %s257
      %p259 = scmp.lt.s32.totalorder %s18, 1
      %s260 = scalar_select %p259, %s18, 1
      %s261 = smul.addr %s260, 8
      %s262 = scalar_lea.vmem %s6, %s261
      %v263 = vld [vmem:[%s253] sm:$0xff]
      %v264 = vld [vmem:[%s253 + $0x8] sm:$0xff]
      %v265 = vld [vmem:[%s253 + $0x10] sm:$0x3]
      %v266 = vld [vmem:[%s253 + $0x18] sm:$0xff]
      %v267 = vld [vmem:[%s253 + $0x20] sm:$0xff]
      %v268 = vld [vmem:[%s253 + $0x28] sm:$0x3]
      %v269 = vld [vmem:[%s253 + $0x30] sm:$0xff]
      %v270 = vld [vmem:[%s253 + $0x38] sm:$0xff]
      %v271 = vld [vmem:[%s253 + $0x40] sm:$0x3]
      %v272 = vld [vmem:[%s253 + $0x48] sm:$0xff]
      %v273 = vld [vmem:[%s253 + $0x50] sm:$0xff]
      %v274 = vld [vmem:[%s253 + $0x58] sm:$0x3]
      %v275 = vld [vmem:[%s253 + $0x60] sm:$0xff]
      %v276 = vld [vmem:[%s253 + $0x68] sm:$0xff]
      %v277 = vld [vmem:[%s253 + $0x70] sm:$0x3]
      %v278 = vld [vmem:[%s253 + $0x78] sm:$0xff]
      %v279 = vld [vmem:[%s253 + $0x80] sm:$0xff]
      %v280 = vld [vmem:[%s253 + $0x88] sm:$0x3]
      %v281 = vld [vmem:[%s253 + $0x90] sm:$0xff]
      %v282 = vld [vmem:[%s253 + $0x98] sm:$0xff]
      %v283 = vld [vmem:[%s253 + $0xa0] sm:$0x3]
      %v284 = vld [vmem:[%s253 + $0xa8] sm:$0xff]
      %v285 = vld [vmem:[%s253 + $0xb0] sm:$0xff]
      %v286 = vld [vmem:[%s253 + $0xb8] sm:$0x3]
      %v287 = vld [vmem:[%s253 + $0xc0] sm:$0xff]
      %v288 = vld [vmem:[%s253 + $0xc8] sm:$0xff]
      %v289 = vld [vmem:[%s253 + $0xd0] sm:$0x3]
      %v290 = vld [vmem:[%s253 + $0xd8] sm:$0xff]
      %v291 = vld [vmem:[%s253 + $0xe0] sm:$0xff]
      %v292 = vld [vmem:[%s253 + $0xe8] sm:$0x3]
      %v293 = vld [vmem:[%s253 + $0xf0] sm:$0xff]
      %v294 = vld [vmem:[%s253 + $0xf8] sm:$0xff]
      %v295 = vld [vmem:[%s253 + $0x100] sm:$0x3]
      %v296 = vld [vmem:[%s253 + $0x108] sm:$0xff]
      %v297 = vld [vmem:[%s253 + $0x110] sm:$0xff]
      %v298 = vld [vmem:[%s253 + $0x118] sm:$0x3]
      %v299 = vld [vmem:[%s253 + $0x120] sm:$0xff]
      %v300 = vld [vmem:[%s253 + $0x128] sm:$0xff]
      %v301 = vld [vmem:[%s253 + $0x130] sm:$0x3]
      %v302 = vld [vmem:[%s253 + $0x138] sm:$0xff]
      %v303 = vld [vmem:[%s253 + $0x140] sm:$0xff]
      %v304 = vld [vmem:[%s253 + $0x148] sm:$0x3]
      %v305 = vld [vmem:[%s253 + $0x150] sm:$0xff]
      %v306 = vld [vmem:[%s253 + $0x158] sm:$0xff]
      %v307 = vld [vmem:[%s253 + $0x160] sm:$0x3]
      %v308 = vld [vmem:[%s253 + $0x168] sm:$0xff]
      %v309 = vld [vmem:[%s253 + $0x170] sm:$0xff]
      %v310 = vld [vmem:[%s253 + $0x178] sm:$0x3]
      %v311 = vld [vmem:[%s253 + $0x180] sm:$0xff]
      %v312 = vld [vmem:[%s253 + $0x188] sm:$0xff]
      %v313 = vld [vmem:[%s253 + $0x190] sm:$0x3]
      %v314 = vld [vmem:[%s253 + $0x198] sm:$0xff]
      %v315 = vld [vmem:[%s253 + $0x1a0] sm:$0xff]
      %v316 = vld [vmem:[%s253 + $0x1a8] sm:$0x3]
      %v317 = vlaneseq
      %v318 = vshrl.u32 %v317, 7
      %v319 = vadd.s32 %v318, 8
      %v320 = vadd.s32 %v318, 16
      %vm321 = vcmp.ge.s32.totalorder %v318, 1
      %vm322 = vcmp.ge.s32.totalorder %v319, 1
      %vm323 = vcmp.ge.s32.totalorder %v320, 1
      %vm324 = vmand 0, %vm321
      %vm325 = vmand 0, %vm322
      %vm326 = vmand 0, %vm323
      %vm327 = vmand 1, %vm321
      %vm328 = vmand 1, %vm322
      %vm329 = vmand 1, %vm323
      %vm330 = vcmp.le.s32.totalorder %v318, 16
      %vm331 = vcmp.le.s32.totalorder %v319, 16
      %vm332 = vcmp.le.s32.totalorder %v320, 16
      %vm333 = vmand %vm324, %vm330
      %vm334 = vmand %vm325, %vm331
      %vm335 = vmand %vm326, %vm332
      %vm336 = vmand %vm327, %vm330
      %vm337 = vmand %vm328, %vm331
      %vm338 = vmand %vm329, %vm332
      %v339 = vld [vmem:[%s1] sm:$0x1]
      %v341 = vlaneseq
      %v342 = vshrl.u32 %v341, 7
      %v343 = vsub.s32 0, %v342
      %v344 = vrot.slane %v339, %v343
      %v346 = vmul.f32 %v263, %v344
      %v347 = vmul.f32 %v264, %v344
      %v348 = vmul.f32 %v265, %v344
      %v349 = vmul.f32 %v266, %v344
      %v350 = vmul.f32 %v267, %v344
      %v351 = vmul.f32 %v268, %v344
      %v352 = vmul.f32 %v269, %v344
      %v353 = vmul.f32 %v270, %v344
      %v354 = vmul.f32 %v271, %v344
      %v355 = vmul.f32 %v272, %v344
      %v356 = vmul.f32 %v273, %v344
      %v357 = vmul.f32 %v274, %v344
      %v358 = vmul.f32 %v275, %v344
      %v359 = vmul.f32 %v276, %v344
      %v360 = vmul.f32 %v277, %v344
      %v361 = vmul.f32 %v278, %v344
      %v362 = vmul.f32 %v279, %v344
      %v363 = vmul.f32 %v280, %v344
      %v364 = vmul.f32 %v281, %v344
      %v365 = vmul.f32 %v282, %v344
      %v366 = vmul.f32 %v283, %v344
      %v367 = vmul.f32 %v284, %v344
      %v368 = vmul.f32 %v285, %v344
      %v369 = vmul.f32 %v286, %v344
      %v370 = vmul.f32 %v287, %v344
      %v371 = vmul.f32 %v288, %v344
      %v372 = vmul.f32 %v289, %v344
      %v373 = vmul.f32 %v290, %v344
      %v374 = vmul.f32 %v291, %v344
      %v375 = vmul.f32 %v292, %v344
      %v376 = vmul.f32 %v293, %v344
      %v377 = vmul.f32 %v294, %v344
      %v378 = vmul.f32 %v295, %v344
      %v379 = vmul.f32 %v296, %v344
      %v380 = vmul.f32 %v297, %v344
      %v381 = vmul.f32 %v298, %v344
      %v382 = vmul.f32 %v299, %v344
      %v383 = vmul.f32 %v300, %v344
      %v384 = vmul.f32 %v301, %v344
      %v385 = vmul.f32 %v302, %v344
      %v386 = vmul.f32 %v303, %v344
      %v387 = vmul.f32 %v304, %v344
      %v388 = vmul.f32 %v305, %v344
      %v389 = vmul.f32 %v306, %v344
      %v390 = vmul.f32 %v307, %v344
      %v391 = vmul.f32 %v308, %v344
      %v392 = vmul.f32 %v309, %v344
      %v393 = vmul.f32 %v310, %v344
      %v394 = vmul.f32 %v311, %v344
      %v395 = vmul.f32 %v312, %v344
      %v396 = vmul.f32 %v313, %v344
      %v397 = vmul.f32 %v314, %v344
      %v398 = vmul.f32 %v315, %v344
      %v399 = vmul.f32 %v316, %v344
      %v400 = vld [vmem:[%s2] sm:$0x1]
      %v402 = vlaneseq
      %v403 = vshrl.u32 %v402, 7
      %v404 = vsub.s32 0, %v403
      %v405 = vrot.slane %v400, %v404
      %v407 = vadd.f32 %v346, %v405
      %v408 = vadd.f32 %v347, %v405
      %v409 = vadd.f32 %v348, %v405
      %v410 = vadd.f32 %v349, %v405
      %v411 = vadd.f32 %v350, %v405
      %v412 = vadd.f32 %v351, %v405
      %v413 = vadd.f32 %v352, %v405
      %v414 = vadd.f32 %v353, %v405
      %v415 = vadd.f32 %v354, %v405
      %v416 = vadd.f32 %v355, %v405
      %v417 = vadd.f32 %v356, %v405
      %v418 = vadd.f32 %v357, %v405
      %v419 = vadd.f32 %v358, %v405
      %v420 = vadd.f32 %v359, %v405
      %v421 = vadd.f32 %v360, %v405
      %v422 = vadd.f32 %v361, %v405
      %v423 = vadd.f32 %v362, %v405
      %v424 = vadd.f32 %v363, %v405
      %v425 = vadd.f32 %v364, %v405
      %v426 = vadd.f32 %v365, %v405
      %v427 = vadd.f32 %v366, %v405
      %v428 = vadd.f32 %v367, %v405
      %v429 = vadd.f32 %v368, %v405
      %v430 = vadd.f32 %v369, %v405
      %v431 = vadd.f32 %v370, %v405
      %v432 = vadd.f32 %v371, %v405
      %v433 = vadd.f32 %v372, %v405
      %v434 = vadd.f32 %v373, %v405
      %v435 = vadd.f32 %v374, %v405
      %v436 = vadd.f32 %v375, %v405
      %v437 = vadd.f32 %v376, %v405
      %v438 = vadd.f32 %v377, %v405
      %v439 = vadd.f32 %v378, %v405
      %v440 = vadd.f32 %v379, %v405
      %v441 = vadd.f32 %v380, %v405
      %v442 = vadd.f32 %v381, %v405
      %v443 = vadd.f32 %v382, %v405
      %v444 = vadd.f32 %v383, %v405
      %v445 = vadd.f32 %v384, %v405
      %v446 = vadd.f32 %v385, %v405
      %v447 = vadd.f32 %v386, %v405
      %v448 = vadd.f32 %v387, %v405
      %v449 = vadd.f32 %v388, %v405
      %v450 = vadd.f32 %v389, %v405
      %v451 = vadd.f32 %v390, %v405
      %v452 = vadd.f32 %v391, %v405
      %v453 = vadd.f32 %v392, %v405
      %v454 = vadd.f32 %v393, %v405
      %v455 = vadd.f32 %v394, %v405
      %v456 = vadd.f32 %v395, %v405
      %v457 = vadd.f32 %v396, %v405
      %v458 = vadd.f32 %v397, %v405
      %v459 = vadd.f32 %v398, %v405
      %v460 = vadd.f32 %v399, %v405
      %v461 = vsel %vm333, %v407, 0.0
      %v462 = vsel %vm334, %v408, 0.0
      %v463 = vsel %vm335, %v409, 0.0
      %v464 = vsel %vm336, %v410, 0.0
      %v465 = vsel %vm337, %v411, 0.0
      %v466 = vsel %vm338, %v412, 0.0
      %v467 = vsel %vm336, %v413, 0.0
      %v468 = vsel %vm337, %v414, 0.0
      %v469 = vsel %vm338, %v415, 0.0
      %v470 = vsel %vm336, %v416, 0.0
      %v471 = vsel %vm337, %v417, 0.0
      %v472 = vsel %vm338, %v418, 0.0
      %v473 = vsel %vm336, %v419, 0.0
      %v474 = vsel %vm337, %v420, 0.0
      %v475 = vsel %vm338, %v421, 0.0
      %v476 = vsel %vm336, %v422, 0.0
      %v477 = vsel %vm337, %v423, 0.0
      %v478 = vsel %vm338, %v424, 0.0
      %v479 = vsel %vm336, %v425, 0.0
      %v480 = vsel %vm337, %v426, 0.0
      %v481 = vsel %vm338, %v427, 0.0
      %v482 = vsel %vm336, %v428, 0.0
      %v483 = vsel %vm337, %v429, 0.0
      %v484 = vsel %vm338, %v430, 0.0
      %v485 = vsel %vm336, %v431, 0.0
      %v486 = vsel %vm337, %v432, 0.0
      %v487 = vsel %vm338, %v433, 0.0
      %v488 = vsel %vm336, %v434, 0.0
      %v489 = vsel %vm337, %v435, 0.0
      %v490 = vsel %vm338, %v436, 0.0
      %v491 = vsel %vm336, %v437, 0.0
      %v492 = vsel %vm337, %v438, 0.0
      %v493 = vsel %vm338, %v439, 0.0
      %v494 = vsel %vm336, %v440, 0.0
      %v495 = vsel %vm337, %v441, 0.0
      %v496 = vsel %vm338, %v442, 0.0
      %v497 = vsel %vm336, %v443, 0.0
      %v498 = vsel %vm337, %v444, 0.0
      %v499 = vsel %vm338, %v445, 0.0
      %v500 = vsel %vm336, %v446, 0.0
      %v501 = vsel %vm337, %v447, 0.0
      %v502 = vsel %vm338, %v448, 0.0
      %v503 = vsel %vm336, %v449, 0.0
      %v504 = vsel %vm337, %v450, 0.0
      %v505 = vsel %vm338, %v451, 0.0
      %v506 = vsel %vm336, %v452, 0.0
      %v507 = vsel %vm337, %v453, 0.0
      %v508 = vsel %vm338, %v454, 0.0
      %v509 = vsel %vm336, %v455, 0.0
      %v510 = vsel %vm337, %v456, 0.0
      %v511 = vsel %vm338, %v457, 0.0
      %v512 = vsel %vm333, %v458, 0.0
      %v513 = vsel %vm334, %v459, 0.0
      %v514 = vsel %vm335, %v460, 0.0
      %v515 = vld [vmem:[%s3] sm:$0xf]
      %vm564 = vcmask 1046528
      %v565 = vrot.slane %v461, 1
      %v566 = vrot.slane %v462, 1
      %v567 = vsel %vm564, %v565, %v566
      %v568 = vrot.slane %v463, 1
      %v569 = vsel %vm564, %v566, %v568
      %v570 = vrot.slane %v464, 1
      %v571 = vrot.slane %v465, 1
      %v572 = vsel %vm564, %v570, %v571
      %v573 = vrot.slane %v466, 1
      %v574 = vsel %vm564, %v571, %v573
      %v575 = vrot.slane %v467, 1
      %v576 = vrot.slane %v468, 1
      %v577 = vsel %vm564, %v575, %v576
      %v578 = vrot.slane %v469, 1
      %v579 = vsel %vm564, %v576, %v578
      %v580 = vrot.slane %v470, 1
      %v581 = vrot.slane %v471, 1
      %v582 = vsel %vm564, %v580, %v581
      %v583 = vrot.slane %v472, 1
      %v584 = vsel %vm564, %v581, %v583
      %v585 = vrot.slane %v473, 1
      %v586 = vrot.slane %v474, 1
      %v587 = vsel %vm564, %v585, %v586
      %v588 = vrot.slane %v475, 1
      %v589 = vsel %vm564, %v586, %v588
      %v590 = vrot.slane %v476, 1
      %v591 = vrot.slane %v477, 1
      %v592 = vsel %vm564, %v590, %v591
      %v593 = vrot.slane %v478, 1
      %v594 = vsel %vm564, %v591, %v593
      %v595 = vrot.slane %v479, 1
      %v596 = vrot.slane %v480, 1
      %v597 = vsel %vm564, %v595, %v596
      %v598 = vrot.slane %v481, 1
      %v599 = vsel %vm564, %v596, %v598
      %v600 = vrot.slane %v482, 1
      %v601 = vrot.slane %v483, 1
      %v602 = vsel %vm564, %v600, %v601
      %v603 = vrot.slane %v484, 1
      %v604 = vsel %vm564, %v601, %v603
      %v605 = vrot.slane %v485, 1
      %v606 = vrot.slane %v486, 1
      %v607 = vsel %vm564, %v605, %v606
      %v608 = vrot.slane %v487, 1
      %v609 = vsel %vm564, %v606, %v608
      %v610 = vrot.slane %v488, 1
      %v611 = vrot.slane %v489, 1
      %v612 = vsel %vm564, %v610, %v611
      %v613 = vrot.slane %v490, 1
      %v614 = vsel %vm564, %v611, %v613
      %v615 = vrot.slane %v491, 1
      %v616 = vrot.slane %v492, 1
      %v617 = vsel %vm564, %v615, %v616
      %v618 = vrot.slane %v493, 1
      %v619 = vsel %vm564, %v616, %v618
      %v620 = vrot.slane %v494, 1
      %v621 = vrot.slane %v495, 1
      %v622 = vsel %vm564, %v620, %v621
      %v623 = vrot.slane %v496, 1
      %v624 = vsel %vm564, %v621, %v623
      %v625 = vrot.slane %v497, 1
      %v626 = vrot.slane %v498, 1
      %v627 = vsel %vm564, %v625, %v626
      %v628 = vrot.slane %v499, 1
      %v629 = vsel %vm564, %v626, %v628
      %v630 = vrot.slane %v500, 1
      %v631 = vrot.slane %v501, 1
      %v632 = vsel %vm564, %v630, %v631
      %v633 = vrot.slane %v502, 1
      %v634 = vsel %vm564, %v631, %v633
      %v635 = vrot.slane %v503, 1
      %v636 = vrot.slane %v504, 1
      %v637 = vsel %vm564, %v635, %v636
      %v638 = vrot.slane %v505, 1
      %v639 = vsel %vm564, %v636, %v638
      %v640 = vrot.slane %v506, 1
      %v641 = vrot.slane %v507, 1
      %v642 = vsel %vm564, %v640, %v641
      %v643 = vrot.slane %v508, 1
      %v644 = vsel %vm564, %v641, %v643
      %s645 = scalar_lea.vmem %s3, 4
      %v646 = vld [vmem:[%s645] sm:$0xf]
      %vm647 = vcmask 31744
      %v648 = vsel %vm647, %v567, 0
      %v650 = vsel %vm647, %v569, 0
      %v652 = vsel %vm647, %v572, 0
      %v654 = vsel %vm647, %v574, 0
      %v656 = vsel %vm647, %v577, 0
      %v658 = vsel %vm647, %v579, 0
      %v660 = vsel %vm647, %v582, 0
      %v662 = vsel %vm647, %v584, 0
      %v664 = vsel %vm647, %v587, 0
      %v666 = vsel %vm647, %v589, 0
      %v668 = vsel %vm647, %v592, 0
      %v670 = vsel %vm647, %v594, 0
      %v672 = vsel %vm647, %v597, 0
      %v674 = vsel %vm647, %v599, 0
      %v676 = vsel %vm647, %v602, 0
      %v678 = vsel %vm647, %v604, 0
      %v680 = vsel %vm647, %v607, 0
      %v682 = vsel %vm647, %v609, 0
      %v684 = vsel %vm647, %v612, 0
      %v686 = vsel %vm647, %v614, 0
      %v688 = vsel %vm647, %v617, 0
      %v690 = vsel %vm647, %v619, 0
      %v692 = vsel %vm647, %v622, 0
      %v694 = vsel %vm647, %v624, 0
      %v696 = vsel %vm647, %v627, 0
      %v698 = vsel %vm647, %v629, 0
      %v700 = vsel %vm647, %v632, 0
      %v702 = vsel %vm647, %v634, 0
      %v704 = vsel %vm647, %v637, 0
      %v706 = vsel %vm647, %v639, 0
      %v708 = vsel %vm647, %v642, 0
      %v710 = vsel %vm647, %v644, 0
      %vm712 = vcmask 1043456
      %v714 = vsel %vm712, %v646, 0
      %716 = vmatprep.subr.mxu0 0.0
      %717 = vmatpush1.msra.mxu0 %v714
      %718 = vmatprep.subr.mxu0 0.0
      %719 = vmatpush1.msra.mxu0 0.0
      %720 = vmatprep.subr.mxu0 0.0
      %721 = vmatpush1.msra.mxu0 0.0
      %722 = vmatprep.subr.mxu0 0.0
      %723 = vmatpush1.msra.mxu0 0.0
      %724 = vmatprep.subr.mxu0 0.0
      %725 = vmatpush1.msra.mxu0 0.0
      %726 = vmatprep.subr.mxu0 0.0
      %727 = vmatpush1.msra.mxu0 0.0
      %728 = vmatprep.subr.mxu0 0.0
      %729 = vmatpush1.msra.mxu0 0.0
      %730 = vmatprep.subr.mxu0 0.0
      %731 = vmatpush1.msra.mxu0 0.0
      %732 = vmatprep.subr.mxu0 0.0
      %733 = vmatpush1.msra.mxu0 0.0
      %734 = vmatprep.subr.mxu0 0.0
      %735 = vmatpush1.msra.mxu0 0.0
      %736 = vmatprep.subr.mxu0 0.0
      %737 = vmatpush1.msra.mxu0 0.0
      %738 = vmatprep.subr.mxu0 0.0
      %739 = vmatpush1.msra.mxu0 0.0
      %740 = vmatprep.subr.mxu0 0.0
      %741 = vmatpush1.msra.mxu0 0.0
      %742 = vmatprep.subr.mxu0 0.0
      %743 = vmatpush1.msra.mxu0 0.0
      %744 = vmatprep.subr.mxu0 0.0
      %745 = vmatpush1.msra.mxu0 0.0
      %746 = vmatprep.subr.mxu0 0.0
      %747 = vmatpush1.msra.mxu0 0.0
      %748 = vmatprep.subr.mxu0 0.0
      %749 = vmatpush1.msra.mxu0 0.0
      %750 = vmatprep.subr.mxu0 0.0
      %751 = vmatpush1.msra.mxu0 0.0
      %752 = vmatprep.subr.mxu0 0.0
      %753 = vmatpush1.msra.mxu0 0.0
      %754 = vmatprep.subr.mxu0 0.0
      %755 = vmatpush1.msra.mxu0 0.0
      %756 = vmatprep.subr.mxu0 0.0
      %757 = vmatpush1.msra.mxu0 0.0
      %758 = vmatprep.subr.mxu0 0.0
      %759 = vmatpush1.msra.mxu0 0.0
      %760 = vmatprep.subr.mxu0 0.0
      %761 = vmatpush1.msra.mxu0 0.0
      %762 = vmatprep.subr.mxu0 0.0
      %763 = vmatpush1.msra.mxu0 0.0
      %764 = vmatprep.subr.mxu0 0.0
      %765 = vmatpush1.msra.mxu0 0.0
      %766 = vmatprep.subr.mxu0 0.0
      %767 = vmatpush1.msra.mxu0 0.0
      %768 = vmatprep.subr.mxu0 0.0
      %769 = vmatpush1.msra.mxu0 0.0
      %770 = vmatprep.subr.mxu0 0.0
      %771 = vmatpush1.msra.mxu0 0.0
      %772 = vmatprep.subr.mxu0 0.0
      %773 = vmatpush1.msra.mxu0 0.0
      %774 = vmatprep.subr.mxu0 0.0
      %775 = vmatpush1.msra.mxu0 0.0
      %776 = vmatprep.subr.mxu0 0.0
      %777 = vmatpush1.msra.mxu0 0.0
      %778 = vmatprep.subr.mxu0 0.0
      %779 = vmatpush1.msra.mxu0 0.0
      %780 = vmatprep.mubr.f32.mxu0 0.0
      %781 = vmatmul.mubr.f32.gmra.mrb[0].mxu0 %v648
      %v782 = vpop.f32.mrb[0].mxu0
      %v783 = vadd.f32 0.0, %v782
      %v784 = vpop.f32.mrb[0].mxu0
      %785 = vmatprep.mubr.f32.mxu0 0.0
      %786 = vmatmul.mubr.f32.gmra.mrb[0].mxu0 %v650
      %v787 = vpop.f32.mrb[0].mxu0
      %v788 = vadd.f32 0.0, %v787
      %v789 = vpop.f32.mrb[0].mxu0
      %790 = vmatprep.mubr.f32.mxu0 0.0
      %791 = vmatmul.mubr.f32.gmra.mrb[0].mxu0 %v652
      %v792 = vpop.f32.mrb[0].mxu0
      %v793 = vadd.f32 0.0, %v792
      %v794 = vpop.f32.mrb[0].mxu0
      %795 = vmatprep.mubr.f32.mxu0 0.0
      %796 = vmatmul.mubr.f32.gmra.mrb[0].mxu0 %v654
      %v797 = vpop.f32.mrb[0].mxu0
      %v798 = vadd.f32 0.0, %v797
      %v799 = vpop.f32.mrb[0].mxu0
      %800 = vmatprep.mubr.f32.mxu0 0.0
      %801 = vmatmul.mubr.f32.gmra.mrb[0].mxu0 %v656
      %v802 = vpop.f32.mrb[0].mxu0
      %v803 = vadd.f32 0.0, %v802
      %v804 = vpop.f32.mrb[0].mxu0
      %805 = vmatprep.mubr.f32.mxu0 0.0
      %806 = vmatmul.mubr.f32.gmra.mrb[0].mxu0 %v658
      %v807 = vpop.f32.mrb[0].mxu0
      %v808 = vadd.f32 0.0, %v807
      %v809 = vpop.f32.mrb[0].mxu0
      %810 = vmatprep.mubr.f32.mxu0 0.0
      %811 = vmatmul.mubr.f32.gmra.mrb[0].mxu0 %v660
      %v812 = vpop.f32.mrb[0].mxu0
      %v813 = vadd.f32 0.0, %v812
      %v814 = vpop.f32.mrb[0].mxu0
      %815 = vmatprep.mubr.f32.mxu0 0.0
      %816 = vmatmul.mubr.f32.gmra.mrb[0].mxu0 %v662
      %v817 = vpop.f32.mrb[0].mxu0
      %v818 = vadd.f32 0.0, %v817
      %v819 = vpop.f32.mrb[0].mxu0
      %820 = vmatprep.mubr.f32.mxu0 0.0
      %821 = vmatmul.mubr.f32.gmra.mrb[0].mxu0 %v664
      %v822 = vpop.f32.mrb[0].mxu0
      %v823 = vadd.f32 0.0, %v822
      %v824 = vpop.f32.mrb[0].mxu0
      %825 = vmatprep.mubr.f32.mxu0 0.0
      %826 = vmatmul.mubr.f32.gmra.mrb[0].mxu0 %v666
      %v827 = vpop.f32.mrb[0].mxu0
      %v828 = vadd.f32 0.0, %v827
      %v829 = vpop.f32.mrb[0].mxu0
      %830 = vmatprep.mubr.f32.mxu0 0.0
      %831 = vmatmul.mubr.f32.gmra.mrb[0].mxu0 %v668
      %v832 = vpop.f32.mrb[0].mxu0
      %v833 = vadd.f32 0.0, %v832
      %v834 = vpop.f32.mrb[0].mxu0
      %835 = vmatprep.mubr.f32.mxu0 0.0
      %836 = vmatmul.mubr.f32.gmra.mrb[0].mxu0 %v670
      %v837 = vpop.f32.mrb[0].mxu0
      %v838 = vadd.f32 0.0, %v837
      %v839 = vpop.f32.mrb[0].mxu0
      %840 = vmatprep.mubr.f32.mxu0 0.0
      %841 = vmatmul.mubr.f32.gmra.mrb[0].mxu0 %v672
      %v842 = vpop.f32.mrb[0].mxu0
      %v843 = vadd.f32 0.0, %v842
      %v844 = vpop.f32.mrb[0].mxu0
      %845 = vmatprep.mubr.f32.mxu0 0.0
      %846 = vmatmul.mubr.f32.gmra.mrb[0].mxu0 %v674
      %v847 = vpop.f32.mrb[0].mxu0
      %v848 = vadd.f32 0.0, %v847
      %v849 = vpop.f32.mrb[0].mxu0
      %850 = vmatprep.mubr.f32.mxu0 0.0
      %851 = vmatmul.mubr.f32.gmra.mrb[0].mxu0 %v676
      %v852 = vpop.f32.mrb[0].mxu0
      %v853 = vadd.f32 0.0, %v852
      %v854 = vpop.f32.mrb[0].mxu0
      %855 = vmatprep.mubr.f32.mxu0 0.0
      %856 = vmatmul.mubr.f32.gmra.mrb[0].mxu0 %v678
      %v857 = vpop.f32.mrb[0].mxu0
      %v858 = vadd.f32 0.0, %v857
      %v859 = vpop.f32.mrb[0].mxu0
      %860 = vmatprep.mubr.f32.mxu0 0.0
      %861 = vmatmul.mubr.f32.gmra.mrb[0].mxu0 %v680
      %v862 = vpop.f32.mrb[0].mxu0
      %v863 = vadd.f32 0.0, %v862
      %v864 = vpop.f32.mrb[0].mxu0
      %865 = vmatprep.mubr.f32.mxu0 0.0
      %866 = vmatmul.mubr.f32.gmra.mrb[0].mxu0 %v682
      %v867 = vpop.f32.mrb[0].mxu0
      %v868 = vadd.f32 0.0, %v867
      %v869 = vpop.f32.mrb[0].mxu0
      %870 = vmatprep.mubr.f32.mxu0 0.0
      %871 = vmatmul.mubr.f32.gmra.mrb[0].mxu0 %v684
      %v872 = vpop.f32.mrb[0].mxu0
      %v873 = vadd.f32 0.0, %v872
      %v874 = vpop.f32.mrb[0].mxu0
      %875 = vmatprep.mubr.f32.mxu0 0.0
      %876 = vmatmul.mubr.f32.gmra.mrb[0].mxu0 %v686
      %v877 = vpop.f32.mrb[0].mxu0
      %v878 = vadd.f32 0.0, %v877
      %v879 = vpop.f32.mrb[0].mxu0
      %880 = vmatprep.mubr.f32.mxu0 0.0
      %881 = vmatmul.mubr.f32.gmra.mrb[0].mxu0 %v688
      %v882 = vpop.f32.mrb[0].mxu0
      %v883 = vadd.f32 0.0, %v882
      %v884 = vpop.f32.mrb[0].mxu0
      %885 = vmatprep.mubr.f32.mxu0 0.0
      %886 = vmatmul.mubr.f32.gmra.mrb[0].mxu0 %v690
      %v887 = vpop.f32.mrb[0].mxu0
      %v888 = vadd.f32 0.0, %v887
      %v889 = vpop.f32.mrb[0].mxu0
      %890 = vmatprep.mubr.f32.mxu0 0.0
      %891 = vmatmul.mubr.f32.gmra.mrb[0].mxu0 %v692
      %v892 = vpop.f32.mrb[0].mxu0
      %v893 = vadd.f32 0.0, %v892
      %v894 = vpop.f32.mrb[0].mxu0
      %895 = vmatprep.mubr.f32.mxu0 0.0
      %896 = vmatmul.mubr.f32.gmra.mrb[0].mxu0 %v694
      %v897 = vpop.f32.mrb[0].mxu0
      %v898 = vadd.f32 0.0, %v897
      %v899 = vpop.f32.mrb[0].mxu0
      %900 = vmatprep.mubr.f32.mxu0 0.0
      %901 = vmatmul.mubr.f32.gmra.mrb[0].mxu0 %v696
      %v902 = vpop.f32.mrb[0].mxu0
      %v903 = vadd.f32 0.0, %v902
      %v904 = vpop.f32.mrb[0].mxu0
      %905 = vmatprep.mubr.f32.mxu0 0.0
      %906 = vmatmul.mubr.f32.gmra.mrb[0].mxu0 %v698
      %v907 = vpop.f32.mrb[0].mxu0
      %v908 = vadd.f32 0.0, %v907
      %v909 = vpop.f32.mrb[0].mxu0
      %910 = vmatprep.mubr.f32.mxu0 0.0
      %911 = vmatmul.mubr.f32.gmra.mrb[0].mxu0 %v700
      %v912 = vpop.f32.mrb[0].mxu0
      %v913 = vadd.f32 0.0, %v912
      %v914 = vpop.f32.mrb[0].mxu0
      %915 = vmatprep.mubr.f32.mxu0 0.0
      %916 = vmatmul.mubr.f32.gmra.mrb[0].mxu0 %v702
      %v917 = vpop.f32.mrb[0].mxu0
      %v918 = vadd.f32 0.0, %v917
      %v919 = vpop.f32.mrb[0].mxu0
      %920 = vmatprep.mubr.f32.mxu0 0.0
      %921 = vmatmul.mubr.f32.gmra.mrb[0].mxu0 %v704
      %v922 = vpop.f32.mrb[0].mxu0
      %v923 = vadd.f32 0.0, %v922
      %v924 = vpop.f32.mrb[0].mxu0
      %925 = vmatprep.mubr.f32.mxu0 0.0
      %926 = vmatmul.mubr.f32.gmra.mrb[0].mxu0 %v706
      %v927 = vpop.f32.mrb[0].mxu0
      %v928 = vadd.f32 0.0, %v927
      %v929 = vpop.f32.mrb[0].mxu0
      %930 = vmatprep.mubr.f32.mxu0 0.0
      %931 = vmatmul.mubr.f32.gmra.mrb[0].mxu0 %v708
      %v932 = vpop.f32.mrb[0].mxu0
      %v933 = vadd.f32 0.0, %v932
      %v934 = vpop.f32.mrb[0].mxu0
      %935 = vmatprep.mubr.f32.mxu0 0.0
      %936 = vmatmul.mubr.f32.gmra.mrb[0].mxu0 %v710
      %v937 = vpop.f32.mrb[0].mxu0
      %v938 = vadd.f32 0.0, %v937
      %v939 = vpop.f32.mrb[0].mxu0
      %940 = vdwg.mxu0
      %v941 = vsel %vm647, %v461, 0
      %v943 = vsel %vm647, %v462, 0
      %v945 = vsel %vm647, %v464, 0
      %v947 = vsel %vm647, %v465, 0
      %v949 = vsel %vm647, %v467, 0
      %v951 = vsel %vm647, %v468, 0
      %v953 = vsel %vm647, %v470, 0
      %v955 = vsel %vm647, %v471, 0
      %v957 = vsel %vm647, %v473, 0
      %v959 = vsel %vm647, %v474, 0
      %v961 = vsel %vm647, %v476, 0
      %v963 = vsel %vm647, %v477, 0
      %v965 = vsel %vm647, %v479, 0
      %v967 = vsel %vm647, %v480, 0
      %v969 = vsel %vm647, %v482, 0
      %v971 = vsel %vm647, %v483, 0
      %v973 = vsel %vm647, %v485, 0
      %v975 = vsel %vm647, %v486, 0
      %v977 = vsel %vm647, %v488, 0
      %v979 = vsel %vm647, %v489, 0
      %v981 = vsel %vm647, %v491, 0
      %v983 = vsel %vm647, %v492, 0
      %v985 = vsel %vm647, %v494, 0
      %v987 = vsel %vm647, %v495, 0
      %v989 = vsel %vm647, %v497, 0
      %v991 = vsel %vm647, %v498, 0
      %v993 = vsel %vm647, %v500, 0
      %v995 = vsel %vm647, %v501, 0
      %v997 = vsel %vm647, %v503, 0
      %v999 = vsel %vm647, %v504, 0
      %v1001 = vsel %vm647, %v506, 0
      %v1003 = vsel %vm647, %v507, 0
      %v1006 = vsel %vm712, %v515, 0
      %1008 = vmatprep.subr.mxu0 0.0
      %1009 = vmatpush1.msra.mxu0 %v1006
      %1010 = vmatprep.subr.mxu0 0.0
      %1011 = vmatpush1.msra.mxu0 0.0
      %1012 = vmatprep.subr.mxu0 0.0
      %1013 = vmatpush1.msra.mxu0 0.0
      %1014 = vmatprep.subr.mxu0 0.0
      %1015 = vmatpush1.msra.mxu0 0.0
      %1016 = vmatprep.subr.mxu0 0.0
      %1017 = vmatpush1.msra.mxu0 0.0
      %1018 = vmatprep.subr.mxu0 0.0
      %1019 = vmatpush1.msra.mxu0 0.0
      %1020 = vmatprep.subr.mxu0 0.0
      %1021 = vmatpush1.msra.mxu0 0.0
      %1022 = vmatprep.subr.mxu0 0.0
      %1023 = vmatpush1.msra.mxu0 0.0
      %1024 = vmatprep.subr.mxu0 0.0
      %1025 = vmatpush1.msra.mxu0 0.0
      %1026 = vmatprep.subr.mxu0 0.0
      %1027 = vmatpush1.msra.mxu0 0.0
      %1028 = vmatprep.subr.mxu0 0.0
      %1029 = vmatpush1.msra.mxu0 0.0
      %1030 = vmatprep.subr.mxu0 0.0
      %1031 = vmatpush1.msra.mxu0 0.0
      %1032 = vmatprep.subr.mxu0 0.0
      %1033 = vmatpush1.msra.mxu0 0.0
      %1034 = vmatprep.subr.mxu0 0.0
      %1035 = vmatpush1.msra.mxu0 0.0
      %1036 = vmatprep.subr.mxu0 0.0
      %1037 = vmatpush1.msra.mxu0 0.0
      %1038 = vmatprep.subr.mxu0 0.0
      %1039 = vmatpush1.msra.mxu0 0.0
      %1040 = vmatprep.subr.mxu0 0.0
      %1041 = vmatpush1.msra.mxu0 0.0
      %1042 = vmatprep.subr.mxu0 0.0
      %1043 = vmatpush1.msra.mxu0 0.0
      %1044 = vmatprep.subr.mxu0 0.0
      %1045 = vmatpush1.msra.mxu0 0.0
      %1046 = vmatprep.subr.mxu0 0.0
      %1047 = vmatpush1.msra.mxu0 0.0
      %1048 = vmatprep.subr.mxu0 0.0
      %1049 = vmatpush1.msra.mxu0 0.0
      %1050 = vmatprep.subr.mxu0 0.0
      %1051 = vmatpush1.msra.mxu0 0.0
      %1052 = vmatprep.subr.mxu0 0.0
      %1053 = vmatpush1.msra.mxu0 0.0
      %1054 = vmatprep.subr.mxu0 0.0
      %1055 = vmatpush1.msra.mxu0 0.0
      %1056 = vmatprep.subr.mxu0 0.0
      %1057 = vmatpush1.msra.mxu0 0.0
      %1058 = vmatprep.subr.mxu0 0.0
      %1059 = vmatpush1.msra.mxu0 0.0
      %1060 = vmatprep.subr.mxu0 0.0
      %1061 = vmatpush1.msra.mxu0 0.0
      %1062 = vmatprep.subr.mxu0 0.0
      %1063 = vmatpush1.msra.mxu0 0.0
      %1064 = vmatprep.subr.mxu0 0.0
      %1065 = vmatpush1.msra.mxu0 0.0
      %1066 = vmatprep.subr.mxu0 0.0
      %1067 = vmatpush1.msra.mxu0 0.0
      %1068 = vmatprep.subr.mxu0 0.0
      %1069 = vmatpush1.msra.mxu0 0.0
      %1070 = vmatprep.subr.mxu0 0.0
      %1071 = vmatpush1.msra.mxu0 0.0
      %1072 = vmatprep.mubr.f32.mxu0 0.0
      %1073 = vmatmul.mubr.f32.gmra.mrb[0].mxu0 %v941
      %v1074 = vpop.f32.mrb[0].mxu0
      %v1075 = vadd.f32 %v783, %v1074
      %v1076 = vpop.f32.mrb[0].mxu0
      %1077 = vmatprep.mubr.f32.mxu0 0.0
      %1078 = vmatmul.mubr.f32.gmra.mrb[0].mxu0 %v943
      %v1079 = vpop.f32.mrb[0].mxu0
      %v1080 = vadd.f32 %v788, %v1079
      %v1081 = vpop.f32.mrb[0].mxu0
      %1082 = vmatprep.mubr.f32.mxu0 0.0
      %1083 = vmatmul.mubr.f32.gmra.mrb[0].mxu0 %v945
      %v1084 = vpop.f32.mrb[0].mxu0
      %v1085 = vadd.f32 %v793, %v1084
      %v1086 = vpop.f32.mrb[0].mxu0
      %1087 = vmatprep.mubr.f32.mxu0 0.0
      %1088 = vmatmul.mubr.f32.gmra.mrb[0].mxu0 %v947
      %v1089 = vpop.f32.mrb[0].mxu0
      %v1090 = vadd.f32 %v798, %v1089
      %v1091 = vpop.f32.mrb[0].mxu0
      %1092 = vmatprep.mubr.f32.mxu0 0.0
      %1093 = vmatmul.mubr.f32.gmra.mrb[0].mxu0 %v949
      %v1094 = vpop.f32.mrb[0].mxu0
      %v1095 = vadd.f32 %v803, %v1094
      %v1096 = vpop.f32.mrb[0].mxu0
      %1097 = vmatprep.mubr.f32.mxu0 0.0
      %1098 = vmatmul.mubr.f32.gmra.mrb[0].mxu0 %v951
      %v1099 = vpop.f32.mrb[0].mxu0
      %v1100 = vadd.f32 %v808, %v1099
      %v1101 = vpop.f32.mrb[0].mxu0
      %1102 = vmatprep.mubr.f32.mxu0 0.0
      %1103 = vmatmul.mubr.f32.gmra.mrb[0].mxu0 %v953
      %v1104 = vpop.f32.mrb[0].mxu0
      %v1105 = vadd.f32 %v813, %v1104
      %v1106 = vpop.f32.mrb[0].mxu0
      %1107 = vmatprep.mubr.f32.mxu0 0.0
      %1108 = vmatmul.mubr.f32.gmra.mrb[0].mxu0 %v955
      %v1109 = vpop.f32.mrb[0].mxu0
      %v1110 = vadd.f32 %v818, %v1109
      %v1111 = vpop.f32.mrb[0].mxu0
      %1112 = vmatprep.mubr.f32.mxu0 0.0
      %1113 = vmatmul.mubr.f32.gmra.mrb[0].mxu0 %v957
      %v1114 = vpop.f32.mrb[0].mxu0
      %v1115 = vadd.f32 %v823, %v1114
      %v1116 = vpop.f32.mrb[0].mxu0
      %1117 = vmatprep.mubr.f32.mxu0 0.0
      %1118 = vmatmul.mubr.f32.gmra.mrb[0].mxu0 %v959
      %v1119 = vpop.f32.mrb[0].mxu0
      %v1120 = vadd.f32 %v828, %v1119
      %v1121 = vpop.f32.mrb[0].mxu0
      %1122 = vmatprep.mubr.f32.mxu0 0.0
      %1123 = vmatmul.mubr.f32.gmra.mrb[0].mxu0 %v961
      %v1124 = vpop.f32.mrb[0].mxu0
      %v1125 = vadd.f32 %v833, %v1124
      %v1126 = vpop.f32.mrb[0].mxu0
      %1127 = vmatprep.mubr.f32.mxu0 0.0
      %1128 = vmatmul.mubr.f32.gmra.mrb[0].mxu0 %v963
      %v1129 = vpop.f32.mrb[0].mxu0
      %v1130 = vadd.f32 %v838, %v1129
      %v1131 = vpop.f32.mrb[0].mxu0
      %1132 = vmatprep.mubr.f32.mxu0 0.0
      %1133 = vmatmul.mubr.f32.gmra.mrb[0].mxu0 %v965
      %v1134 = vpop.f32.mrb[0].mxu0
      %v1135 = vadd.f32 %v843, %v1134
      %v1136 = vpop.f32.mrb[0].mxu0
      %1137 = vmatprep.mubr.f32.mxu0 0.0
      %1138 = vmatmul.mubr.f32.gmra.mrb[0].mxu0 %v967
      %v1139 = vpop.f32.mrb[0].mxu0
      %v1140 = vadd.f32 %v848, %v1139
      %v1141 = vpop.f32.mrb[0].mxu0
      %1142 = vmatprep.mubr.f32.mxu0 0.0
      %1143 = vmatmul.mubr.f32.gmra.mrb[0].mxu0 %v969
      %v1144 = vpop.f32.mrb[0].mxu0
      %v1145 = vadd.f32 %v853, %v1144
      %v1146 = vpop.f32.mrb[0].mxu0
      %1147 = vmatprep.mubr.f32.mxu0 0.0
      %1148 = vmatmul.mubr.f32.gmra.mrb[0].mxu0 %v971
      %v1149 = vpop.f32.mrb[0].mxu0
      %v1150 = vadd.f32 %v858, %v1149
      %v1151 = vpop.f32.mrb[0].mxu0
      %1152 = vmatprep.mubr.f32.mxu0 0.0
      %1153 = vmatmul.mubr.f32.gmra.mrb[0].mxu0 %v973
      %v1154 = vpop.f32.mrb[0].mxu0
      %v1155 = vadd.f32 %v863, %v1154
      %v1156 = vpop.f32.mrb[0].mxu0
      %1157 = vmatprep.mubr.f32.mxu0 0.0
      %1158 = vmatmul.mubr.f32.gmra.mrb[0].mxu0 %v975
      %v1159 = vpop.f32.mrb[0].mxu0
      %v1160 = vadd.f32 %v868, %v1159
      %v1161 = vpop.f32.mrb[0].mxu0
      %1162 = vmatprep.mubr.f32.mxu0 0.0
      %1163 = vmatmul.mubr.f32.gmra.mrb[0].mxu0 %v977
      %v1164 = vpop.f32.mrb[0].mxu0
      %v1165 = vadd.f32 %v873, %v1164
      %v1166 = vpop.f32.mrb[0].mxu0
      %1167 = vmatprep.mubr.f32.mxu0 0.0
      %1168 = vmatmul.mubr.f32.gmra.mrb[0].mxu0 %v979
      %v1169 = vpop.f32.mrb[0].mxu0
      %v1170 = vadd.f32 %v878, %v1169
      %v1171 = vpop.f32.mrb[0].mxu0
      %1172 = vmatprep.mubr.f32.mxu0 0.0
      %1173 = vmatmul.mubr.f32.gmra.mrb[0].mxu0 %v981
      %v1174 = vpop.f32.mrb[0].mxu0
      %v1175 = vadd.f32 %v883, %v1174
      %v1176 = vpop.f32.mrb[0].mxu0
      %1177 = vmatprep.mubr.f32.mxu0 0.0
      %1178 = vmatmul.mubr.f32.gmra.mrb[0].mxu0 %v983
      %v1179 = vpop.f32.mrb[0].mxu0
      %v1180 = vadd.f32 %v888, %v1179
      %v1181 = vpop.f32.mrb[0].mxu0
      %1182 = vmatprep.mubr.f32.mxu0 0.0
      %1183 = vmatmul.mubr.f32.gmra.mrb[0].mxu0 %v985
      %v1184 = vpop.f32.mrb[0].mxu0
      %v1185 = vadd.f32 %v893, %v1184
      %v1186 = vpop.f32.mrb[0].mxu0
      %1187 = vmatprep.mubr.f32.mxu0 0.0
      %1188 = vmatmul.mubr.f32.gmra.mrb[0].mxu0 %v987
      %v1189 = vpop.f32.mrb[0].mxu0
      %v1190 = vadd.f32 %v898, %v1189
      %v1191 = vpop.f32.mrb[0].mxu0
      %1192 = vmatprep.mubr.f32.mxu0 0.0
      %1193 = vmatmul.mubr.f32.gmra.mrb[0].mxu0 %v989
      %v1194 = vpop.f32.mrb[0].mxu0
      %v1195 = vadd.f32 %v903, %v1194
      %v1196 = vpop.f32.mrb[0].mxu0
      %1197 = vmatprep.mubr.f32.mxu0 0.0
      %1198 = vmatmul.mubr.f32.gmra.mrb[0].mxu0 %v991
      %v1199 = vpop.f32.mrb[0].mxu0
      %v1200 = vadd.f32 %v908, %v1199
      %v1201 = vpop.f32.mrb[0].mxu0
      %1202 = vmatprep.mubr.f32.mxu0 0.0
      %1203 = vmatmul.mubr.f32.gmra.mrb[0].mxu0 %v993
      %v1204 = vpop.f32.mrb[0].mxu0
      %v1205 = vadd.f32 %v913, %v1204
      %v1206 = vpop.f32.mrb[0].mxu0
      %1207 = vmatprep.mubr.f32.mxu0 0.0
      %1208 = vmatmul.mubr.f32.gmra.mrb[0].mxu0 %v995
      %v1209 = vpop.f32.mrb[0].mxu0
      %v1210 = vadd.f32 %v918, %v1209
      %v1211 = vpop.f32.mrb[0].mxu0
      %1212 = vmatprep.mubr.f32.mxu0 0.0
      %1213 = vmatmul.mubr.f32.gmra.mrb[0].mxu0 %v997
      %v1214 = vpop.f32.mrb[0].mxu0
      %v1215 = vadd.f32 %v923, %v1214
      %v1216 = vpop.f32.mrb[0].mxu0
      %1217 = vmatprep.mubr.f32.mxu0 0.0
      %1218 = vmatmul.mubr.f32.gmra.mrb[0].mxu0 %v999
      %v1219 = vpop.f32.mrb[0].mxu0
      %v1220 = vadd.f32 %v928, %v1219
      %v1221 = vpop.f32.mrb[0].mxu0
      %1222 = vmatprep.mubr.f32.mxu0 0.0
      %1223 = vmatmul.mubr.f32.gmra.mrb[0].mxu0 %v1001
      %v1224 = vpop.f32.mrb[0].mxu0
      %v1225 = vadd.f32 %v933, %v1224
      %v1226 = vpop.f32.mrb[0].mxu0
      %1227 = vmatprep.mubr.f32.mxu0 0.0
      %1228 = vmatmul.mubr.f32.gmra.mrb[0].mxu0 %v1003
      %v1229 = vpop.f32.mrb[0].mxu0
      %v1230 = vadd.f32 %v938, %v1229
      %v1231 = vpop.f32.mrb[0].mxu0
      %1232 = vdwg.mxu0
      %vm1233 = vcmask 1045504
      %v1234 = vrot.slane %v461, 2
      %v1235 = vrot.slane %v462, 2
      %v1236 = vsel %vm1233, %v1234, %v1235
      %v1237 = vrot.slane %v463, 2
      %v1238 = vsel %vm1233, %v1235, %v1237
      %v1239 = vrot.slane %v464, 2
      %v1240 = vrot.slane %v465, 2
      %v1241 = vsel %vm1233, %v1239, %v1240
      %v1242 = vrot.slane %v466, 2
      %v1243 = vsel %vm1233, %v1240, %v1242
      %v1244 = vrot.slane %v467, 2
      %v1245 = vrot.slane %v468, 2
      %v1246 = vsel %vm1233, %v1244, %v1245
      %v1247 = vrot.slane %v469, 2
      %v1248 = vsel %vm1233, %v1245, %v1247
      %v1249 = vrot.slane %v470, 2
      %v1250 = vrot.slane %v471, 2
      %v1251 = vsel %vm1233, %v1249, %v1250
      %v1252 = vrot.slane %v472, 2
      %v1253 = vsel %vm1233, %v1250, %v1252
      %v1254 = vrot.slane %v473, 2
      %v1255 = vrot.slane %v474, 2
      %v1256 = vsel %vm1233, %v1254, %v1255
      %v1257 = vrot.slane %v475, 2
      %v1258 = vsel %vm1233, %v1255, %v1257
      %v1259 = vrot.slane %v476, 2
      %v1260 = vrot.slane %v477, 2
      %v1261 = vsel %vm1233, %v1259, %v1260
      %v1262 = vrot.slane %v478, 2
      %v1263 = vsel %vm1233, %v1260, %v1262
      %v1264 = vrot.slane %v479, 2
      %v1265 = vrot.slane %v480, 2
      %v1266 = vsel %vm1233, %v1264, %v1265
      %v1267 = vrot.slane %v481, 2
      %v1268 = vsel %vm1233, %v1265, %v1267
      %v1269 = vrot.slane %v482, 2
      %v1270 = vrot.slane %v483, 2
      %v1271 = vsel %vm1233, %v1269, %v1270
      %v1272 = vrot.slane %v484, 2
      %v1273 = vsel %vm1233, %v1270, %v1272
      %v1274 = vrot.slane %v485, 2
      %v1275 = vrot.slane %v486, 2
      %v1276 = vsel %vm1233, %v1274, %v1275
      %v1277 = vrot.slane %v487, 2
      %v1278 = vsel %vm1233, %v1275, %v1277
      %v1279 = vrot.slane %v488, 2
      %v1280 = vrot.slane %v489, 2
      %v1281 = vsel %vm1233, %v1279, %v1280
      %v1282 = vrot.slane %v490, 2
      %v1283 = vsel %vm1233, %v1280, %v1282
      %v1284 = vrot.slane %v491, 2
      %v1285 = vrot.slane %v492, 2
      %v1286 = vsel %vm1233, %v1284, %v1285
      %v1287 = vrot.slane %v493, 2
      %v1288 = vsel %vm1233, %v1285, %v1287
      %v1289 = vrot.slane %v494, 2
      %v1290 = vrot.slane %v495, 2
      %v1291 = vsel %vm1233, %v1289, %v1290
      %v1292 = vrot.slane %v496, 2
      %v1293 = vsel %vm1233, %v1290, %v1292
      %v1294 = vrot.slane %v497, 2
      %v1295 = vrot.slane %v498, 2
      %v1296 = vsel %vm1233, %v1294, %v1295
      %v1297 = vrot.slane %v499, 2
      %v1298 = vsel %vm1233, %v1295, %v1297
      %v1299 = vrot.slane %v500, 2
      %v1300 = vrot.slane %v501, 2
      %v1301 = vsel %vm1233, %v1299, %v1300
      %v1302 = vrot.slane %v502, 2
      %v1303 = vsel %vm1233, %v1300, %v1302
      %v1304 = vrot.slane %v503, 2
      %v1305 = vrot.slane %v504, 2
      %v1306 = vsel %vm1233, %v1304, %v1305
      %v1307 = vrot.slane %v505, 2
      %v1308 = vsel %vm1233, %v1305, %v1307
      %v1309 = vrot.slane %v506, 2
      %v1310 = vrot.slane %v507, 2
      %v1311 = vsel %vm1233, %v1309, %v1310
      %v1312 = vrot.slane %v508, 2
      %v1313 = vsel %vm1233, %v1310, %v1312
      %s1314 = scalar_lea.vmem %s3, 8
      %v1315 = vld [vmem:[%s1314] sm:$0xf]
      %v1316 = vsel %vm647, %v1236, 0
      %v1318 = vsel %vm647, %v1238, 0
      %v1320 = vsel %vm647, %v1241, 0
      %v1322 = vsel %vm647, %v1243, 0
      %v1324 = vsel %vm647, %v1246, 0
      %v1326 = vsel %vm647, %v1248, 0
      %v1328 = vsel %vm647, %v1251, 0
      %v1330 = vsel %vm647, %v1253, 0
      %v1332 = vsel %vm647, %v1256, 0
      %v1334 = vsel %vm647, %v1258, 0
      %v1336 = vsel %vm647, %v1261, 0
      %v1338 = vsel %vm647, %v1263, 0
      %v1340 = vsel %vm647, %v1266, 0
      %v1342 = vsel %vm647, %v1268, 0
      %v1344 = vsel %vm647, %v1271, 0
      %v1346 = vsel %vm647, %v1273, 0
      %v1348 = vsel %vm647, %v1276, 0
      %v1350 = vsel %vm647, %v1278, 0
      %v1352 = vsel %vm647, %v1281, 0
      %v1354 = vsel %vm647, %v1283, 0
      %v1356 = vsel %vm647, %v1286, 0
      %v1358 = vsel %vm647, %v1288, 0
      %v1360 = vsel %vm647, %v1291, 0
      %v1362 = vsel %vm647, %v1293, 0
      %v1364 = vsel %vm647, %v1296, 0
      %v1366 = vsel %vm647, %v1298, 0
      %v1368 = vsel %vm647, %v1301, 0
      %v1370 = vsel %vm647, %v1303, 0
      %v1372 = vsel %vm647, %v1306, 0
      %v1374 = vsel %vm647, %v1308, 0
      %v1376 = vsel %vm647, %v1311, 0
      %v1378 = vsel %vm647, %v1313, 0
      %v1381 = vsel %vm712, %v1315, 0
      %1383 = vmatprep.subr.mxu0 0.0
      %1384 = vmatpush1.msra.mxu0 %v1381
      %1385 = vmatprep.subr.mxu0 0.0
      %1386 = vmatpush1.msra.mxu0 0.0
      %1387 = vmatprep.subr.mxu0 0.0
      %1388 = vmatpush1.msra.mxu0 0.0
      %1389 = vmatprep.subr.mxu0 0.0
      %1390 = vmatpush1.msra.mxu0 0.0
      %1391 = vmatprep.subr.mxu0 0.0
      %1392 = vmatpush1.msra.mxu0 0.0
      %1393 = vmatprep.subr.mxu0 0.0
      %1394 = vmatpush1.msra.mxu0 0.0
      %1395 = vmatprep.subr.mxu0 0.0
      %1396 = vmatpush1.msra.mxu0 0.0
      %1397 = vmatprep.subr.mxu0 0.0
      %1398 = vmatpush1.msra.mxu0 0.0
      %1399 = vmatprep.subr.mxu0 0.0
      %1400 = vmatpush1.msra.mxu0 0.0
      %1401 = vmatprep.subr.mxu0 0.0
      %1402 = vmatpush1.msra.mxu0 0.0
      %1403 = vmatprep.subr.mxu0 0.0
      %1404 = vmatpush1.msra.mxu0 0.0
      %1405 = vmatprep.subr.mxu0 0.0
      %1406 = vmatpush1.msra.mxu0 0.0
      %1407 = vmatprep.subr.mxu0 0.0
      %1408 = vmatpush1.msra.mxu0 0.0
      %1409 = vmatprep.subr.mxu0 0.0
      %1410 = vmatpush1.msra.mxu0 0.0
      %1411 = vmatprep.subr.mxu0 0.0
      %1412 = vmatpush1.msra.mxu0 0.0
      %1413 = vmatprep.subr.mxu0 0.0
      %1414 = vmatpush1.msra.mxu0 0.0
      %1415 = vmatprep.subr.mxu0 0.0
      %1416 = vmatpush1.msra.mxu0 0.0
      %1417 = vmatprep.subr.mxu0 0.0
      %1418 = vmatpush1.msra.mxu0 0.0
      %1419 = vmatprep.subr.mxu0 0.0
      %1420 = vmatpush1.msra.mxu0 0.0
      %1421 = vmatprep.subr.mxu0 0.0
      %1422 = vmatpush1.msra.mxu0 0.0
      %1423 = vmatprep.subr.mxu0 0.0
      %1424 = vmatpush1.msra.mxu0 0.0
      %1425 = vmatprep.subr.mxu0 0.0
      %1426 = vmatpush1.msra.mxu0 0.0
      %1427 = vmatprep.subr.mxu0 0.0
      %1428 = vmatpush1.msra.mxu0 0.0
      %1429 = vmatprep.subr.mxu0 0.0
      %1430 = vmatpush1.msra.mxu0 0.0
      %1431 = vmatprep.subr.mxu0 0.0
      %1432 = vmatpush1.msra.mxu0 0.0
      %1433 = vmatprep.subr.mxu0 0.0
      %1434 = vmatpush1.msra.mxu0 0.0
      %1435 = vmatprep.subr.mxu0 0.0
      %1436 = vmatpush1.msra.mxu0 0.0
      %1437 = vmatprep.subr.mxu0 0.0
      %1438 = vmatpush1.msra.mxu0 0.0
      %1439 = vmatprep.subr.mxu0 0.0
      %1440 = vmatpush1.msra.mxu0 0.0
      %1441 = vmatprep.subr.mxu0 0.0
      %1442 = vmatpush1.msra.mxu0 0.0
      %1443 = vmatprep.subr.mxu0 0.0
      %1444 = vmatpush1.msra.mxu0 0.0
      %1445 = vmatprep.subr.mxu0 0.0
      %1446 = vmatpush1.msra.mxu0 0.0
      %1447 = vmatprep.mubr.f32.mxu0 0.0
      %1448 = vmatmul.mubr.f32.gmra.mrb[0].mxu0 %v1316
      %v1449 = vpop.f32.mrb[0].mxu0
      %v1450 = vadd.f32 0.0, %v1449
      %v1451 = vpop.f32.mrb[0].mxu0
      %1452 = vmatprep.mubr.f32.mxu0 0.0
      %1453 = vmatmul.mubr.f32.gmra.mrb[0].mxu0 %v1318
      %v1454 = vpop.f32.mrb[0].mxu0
      %v1455 = vadd.f32 0.0, %v1454
      %v1456 = vpop.f32.mrb[0].mxu0
      %1457 = vmatprep.mubr.f32.mxu0 0.0
      %1458 = vmatmul.mubr.f32.gmra.mrb[0].mxu0 %v1320
      %v1459 = vpop.f32.mrb[0].mxu0
      %v1460 = vadd.f32 0.0, %v1459
      %v1461 = vpop.f32.mrb[0].mxu0
      %1462 = vmatprep.mubr.f32.mxu0 0.0
      %1463 = vmatmul.mubr.f32.gmra.mrb[0].mxu0 %v1322
      %v1464 = vpop.f32.mrb[0].mxu0
      %v1465 = vadd.f32 0.0, %v1464
      %v1466 = vpop.f32.mrb[0].mxu0
      %1467 = vmatprep.mubr.f32.mxu0 0.0
      %1468 = vmatmul.mubr.f32.gmra.mrb[0].mxu0 %v1324
      %v1469 = vpop.f32.mrb[0].mxu0
      %v1470 = vadd.f32 0.0, %v1469
      %v1471 = vpop.f32.mrb[0].mxu0
      %1472 = vmatprep.mubr.f32.mxu0 0.0
      %1473 = vmatmul.mubr.f32.gmra.mrb[0].mxu0 %v1326
      %v1474 = vpop.f32.mrb[0].mxu0
      %v1475 = vadd.f32 0.0, %v1474
      %v1476 = vpop.f32.mrb[0].mxu0
      %1477 = vmatprep.mubr.f32.mxu0 0.0
      %1478 = vmatmul.mubr.f32.gmra.mrb[0].mxu0 %v1328
      %v1479 = vpop.f32.mrb[0].mxu0
      %v1480 = vadd.f32 0.0, %v1479
      %v1481 = vpop.f32.mrb[0].mxu0
      %1482 = vmatprep.mubr.f32.mxu0 0.0
      %1483 = vmatmul.mubr.f32.gmra.mrb[0].mxu0 %v1330
      %v1484 = vpop.f32.mrb[0].mxu0
      %v1485 = vadd.f32 0.0, %v1484
      %v1486 = vpop.f32.mrb[0].mxu0
      %1487 = vmatprep.mubr.f32.mxu0 0.0
      %1488 = vmatmul.mubr.f32.gmra.mrb[0].mxu0 %v1332
      %v1489 = vpop.f32.mrb[0].mxu0
      %v1490 = vadd.f32 0.0, %v1489
      %v1491 = vpop.f32.mrb[0].mxu0
      %1492 = vmatprep.mubr.f32.mxu0 0.0
      %1493 = vmatmul.mubr.f32.gmra.mrb[0].mxu0 %v1334
      %v1494 = vpop.f32.mrb[0].mxu0
      %v1495 = vadd.f32 0.0, %v1494
      %v1496 = vpop.f32.mrb[0].mxu0
      %1497 = vmatprep.mubr.f32.mxu0 0.0
      %1498 = vmatmul.mubr.f32.gmra.mrb[0].mxu0 %v1336
      %v1499 = vpop.f32.mrb[0].mxu0
      %v1500 = vadd.f32 0.0, %v1499
      %v1501 = vpop.f32.mrb[0].mxu0
      %1502 = vmatprep.mubr.f32.mxu0 0.0
      %1503 = vmatmul.mubr.f32.gmra.mrb[0].mxu0 %v1338
      %v1504 = vpop.f32.mrb[0].mxu0
      %v1505 = vadd.f32 0.0, %v1504
      %v1506 = vpop.f32.mrb[0].mxu0
      %1507 = vmatprep.mubr.f32.mxu0 0.0
      %1508 = vmatmul.mubr.f32.gmra.mrb[0].mxu0 %v1340
      %v1509 = vpop.f32.mrb[0].mxu0
      %v1510 = vadd.f32 0.0, %v1509
      %v1511 = vpop.f32.mrb[0].mxu0
      %1512 = vmatprep.mubr.f32.mxu0 0.0
      %1513 = vmatmul.mubr.f32.gmra.mrb[0].mxu0 %v1342
      %v1514 = vpop.f32.mrb[0].mxu0
      %v1515 = vadd.f32 0.0, %v1514
      %v1516 = vpop.f32.mrb[0].mxu0
      %1517 = vmatprep.mubr.f32.mxu0 0.0
      %1518 = vmatmul.mubr.f32.gmra.mrb[0].mxu0 %v1344
      %v1519 = vpop.f32.mrb[0].mxu0
      %v1520 = vadd.f32 0.0, %v1519
      %v1521 = vpop.f32.mrb[0].mxu0
      %1522 = vmatprep.mubr.f32.mxu0 0.0
      %1523 = vmatmul.mubr.f32.gmra.mrb[0].mxu0 %v1346
      %v1524 = vpop.f32.mrb[0].mxu0
      %v1525 = vadd.f32 0.0, %v1524
      %v1526 = vpop.f32.mrb[0].mxu0
      %1527 = vmatprep.mubr.f32.mxu0 0.0
      %1528 = vmatmul.mubr.f32.gmra.mrb[0].mxu0 %v1348
      %v1529 = vpop.f32.mrb[0].mxu0
      %v1530 = vadd.f32 0.0, %v1529
      %v1531 = vpop.f32.mrb[0].mxu0
      %1532 = vmatprep.mubr.f32.mxu0 0.0
      %1533 = vmatmul.mubr.f32.gmra.mrb[0].mxu0 %v1350
      %v1534 = vpop.f32.mrb[0].mxu0
      %v1535 = vadd.f32 0.0, %v1534
      %v1536 = vpop.f32.mrb[0].mxu0
      %1537 = vmatprep.mubr.f32.mxu0 0.0
      %1538 = vmatmul.mubr.f32.gmra.mrb[0].mxu0 %v1352
      %v1539 = vpop.f32.mrb[0].mxu0
      %v1540 = vadd.f32 0.0, %v1539
      %v1541 = vpop.f32.mrb[0].mxu0
      %1542 = vmatprep.mubr.f32.mxu0 0.0
      %1543 = vmatmul.mubr.f32.gmra.mrb[0].mxu0 %v1354
      %v1544 = vpop.f32.mrb[0].mxu0
      %v1545 = vadd.f32 0.0, %v1544
      %v1546 = vpop.f32.mrb[0].mxu0
      %1547 = vmatprep.mubr.f32.mxu0 0.0
      %1548 = vmatmul.mubr.f32.gmra.mrb[0].mxu0 %v1356
      %v1549 = vpop.f32.mrb[0].mxu0
      %v1550 = vadd.f32 0.0, %v1549
      %v1551 = vpop.f32.mrb[0].mxu0
      %1552 = vmatprep.mubr.f32.mxu0 0.0
      %1553 = vmatmul.mubr.f32.gmra.mrb[0].mxu0 %v1358
      %v1554 = vpop.f32.mrb[0].mxu0
      %v1555 = vadd.f32 0.0, %v1554
      %v1556 = vpop.f32.mrb[0].mxu0
      %1557 = vmatprep.mubr.f32.mxu0 0.0
      %1558 = vmatmul.mubr.f32.gmra.mrb[0].mxu0 %v1360
      %v1559 = vpop.f32.mrb[0].mxu0
      %v1560 = vadd.f32 0.0, %v1559
      %v1561 = vpop.f32.mrb[0].mxu0
      %1562 = vmatprep.mubr.f32.mxu0 0.0
      %1563 = vmatmul.mubr.f32.gmra.mrb[0].mxu0 %v1362
      %v1564 = vpop.f32.mrb[0].mxu0
      %v1565 = vadd.f32 0.0, %v1564
      %v1566 = vpop.f32.mrb[0].mxu0
      %1567 = vmatprep.mubr.f32.mxu0 0.0
      %1568 = vmatmul.mubr.f32.gmra.mrb[0].mxu0 %v1364
      %v1569 = vpop.f32.mrb[0].mxu0
      %v1570 = vadd.f32 0.0, %v1569
      %v1571 = vpop.f32.mrb[0].mxu0
      %1572 = vmatprep.mubr.f32.mxu0 0.0
      %1573 = vmatmul.mubr.f32.gmra.mrb[0].mxu0 %v1366
      %v1574 = vpop.f32.mrb[0].mxu0
      %v1575 = vadd.f32 0.0, %v1574
      %v1576 = vpop.f32.mrb[0].mxu0
      %1577 = vmatprep.mubr.f32.mxu0 0.0
      %1578 = vmatmul.mubr.f32.gmra.mrb[0].mxu0 %v1368
      %v1579 = vpop.f32.mrb[0].mxu0
      %v1580 = vadd.f32 0.0, %v1579
      %v1581 = vpop.f32.mrb[0].mxu0
      %1582 = vmatprep.mubr.f32.mxu0 0.0
      %1583 = vmatmul.mubr.f32.gmra.mrb[0].mxu0 %v1370
      %v1584 = vpop.f32.mrb[0].mxu0
      %v1585 = vadd.f32 0.0, %v1584
      %v1586 = vpop.f32.mrb[0].mxu0
      %1587 = vmatprep.mubr.f32.mxu0 0.0
      %1588 = vmatmul.mubr.f32.gmra.mrb[0].mxu0 %v1372
      %v1589 = vpop.f32.mrb[0].mxu0
      %v1590 = vadd.f32 0.0, %v1589
      %v1591 = vpop.f32.mrb[0].mxu0
      %1592 = vmatprep.mubr.f32.mxu0 0.0
      %1593 = vmatmul.mubr.f32.gmra.mrb[0].mxu0 %v1374
      %v1594 = vpop.f32.mrb[0].mxu0
      %v1595 = vadd.f32 0.0, %v1594
      %v1596 = vpop.f32.mrb[0].mxu0
      %1597 = vmatprep.mubr.f32.mxu0 0.0
      %1598 = vmatmul.mubr.f32.gmra.mrb[0].mxu0 %v1376
      %v1599 = vpop.f32.mrb[0].mxu0
      %v1600 = vadd.f32 0.0, %v1599
      %v1601 = vpop.f32.mrb[0].mxu0
      %1602 = vmatprep.mubr.f32.mxu0 0.0
      %1603 = vmatmul.mubr.f32.gmra.mrb[0].mxu0 %v1378
      %v1604 = vpop.f32.mrb[0].mxu0
      %v1605 = vadd.f32 0.0, %v1604
      %v1606 = vpop.f32.mrb[0].mxu0
      %1607 = vdwg.mxu0
      %v1608 = vadd.f32 %v1075, %v1450
      %v1609 = vadd.f32 %v1080, %v1455
      %v1610 = vadd.f32 %v1085, %v1460
      %v1611 = vadd.f32 %v1090, %v1465
      %v1612 = vadd.f32 %v1095, %v1470
      %v1613 = vadd.f32 %v1100, %v1475
      %v1614 = vadd.f32 %v1105, %v1480
      %v1615 = vadd.f32 %v1110, %v1485
      %v1616 = vadd.f32 %v1115, %v1490
      %v1617 = vadd.f32 %v1120, %v1495
      %v1618 = vadd.f32 %v1125, %v1500
      %v1619 = vadd.f32 %v1130, %v1505
      %v1620 = vadd.f32 %v1135, %v1510
      %v1621 = vadd.f32 %v1140, %v1515
      %v1622 = vadd.f32 %v1145, %v1520
      %v1623 = vadd.f32 %v1150, %v1525
      %v1624 = vadd.f32 %v1155, %v1530
      %v1625 = vadd.f32 %v1160, %v1535
      %v1626 = vadd.f32 %v1165, %v1540
      %v1627 = vadd.f32 %v1170, %v1545
      %v1628 = vadd.f32 %v1175, %v1550
      %v1629 = vadd.f32 %v1180, %v1555
      %v1630 = vadd.f32 %v1185, %v1560
      %v1631 = vadd.f32 %v1190, %v1565
      %v1632 = vadd.f32 %v1195, %v1570
      %v1633 = vadd.f32 %v1200, %v1575
      %v1634 = vadd.f32 %v1205, %v1580
      %v1635 = vadd.f32 %v1210, %v1585
      %v1636 = vadd.f32 %v1215, %v1590
      %v1637 = vadd.f32 %v1220, %v1595
      %v1638 = vadd.f32 %v1225, %v1600
      %v1639 = vadd.f32 %v1230, %v1605
      %s1640 = scalar_lea.vmem %s3, 12
      %v1641 = vld [vmem:[%s1640] sm:$0xf]
      %v1643 = vsel %vm647, %v509, 0
      %v1646 = vsel %vm647, %v510, 0
      %v1649 = vsel %vm712, %v1641, 0
      %1651 = vmatprep.subr.mxu0 0.0
      %1652 = vmatpush1.msra.mxu0 %v1649
      %1653 = vmatprep.subr.mxu0 0.0
      %1654 = vmatpush1.msra.mxu0 0.0
      %1655 = vmatprep.subr.mxu0 0.0
      %1656 = vmatpush1.msra.mxu0 0.0
      %1657 = vmatprep.subr.mxu0 0.0
      %1658 = vmatpush1.msra.mxu0 0.0
      %1659 = vmatprep.subr.mxu0 0.0
      %1660 = vmatpush1.msra.mxu0 0.0
      %1661 = vmatprep.subr.mxu0 0.0
      %1662 = vmatpush1.msra.mxu0 0.0
      %1663 = vmatprep.subr.mxu0 0.0
      %1664 = vmatpush1.msra.mxu0 0.0
      %1665 = vmatprep.subr.mxu0 0.0
      %1666 = vmatpush1.msra.mxu0 0.0
      %1667 = vmatprep.subr.mxu0 0.0
      %1668 = vmatpush1.msra.mxu0 0.0
      %1669 = vmatprep.subr.mxu0 0.0
      %1670 = vmatpush1.msra.mxu0 0.0
      %1671 = vmatprep.subr.mxu0 0.0
      %1672 = vmatpush1.msra.mxu0 0.0
      %1673 = vmatprep.subr.mxu0 0.0
      %1674 = vmatpush1.msra.mxu0 0.0
      %1675 = vmatprep.subr.mxu0 0.0
      %1676 = vmatpush1.msra.mxu0 0.0
      %1677 = vmatprep.subr.mxu0 0.0
      %1678 = vmatpush1.msra.mxu0 0.0
      %1679 = vmatprep.subr.mxu0 0.0
      %1680 = vmatpush1.msra.mxu0 0.0
      %1681 = vmatprep.subr.mxu0 0.0
      %1682 = vmatpush1.msra.mxu0 0.0
      %1683 = vmatprep.subr.mxu0 0.0
      %1684 = vmatpush1.msra.mxu0 0.0
      %1685 = vmatprep.subr.mxu0 0.0
      %1686 = vmatpush1.msra.mxu0 0.0
      %1687 = vmatprep.subr.mxu0 0.0
      %1688 = vmatpush1.msra.mxu0 0.0
      %1689 = vmatprep.subr.mxu0 0.0
      %1690 = vmatpush1.msra.mxu0 0.0
      %1691 = vmatprep.subr.mxu0 0.0
      %1692 = vmatpush1.msra.mxu0 0.0
      %1693 = vmatprep.subr.mxu0 0.0
      %1694 = vmatpush1.msra.mxu0 0.0
      %1695 = vmatprep.subr.mxu0 0.0
      %1696 = vmatpush1.msra.mxu0 0.0
      %1697 = vmatprep.subr.mxu0 0.0
      %1698 = vmatpush1.msra.mxu0 0.0
      %1699 = vmatprep.subr.mxu0 0.0
      %1700 = vmatpush1.msra.mxu0 0.0
      %1701 = vmatprep.subr.mxu0 0.0
      %1702 = vmatpush1.msra.mxu0 0.0
      %1703 = vmatprep.subr.mxu0 0.0
      %1704 = vmatpush1.msra.mxu0 0.0
      %1705 = vmatprep.subr.mxu0 0.0
      %1706 = vmatpush1.msra.mxu0 0.0
      %1707 = vmatprep.subr.mxu0 0.0
      %1708 = vmatpush1.msra.mxu0 0.0
      %1709 = vmatprep.subr.mxu0 0.0
      %1710 = vmatpush1.msra.mxu0 0.0
      %1711 = vmatprep.subr.mxu0 0.0
      %1712 = vmatpush1.msra.mxu0 0.0
      %1713 = vmatprep.subr.mxu0 0.0
      %1714 = vmatpush1.msra.mxu0 0.0
      %1715 = vmatprep.mubr.f32.mxu0 0.0
      %1716 = vmatmul.mubr.f32.gmra.mrb[0].mxu0 %v945
      %v1717 = vpop.f32.mrb[0].mxu0
      %v1718 = vadd.f32 0.0, %v1717
      %v1719 = vpop.f32.mrb[0].mxu0
      %1720 = vmatprep.mubr.f32.mxu0 0.0
      %1721 = vmatmul.mubr.f32.gmra.mrb[0].mxu0 %v947
      %v1722 = vpop.f32.mrb[0].mxu0
      %v1723 = vadd.f32 0.0, %v1722
      %v1724 = vpop.f32.mrb[0].mxu0
      %1725 = vmatprep.mubr.f32.mxu0 0.0
      %1726 = vmatmul.mubr.f32.gmra.mrb[0].mxu0 %v949
      %v1727 = vpop.f32.mrb[0].mxu0
      %v1728 = vadd.f32 0.0, %v1727
      %v1729 = vpop.f32.mrb[0].mxu0
      %1730 = vmatprep.mubr.f32.mxu0 0.0
      %1731 = vmatmul.mubr.f32.gmra.mrb[0].mxu0 %v951
      %v1732 = vpop.f32.mrb[0].mxu0
      %v1733 = vadd.f32 0.0, %v1732
      %v1734 = vpop.f32.mrb[0].mxu0
      %1735 = vmatprep.mubr.f32.mxu0 0.0
      %1736 = vmatmul.mubr.f32.gmra.mrb[0].mxu0 %v953
      %v1737 = vpop.f32.mrb[0].mxu0
      %v1738 = vadd.f32 0.0, %v1737
      %v1739 = vpop.f32.mrb[0].mxu0
      %1740 = vmatprep.mubr.f32.mxu0 0.0
      %1741 = vmatmul.mubr.f32.gmra.mrb[0].mxu0 %v955
      %v1742 = vpop.f32.mrb[0].mxu0
      %v1743 = vadd.f32 0.0, %v1742
      %v1744 = vpop.f32.mrb[0].mxu0
      %1745 = vmatprep.mubr.f32.mxu0 0.0
      %1746 = vmatmul.mubr.f32.gmra.mrb[0].mxu0 %v957
      %v1747 = vpop.f32.mrb[0].mxu0
      %v1748 = vadd.f32 0.0, %v1747
      %v1749 = vpop.f32.mrb[0].mxu0
      %1750 = vmatprep.mubr.f32.mxu0 0.0
      %1751 = vmatmul.mubr.f32.gmra.mrb[0].mxu0 %v959
      %v1752 = vpop.f32.mrb[0].mxu0
      %v1753 = vadd.f32 0.0, %v1752
      %v1754 = vpop.f32.mrb[0].mxu0
      %1755 = vmatprep.mubr.f32.mxu0 0.0
      %1756 = vmatmul.mubr.f32.gmra.mrb[0].mxu0 %v961
      %v1757 = vpop.f32.mrb[0].mxu0
      %v1758 = vadd.f32 0.0, %v1757
      %v1759 = vpop.f32.mrb[0].mxu0
      %1760 = vmatprep.mubr.f32.mxu0 0.0
      %1761 = vmatmul.mubr.f32.gmra.mrb[0].mxu0 %v963
      %v1762 = vpop.f32.mrb[0].mxu0
      %v1763 = vadd.f32 0.0, %v1762
      %v1764 = vpop.f32.mrb[0].mxu0
      %1765 = vmatprep.mubr.f32.mxu0 0.0
      %1766 = vmatmul.mubr.f32.gmra.mrb[0].mxu0 %v965
      %v1767 = vpop.f32.mrb[0].mxu0
      %v1768 = vadd.f32 0.0, %v1767
      %v1769 = vpop.f32.mrb[0].mxu0
      %1770 = vmatprep.mubr.f32.mxu0 0.0
      %1771 = vmatmul.mubr.f32.gmra.mrb[0].mxu0 %v967
      %v1772 = vpop.f32.mrb[0].mxu0
      %v1773 = vadd.f32 0.0, %v1772
      %v1774 = vpop.f32.mrb[0].mxu0
      %1775 = vmatprep.mubr.f32.mxu0 0.0
      %1776 = vmatmul.mubr.f32.gmra.mrb[0].mxu0 %v969
      %v1777 = vpop.f32.mrb[0].mxu0
      %v1778 = vadd.f32 0.0, %v1777
      %v1779 = vpop.f32.mrb[0].mxu0
      %1780 = vmatprep.mubr.f32.mxu0 0.0
      %1781 = vmatmul.mubr.f32.gmra.mrb[0].mxu0 %v971
      %v1782 = vpop.f32.mrb[0].mxu0
      %v1783 = vadd.f32 0.0, %v1782
      %v1784 = vpop.f32.mrb[0].mxu0
      %1785 = vmatprep.mubr.f32.mxu0 0.0
      %1786 = vmatmul.mubr.f32.gmra.mrb[0].mxu0 %v973
      %v1787 = vpop.f32.mrb[0].mxu0
      %v1788 = vadd.f32 0.0, %v1787
      %v1789 = vpop.f32.mrb[0].mxu0
      %1790 = vmatprep.mubr.f32.mxu0 0.0
      %1791 = vmatmul.mubr.f32.gmra.mrb[0].mxu0 %v975
      %v1792 = vpop.f32.mrb[0].mxu0
      %v1793 = vadd.f32 0.0, %v1792
      %v1794 = vpop.f32.mrb[0].mxu0
      %1795 = vmatprep.mubr.f32.mxu0 0.0
      %1796 = vmatmul.mubr.f32.gmra.mrb[0].mxu0 %v977
      %v1797 = vpop.f32.mrb[0].mxu0
      %v1798 = vadd.f32 0.0, %v1797
      %v1799 = vpop.f32.mrb[0].mxu0
      %1800 = vmatprep.mubr.f32.mxu0 0.0
      %1801 = vmatmul.mubr.f32.gmra.mrb[0].mxu0 %v979
      %v1802 = vpop.f32.mrb[0].mxu0
      %v1803 = vadd.f32 0.0, %v1802
      %v1804 = vpop.f32.mrb[0].mxu0
      %1805 = vmatprep.mubr.f32.mxu0 0.0
      %1806 = vmatmul.mubr.f32.gmra.mrb[0].mxu0 %v981
      %v1807 = vpop.f32.mrb[0].mxu0
      %v1808 = vadd.f32 0.0, %v1807
      %v1809 = vpop.f32.mrb[0].mxu0
      %1810 = vmatprep.mubr.f32.mxu0 0.0
      %1811 = vmatmul.mubr.f32.gmra.mrb[0].mxu0 %v983
      %v1812 = vpop.f32.mrb[0].mxu0
      %v1813 = vadd.f32 0.0, %v1812
      %v1814 = vpop.f32.mrb[0].mxu0
      %1815 = vmatprep.mubr.f32.mxu0 0.0
      %1816 = vmatmul.mubr.f32.gmra.mrb[0].mxu0 %v985
      %v1817 = vpop.f32.mrb[0].mxu0
      %v1818 = vadd.f32 0.0, %v1817
      %v1819 = vpop.f32.mrb[0].mxu0
      %1820 = vmatprep.mubr.f32.mxu0 0.0
      %1821 = vmatmul.mubr.f32.gmra.mrb[0].mxu0 %v987
      %v1822 = vpop.f32.mrb[0].mxu0
      %v1823 = vadd.f32 0.0, %v1822
      %v1824 = vpop.f32.mrb[0].mxu0
      %1825 = vmatprep.mubr.f32.mxu0 0.0
      %1826 = vmatmul.mubr.f32.gmra.mrb[0].mxu0 %v989
      %v1827 = vpop.f32.mrb[0].mxu0
      %v1828 = vadd.f32 0.0, %v1827
      %v1829 = vpop.f32.mrb[0].mxu0
      %1830 = vmatprep.mubr.f32.mxu0 0.0
      %1831 = vmatmul.mubr.f32.gmra.mrb[0].mxu0 %v991
      %v1832 = vpop.f32.mrb[0].mxu0
      %v1833 = vadd.f32 0.0, %v1832
      %v1834 = vpop.f32.mrb[0].mxu0
      %1835 = vmatprep.mubr.f32.mxu0 0.0
      %1836 = vmatmul.mubr.f32.gmra.mrb[0].mxu0 %v993
      %v1837 = vpop.f32.mrb[0].mxu0
      %v1838 = vadd.f32 0.0, %v1837
      %v1839 = vpop.f32.mrb[0].mxu0
      %1840 = vmatprep.mubr.f32.mxu0 0.0
      %1841 = vmatmul.mubr.f32.gmra.mrb[0].mxu0 %v995
      %v1842 = vpop.f32.mrb[0].mxu0
      %v1843 = vadd.f32 0.0, %v1842
      %v1844 = vpop.f32.mrb[0].mxu0
      %1845 = vmatprep.mubr.f32.mxu0 0.0
      %1846 = vmatmul.mubr.f32.gmra.mrb[0].mxu0 %v997
      %v1847 = vpop.f32.mrb[0].mxu0
      %v1848 = vadd.f32 0.0, %v1847
      %v1849 = vpop.f32.mrb[0].mxu0
      %1850 = vmatprep.mubr.f32.mxu0 0.0
      %1851 = vmatmul.mubr.f32.gmra.mrb[0].mxu0 %v999
      %v1852 = vpop.f32.mrb[0].mxu0
      %v1853 = vadd.f32 0.0, %v1852
      %v1854 = vpop.f32.mrb[0].mxu0
      %1855 = vmatprep.mubr.f32.mxu0 0.0
      %1856 = vmatmul.mubr.f32.gmra.mrb[0].mxu0 %v1001
      %v1857 = vpop.f32.mrb[0].mxu0
      %v1858 = vadd.f32 0.0, %v1857
      %v1859 = vpop.f32.mrb[0].mxu0
      %1860 = vmatprep.mubr.f32.mxu0 0.0
      %1861 = vmatmul.mubr.f32.gmra.mrb[0].mxu0 %v1003
      %v1862 = vpop.f32.mrb[0].mxu0
      %v1863 = vadd.f32 0.0, %v1862
      %v1864 = vpop.f32.mrb[0].mxu0
      %1865 = vmatprep.mubr.f32.mxu0 0.0
      %1866 = vmatmul.mubr.f32.gmra.mrb[0].mxu0 %v1643
      %v1867 = vpop.f32.mrb[0].mxu0
      %v1868 = vadd.f32 0.0, %v1867
      %v1869 = vpop.f32.mrb[0].mxu0
      %1870 = vmatprep.mubr.f32.mxu0 0.0
      %1871 = vmatmul.mubr.f32.gmra.mrb[0].mxu0 %v1646
      %v1872 = vpop.f32.mrb[0].mxu0
      %v1873 = vadd.f32 0.0, %v1872
      %v1874 = vpop.f32.mrb[0].mxu0
      %1875 = vdwg.mxu0
      %v1876 = vadd.f32 %v1608, %v1718
      %v1877 = vadd.f32 %v1609, %v1723
      %v1878 = vadd.f32 %v1610, %v1728
      %v1879 = vadd.f32 %v1611, %v1733
      %v1880 = vadd.f32 %v1612, %v1738
      %v1881 = vadd.f32 %v1613, %v1743
      %v1882 = vadd.f32 %v1614, %v1748
      %v1883 = vadd.f32 %v1615, %v1753
      %v1884 = vadd.f32 %v1616, %v1758
      %v1885 = vadd.f32 %v1617, %v1763
      %v1886 = vadd.f32 %v1618, %v1768
      %v1887 = vadd.f32 %v1619, %v1773
      %v1888 = vadd.f32 %v1620, %v1778
      %v1889 = vadd.f32 %v1621, %v1783
      %v1890 = vadd.f32 %v1622, %v1788
      %v1891 = vadd.f32 %v1623, %v1793
      %v1892 = vadd.f32 %v1624, %v1798
      %v1893 = vadd.f32 %v1625, %v1803
      %v1894 = vadd.f32 %v1626, %v1808
      %v1895 = vadd.f32 %v1627, %v1813
      %v1896 = vadd.f32 %v1628, %v1818
      %v1897 = vadd.f32 %v1629, %v1823
      %v1898 = vadd.f32 %v1630, %v1828
      %v1899 = vadd.f32 %v1631, %v1833
      %v1900 = vadd.f32 %v1632, %v1838
      %v1901 = vadd.f32 %v1633, %v1843
      %v1902 = vadd.f32 %v1634, %v1848
      %v1903 = vadd.f32 %v1635, %v1853
      %v1904 = vadd.f32 %v1636, %v1858
      %v1905 = vadd.f32 %v1637, %v1863
      %v1906 = vadd.f32 %v1638, %v1868
      %v1907 = vadd.f32 %v1639, %v1873
      %v1909 = vrot.slane %v509, 1
      %v1910 = vrot.slane %v510, 1
      %v1911 = vsel %vm564, %v1909, %v1910
      %v1912 = vrot.slane %v511, 1
      %v1913 = vsel %vm564, %v1910, %v1912
      %s1914 = scalar_lea.vmem %s3, 16
      %v1915 = vld [vmem:[%s1914] sm:$0xf]
      %v1916 = vsel %vm647, %v1911, 0
      %v1918 = vsel %vm647, %v1913, 0
      %v1921 = vsel %vm712, %v1915, 0
      %1923 = vmatprep.subr.mxu0 0.0
      %1924 = vmatpush1.msra.mxu0 %v1921
      %1925 = vmatprep.subr.mxu0 0.0
      %1926 = vmatpush1.msra.mxu0 0.0
      %1927 = vmatprep.subr.mxu0 0.0
      %1928 = vmatpush1.msra.mxu0 0.0
      %1929 = vmatprep.subr.mxu0 0.0
      %1930 = vmatpush1.msra.mxu0 0.0
      %1931 = vmatprep.subr.mxu0 0.0
      %1932 = vmatpush1.msra.mxu0 0.0
      %1933 = vmatprep.subr.mxu0 0.0
      %1934 = vmatpush1.msra.mxu0 0.0
      %1935 = vmatprep.subr.mxu0 0.0
      %1936 = vmatpush1.msra.mxu0 0.0
      %1937 = vmatprep.subr.mxu0 0.0
      %1938 = vmatpush1.msra.mxu0 0.0
      %1939 = vmatprep.subr.mxu0 0.0
      %1940 = vmatpush1.msra.mxu0 0.0
      %1941 = vmatprep.subr.mxu0 0.0
      %1942 = vmatpush1.msra.mxu0 0.0
      %1943 = vmatprep.subr.mxu0 0.0
      %1944 = vmatpush1.msra.mxu0 0.0
      %1945 = vmatprep.subr.mxu0 0.0
      %1946 = vmatpush1.msra.mxu0 0.0
      %1947 = vmatprep.subr.mxu0 0.0
      %1948 = vmatpush1.msra.mxu0 0.0
      %1949 = vmatprep.subr.mxu0 0.0
      %1950 = vmatpush1.msra.mxu0 0.0
      %1951 = vmatprep.subr.mxu0 0.0
      %1952 = vmatpush1.msra.mxu0 0.0
      %1953 = vmatprep.subr.mxu0 0.0
      %1954 = vmatpush1.msra.mxu0 0.0
      %1955 = vmatprep.subr.mxu0 0.0
      %1956 = vmatpush1.msra.mxu0 0.0
      %1957 = vmatprep.subr.mxu0 0.0
      %1958 = vmatpush1.msra.mxu0 0.0
      %1959 = vmatprep.subr.mxu0 0.0
      %1960 = vmatpush1.msra.mxu0 0.0
      %1961 = vmatprep.subr.mxu0 0.0
      %1962 = vmatpush1.msra.mxu0 0.0
      %1963 = vmatprep.subr.mxu0 0.0
      %1964 = vmatpush1.msra.mxu0 0.0
      %1965 = vmatprep.subr.mxu0 0.0
      %1966 = vmatpush1.msra.mxu0 0.0
      %1967 = vmatprep.subr.mxu0 0.0
      %1968 = vmatpush1.msra.mxu0 0.0
      %1969 = vmatprep.subr.mxu0 0.0
      %1970 = vmatpush1.msra.mxu0 0.0
      %1971 = vmatprep.subr.mxu0 0.0
      %1972 = vmatpush1.msra.mxu0 0.0
      %1973 = vmatprep.subr.mxu0 0.0
      %1974 = vmatpush1.msra.mxu0 0.0
      %1975 = vmatprep.subr.mxu0 0.0
      %1976 = vmatpush1.msra.mxu0 0.0
      %1977 = vmatprep.subr.mxu0 0.0
      %1978 = vmatpush1.msra.mxu0 0.0
      %1979 = vmatprep.subr.mxu0 0.0
      %1980 = vmatpush1.msra.mxu0 0.0
      %1981 = vmatprep.subr.mxu0 0.0
      %1982 = vmatpush1.msra.mxu0 0.0
      %1983 = vmatprep.subr.mxu0 0.0
      %1984 = vmatpush1.msra.mxu0 0.0
      %1985 = vmatprep.subr.mxu0 0.0
      %1986 = vmatpush1.msra.mxu0 0.0
      %1987 = vmatprep.mubr.f32.mxu0 0.0
      %1988 = vmatmul.mubr.f32.gmra.mrb[0].mxu0 %v652
      %v1989 = vpop.f32.mrb[0].mxu0
      %v1990 = vadd.f32 0.0, %v1989
      %v1991 = vpop.f32.mrb[0].mxu0
      %1992 = vmatprep.mubr.f32.mxu0 0.0
      %1993 = vmatmul.mubr.f32.gmra.mrb[0].mxu0 %v654
      %v1994 = vpop.f32.mrb[0].mxu0
      %v1995 = vadd.f32 0.0, %v1994
      %v1996 = vpop.f32.mrb[0].mxu0
      %1997 = vmatprep.mubr.f32.mxu0 0.0
      %1998 = vmatmul.mubr.f32.gmra.mrb[0].mxu0 %v656
      %v1999 = vpop.f32.mrb[0].mxu0
      %v2000 = vadd.f32 0.0, %v1999
      %v2001 = vpop.f32.mrb[0].mxu0
      %2002 = vmatprep.mubr.f32.mxu0 0.0
      %2003 = vmatmul.mubr.f32.gmra.mrb[0].mxu0 %v658
      %v2004 = vpop.f32.mrb[0].mxu0
      %v2005 = vadd.f32 0.0, %v2004
      %v2006 = vpop.f32.mrb[0].mxu0
      %2007 = vmatprep.mubr.f32.mxu0 0.0
      %2008 = vmatmul.mubr.f32.gmra.mrb[0].mxu0 %v660
      %v2009 = vpop.f32.mrb[0].mxu0
      %v2010 = vadd.f32 0.0, %v2009
      %v2011 = vpop.f32.mrb[0].mxu0
      %2012 = vmatprep.mubr.f32.mxu0 0.0
      %2013 = vmatmul.mubr.f32.gmra.mrb[0].mxu0 %v662
      %v2014 = vpop.f32.mrb[0].mxu0
      %v2015 = vadd.f32 0.0, %v2014
      %v2016 = vpop.f32.mrb[0].mxu0
      %2017 = vmatprep.mubr.f32.mxu0 0.0
      %2018 = vmatmul.mubr.f32.gmra.mrb[0].mxu0 %v664
      %v2019 = vpop.f32.mrb[0].mxu0
      %v2020 = vadd.f32 0.0, %v2019
      %v2021 = vpop.f32.mrb[0].mxu0
      %2022 = vmatprep.mubr.f32.mxu0 0.0
      %2023 = vmatmul.mubr.f32.gmra.mrb[0].mxu0 %v666
      %v2024 = vpop.f32.mrb[0].mxu0
      %v2025 = vadd.f32 0.0, %v2024
      %v2026 = vpop.f32.mrb[0].mxu0
      %2027 = vmatprep.mubr.f32.mxu0 0.0
      %2028 = vmatmul.mubr.f32.gmra.mrb[0].mxu0 %v668
      %v2029 = vpop.f32.mrb[0].mxu0
      %v2030 = vadd.f32 0.0, %v2029
      %v2031 = vpop.f32.mrb[0].mxu0
      %2032 = vmatprep.mubr.f32.mxu0 0.0
      %2033 = vmatmul.mubr.f32.gmra.mrb[0].mxu0 %v670
      %v2034 = vpop.f32.mrb[0].mxu0
      %v2035 = vadd.f32 0.0, %v2034
      %v2036 = vpop.f32.mrb[0].mxu0
      %2037 = vmatprep.mubr.f32.mxu0 0.0
      %2038 = vmatmul.mubr.f32.gmra.mrb[0].mxu0 %v672
      %v2039 = vpop.f32.mrb[0].mxu0
      %v2040 = vadd.f32 0.0, %v2039
      %v2041 = vpop.f32.mrb[0].mxu0
      %2042 = vmatprep.mubr.f32.mxu0 0.0
      %2043 = vmatmul.mubr.f32.gmra.mrb[0].mxu0 %v674
      %v2044 = vpop.f32.mrb[0].mxu0
      %v2045 = vadd.f32 0.0, %v2044
      %v2046 = vpop.f32.mrb[0].mxu0
      %2047 = vmatprep.mubr.f32.mxu0 0.0
      %2048 = vmatmul.mubr.f32.gmra.mrb[0].mxu0 %v676
      %v2049 = vpop.f32.mrb[0].mxu0
      %v2050 = vadd.f32 0.0, %v2049
      %v2051 = vpop.f32.mrb[0].mxu0
      %2052 = vmatprep.mubr.f32.mxu0 0.0
      %2053 = vmatmul.mubr.f32.gmra.mrb[0].mxu0 %v678
      %v2054 = vpop.f32.mrb[0].mxu0
      %v2055 = vadd.f32 0.0, %v2054
      %v2056 = vpop.f32.mrb[0].mxu0
      %2057 = vmatprep.mubr.f32.mxu0 0.0
      %2058 = vmatmul.mubr.f32.gmra.mrb[0].mxu0 %v680
      %v2059 = vpop.f32.mrb[0].mxu0
      %v2060 = vadd.f32 0.0, %v2059
      %v2061 = vpop.f32.mrb[0].mxu0
      %2062 = vmatprep.mubr.f32.mxu0 0.0
      %2063 = vmatmul.mubr.f32.gmra.mrb[0].mxu0 %v682
      %v2064 = vpop.f32.mrb[0].mxu0
      %v2065 = vadd.f32 0.0, %v2064
      %v2066 = vpop.f32.mrb[0].mxu0
      %2067 = vmatprep.mubr.f32.mxu0 0.0
      %2068 = vmatmul.mubr.f32.gmra.mrb[0].mxu0 %v684
      %v2069 = vpop.f32.mrb[0].mxu0
      %v2070 = vadd.f32 0.0, %v2069
      %v2071 = vpop.f32.mrb[0].mxu0
      %2072 = vmatprep.mubr.f32.mxu0 0.0
      %2073 = vmatmul.mubr.f32.gmra.mrb[0].mxu0 %v686
      %v2074 = vpop.f32.mrb[0].mxu0
      %v2075 = vadd.f32 0.0, %v2074
      %v2076 = vpop.f32.mrb[0].mxu0
      %2077 = vmatprep.mubr.f32.mxu0 0.0
      %2078 = vmatmul.mubr.f32.gmra.mrb[0].mxu0 %v688
      %v2079 = vpop.f32.mrb[0].mxu0
      %v2080 = vadd.f32 0.0, %v2079
      %v2081 = vpop.f32.mrb[0].mxu0
      %2082 = vmatprep.mubr.f32.mxu0 0.0
      %2083 = vmatmul.mubr.f32.gmra.mrb[0].mxu0 %v690
      %v2084 = vpop.f32.mrb[0].mxu0
      %v2085 = vadd.f32 0.0, %v2084
      %v2086 = vpop.f32.mrb[0].mxu0
      %2087 = vmatprep.mubr.f32.mxu0 0.0
      %2088 = vmatmul.mubr.f32.gmra.mrb[0].mxu0 %v692
      %v2089 = vpop.f32.mrb[0].mxu0
      %v2090 = vadd.f32 0.0, %v2089
      %v2091 = vpop.f32.mrb[0].mxu0
      %2092 = vmatprep.mubr.f32.mxu0 0.0
      %2093 = vmatmul.mubr.f32.gmra.mrb[0].mxu0 %v694
      %v2094 = vpop.f32.mrb[0].mxu0
      %v2095 = vadd.f32 0.0, %v2094
      %v2096 = vpop.f32.mrb[0].mxu0
      %2097 = vmatprep.mubr.f32.mxu0 0.0
      %2098 = vmatmul.mubr.f32.gmra.mrb[0].mxu0 %v696
      %v2099 = vpop.f32.mrb[0].mxu0
      %v2100 = vadd.f32 0.0, %v2099
      %v2101 = vpop.f32.mrb[0].mxu0
      %2102 = vmatprep.mubr.f32.mxu0 0.0
      %2103 = vmatmul.mubr.f32.gmra.mrb[0].mxu0 %v698
      %v2104 = vpop.f32.mrb[0].mxu0
      %v2105 = vadd.f32 0.0, %v2104
      %v2106 = vpop.f32.mrb[0].mxu0
      %2107 = vmatprep.mubr.f32.mxu0 0.0
      %2108 = vmatmul.mubr.f32.gmra.mrb[0].mxu0 %v700
      %v2109 = vpop.f32.mrb[0].mxu0
      %v2110 = vadd.f32 0.0, %v2109
      %v2111 = vpop.f32.mrb[0].mxu0
      %2112 = vmatprep.mubr.f32.mxu0 0.0
      %2113 = vmatmul.mubr.f32.gmra.mrb[0].mxu0 %v702
      %v2114 = vpop.f32.mrb[0].mxu0
      %v2115 = vadd.f32 0.0, %v2114
      %v2116 = vpop.f32.mrb[0].mxu0
      %2117 = vmatprep.mubr.f32.mxu0 0.0
      %2118 = vmatmul.mubr.f32.gmra.mrb[0].mxu0 %v704
      %v2119 = vpop.f32.mrb[0].mxu0
      %v2120 = vadd.f32 0.0, %v2119
      %v2121 = vpop.f32.mrb[0].mxu0
      %2122 = vmatprep.mubr.f32.mxu0 0.0
      %2123 = vmatmul.mubr.f32.gmra.mrb[0].mxu0 %v706
      %v2124 = vpop.f32.mrb[0].mxu0
      %v2125 = vadd.f32 0.0, %v2124
      %v2126 = vpop.f32.mrb[0].mxu0
      %2127 = vmatprep.mubr.f32.mxu0 0.0
      %2128 = vmatmul.mubr.f32.gmra.mrb[0].mxu0 %v708
      %v2129 = vpop.f32.mrb[0].mxu0
      %v2130 = vadd.f32 0.0, %v2129
      %v2131 = vpop.f32.mrb[0].mxu0
      %2132 = vmatprep.mubr.f32.mxu0 0.0
      %2133 = vmatmul.mubr.f32.gmra.mrb[0].mxu0 %v710
      %v2134 = vpop.f32.mrb[0].mxu0
      %v2135 = vadd.f32 0.0, %v2134
      %v2136 = vpop.f32.mrb[0].mxu0
      %2137 = vmatprep.mubr.f32.mxu0 0.0
      %2138 = vmatmul.mubr.f32.gmra.mrb[0].mxu0 %v1916
      %v2139 = vpop.f32.mrb[0].mxu0
      %v2140 = vadd.f32 0.0, %v2139
      %v2141 = vpop.f32.mrb[0].mxu0
      %2142 = vmatprep.mubr.f32.mxu0 0.0
      %2143 = vmatmul.mubr.f32.gmra.mrb[0].mxu0 %v1918
      %v2144 = vpop.f32.mrb[0].mxu0
      %v2145 = vadd.f32 0.0, %v2144
      %v2146 = vpop.f32.mrb[0].mxu0
      %2147 = vdwg.mxu0
      %v2148 = vadd.f32 %v1876, %v1990
      %v2149 = vadd.f32 %v1877, %v1995
      %v2150 = vadd.f32 %v1878, %v2000
      %v2151 = vadd.f32 %v1879, %v2005
      %v2152 = vadd.f32 %v1880, %v2010
      %v2153 = vadd.f32 %v1881, %v2015
      %v2154 = vadd.f32 %v1882, %v2020
      %v2155 = vadd.f32 %v1883, %v2025
      %v2156 = vadd.f32 %v1884, %v2030
      %v2157 = vadd.f32 %v1885, %v2035
      %v2158 = vadd.f32 %v1886, %v2040
      %v2159 = vadd.f32 %v1887, %v2045
      %v2160 = vadd.f32 %v1888, %v2050
      %v2161 = vadd.f32 %v1889, %v2055
      %v2162 = vadd.f32 %v1890, %v2060
      %v2163 = vadd.f32 %v1891, %v2065
      %v2164 = vadd.f32 %v1892, %v2070
      %v2165 = vadd.f32 %v1893, %v2075
      %v2166 = vadd.f32 %v1894, %v2080
      %v2167 = vadd.f32 %v1895, %v2085
      %v2168 = vadd.f32 %v1896, %v2090
      %v2169 = vadd.f32 %v1897, %v2095
      %v2170 = vadd.f32 %v1898, %v2100
      %v2171 = vadd.f32 %v1899, %v2105
      %v2172 = vadd.f32 %v1900, %v2110
      %v2173 = vadd.f32 %v1901, %v2115
      %v2174 = vadd.f32 %v1902, %v2120
      %v2175 = vadd.f32 %v1903, %v2125
      %v2176 = vadd.f32 %v1904, %v2130
      %v2177 = vadd.f32 %v1905, %v2135
      %v2178 = vadd.f32 %v1906, %v2140
      %v2179 = vadd.f32 %v1907, %v2145
      %v2180 = vrot.slane %v509, 2
      %v2181 = vrot.slane %v510, 2
      %v2182 = vsel %vm1233, %v2180, %v2181
      %v2183 = vrot.slane %v511, 2
      %v2184 = vsel %vm1233, %v2181, %v2183
      %s2185 = scalar_lea.vmem %s3, 20
      %v2186 = vld [vmem:[%s2185] sm:$0xf]
      %v2187 = vsel %vm647, %v2182, 0
      %v2189 = vsel %vm647, %v2184, 0
      %v2192 = vsel %vm712, %v2186, 0
      %2194 = vmatprep.subr.mxu0 0.0
      %2195 = vmatpush1.msra.mxu0 %v2192
      %2196 = vmatprep.subr.mxu0 0.0
      %2197 = vmatpush1.msra.mxu0 0.0
      %2198 = vmatprep.subr.mxu0 0.0
      %2199 = vmatpush1.msra.mxu0 0.0
      %2200 = vmatprep.subr.mxu0 0.0
      %2201 = vmatpush1.msra.mxu0 0.0
      %2202 = vmatprep.subr.mxu0 0.0
      %2203 = vmatpush1.msra.mxu0 0.0
      %2204 = vmatprep.subr.mxu0 0.0
      %2205 = vmatpush1.msra.mxu0 0.0
      %2206 = vmatprep.subr.mxu0 0.0
      %2207 = vmatpush1.msra.mxu0 0.0
      %2208 = vmatprep.subr.mxu0 0.0
      %2209 = vmatpush1.msra.mxu0 0.0
      %2210 = vmatprep.subr.mxu0 0.0
      %2211 = vmatpush1.msra.mxu0 0.0
      %2212 = vmatprep.subr.mxu0 0.0
      %2213 = vmatpush1.msra.mxu0 0.0
      %2214 = vmatprep.subr.mxu0 0.0
      %2215 = vmatpush1.msra.mxu0 0.0
      %2216 = vmatprep.subr.mxu0 0.0
      %2217 = vmatpush1.msra.mxu0 0.0
      %2218 = vmatprep.subr.mxu0 0.0
      %2219 = vmatpush1.msra.mxu0 0.0
      %2220 = vmatprep.subr.mxu0 0.0
      %2221 = vmatpush1.msra.mxu0 0.0
      %2222 = vmatprep.subr.mxu0 0.0
      %2223 = vmatpush1.msra.mxu0 0.0
      %2224 = vmatprep.subr.mxu0 0.0
      %2225 = vmatpush1.msra.mxu0 0.0
      %2226 = vmatprep.subr.mxu0 0.0
      %2227 = vmatpush1.msra.mxu0 0.0
      %2228 = vmatprep.subr.mxu0 0.0
      %2229 = vmatpush1.msra.mxu0 0.0
      %2230 = vmatprep.subr.mxu0 0.0
      %2231 = vmatpush1.msra.mxu0 0.0
      %2232 = vmatprep.subr.mxu0 0.0
      %2233 = vmatpush1.msra.mxu0 0.0
      %2234 = vmatprep.subr.mxu0 0.0
      %2235 = vmatpush1.msra.mxu0 0.0
      %2236 = vmatprep.subr.mxu0 0.0
      %2237 = vmatpush1.msra.mxu0 0.0
      %2238 = vmatprep.subr.mxu0 0.0
      %2239 = vmatpush1.msra.mxu0 0.0
      %2240 = vmatprep.subr.mxu0 0.0
      %2241 = vmatpush1.msra.mxu0 0.0
      %2242 = vmatprep.subr.mxu0 0.0
      %2243 = vmatpush1.msra.mxu0 0.0
      %2244 = vmatprep.subr.mxu0 0.0
      %2245 = vmatpush1.msra.mxu0 0.0
      %2246 = vmatprep.subr.mxu0 0.0
      %2247 = vmatpush1.msra.mxu0 0.0
      %2248 = vmatprep.subr.mxu0 0.0
      %2249 = vmatpush1.msra.mxu0 0.0
      %2250 = vmatprep.subr.mxu0 0.0
      %2251 = vmatpush1.msra.mxu0 0.0
      %2252 = vmatprep.subr.mxu0 0.0
      %2253 = vmatpush1.msra.mxu0 0.0
      %2254 = vmatprep.subr.mxu0 0.0
      %2255 = vmatpush1.msra.mxu0 0.0
      %2256 = vmatprep.subr.mxu0 0.0
      %2257 = vmatpush1.msra.mxu0 0.0
      %2258 = vmatprep.mubr.f32.mxu0 0.0
      %2259 = vmatmul.mubr.f32.gmra.mrb[0].mxu0 %v1320
      %v2260 = vpop.f32.mrb[0].mxu0
      %v2261 = vadd.f32 0.0, %v2260
      %v2262 = vpop.f32.mrb[0].mxu0
      %2263 = vmatprep.mubr.f32.mxu0 0.0
      %2264 = vmatmul.mubr.f32.gmra.mrb[0].mxu0 %v1322
      %v2265 = vpop.f32.mrb[0].mxu0
      %v2266 = vadd.f32 0.0, %v2265
      %v2267 = vpop.f32.mrb[0].mxu0
      %2268 = vmatprep.mubr.f32.mxu0 0.0
      %2269 = vmatmul.mubr.f32.gmra.mrb[0].mxu0 %v1324
      %v2270 = vpop.f32.mrb[0].mxu0
      %v2271 = vadd.f32 0.0, %v2270
      %v2272 = vpop.f32.mrb[0].mxu0
      %2273 = vmatprep.mubr.f32.mxu0 0.0
      %2274 = vmatmul.mubr.f32.gmra.mrb[0].mxu0 %v1326
      %v2275 = vpop.f32.mrb[0].mxu0
      %v2276 = vadd.f32 0.0, %v2275
      %v2277 = vpop.f32.mrb[0].mxu0
      %2278 = vmatprep.mubr.f32.mxu0 0.0
      %2279 = vmatmul.mubr.f32.gmra.mrb[0].mxu0 %v1328
      %v2280 = vpop.f32.mrb[0].mxu0
      %v2281 = vadd.f32 0.0, %v2280
      %v2282 = vpop.f32.mrb[0].mxu0
      %2283 = vmatprep.mubr.f32.mxu0 0.0
      %2284 = vmatmul.mubr.f32.gmra.mrb[0].mxu0 %v1330
      %v2285 = vpop.f32.mrb[0].mxu0
      %v2286 = vadd.f32 0.0, %v2285
      %v2287 = vpop.f32.mrb[0].mxu0
      %2288 = vmatprep.mubr.f32.mxu0 0.0
      %2289 = vmatmul.mubr.f32.gmra.mrb[0].mxu0 %v1332
      %v2290 = vpop.f32.mrb[0].mxu0
      %v2291 = vadd.f32 0.0, %v2290
      %v2292 = vpop.f32.mrb[0].mxu0
      %2293 = vmatprep.mubr.f32.mxu0 0.0
      %2294 = vmatmul.mubr.f32.gmra.mrb[0].mxu0 %v1334
      %v2295 = vpop.f32.mrb[0].mxu0
      %v2296 = vadd.f32 0.0, %v2295
      %v2297 = vpop.f32.mrb[0].mxu0
      %2298 = vmatprep.mubr.f32.mxu0 0.0
      %2299 = vmatmul.mubr.f32.gmra.mrb[0].mxu0 %v1336
      %v2300 = vpop.f32.mrb[0].mxu0
      %v2301 = vadd.f32 0.0, %v2300
      %v2302 = vpop.f32.mrb[0].mxu0
      %2303 = vmatprep.mubr.f32.mxu0 0.0
      %2304 = vmatmul.mubr.f32.gmra.mrb[0].mxu0 %v1338
      %v2305 = vpop.f32.mrb[0].mxu0
      %v2306 = vadd.f32 0.0, %v2305
      %v2307 = vpop.f32.mrb[0].mxu0
      %2308 = vmatprep.mubr.f32.mxu0 0.0
      %2309 = vmatmul.mubr.f32.gmra.mrb[0].mxu0 %v1340
      %v2310 = vpop.f32.mrb[0].mxu0
      %v2311 = vadd.f32 0.0, %v2310
      %v2312 = vpop.f32.mrb[0].mxu0
      %2313 = vmatprep.mubr.f32.mxu0 0.0
      %2314 = vmatmul.mubr.f32.gmra.mrb[0].mxu0 %v1342
      %v2315 = vpop.f32.mrb[0].mxu0
      %v2316 = vadd.f32 0.0, %v2315
      %v2317 = vpop.f32.mrb[0].mxu0
      %2318 = vmatprep.mubr.f32.mxu0 0.0
      %2319 = vmatmul.mubr.f32.gmra.mrb[0].mxu0 %v1344
      %v2320 = vpop.f32.mrb[0].mxu0
      %v2321 = vadd.f32 0.0, %v2320
      %v2322 = vpop.f32.mrb[0].mxu0
      %2323 = vmatprep.mubr.f32.mxu0 0.0
      %2324 = vmatmul.mubr.f32.gmra.mrb[0].mxu0 %v1346
      %v2325 = vpop.f32.mrb[0].mxu0
      %v2326 = vadd.f32 0.0, %v2325
      %v2327 = vpop.f32.mrb[0].mxu0
      %2328 = vmatprep.mubr.f32.mxu0 0.0
      %2329 = vmatmul.mubr.f32.gmra.mrb[0].mxu0 %v1348
      %v2330 = vpop.f32.mrb[0].mxu0
      %v2331 = vadd.f32 0.0, %v2330
      %v2332 = vpop.f32.mrb[0].mxu0
      %2333 = vmatprep.mubr.f32.mxu0 0.0
      %2334 = vmatmul.mubr.f32.gmra.mrb[0].mxu0 %v1350
      %v2335 = vpop.f32.mrb[0].mxu0
      %v2336 = vadd.f32 0.0, %v2335
      %v2337 = vpop.f32.mrb[0].mxu0
      %2338 = vmatprep.mubr.f32.mxu0 0.0
      %2339 = vmatmul.mubr.f32.gmra.mrb[0].mxu0 %v1352
      %v2340 = vpop.f32.mrb[0].mxu0
      %v2341 = vadd.f32 0.0, %v2340
      %v2342 = vpop.f32.mrb[0].mxu0
      %2343 = vmatprep.mubr.f32.mxu0 0.0
      %2344 = vmatmul.mubr.f32.gmra.mrb[0].mxu0 %v1354
      %v2345 = vpop.f32.mrb[0].mxu0
      %v2346 = vadd.f32 0.0, %v2345
      %v2347 = vpop.f32.mrb[0].mxu0
      %2348 = vmatprep.mubr.f32.mxu0 0.0
      %2349 = vmatmul.mubr.f32.gmra.mrb[0].mxu0 %v1356
      %v2350 = vpop.f32.mrb[0].mxu0
      %v2351 = vadd.f32 0.0, %v2350
      %v2352 = vpop.f32.mrb[0].mxu0
      %2353 = vmatprep.mubr.f32.mxu0 0.0
      %2354 = vmatmul.mubr.f32.gmra.mrb[0].mxu0 %v1358
      %v2355 = vpop.f32.mrb[0].mxu0
      %v2356 = vadd.f32 0.0, %v2355
      %v2357 = vpop.f32.mrb[0].mxu0
      %2358 = vmatprep.mubr.f32.mxu0 0.0
      %2359 = vmatmul.mubr.f32.gmra.mrb[0].mxu0 %v1360
      %v2360 = vpop.f32.mrb[0].mxu0
      %v2361 = vadd.f32 0.0, %v2360
      %v2362 = vpop.f32.mrb[0].mxu0
      %2363 = vmatprep.mubr.f32.mxu0 0.0
      %2364 = vmatmul.mubr.f32.gmra.mrb[0].mxu0 %v1362
      %v2365 = vpop.f32.mrb[0].mxu0
      %v2366 = vadd.f32 0.0, %v2365
      %v2367 = vpop.f32.mrb[0].mxu0
      %2368 = vmatprep.mubr.f32.mxu0 0.0
      %2369 = vmatmul.mubr.f32.gmra.mrb[0].mxu0 %v1364
      %v2370 = vpop.f32.mrb[0].mxu0
      %v2371 = vadd.f32 0.0, %v2370
      %v2372 = vpop.f32.mrb[0].mxu0
      %2373 = vmatprep.mubr.f32.mxu0 0.0
      %2374 = vmatmul.mubr.f32.gmra.mrb[0].mxu0 %v1366
      %v2375 = vpop.f32.mrb[0].mxu0
      %v2376 = vadd.f32 0.0, %v2375
      %v2377 = vpop.f32.mrb[0].mxu0
      %2378 = vmatprep.mubr.f32.mxu0 0.0
      %2379 = vmatmul.mubr.f32.gmra.mrb[0].mxu0 %v1368
      %v2380 = vpop.f32.mrb[0].mxu0
      %v2381 = vadd.f32 0.0, %v2380
      %v2382 = vpop.f32.mrb[0].mxu0
      %2383 = vmatprep.mubr.f32.mxu0 0.0
      %2384 = vmatmul.mubr.f32.gmra.mrb[0].mxu0 %v1370
      %v2385 = vpop.f32.mrb[0].mxu0
      %v2386 = vadd.f32 0.0, %v2385
      %v2387 = vpop.f32.mrb[0].mxu0
      %2388 = vmatprep.mubr.f32.mxu0 0.0
      %2389 = vmatmul.mubr.f32.gmra.mrb[0].mxu0 %v1372
      %v2390 = vpop.f32.mrb[0].mxu0
      %v2391 = vadd.f32 0.0, %v2390
      %v2392 = vpop.f32.mrb[0].mxu0
      %2393 = vmatprep.mubr.f32.mxu0 0.0
      %2394 = vmatmul.mubr.f32.gmra.mrb[0].mxu0 %v1374
      %v2395 = vpop.f32.mrb[0].mxu0
      %v2396 = vadd.f32 0.0, %v2395
      %v2397 = vpop.f32.mrb[0].mxu0
      %2398 = vmatprep.mubr.f32.mxu0 0.0
      %2399 = vmatmul.mubr.f32.gmra.mrb[0].mxu0 %v1376
      %v2400 = vpop.f32.mrb[0].mxu0
      %v2401 = vadd.f32 0.0, %v2400
      %v2402 = vpop.f32.mrb[0].mxu0
      %2403 = vmatprep.mubr.f32.mxu0 0.0
      %2404 = vmatmul.mubr.f32.gmra.mrb[0].mxu0 %v1378
      %v2405 = vpop.f32.mrb[0].mxu0
      %v2406 = vadd.f32 0.0, %v2405
      %v2407 = vpop.f32.mrb[0].mxu0
      %2408 = vmatprep.mubr.f32.mxu0 0.0
      %2409 = vmatmul.mubr.f32.gmra.mrb[0].mxu0 %v2187
      %v2410 = vpop.f32.mrb[0].mxu0
      %v2411 = vadd.f32 0.0, %v2410
      %v2412 = vpop.f32.mrb[0].mxu0
      %2413 = vmatprep.mubr.f32.mxu0 0.0
      %2414 = vmatmul.mubr.f32.gmra.mrb[0].mxu0 %v2189
      %v2415 = vpop.f32.mrb[0].mxu0
      %v2416 = vadd.f32 0.0, %v2415
      %v2417 = vpop.f32.mrb[0].mxu0
      %2418 = vdwg.mxu0
      %v2419 = vadd.f32 %v2148, %v2261
      %v2420 = vadd.f32 %v2149, %v2266
      %v2421 = vadd.f32 %v2150, %v2271
      %v2422 = vadd.f32 %v2151, %v2276
      %v2423 = vadd.f32 %v2152, %v2281
      %v2424 = vadd.f32 %v2153, %v2286
      %v2425 = vadd.f32 %v2154, %v2291
      %v2426 = vadd.f32 %v2155, %v2296
      %v2427 = vadd.f32 %v2156, %v2301
      %v2428 = vadd.f32 %v2157, %v2306
      %v2429 = vadd.f32 %v2158, %v2311
      %v2430 = vadd.f32 %v2159, %v2316
      %v2431 = vadd.f32 %v2160, %v2321
      %v2432 = vadd.f32 %v2161, %v2326
      %v2433 = vadd.f32 %v2162, %v2331
      %v2434 = vadd.f32 %v2163, %v2336
      %v2435 = vadd.f32 %v2164, %v2341
      %v2436 = vadd.f32 %v2165, %v2346
      %v2437 = vadd.f32 %v2166, %v2351
      %v2438 = vadd.f32 %v2167, %v2356
      %v2439 = vadd.f32 %v2168, %v2361
      %v2440 = vadd.f32 %v2169, %v2366
      %v2441 = vadd.f32 %v2170, %v2371
      %v2442 = vadd.f32 %v2171, %v2376
      %v2443 = vadd.f32 %v2172, %v2381
      %v2444 = vadd.f32 %v2173, %v2386
      %v2445 = vadd.f32 %v2174, %v2391
      %v2446 = vadd.f32 %v2175, %v2396
      %v2447 = vadd.f32 %v2176, %v2401
      %v2448 = vadd.f32 %v2177, %v2406
      %v2449 = vadd.f32 %v2178, %v2411
      %v2450 = vadd.f32 %v2179, %v2416
      %s2451 = scalar_lea.vmem %s3, 24
      %v2452 = vld [vmem:[%s2451] sm:$0xf]
      %v2454 = vsel %vm647, %v512, 0
      %v2457 = vsel %vm647, %v513, 0
      %v2460 = vsel %vm712, %v2452, 0
      %2462 = vmatprep.subr.mxu0 0.0
      %2463 = vmatpush1.msra.mxu0 %v2460
      %2464 = vmatprep.subr.mxu0 0.0
      %2465 = vmatpush1.msra.mxu0 0.0
      %2466 = vmatprep.subr.mxu0 0.0
      %2467 = vmatpush1.msra.mxu0 0.0
      %2468 = vmatprep.subr.mxu0 0.0
      %2469 = vmatpush1.msra.mxu0 0.0
      %2470 = vmatprep.subr.mxu0 0.0
      %2471 = vmatpush1.msra.mxu0 0.0
      %2472 = vmatprep.subr.mxu0 0.0
      %2473 = vmatpush1.msra.mxu0 0.0
      %2474 = vmatprep.subr.mxu0 0.0
      %2475 = vmatpush1.msra.mxu0 0.0
      %2476 = vmatprep.subr.mxu0 0.0
      %2477 = vmatpush1.msra.mxu0 0.0
      %2478 = vmatprep.subr.mxu0 0.0
      %2479 = vmatpush1.msra.mxu0 0.0
      %2480 = vmatprep.subr.mxu0 0.0
      %2481 = vmatpush1.msra.mxu0 0.0
      %2482 = vmatprep.subr.mxu0 0.0
      %2483 = vmatpush1.msra.mxu0 0.0
      %2484 = vmatprep.subr.mxu0 0.0
      %2485 = vmatpush1.msra.mxu0 0.0
      %2486 = vmatprep.subr.mxu0 0.0
      %2487 = vmatpush1.msra.mxu0 0.0
      %2488 = vmatprep.subr.mxu0 0.0
      %2489 = vmatpush1.msra.mxu0 0.0
      %2490 = vmatprep.subr.mxu0 0.0
      %2491 = vmatpush1.msra.mxu0 0.0
      %2492 = vmatprep.subr.mxu0 0.0
      %2493 = vmatpush1.msra.mxu0 0.0
      %2494 = vmatprep.subr.mxu0 0.0
      %2495 = vmatpush1.msra.mxu0 0.0
      %2496 = vmatprep.subr.mxu0 0.0
      %2497 = vmatpush1.msra.mxu0 0.0
      %2498 = vmatprep.subr.mxu0 0.0
      %2499 = vmatpush1.msra.mxu0 0.0
      %2500 = vmatprep.subr.mxu0 0.0
      %2501 = vmatpush1.msra.mxu0 0.0
      %2502 = vmatprep.subr.mxu0 0.0
      %2503 = vmatpush1.msra.mxu0 0.0
      %2504 = vmatprep.subr.mxu0 0.0
      %2505 = vmatpush1.msra.mxu0 0.0
      %2506 = vmatprep.subr.mxu0 0.0
      %2507 = vmatpush1.msra.mxu0 0.0
      %2508 = vmatprep.subr.mxu0 0.0
      %2509 = vmatpush1.msra.mxu0 0.0
      %2510 = vmatprep.subr.mxu0 0.0
      %2511 = vmatpush1.msra.mxu0 0.0
      %2512 = vmatprep.subr.mxu0 0.0
      %2513 = vmatpush1.msra.mxu0 0.0
      %2514 = vmatprep.subr.mxu0 0.0
      %2515 = vmatpush1.msra.mxu0 0.0
      %2516 = vmatprep.subr.mxu0 0.0
      %2517 = vmatpush1.msra.mxu0 0.0
      %2518 = vmatprep.subr.mxu0 0.0
      %2519 = vmatpush1.msra.mxu0 0.0
      %2520 = vmatprep.subr.mxu0 0.0
      %2521 = vmatpush1.msra.mxu0 0.0
      %2522 = vmatprep.subr.mxu0 0.0
      %2523 = vmatpush1.msra.mxu0 0.0
      %2524 = vmatprep.subr.mxu0 0.0
      %2525 = vmatpush1.msra.mxu0 0.0
      %2526 = vmatprep.mubr.f32.mxu0 0.0
      %2527 = vmatmul.mubr.f32.gmra.mrb[0].mxu0 %v949
      %v2528 = vpop.f32.mrb[0].mxu0
      %v2529 = vadd.f32 0.0, %v2528
      %v2530 = vpop.f32.mrb[0].mxu0
      %2531 = vmatprep.mubr.f32.mxu0 0.0
      %2532 = vmatmul.mubr.f32.gmra.mrb[0].mxu0 %v951
      %v2533 = vpop.f32.mrb[0].mxu0
      %v2534 = vadd.f32 0.0, %v2533
      %v2535 = vpop.f32.mrb[0].mxu0
      %2536 = vmatprep.mubr.f32.mxu0 0.0
      %2537 = vmatmul.mubr.f32.gmra.mrb[0].mxu0 %v953
      %v2538 = vpop.f32.mrb[0].mxu0
      %v2539 = vadd.f32 0.0, %v2538
      %v2540 = vpop.f32.mrb[0].mxu0
      %2541 = vmatprep.mubr.f32.mxu0 0.0
      %2542 = vmatmul.mubr.f32.gmra.mrb[0].mxu0 %v955
      %v2543 = vpop.f32.mrb[0].mxu0
      %v2544 = vadd.f32 0.0, %v2543
      %v2545 = vpop.f32.mrb[0].mxu0
      %2546 = vmatprep.mubr.f32.mxu0 0.0
      %2547 = vmatmul.mubr.f32.gmra.mrb[0].mxu0 %v957
      %v2548 = vpop.f32.mrb[0].mxu0
      %v2549 = vadd.f32 0.0, %v2548
      %v2550 = vpop.f32.mrb[0].mxu0
      %2551 = vmatprep.mubr.f32.mxu0 0.0
      %2552 = vmatmul.mubr.f32.gmra.mrb[0].mxu0 %v959
      %v2553 = vpop.f32.mrb[0].mxu0
      %v2554 = vadd.f32 0.0, %v2553
      %v2555 = vpop.f32.mrb[0].mxu0
      %2556 = vmatprep.mubr.f32.mxu0 0.0
      %2557 = vmatmul.mubr.f32.gmra.mrb[0].mxu0 %v961
      %v2558 = vpop.f32.mrb[0].mxu0
      %v2559 = vadd.f32 0.0, %v2558
      %v2560 = vpop.f32.mrb[0].mxu0
      %2561 = vmatprep.mubr.f32.mxu0 0.0
      %2562 = vmatmul.mubr.f32.gmra.mrb[0].mxu0 %v963
      %v2563 = vpop.f32.mrb[0].mxu0
      %v2564 = vadd.f32 0.0, %v2563
      %v2565 = vpop.f32.mrb[0].mxu0
      %2566 = vmatprep.mubr.f32.mxu0 0.0
      %2567 = vmatmul.mubr.f32.gmra.mrb[0].mxu0 %v965
      %v2568 = vpop.f32.mrb[0].mxu0
      %v2569 = vadd.f32 0.0, %v2568
      %v2570 = vpop.f32.mrb[0].mxu0
      %2571 = vmatprep.mubr.f32.mxu0 0.0
      %2572 = vmatmul.mubr.f32.gmra.mrb[0].mxu0 %v967
      %v2573 = vpop.f32.mrb[0].mxu0
      %v2574 = vadd.f32 0.0, %v2573
      %v2575 = vpop.f32.mrb[0].mxu0
      %2576 = vmatprep.mubr.f32.mxu0 0.0
      %2577 = vmatmul.mubr.f32.gmra.mrb[0].mxu0 %v969
      %v2578 = vpop.f32.mrb[0].mxu0
      %v2579 = vadd.f32 0.0, %v2578
      %v2580 = vpop.f32.mrb[0].mxu0
      %2581 = vmatprep.mubr.f32.mxu0 0.0
      %2582 = vmatmul.mubr.f32.gmra.mrb[0].mxu0 %v971
      %v2583 = vpop.f32.mrb[0].mxu0
      %v2584 = vadd.f32 0.0, %v2583
      %v2585 = vpop.f32.mrb[0].mxu0
      %2586 = vmatprep.mubr.f32.mxu0 0.0
      %2587 = vmatmul.mubr.f32.gmra.mrb[0].mxu0 %v973
      %v2588 = vpop.f32.mrb[0].mxu0
      %v2589 = vadd.f32 0.0, %v2588
      %v2590 = vpop.f32.mrb[0].mxu0
      %2591 = vmatprep.mubr.f32.mxu0 0.0
      %2592 = vmatmul.mubr.f32.gmra.mrb[0].mxu0 %v975
      %v2593 = vpop.f32.mrb[0].mxu0
      %v2594 = vadd.f32 0.0, %v2593
      %v2595 = vpop.f32.mrb[0].mxu0
      %2596 = vmatprep.mubr.f32.mxu0 0.0
      %2597 = vmatmul.mubr.f32.gmra.mrb[0].mxu0 %v977
      %v2598 = vpop.f32.mrb[0].mxu0
      %v2599 = vadd.f32 0.0, %v2598
      %v2600 = vpop.f32.mrb[0].mxu0
      %2601 = vmatprep.mubr.f32.mxu0 0.0
      %2602 = vmatmul.mubr.f32.gmra.mrb[0].mxu0 %v979
      %v2603 = vpop.f32.mrb[0].mxu0
      %v2604 = vadd.f32 0.0, %v2603
      %v2605 = vpop.f32.mrb[0].mxu0
      %2606 = vmatprep.mubr.f32.mxu0 0.0
      %2607 = vmatmul.mubr.f32.gmra.mrb[0].mxu0 %v981
      %v2608 = vpop.f32.mrb[0].mxu0
      %v2609 = vadd.f32 0.0, %v2608
      %v2610 = vpop.f32.mrb[0].mxu0
      %2611 = vmatprep.mubr.f32.mxu0 0.0
      %2612 = vmatmul.mubr.f32.gmra.mrb[0].mxu0 %v983
      %v2613 = vpop.f32.mrb[0].mxu0
      %v2614 = vadd.f32 0.0, %v2613
      %v2615 = vpop.f32.mrb[0].mxu0
      %2616 = vmatprep.mubr.f32.mxu0 0.0
      %2617 = vmatmul.mubr.f32.gmra.mrb[0].mxu0 %v985
      %v2618 = vpop.f32.mrb[0].mxu0
      %v2619 = vadd.f32 0.0, %v2618
      %v2620 = vpop.f32.mrb[0].mxu0
      %2621 = vmatprep.mubr.f32.mxu0 0.0
      %2622 = vmatmul.mubr.f32.gmra.mrb[0].mxu0 %v987
      %v2623 = vpop.f32.mrb[0].mxu0
      %v2624 = vadd.f32 0.0, %v2623
      %v2625 = vpop.f32.mrb[0].mxu0
      %2626 = vmatprep.mubr.f32.mxu0 0.0
      %2627 = vmatmul.mubr.f32.gmra.mrb[0].mxu0 %v989
      %v2628 = vpop.f32.mrb[0].mxu0
      %v2629 = vadd.f32 0.0, %v2628
      %v2630 = vpop.f32.mrb[0].mxu0
      %2631 = vmatprep.mubr.f32.mxu0 0.0
      %2632 = vmatmul.mubr.f32.gmra.mrb[0].mxu0 %v991
      %v2633 = vpop.f32.mrb[0].mxu0
      %v2634 = vadd.f32 0.0, %v2633
      %v2635 = vpop.f32.mrb[0].mxu0
      %2636 = vmatprep.mubr.f32.mxu0 0.0
      %2637 = vmatmul.mubr.f32.gmra.mrb[0].mxu0 %v993
      %v2638 = vpop.f32.mrb[0].mxu0
      %v2639 = vadd.f32 0.0, %v2638
      %v2640 = vpop.f32.mrb[0].mxu0
      %2641 = vmatprep.mubr.f32.mxu0 0.0
      %2642 = vmatmul.mubr.f32.gmra.mrb[0].mxu0 %v995
      %v2643 = vpop.f32.mrb[0].mxu0
      %v2644 = vadd.f32 0.0, %v2643
      %v2645 = vpop.f32.mrb[0].mxu0
      %2646 = vmatprep.mubr.f32.mxu0 0.0
      %2647 = vmatmul.mubr.f32.gmra.mrb[0].mxu0 %v997
      %v2648 = vpop.f32.mrb[0].mxu0
      %v2649 = vadd.f32 0.0, %v2648
      %v2650 = vpop.f32.mrb[0].mxu0
      %2651 = vmatprep.mubr.f32.mxu0 0.0
      %2652 = vmatmul.mubr.f32.gmra.mrb[0].mxu0 %v999
      %v2653 = vpop.f32.mrb[0].mxu0
      %v2654 = vadd.f32 0.0, %v2653
      %v2655 = vpop.f32.mrb[0].mxu0
      %2656 = vmatprep.mubr.f32.mxu0 0.0
      %2657 = vmatmul.mubr.f32.gmra.mrb[0].mxu0 %v1001
      %v2658 = vpop.f32.mrb[0].mxu0
      %v2659 = vadd.f32 0.0, %v2658
      %v2660 = vpop.f32.mrb[0].mxu0
      %2661 = vmatprep.mubr.f32.mxu0 0.0
      %2662 = vmatmul.mubr.f32.gmra.mrb[0].mxu0 %v1003
      %v2663 = vpop.f32.mrb[0].mxu0
      %v2664 = vadd.f32 0.0, %v2663
      %v2665 = vpop.f32.mrb[0].mxu0
      %2666 = vmatprep.mubr.f32.mxu0 0.0
      %2667 = vmatmul.mubr.f32.gmra.mrb[0].mxu0 %v1643
      %v2668 = vpop.f32.mrb[0].mxu0
      %v2669 = vadd.f32 0.0, %v2668
      %v2670 = vpop.f32.mrb[0].mxu0
      %2671 = vmatprep.mubr.f32.mxu0 0.0
      %2672 = vmatmul.mubr.f32.gmra.mrb[0].mxu0 %v1646
      %v2673 = vpop.f32.mrb[0].mxu0
      %v2674 = vadd.f32 0.0, %v2673
      %v2675 = vpop.f32.mrb[0].mxu0
      %2676 = vmatprep.mubr.f32.mxu0 0.0
      %2677 = vmatmul.mubr.f32.gmra.mrb[0].mxu0 %v2454
      %v2678 = vpop.f32.mrb[0].mxu0
      %v2679 = vadd.f32 0.0, %v2678
      %v2680 = vpop.f32.mrb[0].mxu0
      %2681 = vmatprep.mubr.f32.mxu0 0.0
      %2682 = vmatmul.mubr.f32.gmra.mrb[0].mxu0 %v2457
      %v2683 = vpop.f32.mrb[0].mxu0
      %v2684 = vadd.f32 0.0, %v2683
      %v2685 = vpop.f32.mrb[0].mxu0
      %2686 = vdwg.mxu0
      %v2687 = vadd.f32 %v2419, %v2529
      %v2688 = vadd.f32 %v2420, %v2534
      %v2689 = vadd.f32 %v2421, %v2539
      %v2690 = vadd.f32 %v2422, %v2544
      %v2691 = vadd.f32 %v2423, %v2549
      %v2692 = vadd.f32 %v2424, %v2554
      %v2693 = vadd.f32 %v2425, %v2559
      %v2694 = vadd.f32 %v2426, %v2564
      %v2695 = vadd.f32 %v2427, %v2569
      %v2696 = vadd.f32 %v2428, %v2574
      %v2697 = vadd.f32 %v2429, %v2579
      %v2698 = vadd.f32 %v2430, %v2584
      %v2699 = vadd.f32 %v2431, %v2589
      %v2700 = vadd.f32 %v2432, %v2594
      %v2701 = vadd.f32 %v2433, %v2599
      %v2702 = vadd.f32 %v2434, %v2604
      %v2703 = vadd.f32 %v2435, %v2609
      %v2704 = vadd.f32 %v2436, %v2614
      %v2705 = vadd.f32 %v2437, %v2619
      %v2706 = vadd.f32 %v2438, %v2624
      %v2707 = vadd.f32 %v2439, %v2629
      %v2708 = vadd.f32 %v2440, %v2634
      %v2709 = vadd.f32 %v2441, %v2639
      %v2710 = vadd.f32 %v2442, %v2644
      %v2711 = vadd.f32 %v2443, %v2649
      %v2712 = vadd.f32 %v2444, %v2654
      %v2713 = vadd.f32 %v2445, %v2659
      %v2714 = vadd.f32 %v2446, %v2664
      %v2715 = vadd.f32 %v2447, %v2669
      %v2716 = vadd.f32 %v2448, %v2674
      %v2717 = vadd.f32 %v2449, %v2679
      %v2718 = vadd.f32 %v2450, %v2684
      %v2720 = vrot.slane %v512, 1
      %v2721 = vrot.slane %v513, 1
      %v2722 = vsel %vm564, %v2720, %v2721
      %v2723 = vrot.slane %v514, 1
      %v2724 = vsel %vm564, %v2721, %v2723
      %s2725 = scalar_lea.vmem %s3, 28
      %v2726 = vld [vmem:[%s2725] sm:$0xf]
      %v2727 = vsel %vm647, %v2722, 0
      %v2729 = vsel %vm647, %v2724, 0
      %v2732 = vsel %vm712, %v2726, 0
      %2734 = vmatprep.subr.mxu0 0.0
      %2735 = vmatpush1.msra.mxu0 %v2732
      %2736 = vmatprep.subr.mxu0 0.0
      %2737 = vmatpush1.msra.mxu0 0.0
      %2738 = vmatprep.subr.mxu0 0.0
      %2739 = vmatpush1.msra.mxu0 0.0
      %2740 = vmatprep.subr.mxu0 0.0
      %2741 = vmatpush1.msra.mxu0 0.0
      %2742 = vmatprep.subr.mxu0 0.0
      %2743 = vmatpush1.msra.mxu0 0.0
      %2744 = vmatprep.subr.mxu0 0.0
      %2745 = vmatpush1.msra.mxu0 0.0
      %2746 = vmatprep.subr.mxu0 0.0
      %2747 = vmatpush1.msra.mxu0 0.0
      %2748 = vmatprep.subr.mxu0 0.0
      %2749 = vmatpush1.msra.mxu0 0.0
      %2750 = vmatprep.subr.mxu0 0.0
      %2751 = vmatpush1.msra.mxu0 0.0
      %2752 = vmatprep.subr.mxu0 0.0
      %2753 = vmatpush1.msra.mxu0 0.0
      %2754 = vmatprep.subr.mxu0 0.0
      %2755 = vmatpush1.msra.mxu0 0.0
      %2756 = vmatprep.subr.mxu0 0.0
      %2757 = vmatpush1.msra.mxu0 0.0
      %2758 = vmatprep.subr.mxu0 0.0
      %2759 = vmatpush1.msra.mxu0 0.0
      %2760 = vmatprep.subr.mxu0 0.0
      %2761 = vmatpush1.msra.mxu0 0.0
      %2762 = vmatprep.subr.mxu0 0.0
      %2763 = vmatpush1.msra.mxu0 0.0
      %2764 = vmatprep.subr.mxu0 0.0
      %2765 = vmatpush1.msra.mxu0 0.0
      %2766 = vmatprep.subr.mxu0 0.0
      %2767 = vmatpush1.msra.mxu0 0.0
      %2768 = vmatprep.subr.mxu0 0.0
      %2769 = vmatpush1.msra.mxu0 0.0
      %2770 = vmatprep.subr.mxu0 0.0
      %2771 = vmatpush1.msra.mxu0 0.0
      %2772 = vmatprep.subr.mxu0 0.0
      %2773 = vmatpush1.msra.mxu0 0.0
      %2774 = vmatprep.subr.mxu0 0.0
      %2775 = vmatpush1.msra.mxu0 0.0
      %2776 = vmatprep.subr.mxu0 0.0
      %2777 = vmatpush1.msra.mxu0 0.0
      %2778 = vmatprep.subr.mxu0 0.0
      %2779 = vmatpush1.msra.mxu0 0.0
      %2780 = vmatprep.subr.mxu0 0.0
      %2781 = vmatpush1.msra.mxu0 0.0
      %2782 = vmatprep.subr.mxu0 0.0
      %2783 = vmatpush1.msra.mxu0 0.0
      %2784 = vmatprep.subr.mxu0 0.0
      %2785 = vmatpush1.msra.mxu0 0.0
      %2786 = vmatprep.subr.mxu0 0.0
      %2787 = vmatpush1.msra.mxu0 0.0
      %2788 = vmatprep.subr.mxu0 0.0
      %2789 = vmatpush1.msra.mxu0 0.0
      %2790 = vmatprep.subr.mxu0 0.0
      %2791 = vmatpush1.msra.mxu0 0.0
      %2792 = vmatprep.subr.mxu0 0.0
      %2793 = vmatpush1.msra.mxu0 0.0
      %2794 = vmatprep.subr.mxu0 0.0
      %2795 = vmatpush1.msra.mxu0 0.0
      %2796 = vmatprep.subr.mxu0 0.0
      %2797 = vmatpush1.msra.mxu0 0.0
      %2798 = vmatprep.mubr.f32.mxu0 0.0
      %2799 = vmatmul.mubr.f32.gmra.mrb[0].mxu0 %v656
      %v2800 = vpop.f32.mrb[0].mxu0
      %v2801 = vadd.f32 0.0, %v2800
      %v2802 = vpop.f32.mrb[0].mxu0
      %2803 = vmatprep.mubr.f32.mxu0 0.0
      %2804 = vmatmul.mubr.f32.gmra.mrb[0].mxu0 %v658
      %v2805 = vpop.f32.mrb[0].mxu0
      %v2806 = vadd.f32 0.0, %v2805
      %v2807 = vpop.f32.mrb[0].mxu0
      %2808 = vmatprep.mubr.f32.mxu0 0.0
      %2809 = vmatmul.mubr.f32.gmra.mrb[0].mxu0 %v660
      %v2810 = vpop.f32.mrb[0].mxu0
      %v2811 = vadd.f32 0.0, %v2810
      %v2812 = vpop.f32.mrb[0].mxu0
      %2813 = vmatprep.mubr.f32.mxu0 0.0
      %2814 = vmatmul.mubr.f32.gmra.mrb[0].mxu0 %v662
      %v2815 = vpop.f32.mrb[0].mxu0
      %v2816 = vadd.f32 0.0, %v2815
      %v2817 = vpop.f32.mrb[0].mxu0
      %2818 = vmatprep.mubr.f32.mxu0 0.0
      %2819 = vmatmul.mubr.f32.gmra.mrb[0].mxu0 %v664
      %v2820 = vpop.f32.mrb[0].mxu0
      %v2821 = vadd.f32 0.0, %v2820
      %v2822 = vpop.f32.mrb[0].mxu0
      %2823 = vmatprep.mubr.f32.mxu0 0.0
      %2824 = vmatmul.mubr.f32.gmra.mrb[0].mxu0 %v666
      %v2825 = vpop.f32.mrb[0].mxu0
      %v2826 = vadd.f32 0.0, %v2825
      %v2827 = vpop.f32.mrb[0].mxu0
      %2828 = vmatprep.mubr.f32.mxu0 0.0
      %2829 = vmatmul.mubr.f32.gmra.mrb[0].mxu0 %v668
      %v2830 = vpop.f32.mrb[0].mxu0
      %v2831 = vadd.f32 0.0, %v2830
      %v2832 = vpop.f32.mrb[0].mxu0
      %2833 = vmatprep.mubr.f32.mxu0 0.0
      %2834 = vmatmul.mubr.f32.gmra.mrb[0].mxu0 %v670
      %v2835 = vpop.f32.mrb[0].mxu0
      %v2836 = vadd.f32 0.0, %v2835
      %v2837 = vpop.f32.mrb[0].mxu0
      %2838 = vmatprep.mubr.f32.mxu0 0.0
      %2839 = vmatmul.mubr.f32.gmra.mrb[0].mxu0 %v672
      %v2840 = vpop.f32.mrb[0].mxu0
      %v2841 = vadd.f32 0.0, %v2840
      %v2842 = vpop.f32.mrb[0].mxu0
      %2843 = vmatprep.mubr.f32.mxu0 0.0
      %2844 = vmatmul.mubr.f32.gmra.mrb[0].mxu0 %v674
      %v2845 = vpop.f32.mrb[0].mxu0
      %v2846 = vadd.f32 0.0, %v2845
      %v2847 = vpop.f32.mrb[0].mxu0
      %2848 = vmatprep.mubr.f32.mxu0 0.0
      %2849 = vmatmul.mubr.f32.gmra.mrb[0].mxu0 %v676
      %v2850 = vpop.f32.mrb[0].mxu0
      %v2851 = vadd.f32 0.0, %v2850
      %v2852 = vpop.f32.mrb[0].mxu0
      %2853 = vmatprep.mubr.f32.mxu0 0.0
      %2854 = vmatmul.mubr.f32.gmra.mrb[0].mxu0 %v678
      %v2855 = vpop.f32.mrb[0].mxu0
      %v2856 = vadd.f32 0.0, %v2855
      %v2857 = vpop.f32.mrb[0].mxu0
      %2858 = vmatprep.mubr.f32.mxu0 0.0
      %2859 = vmatmul.mubr.f32.gmra.mrb[0].mxu0 %v680
      %v2860 = vpop.f32.mrb[0].mxu0
      %v2861 = vadd.f32 0.0, %v2860
      %v2862 = vpop.f32.mrb[0].mxu0
      %2863 = vmatprep.mubr.f32.mxu0 0.0
      %2864 = vmatmul.mubr.f32.gmra.mrb[0].mxu0 %v682
      %v2865 = vpop.f32.mrb[0].mxu0
      %v2866 = vadd.f32 0.0, %v2865
      %v2867 = vpop.f32.mrb[0].mxu0
      %2868 = vmatprep.mubr.f32.mxu0 0.0
      %2869 = vmatmul.mubr.f32.gmra.mrb[0].mxu0 %v684
      %v2870 = vpop.f32.mrb[0].mxu0
      %v2871 = vadd.f32 0.0, %v2870
      %v2872 = vpop.f32.mrb[0].mxu0
      %2873 = vmatprep.mubr.f32.mxu0 0.0
      %2874 = vmatmul.mubr.f32.gmra.mrb[0].mxu0 %v686
      %v2875 = vpop.f32.mrb[0].mxu0
      %v2876 = vadd.f32 0.0, %v2875
      %v2877 = vpop.f32.mrb[0].mxu0
      %2878 = vmatprep.mubr.f32.mxu0 0.0
      %2879 = vmatmul.mubr.f32.gmra.mrb[0].mxu0 %v688
      %v2880 = vpop.f32.mrb[0].mxu0
      %v2881 = vadd.f32 0.0, %v2880
      %v2882 = vpop.f32.mrb[0].mxu0
      %2883 = vmatprep.mubr.f32.mxu0 0.0
      %2884 = vmatmul.mubr.f32.gmra.mrb[0].mxu0 %v690
      %v2885 = vpop.f32.mrb[0].mxu0
      %v2886 = vadd.f32 0.0, %v2885
      %v2887 = vpop.f32.mrb[0].mxu0
      %2888 = vmatprep.mubr.f32.mxu0 0.0
      %2889 = vmatmul.mubr.f32.gmra.mrb[0].mxu0 %v692
      %v2890 = vpop.f32.mrb[0].mxu0
      %v2891 = vadd.f32 0.0, %v2890
      %v2892 = vpop.f32.mrb[0].mxu0
      %2893 = vmatprep.mubr.f32.mxu0 0.0
      %2894 = vmatmul.mubr.f32.gmra.mrb[0].mxu0 %v694
      %v2895 = vpop.f32.mrb[0].mxu0
      %v2896 = vadd.f32 0.0, %v2895
      %v2897 = vpop.f32.mrb[0].mxu0
      %2898 = vmatprep.mubr.f32.mxu0 0.0
      %2899 = vmatmul.mubr.f32.gmra.mrb[0].mxu0 %v696
      %v2900 = vpop.f32.mrb[0].mxu0
      %v2901 = vadd.f32 0.0, %v2900
      %v2902 = vpop.f32.mrb[0].mxu0
      %2903 = vmatprep.mubr.f32.mxu0 0.0
      %2904 = vmatmul.mubr.f32.gmra.mrb[0].mxu0 %v698
      %v2905 = vpop.f32.mrb[0].mxu0
      %v2906 = vadd.f32 0.0, %v2905
      %v2907 = vpop.f32.mrb[0].mxu0
      %2908 = vmatprep.mubr.f32.mxu0 0.0
      %2909 = vmatmul.mubr.f32.gmra.mrb[0].mxu0 %v700
      %v2910 = vpop.f32.mrb[0].mxu0
      %v2911 = vadd.f32 0.0, %v2910
      %v2912 = vpop.f32.mrb[0].mxu0
      %2913 = vmatprep.mubr.f32.mxu0 0.0
      %2914 = vmatmul.mubr.f32.gmra.mrb[0].mxu0 %v702
      %v2915 = vpop.f32.mrb[0].mxu0
      %v2916 = vadd.f32 0.0, %v2915
      %v2917 = vpop.f32.mrb[0].mxu0
      %2918 = vmatprep.mubr.f32.mxu0 0.0
      %2919 = vmatmul.mubr.f32.gmra.mrb[0].mxu0 %v704
      %v2920 = vpop.f32.mrb[0].mxu0
      %v2921 = vadd.f32 0.0, %v2920
      %v2922 = vpop.f32.mrb[0].mxu0
      %2923 = vmatprep.mubr.f32.mxu0 0.0
      %2924 = vmatmul.mubr.f32.gmra.mrb[0].mxu0 %v706
      %v2925 = vpop.f32.mrb[0].mxu0
      %v2926 = vadd.f32 0.0, %v2925
      %v2927 = vpop.f32.mrb[0].mxu0
      %2928 = vmatprep.mubr.f32.mxu0 0.0
      %2929 = vmatmul.mubr.f32.gmra.mrb[0].mxu0 %v708
      %v2930 = vpop.f32.mrb[0].mxu0
      %v2931 = vadd.f32 0.0, %v2930
      %v2932 = vpop.f32.mrb[0].mxu0
      %2933 = vmatprep.mubr.f32.mxu0 0.0
      %2934 = vmatmul.mubr.f32.gmra.mrb[0].mxu0 %v710
      %v2935 = vpop.f32.mrb[0].mxu0
      %v2936 = vadd.f32 0.0, %v2935
      %v2937 = vpop.f32.mrb[0].mxu0
      %2938 = vmatprep.mubr.f32.mxu0 0.0
      %2939 = vmatmul.mubr.f32.gmra.mrb[0].mxu0 %v1916
      %v2940 = vpop.f32.mrb[0].mxu0
      %v2941 = vadd.f32 0.0, %v2940
      %v2942 = vpop.f32.mrb[0].mxu0
      %2943 = vmatprep.mubr.f32.mxu0 0.0
      %2944 = vmatmul.mubr.f32.gmra.mrb[0].mxu0 %v1918
      %v2945 = vpop.f32.mrb[0].mxu0
      %v2946 = vadd.f32 0.0, %v2945
      %v2947 = vpop.f32.mrb[0].mxu0
      %2948 = vmatprep.mubr.f32.mxu0 0.0
      %2949 = vmatmul.mubr.f32.gmra.mrb[0].mxu0 %v2727
      %v2950 = vpop.f32.mrb[0].mxu0
      %v2951 = vadd.f32 0.0, %v2950
      %v2952 = vpop.f32.mrb[0].mxu0
      %2953 = vmatprep.mubr.f32.mxu0 0.0
      %2954 = vmatmul.mubr.f32.gmra.mrb[0].mxu0 %v2729
      %v2955 = vpop.f32.mrb[0].mxu0
      %v2956 = vadd.f32 0.0, %v2955
      %v2957 = vpop.f32.mrb[0].mxu0
      %2958 = vdwg.mxu0
      %v2959 = vadd.f32 %v2687, %v2801
      %v2960 = vadd.f32 %v2688, %v2806
      %v2961 = vadd.f32 %v2689, %v2811
      %v2962 = vadd.f32 %v2690, %v2816
      %v2963 = vadd.f32 %v2691, %v2821
      %v2964 = vadd.f32 %v2692, %v2826
      %v2965 = vadd.f32 %v2693, %v2831
      %v2966 = vadd.f32 %v2694, %v2836
      %v2967 = vadd.f32 %v2695, %v2841
      %v2968 = vadd.f32 %v2696, %v2846
      %v2969 = vadd.f32 %v2697, %v2851
      %v2970 = vadd.f32 %v2698, %v2856
      %v2971 = vadd.f32 %v2699, %v2861
      %v2972 = vadd.f32 %v2700, %v2866
      %v2973 = vadd.f32 %v2701, %v2871
      %v2974 = vadd.f32 %v2702, %v2876
      %v2975 = vadd.f32 %v2703, %v2881
      %v2976 = vadd.f32 %v2704, %v2886
      %v2977 = vadd.f32 %v2705, %v2891
      %v2978 = vadd.f32 %v2706, %v2896
      %v2979 = vadd.f32 %v2707, %v2901
      %v2980 = vadd.f32 %v2708, %v2906
      %v2981 = vadd.f32 %v2709, %v2911
      %v2982 = vadd.f32 %v2710, %v2916
      %v2983 = vadd.f32 %v2711, %v2921
      %v2984 = vadd.f32 %v2712, %v2926
      %v2985 = vadd.f32 %v2713, %v2931
      %v2986 = vadd.f32 %v2714, %v2936
      %v2987 = vadd.f32 %v2715, %v2941
      %v2988 = vadd.f32 %v2716, %v2946
      %v2989 = vadd.f32 %v2717, %v2951
      %v2990 = vadd.f32 %v2718, %v2956
      %v2991 = vrot.slane %v512, 2
      %v2992 = vrot.slane %v513, 2
      %v2993 = vsel %vm1233, %v2991, %v2992
      %v2994 = vrot.slane %v514, 2
      %v2995 = vsel %vm1233, %v2992, %v2994
      %s2996 = scalar_lea.vmem %s3, 32
      %v2997 = vld [vmem:[%s2996] sm:$0xf]
      %v2998 = vsel %vm647, %v2993, 0
      %v3000 = vsel %vm647, %v2995, 0
      %v3003 = vsel %vm712, %v2997, 0
      %3005 = vmatprep.subr.mxu0 0.0
      %3006 = vmatpush1.msra.mxu0 %v3003
      %3007 = vmatprep.subr.mxu0 0.0
      %3008 = vmatpush1.msra.mxu0 0.0
      %3009 = vmatprep.subr.mxu0 0.0
      %3010 = vmatpush1.msra.mxu0 0.0
      %3011 = vmatprep.subr.mxu0 0.0
      %3012 = vmatpush1.msra.mxu0 0.0
      %3013 = vmatprep.subr.mxu0 0.0
      %3014 = vmatpush1.msra.mxu0 0.0
      %3015 = vmatprep.subr.mxu0 0.0
      %3016 = vmatpush1.msra.mxu0 0.0
      %3017 = vmatprep.subr.mxu0 0.0
      %3018 = vmatpush1.msra.mxu0 0.0
      %3019 = vmatprep.subr.mxu0 0.0
      %3020 = vmatpush1.msra.mxu0 0.0
      %3021 = vmatprep.subr.mxu0 0.0
      %3022 = vmatpush1.msra.mxu0 0.0
      %3023 = vmatprep.subr.mxu0 0.0
      %3024 = vmatpush1.msra.mxu0 0.0
      %3025 = vmatprep.subr.mxu0 0.0
      %3026 = vmatpush1.msra.mxu0 0.0
      %3027 = vmatprep.subr.mxu0 0.0
      %3028 = vmatpush1.msra.mxu0 0.0
      %3029 = vmatprep.subr.mxu0 0.0
      %3030 = vmatpush1.msra.mxu0 0.0
      %3031 = vmatprep.subr.mxu0 0.0
      %3032 = vmatpush1.msra.mxu0 0.0
      %3033 = vmatprep.subr.mxu0 0.0
      %3034 = vmatpush1.msra.mxu0 0.0
      %3035 = vmatprep.subr.mxu0 0.0
      %3036 = vmatpush1.msra.mxu0 0.0
      %3037 = vmatprep.subr.mxu0 0.0
      %3038 = vmatpush1.msra.mxu0 0.0
      %3039 = vmatprep.subr.mxu0 0.0
      %3040 = vmatpush1.msra.mxu0 0.0
      %3041 = vmatprep.subr.mxu0 0.0
      %3042 = vmatpush1.msra.mxu0 0.0
      %3043 = vmatprep.subr.mxu0 0.0
      %3044 = vmatpush1.msra.mxu0 0.0
      %3045 = vmatprep.subr.mxu0 0.0
      %3046 = vmatpush1.msra.mxu0 0.0
      %3047 = vmatprep.subr.mxu0 0.0
      %3048 = vmatpush1.msra.mxu0 0.0
      %3049 = vmatprep.subr.mxu0 0.0
      %3050 = vmatpush1.msra.mxu0 0.0
      %3051 = vmatprep.subr.mxu0 0.0
      %3052 = vmatpush1.msra.mxu0 0.0
      %3053 = vmatprep.subr.mxu0 0.0
      %3054 = vmatpush1.msra.mxu0 0.0
      %3055 = vmatprep.subr.mxu0 0.0
      %3056 = vmatpush1.msra.mxu0 0.0
      %3057 = vmatprep.subr.mxu0 0.0
      %3058 = vmatpush1.msra.mxu0 0.0
      %3059 = vmatprep.subr.mxu0 0.0
      %3060 = vmatpush1.msra.mxu0 0.0
      %3061 = vmatprep.subr.mxu0 0.0
      %3062 = vmatpush1.msra.mxu0 0.0
      %3063 = vmatprep.subr.mxu0 0.0
      %3064 = vmatpush1.msra.mxu0 0.0
      %3065 = vmatprep.subr.mxu0 0.0
      %3066 = vmatpush1.msra.mxu0 0.0
      %3067 = vmatprep.subr.mxu0 0.0
      %3068 = vmatpush1.msra.mxu0 0.0
      %3069 = vmatprep.mubr.f32.mxu0 0.0
      %3070 = vmatmul.mubr.f32.gmra.mrb[0].mxu0 %v1324
      %v3071 = vpop.f32.mrb[0].mxu0
      %v3072 = vadd.f32 0.0, %v3071
      %v3073 = vpop.f32.mrb[0].mxu0
      %3074 = vmatprep.mubr.f32.mxu0 0.0
      %3075 = vmatmul.mubr.f32.gmra.mrb[0].mxu0 %v1326
      %v3076 = vpop.f32.mrb[0].mxu0
      %v3077 = vadd.f32 0.0, %v3076
      %v3078 = vpop.f32.mrb[0].mxu0
      %3079 = vmatprep.mubr.f32.mxu0 0.0
      %3080 = vmatmul.mubr.f32.gmra.mrb[0].mxu0 %v1328
      %v3081 = vpop.f32.mrb[0].mxu0
      %v3082 = vadd.f32 0.0, %v3081
      %v3083 = vpop.f32.mrb[0].mxu0
      %3084 = vmatprep.mubr.f32.mxu0 0.0
      %3085 = vmatmul.mubr.f32.gmra.mrb[0].mxu0 %v1330
      %v3086 = vpop.f32.mrb[0].mxu0
      %v3087 = vadd.f32 0.0, %v3086
      %v3088 = vpop.f32.mrb[0].mxu0
      %3089 = vmatprep.mubr.f32.mxu0 0.0
      %3090 = vmatmul.mubr.f32.gmra.mrb[0].mxu0 %v1332
      %v3091 = vpop.f32.mrb[0].mxu0
      %v3092 = vadd.f32 0.0, %v3091
      %v3093 = vpop.f32.mrb[0].mxu0
      %3094 = vmatprep.mubr.f32.mxu0 0.0
      %3095 = vmatmul.mubr.f32.gmra.mrb[0].mxu0 %v1334
      %v3096 = vpop.f32.mrb[0].mxu0
      %v3097 = vadd.f32 0.0, %v3096
      %v3098 = vpop.f32.mrb[0].mxu0
      %3099 = vmatprep.mubr.f32.mxu0 0.0
      %3100 = vmatmul.mubr.f32.gmra.mrb[0].mxu0 %v1336
      %v3101 = vpop.f32.mrb[0].mxu0
      %v3102 = vadd.f32 0.0, %v3101
      %v3103 = vpop.f32.mrb[0].mxu0
      %3104 = vmatprep.mubr.f32.mxu0 0.0
      %3105 = vmatmul.mubr.f32.gmra.mrb[0].mxu0 %v1338
      %v3106 = vpop.f32.mrb[0].mxu0
      %v3107 = vadd.f32 0.0, %v3106
      %v3108 = vpop.f32.mrb[0].mxu0
      %3109 = vmatprep.mubr.f32.mxu0 0.0
      %3110 = vmatmul.mubr.f32.gmra.mrb[0].mxu0 %v1340
      %v3111 = vpop.f32.mrb[0].mxu0
      %v3112 = vadd.f32 0.0, %v3111
      %v3113 = vpop.f32.mrb[0].mxu0
      %3114 = vmatprep.mubr.f32.mxu0 0.0
      %3115 = vmatmul.mubr.f32.gmra.mrb[0].mxu0 %v1342
      %v3116 = vpop.f32.mrb[0].mxu0
      %v3117 = vadd.f32 0.0, %v3116
      %v3118 = vpop.f32.mrb[0].mxu0
      %3119 = vmatprep.mubr.f32.mxu0 0.0
      %3120 = vmatmul.mubr.f32.gmra.mrb[0].mxu0 %v1344
      %v3121 = vpop.f32.mrb[0].mxu0
      %v3122 = vadd.f32 0.0, %v3121
      %v3123 = vpop.f32.mrb[0].mxu0
      %3124 = vmatprep.mubr.f32.mxu0 0.0
      %3125 = vmatmul.mubr.f32.gmra.mrb[0].mxu0 %v1346
      %v3126 = vpop.f32.mrb[0].mxu0
      %v3127 = vadd.f32 0.0, %v3126
      %v3128 = vpop.f32.mrb[0].mxu0
      %3129 = vmatprep.mubr.f32.mxu0 0.0
      %3130 = vmatmul.mubr.f32.gmra.mrb[0].mxu0 %v1348
      %v3131 = vpop.f32.mrb[0].mxu0
      %v3132 = vadd.f32 0.0, %v3131
      %v3133 = vpop.f32.mrb[0].mxu0
      %3134 = vmatprep.mubr.f32.mxu0 0.0
      %3135 = vmatmul.mubr.f32.gmra.mrb[0].mxu0 %v1350
      %v3136 = vpop.f32.mrb[0].mxu0
      %v3137 = vadd.f32 0.0, %v3136
      %v3138 = vpop.f32.mrb[0].mxu0
      %3139 = vmatprep.mubr.f32.mxu0 0.0
      %3140 = vmatmul.mubr.f32.gmra.mrb[0].mxu0 %v1352
      %v3141 = vpop.f32.mrb[0].mxu0
      %v3142 = vadd.f32 0.0, %v3141
      %v3143 = vpop.f32.mrb[0].mxu0
      %3144 = vmatprep.mubr.f32.mxu0 0.0
      %3145 = vmatmul.mubr.f32.gmra.mrb[0].mxu0 %v1354
      %v3146 = vpop.f32.mrb[0].mxu0
      %v3147 = vadd.f32 0.0, %v3146
      %v3148 = vpop.f32.mrb[0].mxu0
      %3149 = vmatprep.mubr.f32.mxu0 0.0
      %3150 = vmatmul.mubr.f32.gmra.mrb[0].mxu0 %v1356
      %v3151 = vpop.f32.mrb[0].mxu0
      %v3152 = vadd.f32 0.0, %v3151
      %v3153 = vpop.f32.mrb[0].mxu0
      %3154 = vmatprep.mubr.f32.mxu0 0.0
      %3155 = vmatmul.mubr.f32.gmra.mrb[0].mxu0 %v1358
      %v3156 = vpop.f32.mrb[0].mxu0
      %v3157 = vadd.f32 0.0, %v3156
      %v3158 = vpop.f32.mrb[0].mxu0
      %3159 = vmatprep.mubr.f32.mxu0 0.0
      %3160 = vmatmul.mubr.f32.gmra.mrb[0].mxu0 %v1360
      %v3161 = vpop.f32.mrb[0].mxu0
      %v3162 = vadd.f32 0.0, %v3161
      %v3163 = vpop.f32.mrb[0].mxu0
      %3164 = vmatprep.mubr.f32.mxu0 0.0
      %3165 = vmatmul.mubr.f32.gmra.mrb[0].mxu0 %v1362
      %v3166 = vpop.f32.mrb[0].mxu0
      %v3167 = vadd.f32 0.0, %v3166
      %v3168 = vpop.f32.mrb[0].mxu0
      %3169 = vmatprep.mubr.f32.mxu0 0.0
      %3170 = vmatmul.mubr.f32.gmra.mrb[0].mxu0 %v1364
      %v3171 = vpop.f32.mrb[0].mxu0
      %v3172 = vadd.f32 0.0, %v3171
      %v3173 = vpop.f32.mrb[0].mxu0
      %3174 = vmatprep.mubr.f32.mxu0 0.0
      %3175 = vmatmul.mubr.f32.gmra.mrb[0].mxu0 %v1366
      %v3176 = vpop.f32.mrb[0].mxu0
      %v3177 = vadd.f32 0.0, %v3176
      %v3178 = vpop.f32.mrb[0].mxu0
      %3179 = vmatprep.mubr.f32.mxu0 0.0
      %3180 = vmatmul.mubr.f32.gmra.mrb[0].mxu0 %v1368
      %v3181 = vpop.f32.mrb[0].mxu0
      %v3182 = vadd.f32 0.0, %v3181
      %v3183 = vpop.f32.mrb[0].mxu0
      %3184 = vmatprep.mubr.f32.mxu0 0.0
      %3185 = vmatmul.mubr.f32.gmra.mrb[0].mxu0 %v1370
      %v3186 = vpop.f32.mrb[0].mxu0
      %v3187 = vadd.f32 0.0, %v3186
      %v3188 = vpop.f32.mrb[0].mxu0
      %3189 = vmatprep.mubr.f32.mxu0 0.0
      %3190 = vmatmul.mubr.f32.gmra.mrb[0].mxu0 %v1372
      %v3191 = vpop.f32.mrb[0].mxu0
      %v3192 = vadd.f32 0.0, %v3191
      %v3193 = vpop.f32.mrb[0].mxu0
      %3194 = vmatprep.mubr.f32.mxu0 0.0
      %3195 = vmatmul.mubr.f32.gmra.mrb[0].mxu0 %v1374
      %v3196 = vpop.f32.mrb[0].mxu0
      %v3197 = vadd.f32 0.0, %v3196
      %v3198 = vpop.f32.mrb[0].mxu0
      %3199 = vmatprep.mubr.f32.mxu0 0.0
      %3200 = vmatmul.mubr.f32.gmra.mrb[0].mxu0 %v1376
      %v3201 = vpop.f32.mrb[0].mxu0
      %v3202 = vadd.f32 0.0, %v3201
      %v3203 = vpop.f32.mrb[0].mxu0
      %3204 = vmatprep.mubr.f32.mxu0 0.0
      %3205 = vmatmul.mubr.f32.gmra.mrb[0].mxu0 %v1378
      %v3206 = vpop.f32.mrb[0].mxu0
      %v3207 = vadd.f32 0.0, %v3206
      %v3208 = vpop.f32.mrb[0].mxu0
      %3209 = vmatprep.mubr.f32.mxu0 0.0
      %3210 = vmatmul.mubr.f32.gmra.mrb[0].mxu0 %v2187
      %v3211 = vpop.f32.mrb[0].mxu0
      %v3212 = vadd.f32 0.0, %v3211
      %v3213 = vpop.f32.mrb[0].mxu0
      %3214 = vmatprep.mubr.f32.mxu0 0.0
      %3215 = vmatmul.mubr.f32.gmra.mrb[0].mxu0 %v2189
      %v3216 = vpop.f32.mrb[0].mxu0
      %v3217 = vadd.f32 0.0, %v3216
      %v3218 = vpop.f32.mrb[0].mxu0
      %3219 = vmatprep.mubr.f32.mxu0 0.0
      %3220 = vmatmul.mubr.f32.gmra.mrb[0].mxu0 %v2998
      %v3221 = vpop.f32.mrb[0].mxu0
      %v3222 = vadd.f32 0.0, %v3221
      %v3223 = vpop.f32.mrb[0].mxu0
      %3224 = vmatprep.mubr.f32.mxu0 0.0
      %3225 = vmatmul.mubr.f32.gmra.mrb[0].mxu0 %v3000
      %v3226 = vpop.f32.mrb[0].mxu0
      %v3227 = vadd.f32 0.0, %v3226
      %v3228 = vpop.f32.mrb[0].mxu0
      %3229 = vdwg.mxu0
      %v3230 = vadd.f32 %v2959, %v3072
      %v3231 = vadd.f32 %v2960, %v3077
      %v3232 = vadd.f32 %v2961, %v3082
      %v3233 = vadd.f32 %v2962, %v3087
      %v3234 = vadd.f32 %v2963, %v3092
      %v3235 = vadd.f32 %v2964, %v3097
      %v3236 = vadd.f32 %v2965, %v3102
      %v3237 = vadd.f32 %v2966, %v3107
      %v3238 = vadd.f32 %v2967, %v3112
      %v3239 = vadd.f32 %v2968, %v3117
      %v3240 = vadd.f32 %v2969, %v3122
      %v3241 = vadd.f32 %v2970, %v3127
      %v3242 = vadd.f32 %v2971, %v3132
      %v3243 = vadd.f32 %v2972, %v3137
      %v3244 = vadd.f32 %v2973, %v3142
      %v3245 = vadd.f32 %v2974, %v3147
      %v3246 = vadd.f32 %v2975, %v3152
      %v3247 = vadd.f32 %v2976, %v3157
      %v3248 = vadd.f32 %v2977, %v3162
      %v3249 = vadd.f32 %v2978, %v3167
      %v3250 = vadd.f32 %v2979, %v3172
      %v3251 = vadd.f32 %v2980, %v3177
      %v3252 = vadd.f32 %v2981, %v3182
      %v3253 = vadd.f32 %v2982, %v3187
      %v3254 = vadd.f32 %v2983, %v3192
      %v3255 = vadd.f32 %v2984, %v3197
      %v3256 = vadd.f32 %v2985, %v3202
      %v3257 = vadd.f32 %v2986, %v3207
      %v3258 = vadd.f32 %v2987, %v3212
      %v3259 = vadd.f32 %v2988, %v3217
      %v3260 = vadd.f32 %v2989, %v3222
      %v3261 = vadd.f32 %v2990, %v3227
      %v3262 = vld [vmem:[%s4] sm:$0x1]
      %v3264 = vlaneseq
      %v3265 = vshrl.u32 %v3264, 7
      %v3266 = vsub.s32 0, %v3265
      %v3267 = vrot.slane %v3262, %v3266
      %v3269 = vadd.f32 %v3230, %v3267
      %v3270 = vadd.f32 %v3231, %v3267
      %v3271 = vadd.f32 %v3232, %v3267
      %v3272 = vadd.f32 %v3233, %v3267
      %v3273 = vadd.f32 %v3234, %v3267
      %v3274 = vadd.f32 %v3235, %v3267
      %v3275 = vadd.f32 %v3236, %v3267
      %v3276 = vadd.f32 %v3237, %v3267
      %v3277 = vadd.f32 %v3238, %v3267
      %v3278 = vadd.f32 %v3239, %v3267
      %v3279 = vadd.f32 %v3240, %v3267
      %v3280 = vadd.f32 %v3241, %v3267
      %v3281 = vadd.f32 %v3242, %v3267
      %v3282 = vadd.f32 %v3243, %v3267
      %v3283 = vadd.f32 %v3244, %v3267
      %v3284 = vadd.f32 %v3245, %v3267
      %v3285 = vadd.f32 %v3246, %v3267
      %v3286 = vadd.f32 %v3247, %v3267
      %v3287 = vadd.f32 %v3248, %v3267
      %v3288 = vadd.f32 %v3249, %v3267
      %v3289 = vadd.f32 %v3250, %v3267
      %v3290 = vadd.f32 %v3251, %v3267
      %v3291 = vadd.f32 %v3252, %v3267
      %v3292 = vadd.f32 %v3253, %v3267
      %v3293 = vadd.f32 %v3254, %v3267
      %v3294 = vadd.f32 %v3255, %v3267
      %v3295 = vadd.f32 %v3256, %v3267
      %v3296 = vadd.f32 %v3257, %v3267
      %v3297 = vadd.f32 %v3258, %v3267
      %v3298 = vadd.f32 %v3259, %v3267
      %v3299 = vadd.f32 %v3260, %v3267
      %v3300 = vadd.f32 %v3261, %v3267
      %v3301 = vmax.f32 %v3269, 0.0
      %v3302 = vmax.f32 %v3270, 0.0
      %v3303 = vmax.f32 %v3271, 0.0
      %v3304 = vmax.f32 %v3272, 0.0
      %v3305 = vmax.f32 %v3273, 0.0
      %v3306 = vmax.f32 %v3274, 0.0
      %v3307 = vmax.f32 %v3275, 0.0
      %v3308 = vmax.f32 %v3276, 0.0
      %v3309 = vmax.f32 %v3277, 0.0
      %v3310 = vmax.f32 %v3278, 0.0
      %v3311 = vmax.f32 %v3279, 0.0
      %v3312 = vmax.f32 %v3280, 0.0
      %v3313 = vmax.f32 %v3281, 0.0
      %v3314 = vmax.f32 %v3282, 0.0
      %v3315 = vmax.f32 %v3283, 0.0
      %v3316 = vmax.f32 %v3284, 0.0
      %v3317 = vmax.f32 %v3285, 0.0
      %v3318 = vmax.f32 %v3286, 0.0
      %v3319 = vmax.f32 %v3287, 0.0
      %v3320 = vmax.f32 %v3288, 0.0
      %v3321 = vmax.f32 %v3289, 0.0
      %v3322 = vmax.f32 %v3290, 0.0
      %v3323 = vmax.f32 %v3291, 0.0
      %v3324 = vmax.f32 %v3292, 0.0
      %v3325 = vmax.f32 %v3293, 0.0
      %v3326 = vmax.f32 %v3294, 0.0
      %v3327 = vmax.f32 %v3295, 0.0
      %v3328 = vmax.f32 %v3296, 0.0
      %v3329 = vmax.f32 %v3297, 0.0
      %v3330 = vmax.f32 %v3298, 0.0
      %v3331 = vmax.f32 %v3299, 0.0
      %v3332 = vmax.f32 %v3300, 0.0
      %3333 = vst [vmem:[%s258] sm:$0xff] %v3301
      %3334 = vst [vmem:[%s258 + $0x8] sm:$0xff] %v3302
      %3335 = vst [vmem:[%s258 + $0x10] sm:$0xff] %v3303
      %3336 = vst [vmem:[%s258 + $0x18] sm:$0xff] %v3304
      %3337 = vst [vmem:[%s258 + $0x20] sm:$0xff] %v3305
      %3338 = vst [vmem:[%s258 + $0x28] sm:$0xff] %v3306
      %3339 = vst [vmem:[%s258 + $0x30] sm:$0xff] %v3307
      %3340 = vst [vmem:[%s258 + $0x38] sm:$0xff] %v3308
      %3341 = vst [vmem:[%s258 + $0x40] sm:$0xff] %v3309
      %3342 = vst [vmem:[%s258 + $0x48] sm:$0xff] %v3310
      %3343 = vst [vmem:[%s258 + $0x50] sm:$0xff] %v3311
      %3344 = vst [vmem:[%s258 + $0x58] sm:$0xff] %v3312
      %3345 = vst [vmem:[%s258 + $0x60] sm:$0xff] %v3313
      %3346 = vst [vmem:[%s258 + $0x68] sm:$0xff] %v3314
      %3347 = vst [vmem:[%s258 + $0x70] sm:$0xff] %v3315
      %3348 = vst [vmem:[%s258 + $0x78] sm:$0xff] %v3316
      %3349 = vst [vmem:[%s258 + $0x80] sm:$0xff] %v3317
      %3350 = vst [vmem:[%s258 + $0x88] sm:$0xff] %v3318
      %3351 = vst [vmem:[%s258 + $0x90] sm:$0xff] %v3319
      %3352 = vst [vmem:[%s258 + $0x98] sm:$0xff] %v3320
      %3353 = vst [vmem:[%s258 + $0xa0] sm:$0xff] %v3321
      %3354 = vst [vmem:[%s258 + $0xa8] sm:$0xff] %v3322
      %3355 = vst [vmem:[%s258 + $0xb0] sm:$0xff] %v3323
      %3356 = vst [vmem:[%s258 + $0xb8] sm:$0xff] %v3324
      %3357 = vst [vmem:[%s258 + $0xc0] sm:$0xff] %v3325
      %3358 = vst [vmem:[%s258 + $0xc8] sm:$0xff] %v3326
      %3359 = vst [vmem:[%s258 + $0xd0] sm:$0xff] %v3327
      %3360 = vst [vmem:[%s258 + $0xd8] sm:$0xff] %v3328
      %3361 = vst [vmem:[%s258 + $0xe0] sm:$0xff] %v3329
      %3362 = vst [vmem:[%s258 + $0xe8] sm:$0xff] %v3330
      %3363 = vst [vmem:[%s258 + $0xf0] sm:$0xff] %v3331
      %3364 = vst [vmem:[%s258 + $0xf8] sm:$0xff] %v3332
      %v3365 = vadd.f32 %v3301, %v3302
      %v3366 = vadd.f32 %v3365, %v3303
      %v3367 = vadd.f32 %v3366, %v3304
      %v3368 = vadd.f32 %v3367, %v3305
      %v3369 = vadd.f32 %v3368, %v3306
      %v3370 = vadd.f32 %v3369, %v3307
      %v3371 = vadd.f32 %v3370, %v3308
      %v3372 = vadd.f32 %v3371, %v3309
      %v3373 = vadd.f32 %v3372, %v3310
      %v3374 = vadd.f32 %v3373, %v3311
      %v3375 = vadd.f32 %v3374, %v3312
      %v3376 = vadd.f32 %v3375, %v3313
      %v3377 = vadd.f32 %v3376, %v3314
      %v3378 = vadd.f32 %v3377, %v3315
      %v3379 = vadd.f32 %v3378, %v3316
      %v3380 = vadd.f32 %v3379, %v3317
      %v3381 = vadd.f32 %v3380, %v3318
      %v3382 = vadd.f32 %v3381, %v3319
      %v3383 = vadd.f32 %v3382, %v3320
      %v3384 = vadd.f32 %v3383, %v3321
      %v3385 = vadd.f32 %v3384, %v3322
      %v3386 = vadd.f32 %v3385, %v3323
      %v3387 = vadd.f32 %v3386, %v3324
      %v3388 = vadd.f32 %v3387, %v3325
      %v3389 = vadd.f32 %v3388, %v3326
      %v3390 = vadd.f32 %v3389, %v3327
      %v3391 = vadd.f32 %v3390, %v3328
      %v3392 = vadd.f32 %v3391, %v3329
      %v3393 = vadd.f32 %v3392, %v3330
      %v3394 = vadd.f32 %v3393, %v3331
      %v3395 = vadd.f32 %v3394, %v3332
      %v3396 = vrot.slane %v3395, 4
      %v3397 = vadd.f32 %v3395, %v3396
      %v3398 = vrot.slane %v3397, 2
      %v3399 = vadd.f32 %v3397, %v3398
      %v3400 = vrot.slane %v3399, 1
      %v3401 = vadd.f32 %v3399, %v3400
      %v3402 = vmul.f32 %v3301, %v3301
      %v3403 = vmul.f32 %v3302, %v3302
      %v3404 = vmul.f32 %v3303, %v3303
      %v3405 = vmul.f32 %v3304, %v3304
      %v3406 = vmul.f32 %v3305, %v3305
      %v3407 = vmul.f32 %v3306, %v3306
      %v3408 = vmul.f32 %v3307, %v3307
      %v3409 = vmul.f32 %v3308, %v3308
      %v3410 = vmul.f32 %v3309, %v3309
      %v3411 = vmul.f32 %v3310, %v3310
      %v3412 = vmul.f32 %v3311, %v3311
      %v3413 = vmul.f32 %v3312, %v3312
      %v3414 = vmul.f32 %v3313, %v3313
      %v3415 = vmul.f32 %v3314, %v3314
      %v3416 = vmul.f32 %v3315, %v3315
      %v3417 = vmul.f32 %v3316, %v3316
      %v3418 = vmul.f32 %v3317, %v3317
      %v3419 = vmul.f32 %v3318, %v3318
      %v3420 = vmul.f32 %v3319, %v3319
      %v3421 = vmul.f32 %v3320, %v3320
      %v3422 = vmul.f32 %v3321, %v3321
      %v3423 = vmul.f32 %v3322, %v3322
      %v3424 = vmul.f32 %v3323, %v3323
      %v3425 = vmul.f32 %v3324, %v3324
      %v3426 = vmul.f32 %v3325, %v3325
      %v3427 = vmul.f32 %v3326, %v3326
      %v3428 = vmul.f32 %v3327, %v3327
      %v3429 = vmul.f32 %v3328, %v3328
      %v3430 = vmul.f32 %v3329, %v3329
      %v3431 = vmul.f32 %v3330, %v3330
      %v3432 = vmul.f32 %v3331, %v3331
      %v3433 = vmul.f32 %v3332, %v3332
      %v3434 = vadd.f32 %v3402, %v3403
      %v3435 = vadd.f32 %v3434, %v3404
      %v3436 = vadd.f32 %v3435, %v3405
      %v3437 = vadd.f32 %v3436, %v3406
      %v3438 = vadd.f32 %v3437, %v3407
      %v3439 = vadd.f32 %v3438, %v3408
      %v3440 = vadd.f32 %v3439, %v3409
      %v3441 = vadd.f32 %v3440, %v3410
      %v3442 = vadd.f32 %v3441, %v3411
      %v3443 = vadd.f32 %v3442, %v3412
      %v3444 = vadd.f32 %v3443, %v3413
      %v3445 = vadd.f32 %v3444, %v3414
      %v3446 = vadd.f32 %v3445, %v3415
      %v3447 = vadd.f32 %v3446, %v3416
      %v3448 = vadd.f32 %v3447, %v3417
      %v3449 = vadd.f32 %v3448, %v3418
      %v3450 = vadd.f32 %v3449, %v3419
      %v3451 = vadd.f32 %v3450, %v3420
      %v3452 = vadd.f32 %v3451, %v3421
      %v3453 = vadd.f32 %v3452, %v3422
      %v3454 = vadd.f32 %v3453, %v3423
      %v3455 = vadd.f32 %v3454, %v3424
      %v3456 = vadd.f32 %v3455, %v3425
      %v3457 = vadd.f32 %v3456, %v3426
      %v3458 = vadd.f32 %v3457, %v3427
      %v3459 = vadd.f32 %v3458, %v3428
      %v3460 = vadd.f32 %v3459, %v3429
      %v3461 = vadd.f32 %v3460, %v3430
      %v3462 = vadd.f32 %v3461, %v3431
      %v3463 = vadd.f32 %v3462, %v3432
      %v3464 = vadd.f32 %v3463, %v3433
      %v3465 = vrot.slane %v3464, 4
      %v3466 = vadd.f32 %v3464, %v3465
      %v3467 = vrot.slane %v3466, 2
      %v3468 = vadd.f32 %v3466, %v3467
      %v3469 = vrot.slane %v3468, 1
      %v3470 = vadd.f32 %v3468, %v3469
      %vm3471 = vcmask 1040384
      %v3472 = vsel %vm3471, %v3401, %v3470
      %vm3473 = vcmask 1041408
      %v3474 = vsel %vm3473, %v3472, 0.0
      %3475 = vst [vmem:[%s262] sm:$0xff] %v3474
      %p3476 = scmp.lt.s32.totalorder %s18, 1
      %s3477 = scalar_select %p3476, %s18, 1
      %s3478 = smul.addr %s3477, 32
      %s3479 = smul.addr %s3478, 8
      %s3480 = scalar_lea.vmem %s5, %s3479
      %p3481 = scmp.lt.s32.totalorder %s18, 1
      %s3482 = scalar_select %p3481, %s18, 1
      %s3483 = smul.addr %s3482, 8
      %s3484 = scalar_lea.vmem %s6, %s3483
      // Predicated region
      $region41: #{double_conv_forward.3} parent=39 // pred_check
        %p3485 = pneg %p146
      $region42: #{double_conv_forward.3} parent=39 // pred_check_branch
        %3487 = sbr.rel (%p3485) target = $region44
      $region43: #{double_conv_forward.3} parent=39 // pred_region
        _
      $region44: #{double_conv_forward.3} parent=39 // pred_fallthru
        _
      // Predicated region
      $region45: #{double_conv_forward.3} parent=39 // pred_check
        %p3488 = pneg %p172
      $region46: #{double_conv_forward.3} parent=39 // pred_check_branch
        %3490 = sbr.rel (%p3488) target = $region48
      $region47: #{double_conv_forward.3} parent=39 // pred_region
        _
      $region48: #{double_conv_forward.3} parent=39 // pred_fallthru
        _
    $region40: #{double_conv_forward.3} parent=5 // pred_fallthru
      _
    %p3491 = scmp.le.s32.totalorder 2, %s13
    // Predicated region
    $region49: #{double_conv_forward.3} parent=5 // pred_check
      %p3492 = pneg %p3491
    $region50: #{double_conv_forward.3} parent=5 // pred_check_branch
      %3494 = sbr.rel (%p3492) target = $region52
    $region51: #{double_conv_forward.3} parent=5 // pred_region
      %s3495 = ssub.s32 %s13, 2
      // Predicated region
      $region53: #{double_conv_forward.3} parent=51 // pred_check
        %p3496 = pneg %p152
      $region54: #{double_conv_forward.3} parent=51 // pred_check_branch
        %3498 = sbr.rel (%p3496) target = $region56
      $region55: #{double_conv_forward.3} parent=51 // pred_region
        %p3499 = scmp.lt.s32.totalorder %s19, 1
        %s3500 = scalar_select %p3499, %s19, 1
        %s3501 = smul.addr %s3500, 32
        %s3502 = smul.addr %s3501, 8
        %s3503 = scalar_lea.vmem %s5, %s3502
      $region56: #{double_conv_forward.3} parent=51 // pred_fallthru
        _
      // Predicated region
      $region57: #{double_conv_forward.3} parent=51 // pred_check
        %p3504 = pneg %p178
      $region58: #{double_conv_forward.3} parent=51 // pred_check_branch
        %3506 = sbr.rel (%p3504) target = $region60
      $region59: #{double_conv_forward.3} parent=51 // pred_region
        %p3507 = scmp.lt.s32.totalorder %s19, 1
        %s3508 = scalar_select %p3507, %s19, 1
        %s3509 = smul.addr %s3508, 8
        %s3510 = scalar_lea.vmem %s6, %s3509
      $region60: #{double_conv_forward.3} parent=51 // pred_fallthru
        _
    $region52: #{double_conv_forward.3} parent=5 // pred_fallthru
      _
  $region6: #{double_conv_forward.3} parent=0 // loop_footer
    %s17 = sadd.s32 1, %s13
  $region7: #{double_conv_forward.3} parent=0 // loop_footer_branch
    %12 = sbr.rel target = $region3
  $region8: #{double_conv_forward.3} parent=0 // loop_exit
    _

// kernel: double_conv_forward.4
$region0: #{double_conv_forward.4}
  #allocation0 [shape = 'u32[]', space=smem, size = 0x4, offset = 0x4, fixed_abs, tag = 'smem constant byte address 0x4 - core index']
  #allocation1 [shape = 'u32[144,128]{1,0:T(1,128)}', space=vmem, size = 0x12000, scoped, tag = 'internal scratch']
  %s0 = inlined_call_operand.vmem [shape: f32[2,18,18,128], index: 0, kind: input, shape index: {}]
  %s1 = inlined_call_operand.vmem [shape: f32[1,128], index: 1, kind: input, shape index: {}]
  %s2 = inlined_call_operand.vmem [shape: f32[1,128], index: 2, kind: input, shape index: {}]
  %s3 = inlined_call_operand.vmem [shape: f32[9,128,128], index: 3, kind: input, shape index: {}]
  %s4 = inlined_call_operand.vmem [shape: f32[1,128], index: 4, kind: input, shape index: {}]
  %s5 = inlined_call_operand.vmem [shape: f32[2,256,128], index: 5, kind: output, shape index: {0}]
  %s6 = inlined_call_operand.vmem [shape: f32[2,8,128], index: 6, kind: output, shape index: {1}]
  %7 = xla_tuple %s5, %s6
  %s8 = sld [smem:[#allocation0]]
  $region61: #{double_conv_forward.4} parent=0
    _
  %s10 = ssub.s32 1, %s8
  %s11 = scalar_select 0, %s10, %s8
  loop: start=0, step=1, limit=4
  $region2: #{double_conv_forward.4} parent=0 // loop_pre_header
    _
  $region3: #{double_conv_forward.4} parent=0 // loop_header
    %s13 = sphi 0, %s17
    %p14 = scmp.ge.s32.totalorder %s13, 4
    %s23 = sphi 0, %s25
    %s26 = sphi 0, %s23
    %s27 = sphi 0, %s26
    %s43 = sphi 0, %s27
    %s47 = sphi 0, %s47
    %s49 = sphi 0, %s47
    %s50 = sphi 0, %s49
    %s64 = sphi 0, %s50
    %s68 = sphi 0, %s68
    %s70 = sphi 0, %s68
    %s71 = sphi 0, %s70
    %s85 = sphi 0, %s71
    %s89 = sphi 0, %s89
    %s91 = sphi 0, %s89
    %s92 = sphi 0, %s91
    %s106 = sphi 0, %s92
    %s110 = sphi 0, %s110
    %s112 = sphi 0, %s110
    %s113 = sphi 0, %s112
    %s127 = sphi 0, %s113
    %s133 = sphi 0, %s135
    %s136 = sphi 0, %s133
    %s137 = sphi 0, %s136
    %s153 = sphi 0, %s137
    %s159 = sphi 0, %s161
    %s162 = sphi 0, %s159
    %s163 = sphi 0, %s162
    %s179 = sphi 0, %s163
  $region4: #{double_conv_forward.4} parent=0 // loop_header_branch
    %16 = sbr.rel (%p14) target = $region8
  $region5: #{double_conv_forward.4} parent=0 // loop_body
    %s18 = ssub.s32 %s13, 1
    %s19 = ssub.s32 %s13, 2
    %s20 = sadd.s32 %s13, 1
    %s21 = ssub.s32 %s13, %s20
    %p22 = scmp.eq.s32.totalorder %s21, 0
    %s24 = sadd.s32 %s23, 1
    %s25 = scalar_select %p22, %s23, %s24
    %p28 = pneg %p22
    %p29 = scmp.eq.s32.totalorder %s13, 1
    %p30 = por %p28, %p29
    %p31 = scmp.ne.s32.totalorder %s23, %s26
    %p32 = scmp.eq.s32.totalorder %s13, 0
    %p33 = por %p31, %p32
    %p34 = scmp.ne.s32.totalorder %s23, %s26
    %p35 = scmp.eq.s32.totalorder %s18, 1
    %p36 = por %p34, %p35
    %p37 = scmp.ne.s32.totalorder %s26, %s27
    %p38 = scmp.eq.s32.totalorder %s18, 0
    %p39 = por %p37, %p38
    %p40 = scmp.ne.s32.totalorder %s26, %s27
    %p41 = scmp.eq.s32.totalorder %s19, 1
    %p42 = por %p40, %p41
    %p44 = scmp.ne.s32.totalorder %s27, %s43
    %p45 = scmp.eq.s32.totalorder %s19, 0
    %p46 = por %p44, %p45
    %s48 = sadd.s32 %s47, 1
    %p51 = scmp.eq.s32.totalorder %s13, 1
    %p52 = scmp.ne.s32.totalorder %s47, %s49
    %p53 = scmp.eq.s32.totalorder %s13, 0
    %p54 = por %p52, %p53
    %p55 = scmp.ne.s32.totalorder %s47, %s49
    %p56 = scmp.eq.s32.totalorder %s18, 1
    %p57 = por %p55, %p56
    %p58 = scmp.ne.s32.totalorder %s49, %s50
    %p59 = scmp.eq.s32.totalorder %s18, 0
    %p60 = por %p58, %p59
    %p61 = scmp.ne.s32.totalorder %s49, %s50
    %p62 = scmp.eq.s32.totalorder %s19, 1
    %p63 = por %p61, %p62
    %p65 = scmp.ne.s32.totalorder %s50, %s64
    %p66 = scmp.eq.s32.totalorder %s19, 0
    %p67 = por %p65, %p66
    %s69 = sadd.s32 %s68, 1
    %p72 = scmp.eq.s32.totalorder %s13, 1
    %p73 = scmp.ne.s32.totalorder %s68, %s70
    %p74 = scmp.eq.s32.totalorder %s13, 0
    %p75 = por %p73, %p74
    %p76 = scmp.ne.s32.totalorder %s68, %s70
    %p77 = scmp.eq.s32.totalorder %s18, 1
    %p78 = por %p76, %p77
    %p79 = scmp.ne.s32.totalorder %s70, %s71
    %p80 = scmp.eq.s32.totalorder %s18, 0
    %p81 = por %p79, %p80
    %p82 = scmp.ne.s32.totalorder %s70, %s71
    %p83 = scmp.eq.s32.totalorder %s19, 1
    %p84 = por %p82, %p83
    %p86 = scmp.ne.s32.totalorder %s71, %s85
    %p87 = scmp.eq.s32.totalorder %s19, 0
    %p88 = por %p86, %p87
    %s90 = sadd.s32 %s89, 1
    %p93 = scmp.eq.s32.totalorder %s13, 1
    %p94 = scmp.ne.s32.totalorder %s89, %s91
    %p95 = scmp.eq.s32.totalorder %s13, 0
    %p96 = por %p94, %p95
    %p97 = scmp.ne.s32.totalorder %s89, %s91
    %p98 = scmp.eq.s32.totalorder %s18, 1
    %p99 = por %p97, %p98
    %p100 = scmp.ne.s32.totalorder %s91, %s92
    %p101 = scmp.eq.s32.totalorder %s18, 0
    %p102 = por %p100, %p101
    %p103 = scmp.ne.s32.totalorder %s91, %s92
    %p104 = scmp.eq.s32.totalorder %s19, 1
    %p105 = por %p103, %p104
    %p107 = scmp.ne.s32.totalorder %s92, %s106
    %p108 = scmp.eq.s32.totalorder %s19, 0
    %p109 = por %p107, %p108
    %s111 = sadd.s32 %s110, 1
    %p114 = scmp.eq.s32.totalorder %s13, 1
    %p115 = scmp.ne.s32.totalorder %s110, %s112
    %p116 = scmp.eq.s32.totalorder %s13, 0
    %p117 = por %p115, %p116
    %p118 = scmp.ne.s32.totalorder %s110, %s112
    %p119 = scmp.eq.s32.totalorder %s18, 1
    %p120 = por %p118, %p119
    %p121 = scmp.ne.s32.totalorder %s112, %s113
    %p122 = scmp.eq.s32.totalorder %s18, 0
    %p123 = por %p121, %p122
    %p124 = scmp.ne.s32.totalorder %s112, %s113
    %p125 = scmp.eq.s32.totalorder %s19, 1
    %p126 = por %p124, %p125
    %p128 = scmp.ne.s32.totalorder %s113, %s127
    %p129 = scmp.eq.s32.totalorder %s19, 0
    %p130 = por %p128, %p129
    %s131 = ssub.s32 %s13, %s20
    %p132 = scmp.eq.s32.totalorder %s131, 0
    %s134 = sadd.s32 %s133, 1
    %s135 = scalar_select %p132, %s133, %s134
    %p138 = pneg %p132
    %p139 = scmp.eq.s32.totalorder %s13, 1
    %p140 = por %p138, %p139
    %p141 = scmp.ne.s32.totalorder %s133, %s136
    %p142 = scmp.eq.s32.totalorder %s13, 0
    %p143 = por %p141, %p142
    %p144 = scmp.ne.s32.totalorder %s133, %s136
    %p145 = scmp.eq.s32.totalorder %s18, 1
    %p146 = por %p144, %p145
    %p147 = scmp.ne.s32.totalorder %s136, %s137
    %p148 = scmp.eq.s32.totalorder %s18, 0
    %p149 = por %p147, %p148
    %p150 = scmp.ne.s32.totalorder %s136, %s137
    %p151 = scmp.eq.s32.totalorder %s19, 1
    %p152 = por %p150, %p151
    %p154 = scmp.ne.s32.totalorder %s137, %s153
    %p155 = scmp.eq.s32.totalorder %s19, 0
    %p156 = por %p154, %p155
    %s157 = ssub.s32 %s13, %s20
    %p158 = scmp.eq.s32.totalorder %s157, 0
    %s160 = sadd.s32 %s159, 1
    %s161 = scalar_select %p158, %s159, %s160
    %p164 = pneg %p158
    %p165 = scmp.eq.s32.totalorder %s13, 1
    %p166 = por %p164, %p165
    %p167 = scmp.ne.s32.totalorder %s159, %s162
    %p168 = scmp.eq.s32.totalorder %s13, 0
    %p169 = por %p167, %p168
    %p170 = scmp.ne.s32.totalorder %s159, %s162
    %p171 = scmp.eq.s32.totalorder %s18, 1
    %p172 = por %p170, %p171
    %p173 = scmp.ne.s32.totalorder %s162, %s163
    %p174 = scmp.eq.s32.totalorder %s18, 0
    %p175 = por %p173, %p174
    %p176 = scmp.ne.s32.totalorder %s162, %s163
    %p177 = scmp.eq.s32.totalorder %s19, 1
    %p178 = por %p176, %p177
    %p180 = scmp.ne.s32.totalorder %s163, %s179
    %p181 = scmp.eq.s32.totalorder %s19, 0
    %p182 = por %p180, %p181
    %p183 = scmp.le.s32.totalorder 1, %s13
    %p184 = scmp.lt.s32.totalorder %s13, 3
    %p185 = pnand %p183, %p184
    %p186 = pneg %p185
    // Predicated region
    $region9: #{double_conv_forward.4} parent=5 // pred_check
      _
    $region10: #{double_conv_forward.4} parent=5 // pred_check_branch
      %188 = sbr.rel (%p185) target = $region12
    $region11: #{double_conv_forward.4} parent=5 // pred_region
      %s189 = ssub.s32 %s13, 1
      // Predicated region
      $region13: #{double_conv_forward.4} parent=11 // pred_check
        %p190 = pneg %p60
      $region14: #{double_conv_forward.4} parent=11 // pred_check_branch
        %192 = sbr.rel (%p190) target = $region16
      $region15: #{double_conv_forward.4} parent=11 // pred_region
        _
      $region16: #{double_conv_forward.4} parent=11 // pred_fallthru
        _
      // Predicated region
      $region17: #{double_conv_forward.4} parent=11 // pred_check
        %p193 = pneg %p81
      $region18: #{double_conv_forward.4} parent=11 // pred_check_branch
        %195 = sbr.rel (%p193) target = $region20
      $region19: #{double_conv_forward.4} parent=11 // pred_region
        _
      $region20: #{double_conv_forward.4} parent=11 // pred_fallthru
        _
      // Predicated region
      $region21: #{double_conv_forward.4} parent=11 // pred_check
        %p196 = pneg %p102
      $region22: #{double_conv_forward.4} parent=11 // pred_check_branch
        %198 = sbr.rel (%p196) target = $region24
      $region23: #{double_conv_forward.4} parent=11 // pred_region
        _
      $region24: #{double_conv_forward.4} parent=11 // pred_fallthru
        _
      // Predicated region
      $region25: #{double_conv_forward.4} parent=11 // pred_check
        %p199 = pneg %p123
      $region26: #{double_conv_forward.4} parent=11 // pred_check_branch
        %201 = sbr.rel (%p199) target = $region28
      $region27: #{double_conv_forward.4} parent=11 // pred_region
        _
      $region28: #{double_conv_forward.4} parent=11 // pred_fallthru
        _
    $region12: #{double_conv_forward.4} parent=5 // pred_fallthru
      _
    %p202 = scmp.lt.s32.totalorder %s13, 2
    // Predicated region
    $region29: #{double_conv_forward.4} parent=5 // pred_check
      %p203 = pneg %p202
    $region30: #{double_conv_forward.4} parent=5 // pred_check_branch
      %205 = sbr.rel (%p203) target = $region32
    $region31: #{double_conv_forward.4} parent=5 // pred_region
      // Predicated region
      $region33: #{double_conv_forward.4} parent=31 // pred_check
        %p206 = pneg %p33
      $region34: #{double_conv_forward.4} parent=31 // pred_check_branch
        %208 = sbr.rel (%p206) target = $region36
      $region35: #{double_conv_forward.4} parent=31 // pred_region
        %p209 = scmp.lt.s32.totalorder %s13, 1
        %s210 = scalar_select %p209, %s13, 1
        %s211 = smul.addr %s210, 54
        %s212 = smul.addr %s211, 8
        %s213 = scalar_lea.vmem %s0, %s212
      $region36: #{double_conv_forward.4} parent=31 // pred_fallthru
        _
    $region32: #{double_conv_forward.4} parent=5 // pred_fallthru
      _
    %p214 = scmp.le.s32.totalorder 1, %s13
    %p215 = scmp.lt.s32.totalorder %s13, 3
    %p216 = pnand %p214, %p215
    %p217 = pneg %p216
    // Predicated region
    $region37: #{double_conv_forward.4} parent=5 // pred_check
      _
    $region38: #{double_conv_forward.4} parent=5 // pred_check_branch
      %219 = sbr.rel (%p216) target = $region40
    $region39: #{double_conv_forward.4} parent=5 // pred_region
      %s220 = ssub.s32 %s13, 1
      %p221 = scmp.lt.s32.totalorder %s18, 1
      %s222 = scalar_select %p221, %s18, 1
      %s223 = smul.addr %s222, 54
      %s224 = smul.addr %s223, 8
      %s225 = scalar_lea.vmem %s0, %s224
      %p226 = pneg %p39
      %p227 = pneg %p36
      %p228 = pneg %p60
      %p229 = pneg %p57
      %p230 = pneg %p81
      %p231 = pneg %p78
      %p232 = pneg %p102
      %p233 = pneg %p99
      %p234 = pneg %p123
      %p235 = pneg %p120
      %p236 = pneg %p149
      %p237 = pneg %p146
      %p238 = scmp.lt.s32.totalorder %s18, 1
      %s239 = scalar_select %p238, %s18, 1
      %s240 = smul.addr %s239, 32
      %s241 = smul.addr %s240, 8
      %s242 = scalar_lea.vmem %s5, %s241
      %p243 = pneg %p175
      %p244 = pneg %p172
      %p245 = scmp.lt.s32.totalorder %s18, 1
      %s246 = scalar_select %p245, %s18, 1
      %s247 = smul.addr %s246, 8
      %s248 = scalar_lea.vmem %s6, %s247
      %p249 = scmp.lt.s32.totalorder %s18, 1
      %s250 = scalar_select %p249, %s18, 1
      %s251 = smul.addr %s250, 54
      %s252 = smul.addr %s251, 8
      %s253 = scalar_lea.vmem %s0, %s252
      %p254 = scmp.lt.s32.totalorder %s18, 1
      %s255 = scalar_select %p254, %s18, 1
      %s256 = smul.addr %s255, 32
      %s257 = smul.addr %s256, 8
      %s258 = scalar_lea.vmem %s5, %s257
      %p259 = scmp.lt.s32.totalorder %s18, 1
      %s260 = scalar_select %p259, %s18, 1
      %s261 = smul.addr %s260, 8
      %s262 = scalar_lea.vmem %s6, %s261
      %v263 = vld [vmem:[%s253] sm:$0xff]
      %v264 = vld [vmem:[%s253 + $0x8] sm:$0xff]
      %v265 = vld [vmem:[%s253 + $0x10] sm:$0x3]
      %v266 = vld [vmem:[%s253 + $0x18] sm:$0xff]
      %v267 = vld [vmem:[%s253 + $0x20] sm:$0xff]
      %v268 = vld [vmem:[%s253 + $0x28] sm:$0x3]
      %v269 = vld [vmem:[%s253 + $0x30] sm:$0xff]
      %v270 = vld [vmem:[%s253 + $0x38] sm:$0xff]
      %v271 = vld [vmem:[%s253 + $0x40] sm:$0x3]
      %v272 = vld [vmem:[%s253 + $0x48] sm:$0xff]
      %v273 = vld [vmem:[%s253 + $0x50] sm:$0xff]
      %v274 = vld [vmem:[%s253 + $0x58] sm:$0x3]
      %v275 = vld [vmem:[%s253 + $0x60] sm:$0xff]
      %v276 = vld [vmem:[%s253 + $0x68] sm:$0xff]
      %v277 = vld [vmem:[%s253 + $0x70] sm:$0x3]
      %v278 = vld [vmem:[%s253 + $0x78] sm:$0xff]
      %v279 = vld [vmem:[%s253 + $0x80] sm:$0xff]
      %v280 = vld [vmem:[%s253 + $0x88] sm:$0x3]
      %v281 = vld [vmem:[%s253 + $0x90] sm:$0xff]
      %v282 = vld [vmem:[%s253 + $0x98] sm:$0xff]
      %v283 = vld [vmem:[%s253 + $0xa0] sm:$0x3]
      %v284 = vld [vmem:[%s253 + $0xa8] sm:$0xff]
      %v285 = vld [vmem:[%s253 + $0xb0] sm:$0xff]
      %v286 = vld [vmem:[%s253 + $0xb8] sm:$0x3]
      %v287 = vld [vmem:[%s253 + $0xc0] sm:$0xff]
      %v288 = vld [vmem:[%s253 + $0xc8] sm:$0xff]
      %v289 = vld [vmem:[%s253 + $0xd0] sm:$0x3]
      %v290 = vld [vmem:[%s253 + $0xd8] sm:$0xff]
      %v291 = vld [vmem:[%s253 + $0xe0] sm:$0xff]
      %v292 = vld [vmem:[%s253 + $0xe8] sm:$0x3]
      %v293 = vld [vmem:[%s253 + $0xf0] sm:$0xff]
      %v294 = vld [vmem:[%s253 + $0xf8] sm:$0xff]
      %v295 = vld [vmem:[%s253 + $0x100] sm:$0x3]
      %v296 = vld [vmem:[%s253 + $0x108] sm:$0xff]
      %v297 = vld [vmem:[%s253 + $0x110] sm:$0xff]
      %v298 = vld [vmem:[%s253 + $0x118] sm:$0x3]
      %v299 = vld [vmem:[%s253 + $0x120] sm:$0xff]
      %v300 = vld [vmem:[%s253 + $0x128] sm:$0xff]
      %v301 = vld [vmem:[%s253 + $0x130] sm:$0x3]
      %v302 = vld [vmem:[%s253 + $0x138] sm:$0xff]
      %v303 = vld [vmem:[%s253 + $0x140] sm:$0xff]
      %v304 = vld [vmem:[%s253 + $0x148] sm:$0x3]
      %v305 = vld [vmem:[%s253 + $0x150] sm:$0xff]
      %v306 = vld [vmem:[%s253 + $0x158] sm:$0xff]
      %v307 = vld [vmem:[%s253 + $0x160] sm:$0x3]
      %v308 = vld [vmem:[%s253 + $0x168] sm:$0xff]
      %v309 = vld [vmem:[%s253 + $0x170] sm:$0xff]
      %v310 = vld [vmem:[%s253 + $0x178] sm:$0x3]
      %v311 = vld [vmem:[%s253 + $0x180] sm:$0xff]
      %v312 = vld [vmem:[%s253 + $0x188] sm:$0xff]
      %v313 = vld [vmem:[%s253 + $0x190] sm:$0x3]
      %v314 = vld [vmem:[%s253 + $0x198] sm:$0xff]
      %v315 = vld [vmem:[%s253 + $0x1a0] sm:$0xff]
      %v316 = vld [vmem:[%s253 + $0x1a8] sm:$0x3]
      %v317 = vlaneseq
      %v318 = vshrl.u32 %v317, 7
      %v319 = vadd.s32 %v318, 8
      %v320 = vadd.s32 %v318, 16
      %vm321 = vcmp.ge.s32.totalorder %v318, 1
      %vm322 = vcmp.ge.s32.totalorder %v319, 1
      %vm323 = vcmp.ge.s32.totalorder %v320, 1
      %vm324 = vmand 0, %vm321
      %vm325 = vmand 0, %vm322
      %vm326 = vmand 0, %vm323
      %vm327 = vmand 1, %vm321
      %vm328 = vmand 1, %vm322
      %vm329 = vmand 1, %vm323
      %vm330 = vcmp.le.s32.totalorder %v318, 16
      %vm331 = vcmp.le.s32.totalorder %v319, 16
      %vm332 = vcmp.le.s32.totalorder %v320, 16
      %vm333 = vmand %vm324, %vm330
      %vm334 = vmand %vm325, %vm331
      %vm335 = vmand %vm326, %vm332
      %vm336 = vmand %vm327, %vm330
      %vm337 = vmand %vm328, %vm331
      %vm338 = vmand %vm329, %vm332
      %v339 = vld [vmem:[%s1] sm:$0x1]
      %v341 = vlaneseq
      %v342 = vshrl.u32 %v341, 7
      %v343 = vsub.s32 0, %v342
      %v344 = vrot.slane %v339, %v343
      %v346 = vmul.f32 %v263, %v344
      %v347 = vmul.f32 %v264, %v344
      %v348 = vmul.f32 %v265, %v344
      %v349 = vmul.f32 %v266, %v344
      %v350 = vmul.f32 %v267, %v344
      %v351 = vmul.f32 %v268, %v344
      %v352 = vmul.f32 %v269, %v344
      %v353 = vmul.f32 %v270, %v344
      %v354 = vmul.f32 %v271, %v344
      %v355 = vmul.f32 %v272, %v344
      %v356 = vmul.f32 %v273, %v344
      %v357 = vmul.f32 %v274, %v344
      %v358 = vmul.f32 %v275, %v344
      %v359 = vmul.f32 %v276, %v344
      %v360 = vmul.f32 %v277, %v344
      %v361 = vmul.f32 %v278, %v344
      %v362 = vmul.f32 %v279, %v344
      %v363 = vmul.f32 %v280, %v344
      %v364 = vmul.f32 %v281, %v344
      %v365 = vmul.f32 %v282, %v344
      %v366 = vmul.f32 %v283, %v344
      %v367 = vmul.f32 %v284, %v344
      %v368 = vmul.f32 %v285, %v344
      %v369 = vmul.f32 %v286, %v344
      %v370 = vmul.f32 %v287, %v344
      %v371 = vmul.f32 %v288, %v344
      %v372 = vmul.f32 %v289, %v344
      %v373 = vmul.f32 %v290, %v344
      %v374 = vmul.f32 %v291, %v344
      %v375 = vmul.f32 %v292, %v344
      %v376 = vmul.f32 %v293, %v344
      %v377 = vmul.f32 %v294, %v344
      %v378 = vmul.f32 %v295, %v344
      %v379 = vmul.f32 %v296, %v344
      %v380 = vmul.f32 %v297, %v344
      %v381 = vmul.f32 %v298, %v344
      %v382 = vmul.f32 %v299, %v344
      %v383 = vmul.f32 %v300, %v344
      %v384 = vmul.f32 %v301, %v344
      %v385 = vmul.f32 %v302, %v344
      %v386 = vmul.f32 %v303, %v344
      %v387 = vmul.f32 %v304, %v344
      %v388 = vmul.f32 %v305, %v344
      %v389 = vmul.f32 %v306, %v344
      %v390 = vmul.f32 %v307, %v344
      %v391 = vmul.f32 %v308, %v344
      %v392 = vmul.f32 %v309, %v344
      %v393 = vmul.f32 %v310, %v344
      %v394 = vmul.f32 %v311, %v344
      %v395 = vmul.f32 %v312, %v344
      %v396 = vmul.f32 %v313, %v344
      %v397 = vmul.f32 %v314, %v344
      %v398 = vmul.f32 %v315, %v344
      %v399 = vmul.f32 %v316, %v344
      %v400 = vld [vmem:[%s2] sm:$0x1]
      %v402 = vlaneseq
      %v403 = vshrl.u32 %v402, 7
      %v404 = vsub.s32 0, %v403
      %v405 = vrot.slane %v400, %v404
      %v407 = vadd.f32 %v346, %v405
      %v408 = vadd.f32 %v347, %v405
      %v409 = vadd.f32 %v348, %v405
      %v410 = vadd.f32 %v349, %v405
      %v411 = vadd.f32 %v350, %v405
      %v412 = vadd.f32 %v351, %v405
      %v413 = vadd.f32 %v352, %v405
      %v414 = vadd.f32 %v353, %v405
      %v415 = vadd.f32 %v354, %v405
      %v416 = vadd.f32 %v355, %v405
      %v417 = vadd.f32 %v356, %v405
      %v418 = vadd.f32 %v357, %v405
      %v419 = vadd.f32 %v358, %v405
      %v420 = vadd.f32 %v359, %v405
      %v421 = vadd.f32 %v360, %v405
      %v422 = vadd.f32 %v361, %v405
      %v423 = vadd.f32 %v362, %v405
      %v424 = vadd.f32 %v363, %v405
      %v425 = vadd.f32 %v364, %v405
      %v426 = vadd.f32 %v365, %v405
      %v427 = vadd.f32 %v366, %v405
      %v428 = vadd.f32 %v367, %v405
      %v429 = vadd.f32 %v368, %v405
      %v430 = vadd.f32 %v369, %v405
      %v431 = vadd.f32 %v370, %v405
      %v432 = vadd.f32 %v371, %v405
      %v433 = vadd.f32 %v372, %v405
      %v434 = vadd.f32 %v373, %v405
      %v435 = vadd.f32 %v374, %v405
      %v436 = vadd.f32 %v375, %v405
      %v437 = vadd.f32 %v376, %v405
      %v438 = vadd.f32 %v377, %v405
      %v439 = vadd.f32 %v378, %v405
      %v440 = vadd.f32 %v379, %v405
      %v441 = vadd.f32 %v380, %v405
      %v442 = vadd.f32 %v381, %v405
      %v443 = vadd.f32 %v382, %v405
      %v444 = vadd.f32 %v383, %v405
      %v445 = vadd.f32 %v384, %v405
      %v446 = vadd.f32 %v385, %v405
      %v447 = vadd.f32 %v386, %v405
      %v448 = vadd.f32 %v387, %v405
      %v449 = vadd.f32 %v388, %v405
      %v450 = vadd.f32 %v389, %v405
      %v451 = vadd.f32 %v390, %v405
      %v452 = vadd.f32 %v391, %v405
      %v453 = vadd.f32 %v392, %v405
      %v454 = vadd.f32 %v393, %v405
      %v455 = vadd.f32 %v394, %v405
      %v456 = vadd.f32 %v395, %v405
      %v457 = vadd.f32 %v396, %v405
      %v458 = vadd.f32 %v397, %v405
      %v459 = vadd.f32 %v398, %v405
      %v460 = vadd.f32 %v399, %v405
      %v461 = vsel %vm333, %v407, 0.0
      %v462 = vsel %vm334, %v408, 0.0
      %v463 = vsel %vm335, %v409, 0.0
      %v464 = vsel %vm336, %v410, 0.0
      %v465 = vsel %vm337, %v411, 0.0
      %v466 = vsel %vm338, %v412, 0.0
      %v467 = vsel %vm336, %v413, 0.0
      %v468 = vsel %vm337, %v414, 0.0
      %v469 = vsel %vm338, %v415, 0.0
      %v470 = vsel %vm336, %v416, 0.0
      %v471 = vsel %vm337, %v417, 0.0
      %v472 = vsel %vm338, %v418, 0.0
      %v473 = vsel %vm336, %v419, 0.0
      %v474 = vsel %vm337, %v420, 0.0
      %v475 = vsel %vm338, %v421, 0.0
      %v476 = vsel %vm336, %v422, 0.0
      %v477 = vsel %vm337, %v423, 0.0
      %v478 = vsel %vm338, %v424, 0.0
      %v479 = vsel %vm336, %v425, 0.0
      %v480 = vsel %vm337, %v426, 0.0
      %v481 = vsel %vm338, %v427, 0.0
      %v482 = vsel %vm336, %v428, 0.0
      %v483 = vsel %vm337, %v429, 0.0
      %v484 = vsel %vm338, %v430, 0.0
      %v485 = vsel %vm336, %v431, 0.0
      %v486 = vsel %vm337, %v432, 0.0
      %v487 = vsel %vm338, %v433, 0.0
      %v488 = vsel %vm336, %v434, 0.0
      %v489 = vsel %vm337, %v435, 0.0
      %v490 = vsel %vm338, %v436, 0.0
      %v491 = vsel %vm336, %v437, 0.0
      %v492 = vsel %vm337, %v438, 0.0
      %v493 = vsel %vm338, %v439, 0.0
      %v494 = vsel %vm336, %v440, 0.0
      %v495 = vsel %vm337, %v441, 0.0
      %v496 = vsel %vm338, %v442, 0.0
      %v497 = vsel %vm336, %v443, 0.0
      %v498 = vsel %vm337, %v444, 0.0
      %v499 = vsel %vm338, %v445, 0.0
      %v500 = vsel %vm336, %v446, 0.0
      %v501 = vsel %vm337, %v447, 0.0
      %v502 = vsel %vm338, %v448, 0.0
      %v503 = vsel %vm336, %v449, 0.0
      %v504 = vsel %vm337, %v450, 0.0
      %v505 = vsel %vm338, %v451, 0.0
      %v506 = vsel %vm336, %v452, 0.0
      %v507 = vsel %vm337, %v453, 0.0
      %v508 = vsel %vm338, %v454, 0.0
      %v509 = vsel %vm336, %v455, 0.0
      %v510 = vsel %vm337, %v456, 0.0
      %v511 = vsel %vm338, %v457, 0.0
      %v512 = vsel %vm333, %v458, 0.0
      %v513 = vsel %vm334, %v459, 0.0
      %v514 = vsel %vm335, %v460, 0.0
      %v515 = vld [vmem:[%s3] sm:$0xff]
      %v516 = vld [vmem:[%s3 + $0x8] sm:$0xff]
      %v517 = vld [vmem:[%s3 + $0x10] sm:$0xff]
      %v518 = vld [vmem:[%s3 + $0x18] sm:$0xff]
      %v519 = vld [vmem:[%s3 + $0x20] sm:$0xff]
      %v520 = vld [vmem:[%s3 + $0x28] sm:$0xff]
      %v521 = vld [vmem:[%s3 + $0x30] sm:$0xff]
      %v522 = vld [vmem:[%s3 + $0x38] sm:$0xff]
      %v523 = vld [vmem:[%s3 + $0x40] sm:$0xff]
      %v524 = vld [vmem:[%s3 + $0x48] sm:$0xff]
      %v525 = vld [vmem:[%s3 + $0x50] sm:$0xff]
      %v526 = vld [vmem:[%s3 + $0x58] sm:$0xff]
      %v527 = vld [vmem:[%s3 + $0x60] sm:$0xff]
      %v528 = vld [vmem:[%s3 + $0x68] sm:$0xff]
      %v529 = vld [vmem:[%s3 + $0x70] sm:$0xff]
      %v530 = vld [vmem:[%s3 + $0x78] sm:$0xff]
      %vm579 = vcmask 1046528
      %v580 = vrot.slane %v461, 1
      %v581 = vrot.slane %v462, 1
      %v582 = vsel %vm579, %v580, %v581
      %v583 = vrot.slane %v463, 1
      %v584 = vsel %vm579, %v581, %v583
      %v585 = vrot.slane %v464, 1
      %v586 = vrot.slane %v465, 1
      %v587 = vsel %vm579, %v585, %v586
      %v588 = vrot.slane %v466, 1
      %v589 = vsel %vm579, %v586, %v588
      %v590 = vrot.slane %v467, 1
      %v591 = vrot.slane %v468, 1
      %v592 = vsel %vm579, %v590, %v591
      %v593 = vrot.slane %v469, 1
      %v594 = vsel %vm579, %v591, %v593
      %v595 = vrot.slane %v470, 1
      %v596 = vrot.slane %v471, 1
      %v597 = vsel %vm579, %v595, %v596
      %v598 = vrot.slane %v472, 1
      %v599 = vsel %vm579, %v596, %v598
      %v600 = vrot.slane %v473, 1
      %v601 = vrot.slane %v474, 1
      %v602 = vsel %vm579, %v600, %v601
      %v603 = vrot.slane %v475, 1
      %v604 = vsel %vm579, %v601, %v603
      %v605 = vrot.slane %v476, 1
      %v606 = vrot.slane %v477, 1
      %v607 = vsel %vm579, %v605, %v606
      %v608 = vrot.slane %v478, 1
      %v609 = vsel %vm579, %v606, %v608
      %v610 = vrot.slane %v479, 1
      %v611 = vrot.slane %v480, 1
      %v612 = vsel %vm579, %v610, %v611
      %v613 = vrot.slane %v481, 1
      %v614 = vsel %vm579, %v611, %v613
      %v615 = vrot.slane %v482, 1
      %v616 = vrot.slane %v483, 1
      %v617 = vsel %vm579, %v615, %v616
      %v618 = vrot.slane %v484, 1
      %v619 = vsel %vm579, %v616, %v618
      %v620 = vrot.slane %v485, 1
      %v621 = vrot.slane %v486, 1
      %v622 = vsel %vm579, %v620, %v621
      %v623 = vrot.slane %v487, 1
      %v624 = vsel %vm579, %v621, %v623
      %v625 = vrot.slane %v488, 1
      %v626 = vrot.slane %v489, 1
      %v627 = vsel %vm579, %v625, %v626
      %v628 = vrot.slane %v490, 1
      %v629 = vsel %vm579, %v626, %v628
      %v630 = vrot.slane %v491, 1
      %v631 = vrot.slane %v492, 1
      %v632 = vsel %vm579, %v630, %v631
      %v633 = vrot.slane %v493, 1
      %v634 = vsel %vm579, %v631, %v633
      %v635 = vrot.slane %v494, 1
      %v636 = vrot.slane %v495, 1
      %v637 = vsel %vm579, %v635, %v636
      %v638 = vrot.slane %v496, 1
      %v639 = vsel %vm579, %v636, %v638
      %v640 = vrot.slane %v497, 1
      %v641 = vrot.slane %v498, 1
      %v642 = vsel %vm579, %v640, %v641
      %v643 = vrot.slane %v499, 1
      %v644 = vsel %vm579, %v641, %v643
      %v645 = vrot.slane %v500, 1
      %v646 = vrot.slane %v501, 1
      %v647 = vsel %vm579, %v645, %v646
      %v648 = vrot.slane %v502, 1
      %v649 = vsel %vm579, %v646, %v648
      %v650 = vrot.slane %v503, 1
      %v651 = vrot.slane %v504, 1
      %v652 = vsel %vm579, %v650, %v651
      %v653 = vrot.slane %v505, 1
      %v654 = vsel %vm579, %v651, %v653
      %v655 = vrot.slane %v506, 1
      %v656 = vrot.slane %v507, 1
      %v657 = vsel %vm579, %v655, %v656
      %v658 = vrot.slane %v508, 1
      %v659 = vsel %vm579, %v656, %v658
      %s692 = scalar_lea.vmem %s3, 128
      %v693 = vld [vmem:[%s692] sm:$0xff]
      %v694 = vld [vmem:[%s692 + $0x8] sm:$0xff]
      %v695 = vld [vmem:[%s692 + $0x10] sm:$0xff]
      %v696 = vld [vmem:[%s692 + $0x18] sm:$0xff]
      %v697 = vld [vmem:[%s692 + $0x20] sm:$0xff]
      %v698 = vld [vmem:[%s692 + $0x28] sm:$0xff]
      %v699 = vld [vmem:[%s692 + $0x30] sm:$0xff]
      %v700 = vld [vmem:[%s692 + $0x38] sm:$0xff]
      %v701 = vld [vmem:[%s692 + $0x40] sm:$0xff]
      %v702 = vld [vmem:[%s692 + $0x48] sm:$0xff]
      %v703 = vld [vmem:[%s692 + $0x50] sm:$0xff]
      %v704 = vld [vmem:[%s692 + $0x58] sm:$0xff]
      %v705 = vld [vmem:[%s692 + $0x60] sm:$0xff]
      %v706 = vld [vmem:[%s692 + $0x68] sm:$0xff]
      %v707 = vld [vmem:[%s692 + $0x70] sm:$0xff]
      %v708 = vld [vmem:[%s692 + $0x78] sm:$0xff]
      %709 = vmatprep.subr.mxu0 0.0
      %710 = vmatpush1.msra.mxu0 %v693
      %711 = vmatprep.subr.mxu0 0.0
      %712 = vmatpush1.msra.mxu0 %v694
      %713 = vmatprep.subr.mxu0 0.0
      %714 = vmatpush1.msra.mxu0 %v695
      %715 = vmatprep.subr.mxu0 0.0
      %716 = vmatpush1.msra.mxu0 %v696
      %717 = vmatprep.subr.mxu0 0.0
      %718 = vmatpush1.msra.mxu0 %v697
      %719 = vmatprep.subr.mxu0 0.0
      %720 = vmatpush1.msra.mxu0 %v698
      %721 = vmatprep.subr.mxu0 0.0
      %722 = vmatpush1.msra.mxu0 %v699
      %723 = vmatprep.subr.mxu0 0.0
      %724 = vmatpush1.msra.mxu0 %v700
      %725 = vmatprep.subr.mxu0 0.0
      %726 = vmatpush1.msra.mxu0 %v701
      %727 = vmatprep.subr.mxu0 0.0
      %728 = vmatpush1.msra.mxu0 %v702
      %729 = vmatprep.subr.mxu0 0.0
      %730 = vmatpush1.msra.mxu0 %v703
      %731 = vmatprep.subr.mxu0 0.0
      %732 = vmatpush1.msra.mxu0 %v704
      %733 = vmatprep.subr.mxu0 0.0
      %734 = vmatpush1.msra.mxu0 %v705
      %735 = vmatprep.subr.mxu0 0.0
      %736 = vmatpush1.msra.mxu0 %v706
      %737 = vmatprep.subr.mxu0 0.0
      %738 = vmatpush1.msra.mxu0 %v707
      %739 = vmatprep.subr.mxu0 0.0
      %740 = vmatpush1.msra.mxu0 %v708
      %741 = vmatprep.subr.mxu0 0.0
      %742 = vmatpush1.msra.mxu0 0.0
      %743 = vmatprep.subr.mxu0 0.0
      %744 = vmatpush1.msra.mxu0 0.0
      %745 = vmatprep.subr.mxu0 0.0
      %746 = vmatpush1.msra.mxu0 0.0
      %747 = vmatprep.subr.mxu0 0.0
      %748 = vmatpush1.msra.mxu0 0.0
      %749 = vmatprep.subr.mxu0 0.0
      %750 = vmatpush1.msra.mxu0 0.0
      %751 = vmatprep.subr.mxu0 0.0
      %752 = vmatpush1.msra.mxu0 0.0
      %753 = vmatprep.subr.mxu0 0.0
      %754 = vmatpush1.msra.mxu0 0.0
      %755 = vmatprep.subr.mxu0 0.0
      %756 = vmatpush1.msra.mxu0 0.0
      %757 = vmatprep.subr.mxu0 0.0
      %758 = vmatpush1.msra.mxu0 0.0
      %759 = vmatprep.subr.mxu0 0.0
      %760 = vmatpush1.msra.mxu0 0.0
      %761 = vmatprep.subr.mxu0 0.0
      %762 = vmatpush1.msra.mxu0 0.0
      %763 = vmatprep.subr.mxu0 0.0
      %764 = vmatpush1.msra.mxu0 0.0
      %765 = vmatprep.subr.mxu0 0.0
      %766 = vmatpush1.msra.mxu0 0.0
      %767 = vmatprep.subr.mxu0 0.0
      %768 = vmatpush1.msra.mxu0 0.0
      %769 = vmatprep.subr.mxu0 0.0
      %770 = vmatpush1.msra.mxu0 0.0
      %771 = vmatprep.subr.mxu0 0.0
      %772 = vmatpush1.msra.mxu0 0.0
      %773 = vmatprep.mubr.f32.mxu0 0.0
      %774 = vmatmul.mubr.f32.gmra.mrb[0].mxu0 %v582
      %v775 = vpop.f32.mrb[0].mxu0
      %v776 = vadd.f32 0.0, %v775
      %v777 = vpop.f32.mrb[0].mxu0
      %778 = vmatprep.mubr.f32.mxu0 0.0
      %779 = vmatmul.mubr.f32.gmra.mrb[0].mxu0 %v584
      %v780 = vpop.f32.mrb[0].mxu0
      %v781 = vadd.f32 0.0, %v780
      %v782 = vpop.f32.mrb[0].mxu0
      %783 = vmatprep.mubr.f32.mxu0 0.0
      %784 = vmatmul.mubr.f32.gmra.mrb[0].mxu0 %v587
      %v785 = vpop.f32.mrb[0].mxu0
      %v786 = vadd.f32 0.0, %v785
      %v787 = vpop.f32.mrb[0].mxu0
      %788 = vmatprep.mubr.f32.mxu0 0.0
      %789 = vmatmul.mubr.f32.gmra.mrb[0].mxu0 %v589
      %v790 = vpop.f32.mrb[0].mxu0
      %v791 = vadd.f32 0.0, %v790
      %v792 = vpop.f32.mrb[0].mxu0
      %793 = vmatprep.mubr.f32.mxu0 0.0
      %794 = vmatmul.mubr.f32.gmra.mrb[0].mxu0 %v592
      %v795 = vpop.f32.mrb[0].mxu0
      %v796 = vadd.f32 0.0, %v795
      %v797 = vpop.f32.mrb[0].mxu0
      %798 = vmatprep.mubr.f32.mxu0 0.0
      %799 = vmatmul.mubr.f32.gmra.mrb[0].mxu0 %v594
      %v800 = vpop.f32.mrb[0].mxu0
      %v801 = vadd.f32 0.0, %v800
      %v802 = vpop.f32.mrb[0].mxu0
      %803 = vmatprep.mubr.f32.mxu0 0.0
      %804 = vmatmul.mubr.f32.gmra.mrb[0].mxu0 %v597
      %v805 = vpop.f32.mrb[0].mxu0
      %v806 = vadd.f32 0.0, %v805
      %v807 = vpop.f32.mrb[0].mxu0
      %808 = vmatprep.mubr.f32.mxu0 0.0
      %809 = vmatmul.mubr.f32.gmra.mrb[0].mxu0 %v599
      %v810 = vpop.f32.mrb[0].mxu0
      %v811 = vadd.f32 0.0, %v810
      %v812 = vpop.f32.mrb[0].mxu0
      %813 = vmatprep.mubr.f32.mxu0 0.0
      %814 = vmatmul.mubr.f32.gmra.mrb[0].mxu0 %v602
      %v815 = vpop.f32.mrb[0].mxu0
      %v816 = vadd.f32 0.0, %v815
      %v817 = vpop.f32.mrb[0].mxu0
      %818 = vmatprep.mubr.f32.mxu0 0.0
      %819 = vmatmul.mubr.f32.gmra.mrb[0].mxu0 %v604
      %v820 = vpop.f32.mrb[0].mxu0
      %v821 = vadd.f32 0.0, %v820
      %v822 = vpop.f32.mrb[0].mxu0
      %823 = vmatprep.mubr.f32.mxu0 0.0
      %824 = vmatmul.mubr.f32.gmra.mrb[0].mxu0 %v607
      %v825 = vpop.f32.mrb[0].mxu0
      %v826 = vadd.f32 0.0, %v825
      %v827 = vpop.f32.mrb[0].mxu0
      %828 = vmatprep.mubr.f32.mxu0 0.0
      %829 = vmatmul.mubr.f32.gmra.mrb[0].mxu0 %v609
      %v830 = vpop.f32.mrb[0].mxu0
      %v831 = vadd.f32 0.0, %v830
      %v832 = vpop.f32.mrb[0].mxu0
      %833 = vmatprep.mubr.f32.mxu0 0.0
      %834 = vmatmul.mubr.f32.gmra.mrb[0].mxu0 %v612
      %v835 = vpop.f32.mrb[0].mxu0
      %v836 = vadd.f32 0.0, %v835
      %v837 = vpop.f32.mrb[0].mxu0
      %838 = vmatprep.mubr.f32.mxu0 0.0
      %839 = vmatmul.mubr.f32.gmra.mrb[0].mxu0 %v614
      %v840 = vpop.f32.mrb[0].mxu0
      %v841 = vadd.f32 0.0, %v840
      %v842 = vpop.f32.mrb[0].mxu0
      %843 = vmatprep.mubr.f32.mxu0 0.0
      %844 = vmatmul.mubr.f32.gmra.mrb[0].mxu0 %v617
      %v845 = vpop.f32.mrb[0].mxu0
      %v846 = vadd.f32 0.0, %v845
      %v847 = vpop.f32.mrb[0].mxu0
      %848 = vmatprep.mubr.f32.mxu0 0.0
      %849 = vmatmul.mubr.f32.gmra.mrb[0].mxu0 %v619
      %v850 = vpop.f32.mrb[0].mxu0
      %v851 = vadd.f32 0.0, %v850
      %v852 = vpop.f32.mrb[0].mxu0
      %853 = vmatprep.mubr.f32.mxu0 0.0
      %854 = vmatmul.mubr.f32.gmra.mrb[0].mxu0 %v622
      %v855 = vpop.f32.mrb[0].mxu0
      %v856 = vadd.f32 0.0, %v855
      %v857 = vpop.f32.mrb[0].mxu0
      %858 = vmatprep.mubr.f32.mxu0 0.0
      %859 = vmatmul.mubr.f32.gmra.mrb[0].mxu0 %v624
      %v860 = vpop.f32.mrb[0].mxu0
      %v861 = vadd.f32 0.0, %v860
      %v862 = vpop.f32.mrb[0].mxu0
      %863 = vmatprep.mubr.f32.mxu0 0.0
      %864 = vmatmul.mubr.f32.gmra.mrb[0].mxu0 %v627
      %v865 = vpop.f32.mrb[0].mxu0
      %v866 = vadd.f32 0.0, %v865
      %v867 = vpop.f32.mrb[0].mxu0
      %868 = vmatprep.mubr.f32.mxu0 0.0
      %869 = vmatmul.mubr.f32.gmra.mrb[0].mxu0 %v629
      %v870 = vpop.f32.mrb[0].mxu0
      %v871 = vadd.f32 0.0, %v870
      %v872 = vpop.f32.mrb[0].mxu0
      %873 = vmatprep.mubr.f32.mxu0 0.0
      %874 = vmatmul.mubr.f32.gmra.mrb[0].mxu0 %v632
      %v875 = vpop.f32.mrb[0].mxu0
      %v876 = vadd.f32 0.0, %v875
      %v877 = vpop.f32.mrb[0].mxu0
      %878 = vmatprep.mubr.f32.mxu0 0.0
      %879 = vmatmul.mubr.f32.gmra.mrb[0].mxu0 %v634
      %v880 = vpop.f32.mrb[0].mxu0
      %v881 = vadd.f32 0.0, %v880
      %v882 = vpop.f32.mrb[0].mxu0
      %883 = vmatprep.mubr.f32.mxu0 0.0
      %884 = vmatmul.mubr.f32.gmra.mrb[0].mxu0 %v637
      %v885 = vpop.f32.mrb[0].mxu0
      %v886 = vadd.f32 0.0, %v885
      %v887 = vpop.f32.mrb[0].mxu0
      %888 = vmatprep.mubr.f32.mxu0 0.0
      %889 = vmatmul.mubr.f32.gmra.mrb[0].mxu0 %v639
      %v890 = vpop.f32.mrb[0].mxu0
      %v891 = vadd.f32 0.0, %v890
      %v892 = vpop.f32.mrb[0].mxu0
      %893 = vmatprep.mubr.f32.mxu0 0.0
      %894 = vmatmul.mubr.f32.gmra.mrb[0].mxu0 %v642
      %v895 = vpop.f32.mrb[0].mxu0
      %v896 = vadd.f32 0.0, %v895
      %v897 = vpop.f32.mrb[0].mxu0
      %898 = vmatprep.mubr.f32.mxu0 0.0
      %899 = vmatmul.mubr.f32.gmra.mrb[0].mxu0 %v644
      %v900 = vpop.f32.mrb[0].mxu0
      %v901 = vadd.f32 0.0, %v900
      %v902 = vpop.f32.mrb[0].mxu0
      %903 = vmatprep.mubr.f32.mxu0 0.0
      %904 = vmatmul.mubr.f32.gmra.mrb[0].mxu0 %v647
      %v905 = vpop.f32.mrb[0].mxu0
      %v906 = vadd.f32 0.0, %v905
      %v907 = vpop.f32.mrb[0].mxu0
      %908 = vmatprep.mubr.f32.mxu0 0.0
      %909 = vmatmul.mubr.f32.gmra.mrb[0].mxu0 %v649
      %v910 = vpop.f32.mrb[0].mxu0
      %v911 = vadd.f32 0.0, %v910
      %v912 = vpop.f32.mrb[0].mxu0
      %913 = vmatprep.mubr.f32.mxu0 0.0
      %914 = vmatmul.mubr.f32.gmra.mrb[0].mxu0 %v652
      %v915 = vpop.f32.mrb[0].mxu0
      %v916 = vadd.f32 0.0, %v915
      %v917 = vpop.f32.mrb[0].mxu0
      %918 = vmatprep.mubr.f32.mxu0 0.0
      %919 = vmatmul.mubr.f32.gmra.mrb[0].mxu0 %v654
      %v920 = vpop.f32.mrb[0].mxu0
      %v921 = vadd.f32 0.0, %v920
      %v922 = vpop.f32.mrb[0].mxu0
      %923 = vmatprep.mubr.f32.mxu0 0.0
      %924 = vmatmul.mubr.f32.gmra.mrb[0].mxu0 %v657
      %v925 = vpop.f32.mrb[0].mxu0
      %v926 = vadd.f32 0.0, %v925
      %v927 = vpop.f32.mrb[0].mxu0
      %928 = vmatprep.mubr.f32.mxu0 0.0
      %929 = vmatmul.mubr.f32.gmra.mrb[0].mxu0 %v659
      %v930 = vpop.f32.mrb[0].mxu0
      %v931 = vadd.f32 0.0, %v930
      %v932 = vpop.f32.mrb[0].mxu0
      %933 = vdwg.mxu0
      %934 = vmatprep.subr.mxu0 0.0
      %935 = vmatpush1.msra.mxu0 %v515
      %936 = vmatprep.subr.mxu0 0.0
      %937 = vmatpush1.msra.mxu0 %v516
      %938 = vmatprep.subr.mxu0 0.0
      %939 = vmatpush1.msra.mxu0 %v517
      %940 = vmatprep.subr.mxu0 0.0
      %941 = vmatpush1.msra.mxu0 %v518
      %942 = vmatprep.subr.mxu0 0.0
      %943 = vmatpush1.msra.mxu0 %v519
      %944 = vmatprep.subr.mxu0 0.0
      %945 = vmatpush1.msra.mxu0 %v520
      %946 = vmatprep.subr.mxu0 0.0
      %947 = vmatpush1.msra.mxu0 %v521
      %948 = vmatprep.subr.mxu0 0.0
      %949 = vmatpush1.msra.mxu0 %v522
      %950 = vmatprep.subr.mxu0 0.0
      %951 = vmatpush1.msra.mxu0 %v523
      %952 = vmatprep.subr.mxu0 0.0
      %953 = vmatpush1.msra.mxu0 %v524
      %954 = vmatprep.subr.mxu0 0.0
      %955 = vmatpush1.msra.mxu0 %v525
      %956 = vmatprep.subr.mxu0 0.0
      %957 = vmatpush1.msra.mxu0 %v526
      %958 = vmatprep.subr.mxu0 0.0
      %959 = vmatpush1.msra.mxu0 %v527
      %960 = vmatprep.subr.mxu0 0.0
      %961 = vmatpush1.msra.mxu0 %v528
      %962 = vmatprep.subr.mxu0 0.0
      %963 = vmatpush1.msra.mxu0 %v529
      %964 = vmatprep.subr.mxu0 0.0
      %965 = vmatpush1.msra.mxu0 %v530
      %966 = vmatprep.subr.mxu0 0.0
      %967 = vmatpush1.msra.mxu0 0.0
      %968 = vmatprep.subr.mxu0 0.0
      %969 = vmatpush1.msra.mxu0 0.0
      %970 = vmatprep.subr.mxu0 0.0
      %971 = vmatpush1.msra.mxu0 0.0
      %972 = vmatprep.subr.mxu0 0.0
      %973 = vmatpush1.msra.mxu0 0.0
      %974 = vmatprep.subr.mxu0 0.0
      %975 = vmatpush1.msra.mxu0 0.0
      %976 = vmatprep.subr.mxu0 0.0
      %977 = vmatpush1.msra.mxu0 0.0
      %978 = vmatprep.subr.mxu0 0.0
      %979 = vmatpush1.msra.mxu0 0.0
      %980 = vmatprep.subr.mxu0 0.0
      %981 = vmatpush1.msra.mxu0 0.0
      %982 = vmatprep.subr.mxu0 0.0
      %983 = vmatpush1.msra.mxu0 0.0
      %984 = vmatprep.subr.mxu0 0.0
      %985 = vmatpush1.msra.mxu0 0.0
      %986 = vmatprep.subr.mxu0 0.0
      %987 = vmatpush1.msra.mxu0 0.0
      %988 = vmatprep.subr.mxu0 0.0
      %989 = vmatpush1.msra.mxu0 0.0
      %990 = vmatprep.subr.mxu0 0.0
      %991 = vmatpush1.msra.mxu0 0.0
      %992 = vmatprep.subr.mxu0 0.0
      %993 = vmatpush1.msra.mxu0 0.0
      %994 = vmatprep.subr.mxu0 0.0
      %995 = vmatpush1.msra.mxu0 0.0
      %996 = vmatprep.subr.mxu0 0.0
      %997 = vmatpush1.msra.mxu0 0.0
      %998 = vmatprep.mubr.f32.mxu0 0.0
      %999 = vmatmul.mubr.f32.gmra.mrb[0].mxu0 %v461
      %v1000 = vpop.f32.mrb[0].mxu0
      %v1001 = vadd.f32 %v776, %v1000
      %v1002 = vpop.f32.mrb[0].mxu0
      %1003 = vmatprep.mubr.f32.mxu0 0.0
      %1004 = vmatmul.mubr.f32.gmra.mrb[0].mxu0 %v462
      %v1005 = vpop.f32.mrb[0].mxu0
      %v1006 = vadd.f32 %v781, %v1005
      %v1007 = vpop.f32.mrb[0].mxu0
      %1008 = vmatprep.mubr.f32.mxu0 0.0
      %1009 = vmatmul.mubr.f32.gmra.mrb[0].mxu0 %v464
      %v1010 = vpop.f32.mrb[0].mxu0
      %v1011 = vadd.f32 %v786, %v1010
      %v1012 = vpop.f32.mrb[0].mxu0
      %1013 = vmatprep.mubr.f32.mxu0 0.0
      %1014 = vmatmul.mubr.f32.gmra.mrb[0].mxu0 %v465
      %v1015 = vpop.f32.mrb[0].mxu0
      %v1016 = vadd.f32 %v791, %v1015
      %v1017 = vpop.f32.mrb[0].mxu0
      %1018 = vmatprep.mubr.f32.mxu0 0.0
      %1019 = vmatmul.mubr.f32.gmra.mrb[0].mxu0 %v467
      %v1020 = vpop.f32.mrb[0].mxu0
      %v1021 = vadd.f32 %v796, %v1020
      %v1022 = vpop.f32.mrb[0].mxu0
      %1023 = vmatprep.mubr.f32.mxu0 0.0
      %1024 = vmatmul.mubr.f32.gmra.mrb[0].mxu0 %v468
      %v1025 = vpop.f32.mrb[0].mxu0
      %v1026 = vadd.f32 %v801, %v1025
      %v1027 = vpop.f32.mrb[0].mxu0
      %1028 = vmatprep.mubr.f32.mxu0 0.0
      %1029 = vmatmul.mubr.f32.gmra.mrb[0].mxu0 %v470
      %v1030 = vpop.f32.mrb[0].mxu0
      %v1031 = vadd.f32 %v806, %v1030
      %v1032 = vpop.f32.mrb[0].mxu0
      %1033 = vmatprep.mubr.f32.mxu0 0.0
      %1034 = vmatmul.mubr.f32.gmra.mrb[0].mxu0 %v471
      %v1035 = vpop.f32.mrb[0].mxu0
      %v1036 = vadd.f32 %v811, %v1035
      %v1037 = vpop.f32.mrb[0].mxu0
      %1038 = vmatprep.mubr.f32.mxu0 0.0
      %1039 = vmatmul.mubr.f32.gmra.mrb[0].mxu0 %v473
      %v1040 = vpop.f32.mrb[0].mxu0
      %v1041 = vadd.f32 %v816, %v1040
      %v1042 = vpop.f32.mrb[0].mxu0
      %1043 = vmatprep.mubr.f32.mxu0 0.0
      %1044 = vmatmul.mubr.f32.gmra.mrb[0].mxu0 %v474
      %v1045 = vpop.f32.mrb[0].mxu0
      %v1046 = vadd.f32 %v821, %v1045
      %v1047 = vpop.f32.mrb[0].mxu0
      %1048 = vmatprep.mubr.f32.mxu0 0.0
      %1049 = vmatmul.mubr.f32.gmra.mrb[0].mxu0 %v476
      %v1050 = vpop.f32.mrb[0].mxu0
      %v1051 = vadd.f32 %v826, %v1050
      %v1052 = vpop.f32.mrb[0].mxu0
      %1053 = vmatprep.mubr.f32.mxu0 0.0
      %1054 = vmatmul.mubr.f32.gmra.mrb[0].mxu0 %v477
      %v1055 = vpop.f32.mrb[0].mxu0
      %v1056 = vadd.f32 %v831, %v1055
      %v1057 = vpop.f32.mrb[0].mxu0
      %1058 = vmatprep.mubr.f32.mxu0 0.0
      %1059 = vmatmul.mubr.f32.gmra.mrb[0].mxu0 %v479
      %v1060 = vpop.f32.mrb[0].mxu0
      %v1061 = vadd.f32 %v836, %v1060
      %v1062 = vpop.f32.mrb[0].mxu0
      %1063 = vmatprep.mubr.f32.mxu0 0.0
      %1064 = vmatmul.mubr.f32.gmra.mrb[0].mxu0 %v480
      %v1065 = vpop.f32.mrb[0].mxu0
      %v1066 = vadd.f32 %v841, %v1065
      %v1067 = vpop.f32.mrb[0].mxu0
      %1068 = vmatprep.mubr.f32.mxu0 0.0
      %1069 = vmatmul.mubr.f32.gmra.mrb[0].mxu0 %v482
      %v1070 = vpop.f32.mrb[0].mxu0
      %v1071 = vadd.f32 %v846, %v1070
      %v1072 = vpop.f32.mrb[0].mxu0
      %1073 = vmatprep.mubr.f32.mxu0 0.0
      %1074 = vmatmul.mubr.f32.gmra.mrb[0].mxu0 %v483
      %v1075 = vpop.f32.mrb[0].mxu0
      %v1076 = vadd.f32 %v851, %v1075
      %v1077 = vpop.f32.mrb[0].mxu0
      %1078 = vmatprep.mubr.f32.mxu0 0.0
      %1079 = vmatmul.mubr.f32.gmra.mrb[0].mxu0 %v485
      %v1080 = vpop.f32.mrb[0].mxu0
      %v1081 = vadd.f32 %v856, %v1080
      %v1082 = vpop.f32.mrb[0].mxu0
      %1083 = vmatprep.mubr.f32.mxu0 0.0
      %1084 = vmatmul.mubr.f32.gmra.mrb[0].mxu0 %v486
      %v1085 = vpop.f32.mrb[0].mxu0
      %v1086 = vadd.f32 %v861, %v1085
      %v1087 = vpop.f32.mrb[0].mxu0
      %1088 = vmatprep.mubr.f32.mxu0 0.0
      %1089 = vmatmul.mubr.f32.gmra.mrb[0].mxu0 %v488
      %v1090 = vpop.f32.mrb[0].mxu0
      %v1091 = vadd.f32 %v866, %v1090
      %v1092 = vpop.f32.mrb[0].mxu0
      %1093 = vmatprep.mubr.f32.mxu0 0.0
      %1094 = vmatmul.mubr.f32.gmra.mrb[0].mxu0 %v489
      %v1095 = vpop.f32.mrb[0].mxu0
      %v1096 = vadd.f32 %v871, %v1095
      %v1097 = vpop.f32.mrb[0].mxu0
      %1098 = vmatprep.mubr.f32.mxu0 0.0
      %1099 = vmatmul.mubr.f32.gmra.mrb[0].mxu0 %v491
      %v1100 = vpop.f32.mrb[0].mxu0
      %v1101 = vadd.f32 %v876, %v1100
      %v1102 = vpop.f32.mrb[0].mxu0
      %1103 = vmatprep.mubr.f32.mxu0 0.0
      %1104 = vmatmul.mubr.f32.gmra.mrb[0].mxu0 %v492
      %v1105 = vpop.f32.mrb[0].mxu0
      %v1106 = vadd.f32 %v881, %v1105
      %v1107 = vpop.f32.mrb[0].mxu0
      %1108 = vmatprep.mubr.f32.mxu0 0.0
      %1109 = vmatmul.mubr.f32.gmra.mrb[0].mxu0 %v494
      %v1110 = vpop.f32.mrb[0].mxu0
      %v1111 = vadd.f32 %v886, %v1110
      %v1112 = vpop.f32.mrb[0].mxu0
      %1113 = vmatprep.mubr.f32.mxu0 0.0
      %1114 = vmatmul.mubr.f32.gmra.mrb[0].mxu0 %v495
      %v1115 = vpop.f32.mrb[0].mxu0
      %v1116 = vadd.f32 %v891, %v1115
      %v1117 = vpop.f32.mrb[0].mxu0
      %1118 = vmatprep.mubr.f32.mxu0 0.0
      %1119 = vmatmul.mubr.f32.gmra.mrb[0].mxu0 %v497
      %v1120 = vpop.f32.mrb[0].mxu0
      %v1121 = vadd.f32 %v896, %v1120
      %v1122 = vpop.f32.mrb[0].mxu0
      %1123 = vmatprep.mubr.f32.mxu0 0.0
      %1124 = vmatmul.mubr.f32.gmra.mrb[0].mxu0 %v498
      %v1125 = vpop.f32.mrb[0].mxu0
      %v1126 = vadd.f32 %v901, %v1125
      %v1127 = vpop.f32.mrb[0].mxu0
      %1128 = vmatprep.mubr.f32.mxu0 0.0
      %1129 = vmatmul.mubr.f32.gmra.mrb[0].mxu0 %v500
      %v1130 = vpop.f32.mrb[0].mxu0
      %v1131 = vadd.f32 %v906, %v1130
      %v1132 = vpop.f32.mrb[0].mxu0
      %1133 = vmatprep.mubr.f32.mxu0 0.0
      %1134 = vmatmul.mubr.f32.gmra.mrb[0].mxu0 %v501
      %v1135 = vpop.f32.mrb[0].mxu0
      %v1136 = vadd.f32 %v911, %v1135
      %v1137 = vpop.f32.mrb[0].mxu0
      %1138 = vmatprep.mubr.f32.mxu0 0.0
      %1139 = vmatmul.mubr.f32.gmra.mrb[0].mxu0 %v503
      %v1140 = vpop.f32.mrb[0].mxu0
      %v1141 = vadd.f32 %v916, %v1140
      %v1142 = vpop.f32.mrb[0].mxu0
      %1143 = vmatprep.mubr.f32.mxu0 0.0
      %1144 = vmatmul.mubr.f32.gmra.mrb[0].mxu0 %v504
      %v1145 = vpop.f32.mrb[0].mxu0
      %v1146 = vadd.f32 %v921, %v1145
      %v1147 = vpop.f32.mrb[0].mxu0
      %1148 = vmatprep.mubr.f32.mxu0 0.0
      %1149 = vmatmul.mubr.f32.gmra.mrb[0].mxu0 %v506
      %v1150 = vpop.f32.mrb[0].mxu0
      %v1151 = vadd.f32 %v926, %v1150
      %v1152 = vpop.f32.mrb[0].mxu0
      %1153 = vmatprep.mubr.f32.mxu0 0.0
      %1154 = vmatmul.mubr.f32.gmra.mrb[0].mxu0 %v507
      %v1155 = vpop.f32.mrb[0].mxu0
      %v1156 = vadd.f32 %v931, %v1155
      %v1157 = vpop.f32.mrb[0].mxu0
      %1158 = vdwg.mxu0
      %vm1159 = vcmask 1045504
      %v1160 = vrot.slane %v461, 2
      %v1161 = vrot.slane %v462, 2
      %v1162 = vsel %vm1159, %v1160, %v1161
      %v1163 = vrot.slane %v463, 2
      %v1164 = vsel %vm1159, %v1161, %v1163
      %v1165 = vrot.slane %v464, 2
      %v1166 = vrot.slane %v465, 2
      %v1167 = vsel %vm1159, %v1165, %v1166
      %v1168 = vrot.slane %v466, 2
      %v1169 = vsel %vm1159, %v1166, %v1168
      %v1170 = vrot.slane %v467, 2
      %v1171 = vrot.slane %v468, 2
      %v1172 = vsel %vm1159, %v1170, %v1171
      %v1173 = vrot.slane %v469, 2
      %v1174 = vsel %vm1159, %v1171, %v1173
      %v1175 = vrot.slane %v470, 2
      %v1176 = vrot.slane %v471, 2
      %v1177 = vsel %vm1159, %v1175, %v1176
      %v1178 = vrot.slane %v472, 2
      %v1179 = vsel %vm1159, %v1176, %v1178
      %v1180 = vrot.slane %v473, 2
      %v1181 = vrot.slane %v474, 2
      %v1182 = vsel %vm1159, %v1180, %v1181
      %v1183 = vrot.slane %v475, 2
      %v1184 = vsel %vm1159, %v1181, %v1183
      %v1185 = vrot.slane %v476, 2
      %v1186 = vrot.slane %v477, 2
      %v1187 = vsel %vm1159, %v1185, %v1186
      %v1188 = vrot.slane %v478, 2
      %v1189 = vsel %vm1159, %v1186, %v1188
      %v1190 = vrot.slane %v479, 2
      %v1191 = vrot.slane %v480, 2
      %v1192 = vsel %vm1159, %v1190, %v1191
      %v1193 = vrot.slane %v481, 2
      %v1194 = vsel %vm1159, %v1191, %v1193
      %v1195 = vrot.slane %v482, 2
      %v1196 = vrot.slane %v483, 2
      %v1197 = vsel %vm1159, %v1195, %v1196
      %v1198 = vrot.slane %v484, 2
      %v1199 = vsel %vm1159, %v1196, %v1198
      %v1200 = vrot.slane %v485, 2
      %v1201 = vrot.slane %v486, 2
      %v1202 = vsel %vm1159, %v1200, %v1201
      %v1203 = vrot.slane %v487, 2
      %v1204 = vsel %vm1159, %v1201, %v1203
      %v1205 = vrot.slane %v488, 2
      %v1206 = vrot.slane %v489, 2
      %v1207 = vsel %vm1159, %v1205, %v1206
      %v1208 = vrot.slane %v490, 2
      %v1209 = vsel %vm1159, %v1206, %v1208
      %v1210 = vrot.slane %v491, 2
      %v1211 = vrot.slane %v492, 2
      %v1212 = vsel %vm1159, %v1210, %v1211
      %v1213 = vrot.slane %v493, 2
      %v1214 = vsel %vm1159, %v1211, %v1213
      %v1215 = vrot.slane %v494, 2
      %v1216 = vrot.slane %v495, 2
      %v1217 = vsel %vm1159, %v1215, %v1216
      %v1218 = vrot.slane %v496, 2
      %v1219 = vsel %vm1159, %v1216, %v1218
      %v1220 = vrot.slane %v497, 2
      %v1221 = vrot.slane %v498, 2
      %v1222 = vsel %vm1159, %v1220, %v1221
      %v1223 = vrot.slane %v499, 2
      %v1224 = vsel %vm1159, %v1221, %v1223
      %v1225 = vrot.slane %v500, 2
      %v1226 = vrot.slane %v501, 2
      %v1227 = vsel %vm1159, %v1225, %v1226
      %v1228 = vrot.slane %v502, 2
      %v1229 = vsel %vm1159, %v1226, %v1228
      %v1230 = vrot.slane %v503, 2
      %v1231 = vrot.slane %v504, 2
      %v1232 = vsel %vm1159, %v1230, %v1231
      %v1233 = vrot.slane %v505, 2
      %v1234 = vsel %vm1159, %v1231, %v1233
      %v1235 = vrot.slane %v506, 2
      %v1236 = vrot.slane %v507, 2
      %v1237 = vsel %vm1159, %v1235, %v1236
      %v1238 = vrot.slane %v508, 2
      %v1239 = vsel %vm1159, %v1236, %v1238
      %s1272 = scalar_lea.vmem %s3, 256
      %v1273 = vld [vmem:[%s1272] sm:$0xff]
      %v1274 = vld [vmem:[%s1272 + $0x8] sm:$0xff]
      %v1275 = vld [vmem:[%s1272 + $0x10] sm:$0xff]
      %v1276 = vld [vmem:[%s1272 + $0x18] sm:$0xff]
      %v1277 = vld [vmem:[%s1272 + $0x20] sm:$0xff]
      %v1278 = vld [vmem:[%s1272 + $0x28] sm:$0xff]
      %v1279 = vld [vmem:[%s1272 + $0x30] sm:$0xff]
      %v1280 = vld [vmem:[%s1272 + $0x38] sm:$0xff]
      %v1281 = vld [vmem:[%s1272 + $0x40] sm:$0xff]
      %v1282 = vld [vmem:[%s1272 + $0x48] sm:$0xff]
      %v1283 = vld [vmem:[%s1272 + $0x50] sm:$0xff]
      %v1284 = vld [vmem:[%s1272 + $0x58] sm:$0xff]
      %v1285 = vld [vmem:[%s1272 + $0x60] sm:$0xff]
      %v1286 = vld [vmem:[%s1272 + $0x68] sm:$0xff]
      %v1287 = vld [vmem:[%s1272 + $0x70] sm:$0xff]
      %v1288 = vld [vmem:[%s1272 + $0x78] sm:$0xff]
      %1289 = vmatprep.subr.mxu0 0.0
      %1290 = vmatpush1.msra.mxu0 %v1273
      %1291 = vmatprep.subr.mxu0 0.0
      %1292 = vmatpush1.msra.mxu0 %v1274
      %1293 = vmatprep.subr.mxu0 0.0
      %1294 = vmatpush1.msra.mxu0 %v1275
      %1295 = vmatprep.subr.mxu0 0.0
      %1296 = vmatpush1.msra.mxu0 %v1276
      %1297 = vmatprep.subr.mxu0 0.0
      %1298 = vmatpush1.msra.mxu0 %v1277
      %1299 = vmatprep.subr.mxu0 0.0
      %1300 = vmatpush1.msra.mxu0 %v1278
      %1301 = vmatprep.subr.mxu0 0.0
      %1302 = vmatpush1.msra.mxu0 %v1279
      %1303 = vmatprep.subr.mxu0 0.0
      %1304 = vmatpush1.msra.mxu0 %v1280
      %1305 = vmatprep.subr.mxu0 0.0
      %1306 = vmatpush1.msra.mxu0 %v1281
      %1307 = vmatprep.subr.mxu0 0.0
      %1308 = vmatpush1.msra.mxu0 %v1282
      %1309 = vmatprep.subr.mxu0 0.0
      %1310 = vmatpush1.msra.mxu0 %v1283
      %1311 = vmatprep.subr.mxu0 0.0
      %1312 = vmatpush1.msra.mxu0 %v1284
      %1313 = vmatprep.subr.mxu0 0.0
      %1314 = vmatpush1.msra.mxu0 %v1285
      %1315 = vmatprep.subr.mxu0 0.0
      %1316 = vmatpush1.msra.mxu0 %v1286
      %1317 = vmatprep.subr.mxu0 0.0
      %1318 = vmatpush1.msra.mxu0 %v1287
      %1319 = vmatprep.subr.mxu0 0.0
      %1320 = vmatpush1.msra.mxu0 %v1288
      %1321 = vmatprep.subr.mxu0 0.0
      %1322 = vmatpush1.msra.mxu0 0.0
      %1323 = vmatprep.subr.mxu0 0.0
      %1324 = vmatpush1.msra.mxu0 0.0
      %1325 = vmatprep.subr.mxu0 0.0
      %1326 = vmatpush1.msra.mxu0 0.0
      %1327 = vmatprep.subr.mxu0 0.0
      %1328 = vmatpush1.msra.mxu0 0.0
      %1329 = vmatprep.subr.mxu0 0.0
      %1330 = vmatpush1.msra.mxu0 0.0
      %1331 = vmatprep.subr.mxu0 0.0
      %1332 = vmatpush1.msra.mxu0 0.0
      %1333 = vmatprep.subr.mxu0 0.0
      %1334 = vmatpush1.msra.mxu0 0.0
      %1335 = vmatprep.subr.mxu0 0.0
      %1336 = vmatpush1.msra.mxu0 0.0
      %1337 = vmatprep.subr.mxu0 0.0
      %1338 = vmatpush1.msra.mxu0 0.0
      %1339 = vmatprep.subr.mxu0 0.0
      %1340 = vmatpush1.msra.mxu0 0.0
      %1341 = vmatprep.subr.mxu0 0.0
      %1342 = vmatpush1.msra.mxu0 0.0
      %1343 = vmatprep.subr.mxu0 0.0
      %1344 = vmatpush1.msra.mxu0 0.0
      %1345 = vmatprep.subr.mxu0 0.0
      %1346 = vmatpush1.msra.mxu0 0.0
      %1347 = vmatprep.subr.mxu0 0.0
      %1348 = vmatpush1.msra.mxu0 0.0
      %1349 = vmatprep.subr.mxu0 0.0
      %1350 = vmatpush1.msra.mxu0 0.0
      %1351 = vmatprep.subr.mxu0 0.0
      %1352 = vmatpush1.msra.mxu0 0.0
      %1353 = vmatprep.mubr.f32.mxu0 0.0
      %1354 = vmatmul.mubr.f32.gmra.mrb[0].mxu0 %v1162
      %v1355 = vpop.f32.mrb[0].mxu0
      %v1356 = vadd.f32 0.0, %v1355
      %v1357 = vpop.f32.mrb[0].mxu0
      %1358 = vmatprep.mubr.f32.mxu0 0.0
      %1359 = vmatmul.mubr.f32.gmra.mrb[0].mxu0 %v1164
      %v1360 = vpop.f32.mrb[0].mxu0
      %v1361 = vadd.f32 0.0, %v1360
      %v1362 = vpop.f32.mrb[0].mxu0
      %1363 = vmatprep.mubr.f32.mxu0 0.0
      %1364 = vmatmul.mubr.f32.gmra.mrb[0].mxu0 %v1167
      %v1365 = vpop.f32.mrb[0].mxu0
      %v1366 = vadd.f32 0.0, %v1365
      %v1367 = vpop.f32.mrb[0].mxu0
      %1368 = vmatprep.mubr.f32.mxu0 0.0
      %1369 = vmatmul.mubr.f32.gmra.mrb[0].mxu0 %v1169
      %v1370 = vpop.f32.mrb[0].mxu0
      %v1371 = vadd.f32 0.0, %v1370
      %v1372 = vpop.f32.mrb[0].mxu0
      %1373 = vmatprep.mubr.f32.mxu0 0.0
      %1374 = vmatmul.mubr.f32.gmra.mrb[0].mxu0 %v1172
      %v1375 = vpop.f32.mrb[0].mxu0
      %v1376 = vadd.f32 0.0, %v1375
      %v1377 = vpop.f32.mrb[0].mxu0
      %1378 = vmatprep.mubr.f32.mxu0 0.0
      %1379 = vmatmul.mubr.f32.gmra.mrb[0].mxu0 %v1174
      %v1380 = vpop.f32.mrb[0].mxu0
      %v1381 = vadd.f32 0.0, %v1380
      %v1382 = vpop.f32.mrb[0].mxu0
      %1383 = vmatprep.mubr.f32.mxu0 0.0
      %1384 = vmatmul.mubr.f32.gmra.mrb[0].mxu0 %v1177
      %v1385 = vpop.f32.mrb[0].mxu0
      %v1386 = vadd.f32 0.0, %v1385
      %v1387 = vpop.f32.mrb[0].mxu0
      %1388 = vmatprep.mubr.f32.mxu0 0.0
      %1389 = vmatmul.mubr.f32.gmra.mrb[0].mxu0 %v1179
      %v1390 = vpop.f32.mrb[0].mxu0
      %v1391 = vadd.f32 0.0, %v1390
      %v1392 = vpop.f32.mrb[0].mxu0
      %1393 = vmatprep.mubr.f32.mxu0 0.0
      %1394 = vmatmul.mubr.f32.gmra.mrb[0].mxu0 %v1182
      %v1395 = vpop.f32.mrb[0].mxu0
      %v1396 = vadd.f32 0.0, %v1395
      %v1397 = vpop.f32.mrb[0].mxu0
      %1398 = vmatprep.mubr.f32.mxu0 0.0
      %1399 = vmatmul.mubr.f32.gmra.mrb[0].mxu0 %v1184
      %v1400 = vpop.f32.mrb[0].mxu0
      %v1401 = vadd.f32 0.0, %v1400
      %v1402 = vpop.f32.mrb[0].mxu0
      %1403 = vmatprep.mubr.f32.mxu0 0.0
      %1404 = vmatmul.mubr.f32.gmra.mrb[0].mxu0 %v1187
      %v1405 = vpop.f32.mrb[0].mxu0
      %v1406 = vadd.f32 0.0, %v1405
      %v1407 = vpop.f32.mrb[0].mxu0
      %1408 = vmatprep.mubr.f32.mxu0 0.0
      %1409 = vmatmul.mubr.f32.gmra.mrb[0].mxu0 %v1189
      %v1410 = vpop.f32.mrb[0].mxu0
      %v1411 = vadd.f32 0.0, %v1410
      %v1412 = vpop.f32.mrb[0].mxu0
      %1413 = vmatprep.mubr.f32.mxu0 0.0
      %1414 = vmatmul.mubr.f32.gmra.mrb[0].mxu0 %v1192
      %v1415 = vpop.f32.mrb[0].mxu0
      %v1416 = vadd.f32 0.0, %v1415
      %v1417 = vpop.f32.mrb[0].mxu0
      %1418 = vmatprep.mubr.f32.mxu0 0.0
      %1419 = vmatmul.mubr.f32.gmra.mrb[0].mxu0 %v1194
      %v1420 = vpop.f32.mrb[0].mxu0
      %v1421 = vadd.f32 0.0, %v1420
      %v1422 = vpop.f32.mrb[0].mxu0
      %1423 = vmatprep.mubr.f32.mxu0 0.0
      %1424 = vmatmul.mubr.f32.gmra.mrb[0].mxu0 %v1197
      %v1425 = vpop.f32.mrb[0].mxu0
      %v1426 = vadd.f32 0.0, %v1425
      %v1427 = vpop.f32.mrb[0].mxu0
      %1428 = vmatprep.mubr.f32.mxu0 0.0
      %1429 = vmatmul.mubr.f32.gmra.mrb[0].mxu0 %v1199
      %v1430 = vpop.f32.mrb[0].mxu0
      %v1431 = vadd.f32 0.0, %v1430
      %v1432 = vpop.f32.mrb[0].mxu0
      %1433 = vmatprep.mubr.f32.mxu0 0.0
      %1434 = vmatmul.mubr.f32.gmra.mrb[0].mxu0 %v1202
      %v1435 = vpop.f32.mrb[0].mxu0
      %v1436 = vadd.f32 0.0, %v1435
      %v1437 = vpop.f32.mrb[0].mxu0
      %1438 = vmatprep.mubr.f32.mxu0 0.0
      %1439 = vmatmul.mubr.f32.gmra.mrb[0].mxu0 %v1204
      %v1440 = vpop.f32.mrb[0].mxu0
      %v1441 = vadd.f32 0.0, %v1440
      %v1442 = vpop.f32.mrb[0].mxu0
      %1443 = vmatprep.mubr.f32.mxu0 0.0
      %1444 = vmatmul.mubr.f32.gmra.mrb[0].mxu0 %v1207
      %v1445 = vpop.f32.mrb[0].mxu0
      %v1446 = vadd.f32 0.0, %v1445
      %v1447 = vpop.f32.mrb[0].mxu0
      %1448 = vmatprep.mubr.f32.mxu0 0.0
      %1449 = vmatmul.mubr.f32.gmra.mrb[0].mxu0 %v1209
      %v1450 = vpop.f32.mrb[0].mxu0
      %v1451 = vadd.f32 0.0, %v1450
      %v1452 = vpop.f32.mrb[0].mxu0
      %1453 = vmatprep.mubr.f32.mxu0 0.0
      %1454 = vmatmul.mubr.f32.gmra.mrb[0].mxu0 %v1212
      %v1455 = vpop.f32.mrb[0].mxu0
      %v1456 = vadd.f32 0.0, %v1455
      %v1457 = vpop.f32.mrb[0].mxu0
      %1458 = vmatprep.mubr.f32.mxu0 0.0
      %1459 = vmatmul.mubr.f32.gmra.mrb[0].mxu0 %v1214
      %v1460 = vpop.f32.mrb[0].mxu0
      %v1461 = vadd.f32 0.0, %v1460
      %v1462 = vpop.f32.mrb[0].mxu0
      %1463 = vmatprep.mubr.f32.mxu0 0.0
      %1464 = vmatmul.mubr.f32.gmra.mrb[0].mxu0 %v1217
      %v1465 = vpop.f32.mrb[0].mxu0
      %v1466 = vadd.f32 0.0, %v1465
      %v1467 = vpop.f32.mrb[0].mxu0
      %1468 = vmatprep.mubr.f32.mxu0 0.0
      %1469 = vmatmul.mubr.f32.gmra.mrb[0].mxu0 %v1219
      %v1470 = vpop.f32.mrb[0].mxu0
      %v1471 = vadd.f32 0.0, %v1470
      %v1472 = vpop.f32.mrb[0].mxu0
      %1473 = vmatprep.mubr.f32.mxu0 0.0
      %1474 = vmatmul.mubr.f32.gmra.mrb[0].mxu0 %v1222
      %v1475 = vpop.f32.mrb[0].mxu0
      %v1476 = vadd.f32 0.0, %v1475
      %v1477 = vpop.f32.mrb[0].mxu0
      %1478 = vmatprep.mubr.f32.mxu0 0.0
      %1479 = vmatmul.mubr.f32.gmra.mrb[0].mxu0 %v1224
      %v1480 = vpop.f32.mrb[0].mxu0
      %v1481 = vadd.f32 0.0, %v1480
      %v1482 = vpop.f32.mrb[0].mxu0
      %1483 = vmatprep.mubr.f32.mxu0 0.0
      %1484 = vmatmul.mubr.f32.gmra.mrb[0].mxu0 %v1227
      %v1485 = vpop.f32.mrb[0].mxu0
      %v1486 = vadd.f32 0.0, %v1485
      %v1487 = vpop.f32.mrb[0].mxu0
      %1488 = vmatprep.mubr.f32.mxu0 0.0
      %1489 = vmatmul.mubr.f32.gmra.mrb[0].mxu0 %v1229
      %v1490 = vpop.f32.mrb[0].mxu0
      %v1491 = vadd.f32 0.0, %v1490
      %v1492 = vpop.f32.mrb[0].mxu0
      %1493 = vmatprep.mubr.f32.mxu0 0.0
      %1494 = vmatmul.mubr.f32.gmra.mrb[0].mxu0 %v1232
      %v1495 = vpop.f32.mrb[0].mxu0
      %v1496 = vadd.f32 0.0, %v1495
      %v1497 = vpop.f32.mrb[0].mxu0
      %1498 = vmatprep.mubr.f32.mxu0 0.0
      %1499 = vmatmul.mubr.f32.gmra.mrb[0].mxu0 %v1234
      %v1500 = vpop.f32.mrb[0].mxu0
      %v1501 = vadd.f32 0.0, %v1500
      %v1502 = vpop.f32.mrb[0].mxu0
      %1503 = vmatprep.mubr.f32.mxu0 0.0
      %1504 = vmatmul.mubr.f32.gmra.mrb[0].mxu0 %v1237
      %v1505 = vpop.f32.mrb[0].mxu0
      %v1506 = vadd.f32 0.0, %v1505
      %v1507 = vpop.f32.mrb[0].mxu0
      %1508 = vmatprep.mubr.f32.mxu0 0.0
      %1509 = vmatmul.mubr.f32.gmra.mrb[0].mxu0 %v1239
      %v1510 = vpop.f32.mrb[0].mxu0
      %v1511 = vadd.f32 0.0, %v1510
      %v1512 = vpop.f32.mrb[0].mxu0
      %1513 = vdwg.mxu0
      %v1514 = vadd.f32 %v1001, %v1356
      %v1515 = vadd.f32 %v1006, %v1361
      %v1516 = vadd.f32 %v1011, %v1366
      %v1517 = vadd.f32 %v1016, %v1371
      %v1518 = vadd.f32 %v1021, %v1376
      %v1519 = vadd.f32 %v1026, %v1381
      %v1520 = vadd.f32 %v1031, %v1386
      %v1521 = vadd.f32 %v1036, %v1391
      %v1522 = vadd.f32 %v1041, %v1396
      %v1523 = vadd.f32 %v1046, %v1401
      %v1524 = vadd.f32 %v1051, %v1406
      %v1525 = vadd.f32 %v1056, %v1411
      %v1526 = vadd.f32 %v1061, %v1416
      %v1527 = vadd.f32 %v1066, %v1421
      %v1528 = vadd.f32 %v1071, %v1426
      %v1529 = vadd.f32 %v1076, %v1431
      %v1530 = vadd.f32 %v1081, %v1436
      %v1531 = vadd.f32 %v1086, %v1441
      %v1532 = vadd.f32 %v1091, %v1446
      %v1533 = vadd.f32 %v1096, %v1451
      %v1534 = vadd.f32 %v1101, %v1456
      %v1535 = vadd.f32 %v1106, %v1461
      %v1536 = vadd.f32 %v1111, %v1466
      %v1537 = vadd.f32 %v1116, %v1471
      %v1538 = vadd.f32 %v1121, %v1476
      %v1539 = vadd.f32 %v1126, %v1481
      %v1540 = vadd.f32 %v1131, %v1486
      %v1541 = vadd.f32 %v1136, %v1491
      %v1542 = vadd.f32 %v1141, %v1496
      %v1543 = vadd.f32 %v1146, %v1501
      %v1544 = vadd.f32 %v1151, %v1506
      %v1545 = vadd.f32 %v1156, %v1511
      %s1546 = scalar_lea.vmem %s3, 384
      %v1547 = vld [vmem:[%s1546] sm:$0xff]
      %v1548 = vld [vmem:[%s1546 + $0x8] sm:$0xff]
      %v1549 = vld [vmem:[%s1546 + $0x10] sm:$0xff]
      %v1550 = vld [vmem:[%s1546 + $0x18] sm:$0xff]
      %v1551 = vld [vmem:[%s1546 + $0x20] sm:$0xff]
      %v1552 = vld [vmem:[%s1546 + $0x28] sm:$0xff]
      %v1553 = vld [vmem:[%s1546 + $0x30] sm:$0xff]
      %v1554 = vld [vmem:[%s1546 + $0x38] sm:$0xff]
      %v1555 = vld [vmem:[%s1546 + $0x40] sm:$0xff]
      %v1556 = vld [vmem:[%s1546 + $0x48] sm:$0xff]
      %v1557 = vld [vmem:[%s1546 + $0x50] sm:$0xff]
      %v1558 = vld [vmem:[%s1546 + $0x58] sm:$0xff]
      %v1559 = vld [vmem:[%s1546 + $0x60] sm:$0xff]
      %v1560 = vld [vmem:[%s1546 + $0x68] sm:$0xff]
      %v1561 = vld [vmem:[%s1546 + $0x70] sm:$0xff]
      %v1562 = vld [vmem:[%s1546 + $0x78] sm:$0xff]
      %1563 = vmatprep.subr.mxu0 0.0
      %1564 = vmatpush1.msra.mxu0 %v1547
      %1565 = vmatprep.subr.mxu0 0.0
      %1566 = vmatpush1.msra.mxu0 %v1548
      %1567 = vmatprep.subr.mxu0 0.0
      %1568 = vmatpush1.msra.mxu0 %v1549
      %1569 = vmatprep.subr.mxu0 0.0
      %1570 = vmatpush1.msra.mxu0 %v1550
      %1571 = vmatprep.subr.mxu0 0.0
      %1572 = vmatpush1.msra.mxu0 %v1551
      %1573 = vmatprep.subr.mxu0 0.0
      %1574 = vmatpush1.msra.mxu0 %v1552
      %1575 = vmatprep.subr.mxu0 0.0
      %1576 = vmatpush1.msra.mxu0 %v1553
      %1577 = vmatprep.subr.mxu0 0.0
      %1578 = vmatpush1.msra.mxu0 %v1554
      %1579 = vmatprep.subr.mxu0 0.0
      %1580 = vmatpush1.msra.mxu0 %v1555
      %1581 = vmatprep.subr.mxu0 0.0
      %1582 = vmatpush1.msra.mxu0 %v1556
      %1583 = vmatprep.subr.mxu0 0.0
      %1584 = vmatpush1.msra.mxu0 %v1557
      %1585 = vmatprep.subr.mxu0 0.0
      %1586 = vmatpush1.msra.mxu0 %v1558
      %1587 = vmatprep.subr.mxu0 0.0
      %1588 = vmatpush1.msra.mxu0 %v1559
      %1589 = vmatprep.subr.mxu0 0.0
      %1590 = vmatpush1.msra.mxu0 %v1560
      %1591 = vmatprep.subr.mxu0 0.0
      %1592 = vmatpush1.msra.mxu0 %v1561
      %1593 = vmatprep.subr.mxu0 0.0
      %1594 = vmatpush1.msra.mxu0 %v1562
      %1595 = vmatprep.subr.mxu0 0.0
      %1596 = vmatpush1.msra.mxu0 0.0
      %1597 = vmatprep.subr.mxu0 0.0
      %1598 = vmatpush1.msra.mxu0 0.0
      %1599 = vmatprep.subr.mxu0 0.0
      %1600 = vmatpush1.msra.mxu0 0.0
      %1601 = vmatprep.subr.mxu0 0.0
      %1602 = vmatpush1.msra.mxu0 0.0
      %1603 = vmatprep.subr.mxu0 0.0
      %1604 = vmatpush1.msra.mxu0 0.0
      %1605 = vmatprep.subr.mxu0 0.0
      %1606 = vmatpush1.msra.mxu0 0.0
      %1607 = vmatprep.subr.mxu0 0.0
      %1608 = vmatpush1.msra.mxu0 0.0
      %1609 = vmatprep.subr.mxu0 0.0
      %1610 = vmatpush1.msra.mxu0 0.0
      %1611 = vmatprep.subr.mxu0 0.0
      %1612 = vmatpush1.msra.mxu0 0.0
      %1613 = vmatprep.subr.mxu0 0.0
      %1614 = vmatpush1.msra.mxu0 0.0
      %1615 = vmatprep.subr.mxu0 0.0
      %1616 = vmatpush1.msra.mxu0 0.0
      %1617 = vmatprep.subr.mxu0 0.0
      %1618 = vmatpush1.msra.mxu0 0.0
      %1619 = vmatprep.subr.mxu0 0.0
      %1620 = vmatpush1.msra.mxu0 0.0
      %1621 = vmatprep.subr.mxu0 0.0
      %1622 = vmatpush1.msra.mxu0 0.0
      %1623 = vmatprep.subr.mxu0 0.0
      %1624 = vmatpush1.msra.mxu0 0.0
      %1625 = vmatprep.subr.mxu0 0.0
      %1626 = vmatpush1.msra.mxu0 0.0
      %1627 = vmatprep.mubr.f32.mxu0 0.0
      %1628 = vmatmul.mubr.f32.gmra.mrb[0].mxu0 %v464
      %v1629 = vpop.f32.mrb[0].mxu0
      %v1630 = vadd.f32 0.0, %v1629
      %v1631 = vpop.f32.mrb[0].mxu0
      %1632 = vmatprep.mubr.f32.mxu0 0.0
      %1633 = vmatmul.mubr.f32.gmra.mrb[0].mxu0 %v465
      %v1634 = vpop.f32.mrb[0].mxu0
      %v1635 = vadd.f32 0.0, %v1634
      %v1636 = vpop.f32.mrb[0].mxu0
      %1637 = vmatprep.mubr.f32.mxu0 0.0
      %1638 = vmatmul.mubr.f32.gmra.mrb[0].mxu0 %v467
      %v1639 = vpop.f32.mrb[0].mxu0
      %v1640 = vadd.f32 0.0, %v1639
      %v1641 = vpop.f32.mrb[0].mxu0
      %1642 = vmatprep.mubr.f32.mxu0 0.0
      %1643 = vmatmul.mubr.f32.gmra.mrb[0].mxu0 %v468
      %v1644 = vpop.f32.mrb[0].mxu0
      %v1645 = vadd.f32 0.0, %v1644
      %v1646 = vpop.f32.mrb[0].mxu0
      %1647 = vmatprep.mubr.f32.mxu0 0.0
      %1648 = vmatmul.mubr.f32.gmra.mrb[0].mxu0 %v470
      %v1649 = vpop.f32.mrb[0].mxu0
      %v1650 = vadd.f32 0.0, %v1649
      %v1651 = vpop.f32.mrb[0].mxu0
      %1652 = vmatprep.mubr.f32.mxu0 0.0
      %1653 = vmatmul.mubr.f32.gmra.mrb[0].mxu0 %v471
      %v1654 = vpop.f32.mrb[0].mxu0
      %v1655 = vadd.f32 0.0, %v1654
      %v1656 = vpop.f32.mrb[0].mxu0
      %1657 = vmatprep.mubr.f32.mxu0 0.0
      %1658 = vmatmul.mubr.f32.gmra.mrb[0].mxu0 %v473
      %v1659 = vpop.f32.mrb[0].mxu0
      %v1660 = vadd.f32 0.0, %v1659
      %v1661 = vpop.f32.mrb[0].mxu0
      %1662 = vmatprep.mubr.f32.mxu0 0.0
      %1663 = vmatmul.mubr.f32.gmra.mrb[0].mxu0 %v474
      %v1664 = vpop.f32.mrb[0].mxu0
      %v1665 = vadd.f32 0.0, %v1664
      %v1666 = vpop.f32.mrb[0].mxu0
      %1667 = vmatprep.mubr.f32.mxu0 0.0
      %1668 = vmatmul.mubr.f32.gmra.mrb[0].mxu0 %v476
      %v1669 = vpop.f32.mrb[0].mxu0
      %v1670 = vadd.f32 0.0, %v1669
      %v1671 = vpop.f32.mrb[0].mxu0
      %1672 = vmatprep.mubr.f32.mxu0 0.0
      %1673 = vmatmul.mubr.f32.gmra.mrb[0].mxu0 %v477
      %v1674 = vpop.f32.mrb[0].mxu0
      %v1675 = vadd.f32 0.0, %v1674
      %v1676 = vpop.f32.mrb[0].mxu0
      %1677 = vmatprep.mubr.f32.mxu0 0.0
      %1678 = vmatmul.mubr.f32.gmra.mrb[0].mxu0 %v479
      %v1679 = vpop.f32.mrb[0].mxu0
      %v1680 = vadd.f32 0.0, %v1679
      %v1681 = vpop.f32.mrb[0].mxu0
      %1682 = vmatprep.mubr.f32.mxu0 0.0
      %1683 = vmatmul.mubr.f32.gmra.mrb[0].mxu0 %v480
      %v1684 = vpop.f32.mrb[0].mxu0
      %v1685 = vadd.f32 0.0, %v1684
      %v1686 = vpop.f32.mrb[0].mxu0
      %1687 = vmatprep.mubr.f32.mxu0 0.0
      %1688 = vmatmul.mubr.f32.gmra.mrb[0].mxu0 %v482
      %v1689 = vpop.f32.mrb[0].mxu0
      %v1690 = vadd.f32 0.0, %v1689
      %v1691 = vpop.f32.mrb[0].mxu0
      %1692 = vmatprep.mubr.f32.mxu0 0.0
      %1693 = vmatmul.mubr.f32.gmra.mrb[0].mxu0 %v483
      %v1694 = vpop.f32.mrb[0].mxu0
      %v1695 = vadd.f32 0.0, %v1694
      %v1696 = vpop.f32.mrb[0].mxu0
      %1697 = vmatprep.mubr.f32.mxu0 0.0
      %1698 = vmatmul.mubr.f32.gmra.mrb[0].mxu0 %v485
      %v1699 = vpop.f32.mrb[0].mxu0
      %v1700 = vadd.f32 0.0, %v1699
      %v1701 = vpop.f32.mrb[0].mxu0
      %1702 = vmatprep.mubr.f32.mxu0 0.0
      %1703 = vmatmul.mubr.f32.gmra.mrb[0].mxu0 %v486
      %v1704 = vpop.f32.mrb[0].mxu0
      %v1705 = vadd.f32 0.0, %v1704
      %v1706 = vpop.f32.mrb[0].mxu0
      %1707 = vmatprep.mubr.f32.mxu0 0.0
      %1708 = vmatmul.mubr.f32.gmra.mrb[0].mxu0 %v488
      %v1709 = vpop.f32.mrb[0].mxu0
      %v1710 = vadd.f32 0.0, %v1709
      %v1711 = vpop.f32.mrb[0].mxu0
      %1712 = vmatprep.mubr.f32.mxu0 0.0
      %1713 = vmatmul.mubr.f32.gmra.mrb[0].mxu0 %v489
      %v1714 = vpop.f32.mrb[0].mxu0
      %v1715 = vadd.f32 0.0, %v1714
      %v1716 = vpop.f32.mrb[0].mxu0
      %1717 = vmatprep.mubr.f32.mxu0 0.0
      %1718 = vmatmul.mubr.f32.gmra.mrb[0].mxu0 %v491
      %v1719 = vpop.f32.mrb[0].mxu0
      %v1720 = vadd.f32 0.0, %v1719
      %v1721 = vpop.f32.mrb[0].mxu0
      %1722 = vmatprep.mubr.f32.mxu0 0.0
      %1723 = vmatmul.mubr.f32.gmra.mrb[0].mxu0 %v492
      %v1724 = vpop.f32.mrb[0].mxu0
      %v1725 = vadd.f32 0.0, %v1724
      %v1726 = vpop.f32.mrb[0].mxu0
      %1727 = vmatprep.mubr.f32.mxu0 0.0
      %1728 = vmatmul.mubr.f32.gmra.mrb[0].mxu0 %v494
      %v1729 = vpop.f32.mrb[0].mxu0
      %v1730 = vadd.f32 0.0, %v1729
      %v1731 = vpop.f32.mrb[0].mxu0
      %1732 = vmatprep.mubr.f32.mxu0 0.0
      %1733 = vmatmul.mubr.f32.gmra.mrb[0].mxu0 %v495
      %v1734 = vpop.f32.mrb[0].mxu0
      %v1735 = vadd.f32 0.0, %v1734
      %v1736 = vpop.f32.mrb[0].mxu0
      %1737 = vmatprep.mubr.f32.mxu0 0.0
      %1738 = vmatmul.mubr.f32.gmra.mrb[0].mxu0 %v497
      %v1739 = vpop.f32.mrb[0].mxu0
      %v1740 = vadd.f32 0.0, %v1739
      %v1741 = vpop.f32.mrb[0].mxu0
      %1742 = vmatprep.mubr.f32.mxu0 0.0
      %1743 = vmatmul.mubr.f32.gmra.mrb[0].mxu0 %v498
      %v1744 = vpop.f32.mrb[0].mxu0
      %v1745 = vadd.f32 0.0, %v1744
      %v1746 = vpop.f32.mrb[0].mxu0
      %1747 = vmatprep.mubr.f32.mxu0 0.0
      %1748 = vmatmul.mubr.f32.gmra.mrb[0].mxu0 %v500
      %v1749 = vpop.f32.mrb[0].mxu0
      %v1750 = vadd.f32 0.0, %v1749
      %v1751 = vpop.f32.mrb[0].mxu0
      %1752 = vmatprep.mubr.f32.mxu0 0.0
      %1753 = vmatmul.mubr.f32.gmra.mrb[0].mxu0 %v501
      %v1754 = vpop.f32.mrb[0].mxu0
      %v1755 = vadd.f32 0.0, %v1754
      %v1756 = vpop.f32.mrb[0].mxu0
      %1757 = vmatprep.mubr.f32.mxu0 0.0
      %1758 = vmatmul.mubr.f32.gmra.mrb[0].mxu0 %v503
      %v1759 = vpop.f32.mrb[0].mxu0
      %v1760 = vadd.f32 0.0, %v1759
      %v1761 = vpop.f32.mrb[0].mxu0
      %1762 = vmatprep.mubr.f32.mxu0 0.0
      %1763 = vmatmul.mubr.f32.gmra.mrb[0].mxu0 %v504
      %v1764 = vpop.f32.mrb[0].mxu0
      %v1765 = vadd.f32 0.0, %v1764
      %v1766 = vpop.f32.mrb[0].mxu0
      %1767 = vmatprep.mubr.f32.mxu0 0.0
      %1768 = vmatmul.mubr.f32.gmra.mrb[0].mxu0 %v506
      %v1769 = vpop.f32.mrb[0].mxu0
      %v1770 = vadd.f32 0.0, %v1769
      %v1771 = vpop.f32.mrb[0].mxu0
      %1772 = vmatprep.mubr.f32.mxu0 0.0
      %1773 = vmatmul.mubr.f32.gmra.mrb[0].mxu0 %v507
      %v1774 = vpop.f32.mrb[0].mxu0
      %v1775 = vadd.f32 0.0, %v1774
      %v1776 = vpop.f32.mrb[0].mxu0
      %1777 = vmatprep.mubr.f32.mxu0 0.0
      %1778 = vmatmul.mubr.f32.gmra.mrb[0].mxu0 %v509
      %v1779 = vpop.f32.mrb[0].mxu0
      %v1780 = vadd.f32 0.0, %v1779
      %v1781 = vpop.f32.mrb[0].mxu0
      %1782 = vmatprep.mubr.f32.mxu0 0.0
      %1783 = vmatmul.mubr.f32.gmra.mrb[0].mxu0 %v510
      %v1784 = vpop.f32.mrb[0].mxu0
      %v1785 = vadd.f32 0.0, %v1784
      %v1786 = vpop.f32.mrb[0].mxu0
      %1787 = vdwg.mxu0
      %v1788 = vadd.f32 %v1514, %v1630
      %v1789 = vadd.f32 %v1515, %v1635
      %v1790 = vadd.f32 %v1516, %v1640
      %v1791 = vadd.f32 %v1517, %v1645
      %v1792 = vadd.f32 %v1518, %v1650
      %v1793 = vadd.f32 %v1519, %v1655
      %v1794 = vadd.f32 %v1520, %v1660
      %v1795 = vadd.f32 %v1521, %v1665
      %v1796 = vadd.f32 %v1522, %v1670
      %v1797 = vadd.f32 %v1523, %v1675
      %v1798 = vadd.f32 %v1524, %v1680
      %v1799 = vadd.f32 %v1525, %v1685
      %v1800 = vadd.f32 %v1526, %v1690
      %v1801 = vadd.f32 %v1527, %v1695
      %v1802 = vadd.f32 %v1528, %v1700
      %v1803 = vadd.f32 %v1529, %v1705
      %v1804 = vadd.f32 %v1530, %v1710
      %v1805 = vadd.f32 %v1531, %v1715
      %v1806 = vadd.f32 %v1532, %v1720
      %v1807 = vadd.f32 %v1533, %v1725
      %v1808 = vadd.f32 %v1534, %v1730
      %v1809 = vadd.f32 %v1535, %v1735
      %v1810 = vadd.f32 %v1536, %v1740
      %v1811 = vadd.f32 %v1537, %v1745
      %v1812 = vadd.f32 %v1538, %v1750
      %v1813 = vadd.f32 %v1539, %v1755
      %v1814 = vadd.f32 %v1540, %v1760
      %v1815 = vadd.f32 %v1541, %v1765
      %v1816 = vadd.f32 %v1542, %v1770
      %v1817 = vadd.f32 %v1543, %v1775
      %v1818 = vadd.f32 %v1544, %v1780
      %v1819 = vadd.f32 %v1545, %v1785
      %v1823 = vrot.slane %v509, 1
      %v1824 = vrot.slane %v510, 1
      %v1825 = vsel %vm579, %v1823, %v1824
      %v1826 = vrot.slane %v511, 1
      %v1827 = vsel %vm579, %v1824, %v1826
      %s1830 = scalar_lea.vmem %s3, 512
      %v1831 = vld [vmem:[%s1830] sm:$0xff]
      %v1832 = vld [vmem:[%s1830 + $0x8] sm:$0xff]
      %v1833 = vld [vmem:[%s1830 + $0x10] sm:$0xff]
      %v1834 = vld [vmem:[%s1830 + $0x18] sm:$0xff]
      %v1835 = vld [vmem:[%s1830 + $0x20] sm:$0xff]
      %v1836 = vld [vmem:[%s1830 + $0x28] sm:$0xff]
      %v1837 = vld [vmem:[%s1830 + $0x30] sm:$0xff]
      %v1838 = vld [vmem:[%s1830 + $0x38] sm:$0xff]
      %v1839 = vld [vmem:[%s1830 + $0x40] sm:$0xff]
      %v1840 = vld [vmem:[%s1830 + $0x48] sm:$0xff]
      %v1841 = vld [vmem:[%s1830 + $0x50] sm:$0xff]
      %v1842 = vld [vmem:[%s1830 + $0x58] sm:$0xff]
      %v1843 = vld [vmem:[%s1830 + $0x60] sm:$0xff]
      %v1844 = vld [vmem:[%s1830 + $0x68] sm:$0xff]
      %v1845 = vld [vmem:[%s1830 + $0x70] sm:$0xff]
      %v1846 = vld [vmem:[%s1830 + $0x78] sm:$0xff]
      %1847 = vmatprep.subr.mxu0 0.0
      %1848 = vmatpush1.msra.mxu0 %v1831
      %1849 = vmatprep.subr.mxu0 0.0
      %1850 = vmatpush1.msra.mxu0 %v1832
      %1851 = vmatprep.subr.mxu0 0.0
      %1852 = vmatpush1.msra.mxu0 %v1833
      %1853 = vmatprep.subr.mxu0 0.0
      %1854 = vmatpush1.msra.mxu0 %v1834
      %1855 = vmatprep.subr.mxu0 0.0
      %1856 = vmatpush1.msra.mxu0 %v1835
      %1857 = vmatprep.subr.mxu0 0.0
      %1858 = vmatpush1.msra.mxu0 %v1836
      %1859 = vmatprep.subr.mxu0 0.0
      %1860 = vmatpush1.msra.mxu0 %v1837
      %1861 = vmatprep.subr.mxu0 0.0
      %1862 = vmatpush1.msra.mxu0 %v1838
      %1863 = vmatprep.subr.mxu0 0.0
      %1864 = vmatpush1.msra.mxu0 %v1839
      %1865 = vmatprep.subr.mxu0 0.0
      %1866 = vmatpush1.msra.mxu0 %v1840
      %1867 = vmatprep.subr.mxu0 0.0
      %1868 = vmatpush1.msra.mxu0 %v1841
      %1869 = vmatprep.subr.mxu0 0.0
      %1870 = vmatpush1.msra.mxu0 %v1842
      %1871 = vmatprep.subr.mxu0 0.0
      %1872 = vmatpush1.msra.mxu0 %v1843
      %1873 = vmatprep.subr.mxu0 0.0
      %1874 = vmatpush1.msra.mxu0 %v1844
      %1875 = vmatprep.subr.mxu0 0.0
      %1876 = vmatpush1.msra.mxu0 %v1845
      %1877 = vmatprep.subr.mxu0 0.0
      %1878 = vmatpush1.msra.mxu0 %v1846
      %1879 = vmatprep.subr.mxu0 0.0
      %1880 = vmatpush1.msra.mxu0 0.0
      %1881 = vmatprep.subr.mxu0 0.0
      %1882 = vmatpush1.msra.mxu0 0.0
      %1883 = vmatprep.subr.mxu0 0.0
      %1884 = vmatpush1.msra.mxu0 0.0
      %1885 = vmatprep.subr.mxu0 0.0
      %1886 = vmatpush1.msra.mxu0 0.0
      %1887 = vmatprep.subr.mxu0 0.0
      %1888 = vmatpush1.msra.mxu0 0.0
      %1889 = vmatprep.subr.mxu0 0.0
      %1890 = vmatpush1.msra.mxu0 0.0
      %1891 = vmatprep.subr.mxu0 0.0
      %1892 = vmatpush1.msra.mxu0 0.0
      %1893 = vmatprep.subr.mxu0 0.0
      %1894 = vmatpush1.msra.mxu0 0.0
      %1895 = vmatprep.subr.mxu0 0.0
      %1896 = vmatpush1.msra.mxu0 0.0
      %1897 = vmatprep.subr.mxu0 0.0
      %1898 = vmatpush1.msra.mxu0 0.0
      %1899 = vmatprep.subr.mxu0 0.0
      %1900 = vmatpush1.msra.mxu0 0.0
      %1901 = vmatprep.subr.mxu0 0.0
      %1902 = vmatpush1.msra.mxu0 0.0
      %1903 = vmatprep.subr.mxu0 0.0
      %1904 = vmatpush1.msra.mxu0 0.0
      %1905 = vmatprep.subr.mxu0 0.0
      %1906 = vmatpush1.msra.mxu0 0.0
      %1907 = vmatprep.subr.mxu0 0.0
      %1908 = vmatpush1.msra.mxu0 0.0
      %1909 = vmatprep.subr.mxu0 0.0
      %1910 = vmatpush1.msra.mxu0 0.0
      %1911 = vmatprep.mubr.f32.mxu0 0.0
      %1912 = vmatmul.mubr.f32.gmra.mrb[0].mxu0 %v587
      %v1913 = vpop.f32.mrb[0].mxu0
      %v1914 = vadd.f32 0.0, %v1913
      %v1915 = vpop.f32.mrb[0].mxu0
      %1916 = vmatprep.mubr.f32.mxu0 0.0
      %1917 = vmatmul.mubr.f32.gmra.mrb[0].mxu0 %v589
      %v1918 = vpop.f32.mrb[0].mxu0
      %v1919 = vadd.f32 0.0, %v1918
      %v1920 = vpop.f32.mrb[0].mxu0
      %1921 = vmatprep.mubr.f32.mxu0 0.0
      %1922 = vmatmul.mubr.f32.gmra.mrb[0].mxu0 %v592
      %v1923 = vpop.f32.mrb[0].mxu0
      %v1924 = vadd.f32 0.0, %v1923
      %v1925 = vpop.f32.mrb[0].mxu0
      %1926 = vmatprep.mubr.f32.mxu0 0.0
      %1927 = vmatmul.mubr.f32.gmra.mrb[0].mxu0 %v594
      %v1928 = vpop.f32.mrb[0].mxu0
      %v1929 = vadd.f32 0.0, %v1928
      %v1930 = vpop.f32.mrb[0].mxu0
      %1931 = vmatprep.mubr.f32.mxu0 0.0
      %1932 = vmatmul.mubr.f32.gmra.mrb[0].mxu0 %v597
      %v1933 = vpop.f32.mrb[0].mxu0
      %v1934 = vadd.f32 0.0, %v1933
      %v1935 = vpop.f32.mrb[0].mxu0
      %1936 = vmatprep.mubr.f32.mxu0 0.0
      %1937 = vmatmul.mubr.f32.gmra.mrb[0].mxu0 %v599
      %v1938 = vpop.f32.mrb[0].mxu0
      %v1939 = vadd.f32 0.0, %v1938
      %v1940 = vpop.f32.mrb[0].mxu0
      %1941 = vmatprep.mubr.f32.mxu0 0.0
      %1942 = vmatmul.mubr.f32.gmra.mrb[0].mxu0 %v602
      %v1943 = vpop.f32.mrb[0].mxu0
      %v1944 = vadd.f32 0.0, %v1943
      %v1945 = vpop.f32.mrb[0].mxu0
      %1946 = vmatprep.mubr.f32.mxu0 0.0
      %1947 = vmatmul.mubr.f32.gmra.mrb[0].mxu0 %v604
      %v1948 = vpop.f32.mrb[0].mxu0
      %v1949 = vadd.f32 0.0, %v1948
      %v1950 = vpop.f32.mrb[0].mxu0
      %1951 = vmatprep.mubr.f32.mxu0 0.0
      %1952 = vmatmul.mubr.f32.gmra.mrb[0].mxu0 %v607
      %v1953 = vpop.f32.mrb[0].mxu0
      %v1954 = vadd.f32 0.0, %v1953
      %v1955 = vpop.f32.mrb[0].mxu0
      %1956 = vmatprep.mubr.f32.mxu0 0.0
      %1957 = vmatmul.mubr.f32.gmra.mrb[0].mxu0 %v609
      %v1958 = vpop.f32.mrb[0].mxu0
      %v1959 = vadd.f32 0.0, %v1958
      %v1960 = vpop.f32.mrb[0].mxu0
      %1961 = vmatprep.mubr.f32.mxu0 0.0
      %1962 = vmatmul.mubr.f32.gmra.mrb[0].mxu0 %v612
      %v1963 = vpop.f32.mrb[0].mxu0
      %v1964 = vadd.f32 0.0, %v1963
      %v1965 = vpop.f32.mrb[0].mxu0
      %1966 = vmatprep.mubr.f32.mxu0 0.0
      %1967 = vmatmul.mubr.f32.gmra.mrb[0].mxu0 %v614
      %v1968 = vpop.f32.mrb[0].mxu0
      %v1969 = vadd.f32 0.0, %v1968
      %v1970 = vpop.f32.mrb[0].mxu0
      %1971 = vmatprep.mubr.f32.mxu0 0.0
      %1972 = vmatmul.mubr.f32.gmra.mrb[0].mxu0 %v617
      %v1973 = vpop.f32.mrb[0].mxu0
      %v1974 = vadd.f32 0.0, %v1973
      %v1975 = vpop.f32.mrb[0].mxu0
      %1976 = vmatprep.mubr.f32.mxu0 0.0
      %1977 = vmatmul.mubr.f32.gmra.mrb[0].mxu0 %v619
      %v1978 = vpop.f32.mrb[0].mxu0
      %v1979 = vadd.f32 0.0, %v1978
      %v1980 = vpop.f32.mrb[0].mxu0
      %1981 = vmatprep.mubr.f32.mxu0 0.0
      %1982 = vmatmul.mubr.f32.gmra.mrb[0].mxu0 %v622
      %v1983 = vpop.f32.mrb[0].mxu0
      %v1984 = vadd.f32 0.0, %v1983
      %v1985 = vpop.f32.mrb[0].mxu0
      %1986 = vmatprep.mubr.f32.mxu0 0.0
      %1987 = vmatmul.mubr.f32.gmra.mrb[0].mxu0 %v624
      %v1988 = vpop.f32.mrb[0].mxu0
      %v1989 = vadd.f32 0.0, %v1988
      %v1990 = vpop.f32.mrb[0].mxu0
      %1991 = vmatprep.mubr.f32.mxu0 0.0
      %1992 = vmatmul.mubr.f32.gmra.mrb[0].mxu0 %v627
      %v1993 = vpop.f32.mrb[0].mxu0
      %v1994 = vadd.f32 0.0, %v1993
      %v1995 = vpop.f32.mrb[0].mxu0
      %1996 = vmatprep.mubr.f32.mxu0 0.0
      %1997 = vmatmul.mubr.f32.gmra.mrb[0].mxu0 %v629
      %v1998 = vpop.f32.mrb[0].mxu0
      %v1999 = vadd.f32 0.0, %v1998
      %v2000 = vpop.f32.mrb[0].mxu0
      %2001 = vmatprep.mubr.f32.mxu0 0.0
      %2002 = vmatmul.mubr.f32.gmra.mrb[0].mxu0 %v632
      %v2003 = vpop.f32.mrb[0].mxu0
      %v2004 = vadd.f32 0.0, %v2003
      %v2005 = vpop.f32.mrb[0].mxu0
      %2006 = vmatprep.mubr.f32.mxu0 0.0
      %2007 = vmatmul.mubr.f32.gmra.mrb[0].mxu0 %v634
      %v2008 = vpop.f32.mrb[0].mxu0
      %v2009 = vadd.f32 0.0, %v2008
      %v2010 = vpop.f32.mrb[0].mxu0
      %2011 = vmatprep.mubr.f32.mxu0 0.0
      %2012 = vmatmul.mubr.f32.gmra.mrb[0].mxu0 %v637
      %v2013 = vpop.f32.mrb[0].mxu0
      %v2014 = vadd.f32 0.0, %v2013
      %v2015 = vpop.f32.mrb[0].mxu0
      %2016 = vmatprep.mubr.f32.mxu0 0.0
      %2017 = vmatmul.mubr.f32.gmra.mrb[0].mxu0 %v639
      %v2018 = vpop.f32.mrb[0].mxu0
      %v2019 = vadd.f32 0.0, %v2018
      %v2020 = vpop.f32.mrb[0].mxu0
      %2021 = vmatprep.mubr.f32.mxu0 0.0
      %2022 = vmatmul.mubr.f32.gmra.mrb[0].mxu0 %v642
      %v2023 = vpop.f32.mrb[0].mxu0
      %v2024 = vadd.f32 0.0, %v2023
      %v2025 = vpop.f32.mrb[0].mxu0
      %2026 = vmatprep.mubr.f32.mxu0 0.0
      %2027 = vmatmul.mubr.f32.gmra.mrb[0].mxu0 %v644
      %v2028 = vpop.f32.mrb[0].mxu0
      %v2029 = vadd.f32 0.0, %v2028
      %v2030 = vpop.f32.mrb[0].mxu0
      %2031 = vmatprep.mubr.f32.mxu0 0.0
      %2032 = vmatmul.mubr.f32.gmra.mrb[0].mxu0 %v647
      %v2033 = vpop.f32.mrb[0].mxu0
      %v2034 = vadd.f32 0.0, %v2033
      %v2035 = vpop.f32.mrb[0].mxu0
      %2036 = vmatprep.mubr.f32.mxu0 0.0
      %2037 = vmatmul.mubr.f32.gmra.mrb[0].mxu0 %v649
      %v2038 = vpop.f32.mrb[0].mxu0
      %v2039 = vadd.f32 0.0, %v2038
      %v2040 = vpop.f32.mrb[0].mxu0
      %2041 = vmatprep.mubr.f32.mxu0 0.0
      %2042 = vmatmul.mubr.f32.gmra.mrb[0].mxu0 %v652
      %v2043 = vpop.f32.mrb[0].mxu0
      %v2044 = vadd.f32 0.0, %v2043
      %v2045 = vpop.f32.mrb[0].mxu0
      %2046 = vmatprep.mubr.f32.mxu0 0.0
      %2047 = vmatmul.mubr.f32.gmra.mrb[0].mxu0 %v654
      %v2048 = vpop.f32.mrb[0].mxu0
      %v2049 = vadd.f32 0.0, %v2048
      %v2050 = vpop.f32.mrb[0].mxu0
      %2051 = vmatprep.mubr.f32.mxu0 0.0
      %2052 = vmatmul.mubr.f32.gmra.mrb[0].mxu0 %v657
      %v2053 = vpop.f32.mrb[0].mxu0
      %v2054 = vadd.f32 0.0, %v2053
      %v2055 = vpop.f32.mrb[0].mxu0
      %2056 = vmatprep.mubr.f32.mxu0 0.0
      %2057 = vmatmul.mubr.f32.gmra.mrb[0].mxu0 %v659
      %v2058 = vpop.f32.mrb[0].mxu0
      %v2059 = vadd.f32 0.0, %v2058
      %v2060 = vpop.f32.mrb[0].mxu0
      %2061 = vmatprep.mubr.f32.mxu0 0.0
      %2062 = vmatmul.mubr.f32.gmra.mrb[0].mxu0 %v1825
      %v2063 = vpop.f32.mrb[0].mxu0
      %v2064 = vadd.f32 0.0, %v2063
      %v2065 = vpop.f32.mrb[0].mxu0
      %2066 = vmatprep.mubr.f32.mxu0 0.0
      %2067 = vmatmul.mubr.f32.gmra.mrb[0].mxu0 %v1827
      %v2068 = vpop.f32.mrb[0].mxu0
      %v2069 = vadd.f32 0.0, %v2068
      %v2070 = vpop.f32.mrb[0].mxu0
      %2071 = vdwg.mxu0
      %v2072 = vadd.f32 %v1788, %v1914
      %v2073 = vadd.f32 %v1789, %v1919
      %v2074 = vadd.f32 %v1790, %v1924
      %v2075 = vadd.f32 %v1791, %v1929
      %v2076 = vadd.f32 %v1792, %v1934
      %v2077 = vadd.f32 %v1793, %v1939
      %v2078 = vadd.f32 %v1794, %v1944
      %v2079 = vadd.f32 %v1795, %v1949
      %v2080 = vadd.f32 %v1796, %v1954
      %v2081 = vadd.f32 %v1797, %v1959
      %v2082 = vadd.f32 %v1798, %v1964
      %v2083 = vadd.f32 %v1799, %v1969
      %v2084 = vadd.f32 %v1800, %v1974
      %v2085 = vadd.f32 %v1801, %v1979
      %v2086 = vadd.f32 %v1802, %v1984
      %v2087 = vadd.f32 %v1803, %v1989
      %v2088 = vadd.f32 %v1804, %v1994
      %v2089 = vadd.f32 %v1805, %v1999
      %v2090 = vadd.f32 %v1806, %v2004
      %v2091 = vadd.f32 %v1807, %v2009
      %v2092 = vadd.f32 %v1808, %v2014
      %v2093 = vadd.f32 %v1809, %v2019
      %v2094 = vadd.f32 %v1810, %v2024
      %v2095 = vadd.f32 %v1811, %v2029
      %v2096 = vadd.f32 %v1812, %v2034
      %v2097 = vadd.f32 %v1813, %v2039
      %v2098 = vadd.f32 %v1814, %v2044
      %v2099 = vadd.f32 %v1815, %v2049
      %v2100 = vadd.f32 %v1816, %v2054
      %v2101 = vadd.f32 %v1817, %v2059
      %v2102 = vadd.f32 %v1818, %v2064
      %v2103 = vadd.f32 %v1819, %v2069
      %v2104 = vrot.slane %v509, 2
      %v2105 = vrot.slane %v510, 2
      %v2106 = vsel %vm1159, %v2104, %v2105
      %v2107 = vrot.slane %v511, 2
      %v2108 = vsel %vm1159, %v2105, %v2107
      %s2111 = scalar_lea.vmem %s3, 640
      %v2112 = vld [vmem:[%s2111] sm:$0xff]
      %v2113 = vld [vmem:[%s2111 + $0x8] sm:$0xff]
      %v2114 = vld [vmem:[%s2111 + $0x10] sm:$0xff]
      %v2115 = vld [vmem:[%s2111 + $0x18] sm:$0xff]
      %v2116 = vld [vmem:[%s2111 + $0x20] sm:$0xff]
      %v2117 = vld [vmem:[%s2111 + $0x28] sm:$0xff]
      %v2118 = vld [vmem:[%s2111 + $0x30] sm:$0xff]
      %v2119 = vld [vmem:[%s2111 + $0x38] sm:$0xff]
      %v2120 = vld [vmem:[%s2111 + $0x40] sm:$0xff]
      %v2121 = vld [vmem:[%s2111 + $0x48] sm:$0xff]
      %v2122 = vld [vmem:[%s2111 + $0x50] sm:$0xff]
      %v2123 = vld [vmem:[%s2111 + $0x58] sm:$0xff]
      %v2124 = vld [vmem:[%s2111 + $0x60] sm:$0xff]
      %v2125 = vld [vmem:[%s2111 + $0x68] sm:$0xff]
      %v2126 = vld [vmem:[%s2111 + $0x70] sm:$0xff]
      %v2127 = vld [vmem:[%s2111 + $0x78] sm:$0xff]
      %2128 = vmatprep.subr.mxu0 0.0
      %2129 = vmatpush1.msra.mxu0 %v2112
      %2130 = vmatprep.subr.mxu0 0.0
      %2131 = vmatpush1.msra.mxu0 %v2113
      %2132 = vmatprep.subr.mxu0 0.0
      %2133 = vmatpush1.msra.mxu0 %v2114
      %2134 = vmatprep.subr.mxu0 0.0
      %2135 = vmatpush1.msra.mxu0 %v2115
      %2136 = vmatprep.subr.mxu0 0.0
      %2137 = vmatpush1.msra.mxu0 %v2116
      %2138 = vmatprep.subr.mxu0 0.0
      %2139 = vmatpush1.msra.mxu0 %v2117
      %2140 = vmatprep.subr.mxu0 0.0
      %2141 = vmatpush1.msra.mxu0 %v2118
      %2142 = vmatprep.subr.mxu0 0.0
      %2143 = vmatpush1.msra.mxu0 %v2119
      %2144 = vmatprep.subr.mxu0 0.0
      %2145 = vmatpush1.msra.mxu0 %v2120
      %2146 = vmatprep.subr.mxu0 0.0
      %2147 = vmatpush1.msra.mxu0 %v2121
      %2148 = vmatprep.subr.mxu0 0.0
      %2149 = vmatpush1.msra.mxu0 %v2122
      %2150 = vmatprep.subr.mxu0 0.0
      %2151 = vmatpush1.msra.mxu0 %v2123
      %2152 = vmatprep.subr.mxu0 0.0
      %2153 = vmatpush1.msra.mxu0 %v2124
      %2154 = vmatprep.subr.mxu0 0.0
      %2155 = vmatpush1.msra.mxu0 %v2125
      %2156 = vmatprep.subr.mxu0 0.0
      %2157 = vmatpush1.msra.mxu0 %v2126
      %2158 = vmatprep.subr.mxu0 0.0
      %2159 = vmatpush1.msra.mxu0 %v2127
      %2160 = vmatprep.subr.mxu0 0.0
      %2161 = vmatpush1.msra.mxu0 0.0
      %2162 = vmatprep.subr.mxu0 0.0
      %2163 = vmatpush1.msra.mxu0 0.0
      %2164 = vmatprep.subr.mxu0 0.0
      %2165 = vmatpush1.msra.mxu0 0.0
      %2166 = vmatprep.subr.mxu0 0.0
      %2167 = vmatpush1.msra.mxu0 0.0
      %2168 = vmatprep.subr.mxu0 0.0
      %2169 = vmatpush1.msra.mxu0 0.0
      %2170 = vmatprep.subr.mxu0 0.0
      %2171 = vmatpush1.msra.mxu0 0.0
      %2172 = vmatprep.subr.mxu0 0.0
      %2173 = vmatpush1.msra.mxu0 0.0
      %2174 = vmatprep.subr.mxu0 0.0
      %2175 = vmatpush1.msra.mxu0 0.0
      %2176 = vmatprep.subr.mxu0 0.0
      %2177 = vmatpush1.msra.mxu0 0.0
      %2178 = vmatprep.subr.mxu0 0.0
      %2179 = vmatpush1.msra.mxu0 0.0
      %2180 = vmatprep.subr.mxu0 0.0
      %2181 = vmatpush1.msra.mxu0 0.0
      %2182 = vmatprep.subr.mxu0 0.0
      %2183 = vmatpush1.msra.mxu0 0.0
      %2184 = vmatprep.subr.mxu0 0.0
      %2185 = vmatpush1.msra.mxu0 0.0
      %2186 = vmatprep.subr.mxu0 0.0
      %2187 = vmatpush1.msra.mxu0 0.0
      %2188 = vmatprep.subr.mxu0 0.0
      %2189 = vmatpush1.msra.mxu0 0.0
      %2190 = vmatprep.subr.mxu0 0.0
      %2191 = vmatpush1.msra.mxu0 0.0
      %2192 = vmatprep.mubr.f32.mxu0 0.0
      %2193 = vmatmul.mubr.f32.gmra.mrb[0].mxu0 %v1167
      %v2194 = vpop.f32.mrb[0].mxu0
      %v2195 = vadd.f32 0.0, %v2194
      %v2196 = vpop.f32.mrb[0].mxu0
      %2197 = vmatprep.mubr.f32.mxu0 0.0
      %2198 = vmatmul.mubr.f32.gmra.mrb[0].mxu0 %v1169
      %v2199 = vpop.f32.mrb[0].mxu0
      %v2200 = vadd.f32 0.0, %v2199
      %v2201 = vpop.f32.mrb[0].mxu0
      %2202 = vmatprep.mubr.f32.mxu0 0.0
      %2203 = vmatmul.mubr.f32.gmra.mrb[0].mxu0 %v1172
      %v2204 = vpop.f32.mrb[0].mxu0
      %v2205 = vadd.f32 0.0, %v2204
      %v2206 = vpop.f32.mrb[0].mxu0
      %2207 = vmatprep.mubr.f32.mxu0 0.0
      %2208 = vmatmul.mubr.f32.gmra.mrb[0].mxu0 %v1174
      %v2209 = vpop.f32.mrb[0].mxu0
      %v2210 = vadd.f32 0.0, %v2209
      %v2211 = vpop.f32.mrb[0].mxu0
      %2212 = vmatprep.mubr.f32.mxu0 0.0
      %2213 = vmatmul.mubr.f32.gmra.mrb[0].mxu0 %v1177
      %v2214 = vpop.f32.mrb[0].mxu0
      %v2215 = vadd.f32 0.0, %v2214
      %v2216 = vpop.f32.mrb[0].mxu0
      %2217 = vmatprep.mubr.f32.mxu0 0.0
      %2218 = vmatmul.mubr.f32.gmra.mrb[0].mxu0 %v1179
      %v2219 = vpop.f32.mrb[0].mxu0
      %v2220 = vadd.f32 0.0, %v2219
      %v2221 = vpop.f32.mrb[0].mxu0
      %2222 = vmatprep.mubr.f32.mxu0 0.0
      %2223 = vmatmul.mubr.f32.gmra.mrb[0].mxu0 %v1182
      %v2224 = vpop.f32.mrb[0].mxu0
      %v2225 = vadd.f32 0.0, %v2224
      %v2226 = vpop.f32.mrb[0].mxu0
      %2227 = vmatprep.mubr.f32.mxu0 0.0
      %2228 = vmatmul.mubr.f32.gmra.mrb[0].mxu0 %v1184
      %v2229 = vpop.f32.mrb[0].mxu0
      %v2230 = vadd.f32 0.0, %v2229
      %v2231 = vpop.f32.mrb[0].mxu0
      %2232 = vmatprep.mubr.f32.mxu0 0.0
      %2233 = vmatmul.mubr.f32.gmra.mrb[0].mxu0 %v1187
      %v2234 = vpop.f32.mrb[0].mxu0
      %v2235 = vadd.f32 0.0, %v2234
      %v2236 = vpop.f32.mrb[0].mxu0
      %2237 = vmatprep.mubr.f32.mxu0 0.0
      %2238 = vmatmul.mubr.f32.gmra.mrb[0].mxu0 %v1189
      %v2239 = vpop.f32.mrb[0].mxu0
      %v2240 = vadd.f32 0.0, %v2239
      %v2241 = vpop.f32.mrb[0].mxu0
      %2242 = vmatprep.mubr.f32.mxu0 0.0
      %2243 = vmatmul.mubr.f32.gmra.mrb[0].mxu0 %v1192
      %v2244 = vpop.f32.mrb[0].mxu0
      %v2245 = vadd.f32 0.0, %v2244
      %v2246 = vpop.f32.mrb[0].mxu0
      %2247 = vmatprep.mubr.f32.mxu0 0.0
      %2248 = vmatmul.mubr.f32.gmra.mrb[0].mxu0 %v1194
      %v2249 = vpop.f32.mrb[0].mxu0
      %v2250 = vadd.f32 0.0, %v2249
      %v2251 = vpop.f32.mrb[0].mxu0
      %2252 = vmatprep.mubr.f32.mxu0 0.0
      %2253 = vmatmul.mubr.f32.gmra.mrb[0].mxu0 %v1197
      %v2254 = vpop.f32.mrb[0].mxu0
      %v2255 = vadd.f32 0.0, %v2254
      %v2256 = vpop.f32.mrb[0].mxu0
      %2257 = vmatprep.mubr.f32.mxu0 0.0
      %2258 = vmatmul.mubr.f32.gmra.mrb[0].mxu0 %v1199
      %v2259 = vpop.f32.mrb[0].mxu0
      %v2260 = vadd.f32 0.0, %v2259
      %v2261 = vpop.f32.mrb[0].mxu0
      %2262 = vmatprep.mubr.f32.mxu0 0.0
      %2263 = vmatmul.mubr.f32.gmra.mrb[0].mxu0 %v1202
      %v2264 = vpop.f32.mrb[0].mxu0
      %v2265 = vadd.f32 0.0, %v2264
      %v2266 = vpop.f32.mrb[0].mxu0
      %2267 = vmatprep.mubr.f32.mxu0 0.0
      %2268 = vmatmul.mubr.f32.gmra.mrb[0].mxu0 %v1204
      %v2269 = vpop.f32.mrb[0].mxu0
      %v2270 = vadd.f32 0.0, %v2269
      %v2271 = vpop.f32.mrb[0].mxu0
      %2272 = vmatprep.mubr.f32.mxu0 0.0
      %2273 = vmatmul.mubr.f32.gmra.mrb[0].mxu0 %v1207
      %v2274 = vpop.f32.mrb[0].mxu0
      %v2275 = vadd.f32 0.0, %v2274
      %v2276 = vpop.f32.mrb[0].mxu0
      %2277 = vmatprep.mubr.f32.mxu0 0.0
      %2278 = vmatmul.mubr.f32.gmra.mrb[0].mxu0 %v1209
      %v2279 = vpop.f32.mrb[0].mxu0
      %v2280 = vadd.f32 0.0, %v2279
      %v2281 = vpop.f32.mrb[0].mxu0
      %2282 = vmatprep.mubr.f32.mxu0 0.0
      %2283 = vmatmul.mubr.f32.gmra.mrb[0].mxu0 %v1212
      %v2284 = vpop.f32.mrb[0].mxu0
      %v2285 = vadd.f32 0.0, %v2284
      %v2286 = vpop.f32.mrb[0].mxu0
      %2287 = vmatprep.mubr.f32.mxu0 0.0
      %2288 = vmatmul.mubr.f32.gmra.mrb[0].mxu0 %v1214
      %v2289 = vpop.f32.mrb[0].mxu0
      %v2290 = vadd.f32 0.0, %v2289
      %v2291 = vpop.f32.mrb[0].mxu0
      %2292 = vmatprep.mubr.f32.mxu0 0.0
      %2293 = vmatmul.mubr.f32.gmra.mrb[0].mxu0 %v1217
      %v2294 = vpop.f32.mrb[0].mxu0
      %v2295 = vadd.f32 0.0, %v2294
      %v2296 = vpop.f32.mrb[0].mxu0
      %2297 = vmatprep.mubr.f32.mxu0 0.0
      %2298 = vmatmul.mubr.f32.gmra.mrb[0].mxu0 %v1219
      %v2299 = vpop.f32.mrb[0].mxu0
      %v2300 = vadd.f32 0.0, %v2299
      %v2301 = vpop.f32.mrb[0].mxu0
      %2302 = vmatprep.mubr.f32.mxu0 0.0
      %2303 = vmatmul.mubr.f32.gmra.mrb[0].mxu0 %v1222
      %v2304 = vpop.f32.mrb[0].mxu0
      %v2305 = vadd.f32 0.0, %v2304
      %v2306 = vpop.f32.mrb[0].mxu0
      %2307 = vmatprep.mubr.f32.mxu0 0.0
      %2308 = vmatmul.mubr.f32.gmra.mrb[0].mxu0 %v1224
      %v2309 = vpop.f32.mrb[0].mxu0
      %v2310 = vadd.f32 0.0, %v2309
      %v2311 = vpop.f32.mrb[0].mxu0
      %2312 = vmatprep.mubr.f32.mxu0 0.0
      %2313 = vmatmul.mubr.f32.gmra.mrb[0].mxu0 %v1227
      %v2314 = vpop.f32.mrb[0].mxu0
      %v2315 = vadd.f32 0.0, %v2314
      %v2316 = vpop.f32.mrb[0].mxu0
      %2317 = vmatprep.mubr.f32.mxu0 0.0
      %2318 = vmatmul.mubr.f32.gmra.mrb[0].mxu0 %v1229
      %v2319 = vpop.f32.mrb[0].mxu0
      %v2320 = vadd.f32 0.0, %v2319
      %v2321 = vpop.f32.mrb[0].mxu0
      %2322 = vmatprep.mubr.f32.mxu0 0.0
      %2323 = vmatmul.mubr.f32.gmra.mrb[0].mxu0 %v1232
      %v2324 = vpop.f32.mrb[0].mxu0
      %v2325 = vadd.f32 0.0, %v2324
      %v2326 = vpop.f32.mrb[0].mxu0
      %2327 = vmatprep.mubr.f32.mxu0 0.0
      %2328 = vmatmul.mubr.f32.gmra.mrb[0].mxu0 %v1234
      %v2329 = vpop.f32.mrb[0].mxu0
      %v2330 = vadd.f32 0.0, %v2329
      %v2331 = vpop.f32.mrb[0].mxu0
      %2332 = vmatprep.mubr.f32.mxu0 0.0
      %2333 = vmatmul.mubr.f32.gmra.mrb[0].mxu0 %v1237
      %v2334 = vpop.f32.mrb[0].mxu0
      %v2335 = vadd.f32 0.0, %v2334
      %v2336 = vpop.f32.mrb[0].mxu0
      %2337 = vmatprep.mubr.f32.mxu0 0.0
      %2338 = vmatmul.mubr.f32.gmra.mrb[0].mxu0 %v1239
      %v2339 = vpop.f32.mrb[0].mxu0
      %v2340 = vadd.f32 0.0, %v2339
      %v2341 = vpop.f32.mrb[0].mxu0
      %2342 = vmatprep.mubr.f32.mxu0 0.0
      %2343 = vmatmul.mubr.f32.gmra.mrb[0].mxu0 %v2106
      %v2344 = vpop.f32.mrb[0].mxu0
      %v2345 = vadd.f32 0.0, %v2344
      %v2346 = vpop.f32.mrb[0].mxu0
      %2347 = vmatprep.mubr.f32.mxu0 0.0
      %2348 = vmatmul.mubr.f32.gmra.mrb[0].mxu0 %v2108
      %v2349 = vpop.f32.mrb[0].mxu0
      %v2350 = vadd.f32 0.0, %v2349
      %v2351 = vpop.f32.mrb[0].mxu0
      %2352 = vdwg.mxu0
      %v2353 = vadd.f32 %v2072, %v2195
      %v2354 = vadd.f32 %v2073, %v2200
      %v2355 = vadd.f32 %v2074, %v2205
      %v2356 = vadd.f32 %v2075, %v2210
      %v2357 = vadd.f32 %v2076, %v2215
      %v2358 = vadd.f32 %v2077, %v2220
      %v2359 = vadd.f32 %v2078, %v2225
      %v2360 = vadd.f32 %v2079, %v2230
      %v2361 = vadd.f32 %v2080, %v2235
      %v2362 = vadd.f32 %v2081, %v2240
      %v2363 = vadd.f32 %v2082, %v2245
      %v2364 = vadd.f32 %v2083, %v2250
      %v2365 = vadd.f32 %v2084, %v2255
      %v2366 = vadd.f32 %v2085, %v2260
      %v2367 = vadd.f32 %v2086, %v2265
      %v2368 = vadd.f32 %v2087, %v2270
      %v2369 = vadd.f32 %v2088, %v2275
      %v2370 = vadd.f32 %v2089, %v2280
      %v2371 = vadd.f32 %v2090, %v2285
      %v2372 = vadd.f32 %v2091, %v2290
      %v2373 = vadd.f32 %v2092, %v2295
      %v2374 = vadd.f32 %v2093, %v2300
      %v2375 = vadd.f32 %v2094, %v2305
      %v2376 = vadd.f32 %v2095, %v2310
      %v2377 = vadd.f32 %v2096, %v2315
      %v2378 = vadd.f32 %v2097, %v2320
      %v2379 = vadd.f32 %v2098, %v2325
      %v2380 = vadd.f32 %v2099, %v2330
      %v2381 = vadd.f32 %v2100, %v2335
      %v2382 = vadd.f32 %v2101, %v2340
      %v2383 = vadd.f32 %v2102, %v2345
      %v2384 = vadd.f32 %v2103, %v2350
      %s2385 = scalar_lea.vmem %s3, 768
      %v2386 = vld [vmem:[%s2385] sm:$0xff]
      %v2387 = vld [vmem:[%s2385 + $0x8] sm:$0xff]
      %v2388 = vld [vmem:[%s2385 + $0x10] sm:$0xff]
      %v2389 = vld [vmem:[%s2385 + $0x18] sm:$0xff]
      %v2390 = vld [vmem:[%s2385 + $0x20] sm:$0xff]
      %v2391 = vld [vmem:[%s2385 + $0x28] sm:$0xff]
      %v2392 = vld [vmem:[%s2385 + $0x30] sm:$0xff]
      %v2393 = vld [vmem:[%s2385 + $0x38] sm:$0xff]
      %v2394 = vld [vmem:[%s2385 + $0x40] sm:$0xff]
      %v2395 = vld [vmem:[%s2385 + $0x48] sm:$0xff]
      %v2396 = vld [vmem:[%s2385 + $0x50] sm:$0xff]
      %v2397 = vld [vmem:[%s2385 + $0x58] sm:$0xff]
      %v2398 = vld [vmem:[%s2385 + $0x60] sm:$0xff]
      %v2399 = vld [vmem:[%s2385 + $0x68] sm:$0xff]
      %v2400 = vld [vmem:[%s2385 + $0x70] sm:$0xff]
      %v2401 = vld [vmem:[%s2385 + $0x78] sm:$0xff]
      %2402 = vmatprep.subr.mxu0 0.0
      %2403 = vmatpush1.msra.mxu0 %v2386
      %2404 = vmatprep.subr.mxu0 0.0
      %2405 = vmatpush1.msra.mxu0 %v2387
      %2406 = vmatprep.subr.mxu0 0.0
      %2407 = vmatpush1.msra.mxu0 %v2388
      %2408 = vmatprep.subr.mxu0 0.0
      %2409 = vmatpush1.msra.mxu0 %v2389
      %2410 = vmatprep.subr.mxu0 0.0
      %2411 = vmatpush1.msra.mxu0 %v2390
      %2412 = vmatprep.subr.mxu0 0.0
      %2413 = vmatpush1.msra.mxu0 %v2391
      %2414 = vmatprep.subr.mxu0 0.0
      %2415 = vmatpush1.msra.mxu0 %v2392
      %2416 = vmatprep.subr.mxu0 0.0
      %2417 = vmatpush1.msra.mxu0 %v2393
      %2418 = vmatprep.subr.mxu0 0.0
      %2419 = vmatpush1.msra.mxu0 %v2394
      %2420 = vmatprep.subr.mxu0 0.0
      %2421 = vmatpush1.msra.mxu0 %v2395
      %2422 = vmatprep.subr.mxu0 0.0
      %2423 = vmatpush1.msra.mxu0 %v2396
      %2424 = vmatprep.subr.mxu0 0.0
      %2425 = vmatpush1.msra.mxu0 %v2397
      %2426 = vmatprep.subr.mxu0 0.0
      %2427 = vmatpush1.msra.mxu0 %v2398
      %2428 = vmatprep.subr.mxu0 0.0
      %2429 = vmatpush1.msra.mxu0 %v2399
      %2430 = vmatprep.subr.mxu0 0.0
      %2431 = vmatpush1.msra.mxu0 %v2400
      %2432 = vmatprep.subr.mxu0 0.0
      %2433 = vmatpush1.msra.mxu0 %v2401
      %2434 = vmatprep.subr.mxu0 0.0
      %2435 = vmatpush1.msra.mxu0 0.0
      %2436 = vmatprep.subr.mxu0 0.0
      %2437 = vmatpush1.msra.mxu0 0.0
      %2438 = vmatprep.subr.mxu0 0.0
      %2439 = vmatpush1.msra.mxu0 0.0
      %2440 = vmatprep.subr.mxu0 0.0
      %2441 = vmatpush1.msra.mxu0 0.0
      %2442 = vmatprep.subr.mxu0 0.0
      %2443 = vmatpush1.msra.mxu0 0.0
      %2444 = vmatprep.subr.mxu0 0.0
      %2445 = vmatpush1.msra.mxu0 0.0
      %2446 = vmatprep.subr.mxu0 0.0
      %2447 = vmatpush1.msra.mxu0 0.0
      %2448 = vmatprep.subr.mxu0 0.0
      %2449 = vmatpush1.msra.mxu0 0.0
      %2450 = vmatprep.subr.mxu0 0.0
      %2451 = vmatpush1.msra.mxu0 0.0
      %2452 = vmatprep.subr.mxu0 0.0
      %2453 = vmatpush1.msra.mxu0 0.0
      %2454 = vmatprep.subr.mxu0 0.0
      %2455 = vmatpush1.msra.mxu0 0.0
      %2456 = vmatprep.subr.mxu0 0.0
      %2457 = vmatpush1.msra.mxu0 0.0
      %2458 = vmatprep.subr.mxu0 0.0
      %2459 = vmatpush1.msra.mxu0 0.0
      %2460 = vmatprep.subr.mxu0 0.0
      %2461 = vmatpush1.msra.mxu0 0.0
      %2462 = vmatprep.subr.mxu0 0.0
      %2463 = vmatpush1.msra.mxu0 0.0
      %2464 = vmatprep.subr.mxu0 0.0
      %2465 = vmatpush1.msra.mxu0 0.0
      %2466 = vmatprep.mubr.f32.mxu0 0.0
      %2467 = vmatmul.mubr.f32.gmra.mrb[0].mxu0 %v467
      %v2468 = vpop.f32.mrb[0].mxu0
      %v2469 = vadd.f32 0.0, %v2468
      %v2470 = vpop.f32.mrb[0].mxu0
      %2471 = vmatprep.mubr.f32.mxu0 0.0
      %2472 = vmatmul.mubr.f32.gmra.mrb[0].mxu0 %v468
      %v2473 = vpop.f32.mrb[0].mxu0
      %v2474 = vadd.f32 0.0, %v2473
      %v2475 = vpop.f32.mrb[0].mxu0
      %2476 = vmatprep.mubr.f32.mxu0 0.0
      %2477 = vmatmul.mubr.f32.gmra.mrb[0].mxu0 %v470
      %v2478 = vpop.f32.mrb[0].mxu0
      %v2479 = vadd.f32 0.0, %v2478
      %v2480 = vpop.f32.mrb[0].mxu0
      %2481 = vmatprep.mubr.f32.mxu0 0.0
      %2482 = vmatmul.mubr.f32.gmra.mrb[0].mxu0 %v471
      %v2483 = vpop.f32.mrb[0].mxu0
      %v2484 = vadd.f32 0.0, %v2483
      %v2485 = vpop.f32.mrb[0].mxu0
      %2486 = vmatprep.mubr.f32.mxu0 0.0
      %2487 = vmatmul.mubr.f32.gmra.mrb[0].mxu0 %v473
      %v2488 = vpop.f32.mrb[0].mxu0
      %v2489 = vadd.f32 0.0, %v2488
      %v2490 = vpop.f32.mrb[0].mxu0
      %2491 = vmatprep.mubr.f32.mxu0 0.0
      %2492 = vmatmul.mubr.f32.gmra.mrb[0].mxu0 %v474
      %v2493 = vpop.f32.mrb[0].mxu0
      %v2494 = vadd.f32 0.0, %v2493
      %v2495 = vpop.f32.mrb[0].mxu0
      %2496 = vmatprep.mubr.f32.mxu0 0.0
      %2497 = vmatmul.mubr.f32.gmra.mrb[0].mxu0 %v476
      %v2498 = vpop.f32.mrb[0].mxu0
      %v2499 = vadd.f32 0.0, %v2498
      %v2500 = vpop.f32.mrb[0].mxu0
      %2501 = vmatprep.mubr.f32.mxu0 0.0
      %2502 = vmatmul.mubr.f32.gmra.mrb[0].mxu0 %v477
      %v2503 = vpop.f32.mrb[0].mxu0
      %v2504 = vadd.f32 0.0, %v2503
      %v2505 = vpop.f32.mrb[0].mxu0
      %2506 = vmatprep.mubr.f32.mxu0 0.0
      %2507 = vmatmul.mubr.f32.gmra.mrb[0].mxu0 %v479
      %v2508 = vpop.f32.mrb[0].mxu0
      %v2509 = vadd.f32 0.0, %v2508
      %v2510 = vpop.f32.mrb[0].mxu0
      %2511 = vmatprep.mubr.f32.mxu0 0.0
      %2512 = vmatmul.mubr.f32.gmra.mrb[0].mxu0 %v480
      %v2513 = vpop.f32.mrb[0].mxu0
      %v2514 = vadd.f32 0.0, %v2513
      %v2515 = vpop.f32.mrb[0].mxu0
      %2516 = vmatprep.mubr.f32.mxu0 0.0
      %2517 = vmatmul.mubr.f32.gmra.mrb[0].mxu0 %v482
      %v2518 = vpop.f32.mrb[0].mxu0
      %v2519 = vadd.f32 0.0, %v2518
      %v2520 = vpop.f32.mrb[0].mxu0
      %2521 = vmatprep.mubr.f32.mxu0 0.0
      %2522 = vmatmul.mubr.f32.gmra.mrb[0].mxu0 %v483
      %v2523 = vpop.f32.mrb[0].mxu0
      %v2524 = vadd.f32 0.0, %v2523
      %v2525 = vpop.f32.mrb[0].mxu0
      %2526 = vmatprep.mubr.f32.mxu0 0.0
      %2527 = vmatmul.mubr.f32.gmra.mrb[0].mxu0 %v485
      %v2528 = vpop.f32.mrb[0].mxu0
      %v2529 = vadd.f32 0.0, %v2528
      %v2530 = vpop.f32.mrb[0].mxu0
      %2531 = vmatprep.mubr.f32.mxu0 0.0
      %2532 = vmatmul.mubr.f32.gmra.mrb[0].mxu0 %v486
      %v2533 = vpop.f32.mrb[0].mxu0
      %v2534 = vadd.f32 0.0, %v2533
      %v2535 = vpop.f32.mrb[0].mxu0
      %2536 = vmatprep.mubr.f32.mxu0 0.0
      %2537 = vmatmul.mubr.f32.gmra.mrb[0].mxu0 %v488
      %v2538 = vpop.f32.mrb[0].mxu0
      %v2539 = vadd.f32 0.0, %v2538
      %v2540 = vpop.f32.mrb[0].mxu0
      %2541 = vmatprep.mubr.f32.mxu0 0.0
      %2542 = vmatmul.mubr.f32.gmra.mrb[0].mxu0 %v489
      %v2543 = vpop.f32.mrb[0].mxu0
      %v2544 = vadd.f32 0.0, %v2543
      %v2545 = vpop.f32.mrb[0].mxu0
      %2546 = vmatprep.mubr.f32.mxu0 0.0
      %2547 = vmatmul.mubr.f32.gmra.mrb[0].mxu0 %v491
      %v2548 = vpop.f32.mrb[0].mxu0
      %v2549 = vadd.f32 0.0, %v2548
      %v2550 = vpop.f32.mrb[0].mxu0
      %2551 = vmatprep.mubr.f32.mxu0 0.0
      %2552 = vmatmul.mubr.f32.gmra.mrb[0].mxu0 %v492
      %v2553 = vpop.f32.mrb[0].mxu0
      %v2554 = vadd.f32 0.0, %v2553
      %v2555 = vpop.f32.mrb[0].mxu0
      %2556 = vmatprep.mubr.f32.mxu0 0.0
      %2557 = vmatmul.mubr.f32.gmra.mrb[0].mxu0 %v494
      %v2558 = vpop.f32.mrb[0].mxu0
      %v2559 = vadd.f32 0.0, %v2558
      %v2560 = vpop.f32.mrb[0].mxu0
      %2561 = vmatprep.mubr.f32.mxu0 0.0
      %2562 = vmatmul.mubr.f32.gmra.mrb[0].mxu0 %v495
      %v2563 = vpop.f32.mrb[0].mxu0
      %v2564 = vadd.f32 0.0, %v2563
      %v2565 = vpop.f32.mrb[0].mxu0
      %2566 = vmatprep.mubr.f32.mxu0 0.0
      %2567 = vmatmul.mubr.f32.gmra.mrb[0].mxu0 %v497
      %v2568 = vpop.f32.mrb[0].mxu0
      %v2569 = vadd.f32 0.0, %v2568
      %v2570 = vpop.f32.mrb[0].mxu0
      %2571 = vmatprep.mubr.f32.mxu0 0.0
      %2572 = vmatmul.mubr.f32.gmra.mrb[0].mxu0 %v498
      %v2573 = vpop.f32.mrb[0].mxu0
      %v2574 = vadd.f32 0.0, %v2573
      %v2575 = vpop.f32.mrb[0].mxu0
      %2576 = vmatprep.mubr.f32.mxu0 0.0
      %2577 = vmatmul.mubr.f32.gmra.mrb[0].mxu0 %v500
      %v2578 = vpop.f32.mrb[0].mxu0
      %v2579 = vadd.f32 0.0, %v2578
      %v2580 = vpop.f32.mrb[0].mxu0
      %2581 = vmatprep.mubr.f32.mxu0 0.0
      %2582 = vmatmul.mubr.f32.gmra.mrb[0].mxu0 %v501
      %v2583 = vpop.f32.mrb[0].mxu0
      %v2584 = vadd.f32 0.0, %v2583
      %v2585 = vpop.f32.mrb[0].mxu0
      %2586 = vmatprep.mubr.f32.mxu0 0.0
      %2587 = vmatmul.mubr.f32.gmra.mrb[0].mxu0 %v503
      %v2588 = vpop.f32.mrb[0].mxu0
      %v2589 = vadd.f32 0.0, %v2588
      %v2590 = vpop.f32.mrb[0].mxu0
      %2591 = vmatprep.mubr.f32.mxu0 0.0
      %2592 = vmatmul.mubr.f32.gmra.mrb[0].mxu0 %v504
      %v2593 = vpop.f32.mrb[0].mxu0
      %v2594 = vadd.f32 0.0, %v2593
      %v2595 = vpop.f32.mrb[0].mxu0
      %2596 = vmatprep.mubr.f32.mxu0 0.0
      %2597 = vmatmul.mubr.f32.gmra.mrb[0].mxu0 %v506
      %v2598 = vpop.f32.mrb[0].mxu0
      %v2599 = vadd.f32 0.0, %v2598
      %v2600 = vpop.f32.mrb[0].mxu0
      %2601 = vmatprep.mubr.f32.mxu0 0.0
      %2602 = vmatmul.mubr.f32.gmra.mrb[0].mxu0 %v507
      %v2603 = vpop.f32.mrb[0].mxu0
      %v2604 = vadd.f32 0.0, %v2603
      %v2605 = vpop.f32.mrb[0].mxu0
      %2606 = vmatprep.mubr.f32.mxu0 0.0
      %2607 = vmatmul.mubr.f32.gmra.mrb[0].mxu0 %v509
      %v2608 = vpop.f32.mrb[0].mxu0
      %v2609 = vadd.f32 0.0, %v2608
      %v2610 = vpop.f32.mrb[0].mxu0
      %2611 = vmatprep.mubr.f32.mxu0 0.0
      %2612 = vmatmul.mubr.f32.gmra.mrb[0].mxu0 %v510
      %v2613 = vpop.f32.mrb[0].mxu0
      %v2614 = vadd.f32 0.0, %v2613
      %v2615 = vpop.f32.mrb[0].mxu0
      %2616 = vmatprep.mubr.f32.mxu0 0.0
      %2617 = vmatmul.mubr.f32.gmra.mrb[0].mxu0 %v512
      %v2618 = vpop.f32.mrb[0].mxu0
      %v2619 = vadd.f32 0.0, %v2618
      %v2620 = vpop.f32.mrb[0].mxu0
      %2621 = vmatprep.mubr.f32.mxu0 0.0
      %2622 = vmatmul.mubr.f32.gmra.mrb[0].mxu0 %v513
      %v2623 = vpop.f32.mrb[0].mxu0
      %v2624 = vadd.f32 0.0, %v2623
      %v2625 = vpop.f32.mrb[0].mxu0
      %2626 = vdwg.mxu0
      %v2627 = vadd.f32 %v2353, %v2469
      %v2628 = vadd.f32 %v2354, %v2474
      %v2629 = vadd.f32 %v2355, %v2479
      %v2630 = vadd.f32 %v2356, %v2484
      %v2631 = vadd.f32 %v2357, %v2489
      %v2632 = vadd.f32 %v2358, %v2494
      %v2633 = vadd.f32 %v2359, %v2499
      %v2634 = vadd.f32 %v2360, %v2504
      %v2635 = vadd.f32 %v2361, %v2509
      %v2636 = vadd.f32 %v2362, %v2514
      %v2637 = vadd.f32 %v2363, %v2519
      %v2638 = vadd.f32 %v2364, %v2524
      %v2639 = vadd.f32 %v2365, %v2529
      %v2640 = vadd.f32 %v2366, %v2534
      %v2641 = vadd.f32 %v2367, %v2539
      %v2642 = vadd.f32 %v2368, %v2544
      %v2643 = vadd.f32 %v2369, %v2549
      %v2644 = vadd.f32 %v2370, %v2554
      %v2645 = vadd.f32 %v2371, %v2559
      %v2646 = vadd.f32 %v2372, %v2564
      %v2647 = vadd.f32 %v2373, %v2569
      %v2648 = vadd.f32 %v2374, %v2574
      %v2649 = vadd.f32 %v2375, %v2579
      %v2650 = vadd.f32 %v2376, %v2584
      %v2651 = vadd.f32 %v2377, %v2589
      %v2652 = vadd.f32 %v2378, %v2594
      %v2653 = vadd.f32 %v2379, %v2599
      %v2654 = vadd.f32 %v2380, %v2604
      %v2655 = vadd.f32 %v2381, %v2609
      %v2656 = vadd.f32 %v2382, %v2614
      %v2657 = vadd.f32 %v2383, %v2619
      %v2658 = vadd.f32 %v2384, %v2624
      %v2662 = vrot.slane %v512, 1
      %v2663 = vrot.slane %v513, 1
      %v2664 = vsel %vm579, %v2662, %v2663
      %v2665 = vrot.slane %v514, 1
      %v2666 = vsel %vm579, %v2663, %v2665
      %s2669 = scalar_lea.vmem %s3, 896
      %v2670 = vld [vmem:[%s2669] sm:$0xff]
      %v2671 = vld [vmem:[%s2669 + $0x8] sm:$0xff]
      %v2672 = vld [vmem:[%s2669 + $0x10] sm:$0xff]
      %v2673 = vld [vmem:[%s2669 + $0x18] sm:$0xff]
      %v2674 = vld [vmem:[%s2669 + $0x20] sm:$0xff]
      %v2675 = vld [vmem:[%s2669 + $0x28] sm:$0xff]
      %v2676 = vld [vmem:[%s2669 + $0x30] sm:$0xff]
      %v2677 = vld [vmem:[%s2669 + $0x38] sm:$0xff]
      %v2678 = vld [vmem:[%s2669 + $0x40] sm:$0xff]
      %v2679 = vld [vmem:[%s2669 + $0x48] sm:$0xff]
      %v2680 = vld [vmem:[%s2669 + $0x50] sm:$0xff]
      %v2681 = vld [vmem:[%s2669 + $0x58] sm:$0xff]
      %v2682 = vld [vmem:[%s2669 + $0x60] sm:$0xff]
      %v2683 = vld [vmem:[%s2669 + $0x68] sm:$0xff]
      %v2684 = vld [vmem:[%s2669 + $0x70] sm:$0xff]
      %v2685 = vld [vmem:[%s2669 + $0x78] sm:$0xff]
      %2686 = vmatprep.subr.mxu0 0.0
      %2687 = vmatpush1.msra.mxu0 %v2670
      %2688 = vmatprep.subr.mxu0 0.0
      %2689 = vmatpush1.msra.mxu0 %v2671
      %2690 = vmatprep.subr.mxu0 0.0
      %2691 = vmatpush1.msra.mxu0 %v2672
      %2692 = vmatprep.subr.mxu0 0.0
      %2693 = vmatpush1.msra.mxu0 %v2673
      %2694 = vmatprep.subr.mxu0 0.0
      %2695 = vmatpush1.msra.mxu0 %v2674
      %2696 = vmatprep.subr.mxu0 0.0
      %2697 = vmatpush1.msra.mxu0 %v2675
      %2698 = vmatprep.subr.mxu0 0.0
      %2699 = vmatpush1.msra.mxu0 %v2676
      %2700 = vmatprep.subr.mxu0 0.0
      %2701 = vmatpush1.msra.mxu0 %v2677
      %2702 = vmatprep.subr.mxu0 0.0
      %2703 = vmatpush1.msra.mxu0 %v2678
      %2704 = vmatprep.subr.mxu0 0.0
      %2705 = vmatpush1.msra.mxu0 %v2679
      %2706 = vmatprep.subr.mxu0 0.0
      %2707 = vmatpush1.msra.mxu0 %v2680
      %2708 = vmatprep.subr.mxu0 0.0
      %2709 = vmatpush1.msra.mxu0 %v2681
      %2710 = vmatprep.subr.mxu0 0.0
      %2711 = vmatpush1.msra.mxu0 %v2682
      %2712 = vmatprep.subr.mxu0 0.0
      %2713 = vmatpush1.msra.mxu0 %v2683
      %2714 = vmatprep.subr.mxu0 0.0
      %2715 = vmatpush1.msra.mxu0 %v2684
      %2716 = vmatprep.subr.mxu0 0.0
      %2717 = vmatpush1.msra.mxu0 %v2685
      %2718 = vmatprep.subr.mxu0 0.0
      %2719 = vmatpush1.msra.mxu0 0.0
      %2720 = vmatprep.subr.mxu0 0.0
      %2721 = vmatpush1.msra.mxu0 0.0
      %2722 = vmatprep.subr.mxu0 0.0
      %2723 = vmatpush1.msra.mxu0 0.0
      %2724 = vmatprep.subr.mxu0 0.0
      %2725 = vmatpush1.msra.mxu0 0.0
      %2726 = vmatprep.subr.mxu0 0.0
      %2727 = vmatpush1.msra.mxu0 0.0
      %2728 = vmatprep.subr.mxu0 0.0
      %2729 = vmatpush1.msra.mxu0 0.0
      %2730 = vmatprep.subr.mxu0 0.0
      %2731 = vmatpush1.msra.mxu0 0.0
      %2732 = vmatprep.subr.mxu0 0.0
      %2733 = vmatpush1.msra.mxu0 0.0
      %2734 = vmatprep.subr.mxu0 0.0
      %2735 = vmatpush1.msra.mxu0 0.0
      %2736 = vmatprep.subr.mxu0 0.0
      %2737 = vmatpush1.msra.mxu0 0.0
      %2738 = vmatprep.subr.mxu0 0.0
      %2739 = vmatpush1.msra.mxu0 0.0
      %2740 = vmatprep.subr.mxu0 0.0
      %2741 = vmatpush1.msra.mxu0 0.0
      %2742 = vmatprep.subr.mxu0 0.0
      %2743 = vmatpush1.msra.mxu0 0.0
      %2744 = vmatprep.subr.mxu0 0.0
      %2745 = vmatpush1.msra.mxu0 0.0
      %2746 = vmatprep.subr.mxu0 0.0
      %2747 = vmatpush1.msra.mxu0 0.0
      %2748 = vmatprep.subr.mxu0 0.0
      %2749 = vmatpush1.msra.mxu0 0.0
      %2750 = vmatprep.mubr.f32.mxu0 0.0
      %2751 = vmatmul.mubr.f32.gmra.mrb[0].mxu0 %v592
      %v2752 = vpop.f32.mrb[0].mxu0
      %v2753 = vadd.f32 0.0, %v2752
      %v2754 = vpop.f32.mrb[0].mxu0
      %2755 = vmatprep.mubr.f32.mxu0 0.0
      %2756 = vmatmul.mubr.f32.gmra.mrb[0].mxu0 %v594
      %v2757 = vpop.f32.mrb[0].mxu0
      %v2758 = vadd.f32 0.0, %v2757
      %v2759 = vpop.f32.mrb[0].mxu0
      %2760 = vmatprep.mubr.f32.mxu0 0.0
      %2761 = vmatmul.mubr.f32.gmra.mrb[0].mxu0 %v597
      %v2762 = vpop.f32.mrb[0].mxu0
      %v2763 = vadd.f32 0.0, %v2762
      %v2764 = vpop.f32.mrb[0].mxu0
      %2765 = vmatprep.mubr.f32.mxu0 0.0
      %2766 = vmatmul.mubr.f32.gmra.mrb[0].mxu0 %v599
      %v2767 = vpop.f32.mrb[0].mxu0
      %v2768 = vadd.f32 0.0, %v2767
      %v2769 = vpop.f32.mrb[0].mxu0
      %2770 = vmatprep.mubr.f32.mxu0 0.0
      %2771 = vmatmul.mubr.f32.gmra.mrb[0].mxu0 %v602
      %v2772 = vpop.f32.mrb[0].mxu0
      %v2773 = vadd.f32 0.0, %v2772
      %v2774 = vpop.f32.mrb[0].mxu0
      %2775 = vmatprep.mubr.f32.mxu0 0.0
      %2776 = vmatmul.mubr.f32.gmra.mrb[0].mxu0 %v604
      %v2777 = vpop.f32.mrb[0].mxu0
      %v2778 = vadd.f32 0.0, %v2777
      %v2779 = vpop.f32.mrb[0].mxu0
      %2780 = vmatprep.mubr.f32.mxu0 0.0
      %2781 = vmatmul.mubr.f32.gmra.mrb[0].mxu0 %v607
      %v2782 = vpop.f32.mrb[0].mxu0
      %v2783 = vadd.f32 0.0, %v2782
      %v2784 = vpop.f32.mrb[0].mxu0
      %2785 = vmatprep.mubr.f32.mxu0 0.0
      %2786 = vmatmul.mubr.f32.gmra.mrb[0].mxu0 %v609
      %v2787 = vpop.f32.mrb[0].mxu0
      %v2788 = vadd.f32 0.0, %v2787
      %v2789 = vpop.f32.mrb[0].mxu0
      %2790 = vmatprep.mubr.f32.mxu0 0.0
      %2791 = vmatmul.mubr.f32.gmra.mrb[0].mxu0 %v612
      %v2792 = vpop.f32.mrb[0].mxu0
      %v2793 = vadd.f32 0.0, %v2792
      %v2794 = vpop.f32.mrb[0].mxu0
      %2795 = vmatprep.mubr.f32.mxu0 0.0
      %2796 = vmatmul.mubr.f32.gmra.mrb[0].mxu0 %v614
      %v2797 = vpop.f32.mrb[0].mxu0
      %v2798 = vadd.f32 0.0, %v2797
      %v2799 = vpop.f32.mrb[0].mxu0
      %2800 = vmatprep.mubr.f32.mxu0 0.0
      %2801 = vmatmul.mubr.f32.gmra.mrb[0].mxu0 %v617
      %v2802 = vpop.f32.mrb[0].mxu0
      %v2803 = vadd.f32 0.0, %v2802
      %v2804 = vpop.f32.mrb[0].mxu0
      %2805 = vmatprep.mubr.f32.mxu0 0.0
      %2806 = vmatmul.mubr.f32.gmra.mrb[0].mxu0 %v619
      %v2807 = vpop.f32.mrb[0].mxu0
      %v2808 = vadd.f32 0.0, %v2807
      %v2809 = vpop.f32.mrb[0].mxu0
      %2810 = vmatprep.mubr.f32.mxu0 0.0
      %2811 = vmatmul.mubr.f32.gmra.mrb[0].mxu0 %v622
      %v2812 = vpop.f32.mrb[0].mxu0
      %v2813 = vadd.f32 0.0, %v2812
      %v2814 = vpop.f32.mrb[0].mxu0
      %2815 = vmatprep.mubr.f32.mxu0 0.0
      %2816 = vmatmul.mubr.f32.gmra.mrb[0].mxu0 %v624
      %v2817 = vpop.f32.mrb[0].mxu0
      %v2818 = vadd.f32 0.0, %v2817
      %v2819 = vpop.f32.mrb[0].mxu0
      %2820 = vmatprep.mubr.f32.mxu0 0.0
      %2821 = vmatmul.mubr.f32.gmra.mrb[0].mxu0 %v627
      %v2822 = vpop.f32.mrb[0].mxu0
      %v2823 = vadd.f32 0.0, %v2822
      %v2824 = vpop.f32.mrb[0].mxu0
      %2825 = vmatprep.mubr.f32.mxu0 0.0
      %2826 = vmatmul.mubr.f32.gmra.mrb[0].mxu0 %v629
      %v2827 = vpop.f32.mrb[0].mxu0
      %v2828 = vadd.f32 0.0, %v2827
      %v2829 = vpop.f32.mrb[0].mxu0
      %2830 = vmatprep.mubr.f32.mxu0 0.0
      %2831 = vmatmul.mubr.f32.gmra.mrb[0].mxu0 %v632
      %v2832 = vpop.f32.mrb[0].mxu0
      %v2833 = vadd.f32 0.0, %v2832
      %v2834 = vpop.f32.mrb[0].mxu0
      %2835 = vmatprep.mubr.f32.mxu0 0.0
      %2836 = vmatmul.mubr.f32.gmra.mrb[0].mxu0 %v634
      %v2837 = vpop.f32.mrb[0].mxu0
      %v2838 = vadd.f32 0.0, %v2837
      %v2839 = vpop.f32.mrb[0].mxu0
      %2840 = vmatprep.mubr.f32.mxu0 0.0
      %2841 = vmatmul.mubr.f32.gmra.mrb[0].mxu0 %v637
      %v2842 = vpop.f32.mrb[0].mxu0
      %v2843 = vadd.f32 0.0, %v2842
      %v2844 = vpop.f32.mrb[0].mxu0
      %2845 = vmatprep.mubr.f32.mxu0 0.0
      %2846 = vmatmul.mubr.f32.gmra.mrb[0].mxu0 %v639
      %v2847 = vpop.f32.mrb[0].mxu0
      %v2848 = vadd.f32 0.0, %v2847
      %v2849 = vpop.f32.mrb[0].mxu0
      %2850 = vmatprep.mubr.f32.mxu0 0.0
      %2851 = vmatmul.mubr.f32.gmra.mrb[0].mxu0 %v642
      %v2852 = vpop.f32.mrb[0].mxu0
      %v2853 = vadd.f32 0.0, %v2852
      %v2854 = vpop.f32.mrb[0].mxu0
      %2855 = vmatprep.mubr.f32.mxu0 0.0
      %2856 = vmatmul.mubr.f32.gmra.mrb[0].mxu0 %v644
      %v2857 = vpop.f32.mrb[0].mxu0
      %v2858 = vadd.f32 0.0, %v2857
      %v2859 = vpop.f32.mrb[0].mxu0
      %2860 = vmatprep.mubr.f32.mxu0 0.0
      %2861 = vmatmul.mubr.f32.gmra.mrb[0].mxu0 %v647
      %v2862 = vpop.f32.mrb[0].mxu0
      %v2863 = vadd.f32 0.0, %v2862
      %v2864 = vpop.f32.mrb[0].mxu0
      %2865 = vmatprep.mubr.f32.mxu0 0.0
      %2866 = vmatmul.mubr.f32.gmra.mrb[0].mxu0 %v649
      %v2867 = vpop.f32.mrb[0].mxu0
      %v2868 = vadd.f32 0.0, %v2867
      %v2869 = vpop.f32.mrb[0].mxu0
      %2870 = vmatprep.mubr.f32.mxu0 0.0
      %2871 = vmatmul.mubr.f32.gmra.mrb[0].mxu0 %v652
      %v2872 = vpop.f32.mrb[0].mxu0
      %v2873 = vadd.f32 0.0, %v2872
      %v2874 = vpop.f32.mrb[0].mxu0
      %2875 = vmatprep.mubr.f32.mxu0 0.0
      %2876 = vmatmul.mubr.f32.gmra.mrb[0].mxu0 %v654
      %v2877 = vpop.f32.mrb[0].mxu0
      %v2878 = vadd.f32 0.0, %v2877
      %v2879 = vpop.f32.mrb[0].mxu0
      %2880 = vmatprep.mubr.f32.mxu0 0.0
      %2881 = vmatmul.mubr.f32.gmra.mrb[0].mxu0 %v657
      %v2882 = vpop.f32.mrb[0].mxu0
      %v2883 = vadd.f32 0.0, %v2882
      %v2884 = vpop.f32.mrb[0].mxu0
      %2885 = vmatprep.mubr.f32.mxu0 0.0
      %2886 = vmatmul.mubr.f32.gmra.mrb[0].mxu0 %v659
      %v2887 = vpop.f32.mrb[0].mxu0
      %v2888 = vadd.f32 0.0, %v2887
      %v2889 = vpop.f32.mrb[0].mxu0
      %2890 = vmatprep.mubr.f32.mxu0 0.0
      %2891 = vmatmul.mubr.f32.gmra.mrb[0].mxu0 %v1825
      %v2892 = vpop.f32.mrb[0].mxu0
      %v2893 = vadd.f32 0.0, %v2892
      %v2894 = vpop.f32.mrb[0].mxu0
      %2895 = vmatprep.mubr.f32.mxu0 0.0
      %2896 = vmatmul.mubr.f32.gmra.mrb[0].mxu0 %v1827
      %v2897 = vpop.f32.mrb[0].mxu0
      %v2898 = vadd.f32 0.0, %v2897
      %v2899 = vpop.f32.mrb[0].mxu0
      %2900 = vmatprep.mubr.f32.mxu0 0.0
      %2901 = vmatmul.mubr.f32.gmra.mrb[0].mxu0 %v2664
      %v2902 = vpop.f32.mrb[0].mxu0
      %v2903 = vadd.f32 0.0, %v2902
      %v2904 = vpop.f32.mrb[0].mxu0
      %2905 = vmatprep.mubr.f32.mxu0 0.0
      %2906 = vmatmul.mubr.f32.gmra.mrb[0].mxu0 %v2666
      %v2907 = vpop.f32.mrb[0].mxu0
      %v2908 = vadd.f32 0.0, %v2907
      %v2909 = vpop.f32.mrb[0].mxu0
      %2910 = vdwg.mxu0
      %v2911 = vadd.f32 %v2627, %v2753
      %v2912 = vadd.f32 %v2628, %v2758
      %v2913 = vadd.f32 %v2629, %v2763
      %v2914 = vadd.f32 %v2630, %v2768
      %v2915 = vadd.f32 %v2631, %v2773
      %v2916 = vadd.f32 %v2632, %v2778
      %v2917 = vadd.f32 %v2633, %v2783
      %v2918 = vadd.f32 %v2634, %v2788
      %v2919 = vadd.f32 %v2635, %v2793
      %v2920 = vadd.f32 %v2636, %v2798
      %v2921 = vadd.f32 %v2637, %v2803
      %v2922 = vadd.f32 %v2638, %v2808
      %v2923 = vadd.f32 %v2639, %v2813
      %v2924 = vadd.f32 %v2640, %v2818
      %v2925 = vadd.f32 %v2641, %v2823
      %v2926 = vadd.f32 %v2642, %v2828
      %v2927 = vadd.f32 %v2643, %v2833
      %v2928 = vadd.f32 %v2644, %v2838
      %v2929 = vadd.f32 %v2645, %v2843
      %v2930 = vadd.f32 %v2646, %v2848
      %v2931 = vadd.f32 %v2647, %v2853
      %v2932 = vadd.f32 %v2648, %v2858
      %v2933 = vadd.f32 %v2649, %v2863
      %v2934 = vadd.f32 %v2650, %v2868
      %v2935 = vadd.f32 %v2651, %v2873
      %v2936 = vadd.f32 %v2652, %v2878
      %v2937 = vadd.f32 %v2653, %v2883
      %v2938 = vadd.f32 %v2654, %v2888
      %v2939 = vadd.f32 %v2655, %v2893
      %v2940 = vadd.f32 %v2656, %v2898
      %v2941 = vadd.f32 %v2657, %v2903
      %v2942 = vadd.f32 %v2658, %v2908
      %v2943 = vrot.slane %v512, 2
      %v2944 = vrot.slane %v513, 2
      %v2945 = vsel %vm1159, %v2943, %v2944
      %v2946 = vrot.slane %v514, 2
      %v2947 = vsel %vm1159, %v2944, %v2946
      %s2950 = scalar_lea.vmem %s3, 1024
      %v2951 = vld [vmem:[%s2950] sm:$0xff]
      %v2952 = vld [vmem:[%s2950 + $0x8] sm:$0xff]
      %v2953 = vld [vmem:[%s2950 + $0x10] sm:$0xff]
      %v2954 = vld [vmem:[%s2950 + $0x18] sm:$0xff]
      %v2955 = vld [vmem:[%s2950 + $0x20] sm:$0xff]
      %v2956 = vld [vmem:[%s2950 + $0x28] sm:$0xff]
      %v2957 = vld [vmem:[%s2950 + $0x30] sm:$0xff]
      %v2958 = vld [vmem:[%s2950 + $0x38] sm:$0xff]
      %v2959 = vld [vmem:[%s2950 + $0x40] sm:$0xff]
      %v2960 = vld [vmem:[%s2950 + $0x48] sm:$0xff]
      %v2961 = vld [vmem:[%s2950 + $0x50] sm:$0xff]
      %v2962 = vld [vmem:[%s2950 + $0x58] sm:$0xff]
      %v2963 = vld [vmem:[%s2950 + $0x60] sm:$0xff]
      %v2964 = vld [vmem:[%s2950 + $0x68] sm:$0xff]
      %v2965 = vld [vmem:[%s2950 + $0x70] sm:$0xff]
      %v2966 = vld [vmem:[%s2950 + $0x78] sm:$0xff]
      %2967 = vmatprep.subr.mxu0 0.0
      %2968 = vmatpush1.msra.mxu0 %v2951
      %2969 = vmatprep.subr.mxu0 0.0
      %2970 = vmatpush1.msra.mxu0 %v2952
      %2971 = vmatprep.subr.mxu0 0.0
      %2972 = vmatpush1.msra.mxu0 %v2953
      %2973 = vmatprep.subr.mxu0 0.0
      %2974 = vmatpush1.msra.mxu0 %v2954
      %2975 = vmatprep.subr.mxu0 0.0
      %2976 = vmatpush1.msra.mxu0 %v2955
      %2977 = vmatprep.subr.mxu0 0.0
      %2978 = vmatpush1.msra.mxu0 %v2956
      %2979 = vmatprep.subr.mxu0 0.0
      %2980 = vmatpush1.msra.mxu0 %v2957
      %2981 = vmatprep.subr.mxu0 0.0
      %2982 = vmatpush1.msra.mxu0 %v2958
      %2983 = vmatprep.subr.mxu0 0.0
      %2984 = vmatpush1.msra.mxu0 %v2959
      %2985 = vmatprep.subr.mxu0 0.0
      %2986 = vmatpush1.msra.mxu0 %v2960
      %2987 = vmatprep.subr.mxu0 0.0
      %2988 = vmatpush1.msra.mxu0 %v2961
      %2989 = vmatprep.subr.mxu0 0.0
      %2990 = vmatpush1.msra.mxu0 %v2962
      %2991 = vmatprep.subr.mxu0 0.0
      %2992 = vmatpush1.msra.mxu0 %v2963
      %2993 = vmatprep.subr.mxu0 0.0
      %2994 = vmatpush1.msra.mxu0 %v2964
      %2995 = vmatprep.subr.mxu0 0.0
      %2996 = vmatpush1.msra.mxu0 %v2965
      %2997 = vmatprep.subr.mxu0 0.0
      %2998 = vmatpush1.msra.mxu0 %v2966
      %2999 = vmatprep.subr.mxu0 0.0
      %3000 = vmatpush1.msra.mxu0 0.0
      %3001 = vmatprep.subr.mxu0 0.0
      %3002 = vmatpush1.msra.mxu0 0.0
      %3003 = vmatprep.subr.mxu0 0.0
      %3004 = vmatpush1.msra.mxu0 0.0
      %3005 = vmatprep.subr.mxu0 0.0
      %3006 = vmatpush1.msra.mxu0 0.0
      %3007 = vmatprep.subr.mxu0 0.0
      %3008 = vmatpush1.msra.mxu0 0.0
      %3009 = vmatprep.subr.mxu0 0.0
      %3010 = vmatpush1.msra.mxu0 0.0
      %3011 = vmatprep.subr.mxu0 0.0
      %3012 = vmatpush1.msra.mxu0 0.0
      %3013 = vmatprep.subr.mxu0 0.0
      %3014 = vmatpush1.msra.mxu0 0.0
      %3015 = vmatprep.subr.mxu0 0.0
      %3016 = vmatpush1.msra.mxu0 0.0
      %3017 = vmatprep.subr.mxu0 0.0
      %3018 = vmatpush1.msra.mxu0 0.0
      %3019 = vmatprep.subr.mxu0 0.0
      %3020 = vmatpush1.msra.mxu0 0.0
      %3021 = vmatprep.subr.mxu0 0.0
      %3022 = vmatpush1.msra.mxu0 0.0
      %3023 = vmatprep.subr.mxu0 0.0
      %3024 = vmatpush1.msra.mxu0 0.0
      %3025 = vmatprep.subr.mxu0 0.0
      %3026 = vmatpush1.msra.mxu0 0.0
      %3027 = vmatprep.subr.mxu0 0.0
      %3028 = vmatpush1.msra.mxu0 0.0
      %3029 = vmatprep.subr.mxu0 0.0
      %3030 = vmatpush1.msra.mxu0 0.0
      %3031 = vmatprep.mubr.f32.mxu0 0.0
      %3032 = vmatmul.mubr.f32.gmra.mrb[0].mxu0 %v1172
      %v3033 = vpop.f32.mrb[0].mxu0
      %v3034 = vadd.f32 0.0, %v3033
      %v3035 = vpop.f32.mrb[0].mxu0
      %3036 = vmatprep.mubr.f32.mxu0 0.0
      %3037 = vmatmul.mubr.f32.gmra.mrb[0].mxu0 %v1174
      %v3038 = vpop.f32.mrb[0].mxu0
      %v3039 = vadd.f32 0.0, %v3038
      %v3040 = vpop.f32.mrb[0].mxu0
      %3041 = vmatprep.mubr.f32.mxu0 0.0
      %3042 = vmatmul.mubr.f32.gmra.mrb[0].mxu0 %v1177
      %v3043 = vpop.f32.mrb[0].mxu0
      %v3044 = vadd.f32 0.0, %v3043
      %v3045 = vpop.f32.mrb[0].mxu0
      %3046 = vmatprep.mubr.f32.mxu0 0.0
      %3047 = vmatmul.mubr.f32.gmra.mrb[0].mxu0 %v1179
      %v3048 = vpop.f32.mrb[0].mxu0
      %v3049 = vadd.f32 0.0, %v3048
      %v3050 = vpop.f32.mrb[0].mxu0
      %3051 = vmatprep.mubr.f32.mxu0 0.0
      %3052 = vmatmul.mubr.f32.gmra.mrb[0].mxu0 %v1182
      %v3053 = vpop.f32.mrb[0].mxu0
      %v3054 = vadd.f32 0.0, %v3053
      %v3055 = vpop.f32.mrb[0].mxu0
      %3056 = vmatprep.mubr.f32.mxu0 0.0
      %3057 = vmatmul.mubr.f32.gmra.mrb[0].mxu0 %v1184
      %v3058 = vpop.f32.mrb[0].mxu0
      %v3059 = vadd.f32 0.0, %v3058
      %v3060 = vpop.f32.mrb[0].mxu0
      %3061 = vmatprep.mubr.f32.mxu0 0.0
      %3062 = vmatmul.mubr.f32.gmra.mrb[0].mxu0 %v1187
      %v3063 = vpop.f32.mrb[0].mxu0
      %v3064 = vadd.f32 0.0, %v3063
      %v3065 = vpop.f32.mrb[0].mxu0
      %3066 = vmatprep.mubr.f32.mxu0 0.0
      %3067 = vmatmul.mubr.f32.gmra.mrb[0].mxu0 %v1189
      %v3068 = vpop.f32.mrb[0].mxu0
      %v3069 = vadd.f32 0.0, %v3068
      %v3070 = vpop.f32.mrb[0].mxu0
      %3071 = vmatprep.mubr.f32.mxu0 0.0
      %3072 = vmatmul.mubr.f32.gmra.mrb[0].mxu0 %v1192
      %v3073 = vpop.f32.mrb[0].mxu0
      %v3074 = vadd.f32 0.0, %v3073
      %v3075 = vpop.f32.mrb[0].mxu0
      %3076 = vmatprep.mubr.f32.mxu0 0.0
      %3077 = vmatmul.mubr.f32.gmra.mrb[0].mxu0 %v1194
      %v3078 = vpop.f32.mrb[0].mxu0
      %v3079 = vadd.f32 0.0, %v3078
      %v3080 = vpop.f32.mrb[0].mxu0
      %3081 = vmatprep.mubr.f32.mxu0 0.0
      %3082 = vmatmul.mubr.f32.gmra.mrb[0].mxu0 %v1197
      %v3083 = vpop.f32.mrb[0].mxu0
      %v3084 = vadd.f32 0.0, %v3083
      %v3085 = vpop.f32.mrb[0].mxu0
      %3086 = vmatprep.mubr.f32.mxu0 0.0
      %3087 = vmatmul.mubr.f32.gmra.mrb[0].mxu0 %v1199
      %v3088 = vpop.f32.mrb[0].mxu0
      %v3089 = vadd.f32 0.0, %v3088
      %v3090 = vpop.f32.mrb[0].mxu0
      %3091 = vmatprep.mubr.f32.mxu0 0.0
      %3092 = vmatmul.mubr.f32.gmra.mrb[0].mxu0 %v1202
      %v3093 = vpop.f32.mrb[0].mxu0
      %v3094 = vadd.f32 0.0, %v3093
      %v3095 = vpop.f32.mrb[0].mxu0
      %3096 = vmatprep.mubr.f32.mxu0 0.0
      %3097 = vmatmul.mubr.f32.gmra.mrb[0].mxu0 %v1204
      %v3098 = vpop.f32.mrb[0].mxu0
      %v3099 = vadd.f32 0.0, %v3098
      %v3100 = vpop.f32.mrb[0].mxu0
      %3101 = vmatprep.mubr.f32.mxu0 0.0
      %3102 = vmatmul.mubr.f32.gmra.mrb[0].mxu0 %v1207
      %v3103 = vpop.f32.mrb[0].mxu0
      %v3104 = vadd.f32 0.0, %v3103
      %v3105 = vpop.f32.mrb[0].mxu0
      %3106 = vmatprep.mubr.f32.mxu0 0.0
      %3107 = vmatmul.mubr.f32.gmra.mrb[0].mxu0 %v1209
      %v3108 = vpop.f32.mrb[0].mxu0
      %v3109 = vadd.f32 0.0, %v3108
      %v3110 = vpop.f32.mrb[0].mxu0
      %3111 = vmatprep.mubr.f32.mxu0 0.0
      %3112 = vmatmul.mubr.f32.gmra.mrb[0].mxu0 %v1212
      %v3113 = vpop.f32.mrb[0].mxu0
      %v3114 = vadd.f32 0.0, %v3113
      %v3115 = vpop.f32.mrb[0].mxu0
      %3116 = vmatprep.mubr.f32.mxu0 0.0
      %3117 = vmatmul.mubr.f32.gmra.mrb[0].mxu0 %v1214
      %v3118 = vpop.f32.mrb[0].mxu0
      %v3119 = vadd.f32 0.0, %v3118
      %v3120 = vpop.f32.mrb[0].mxu0
      %3121 = vmatprep.mubr.f32.mxu0 0.0
      %3122 = vmatmul.mubr.f32.gmra.mrb[0].mxu0 %v1217
      %v3123 = vpop.f32.mrb[0].mxu0
      %v3124 = vadd.f32 0.0, %v3123
      %v3125 = vpop.f32.mrb[0].mxu0
      %3126 = vmatprep.mubr.f32.mxu0 0.0
      %3127 = vmatmul.mubr.f32.gmra.mrb[0].mxu0 %v1219
      %v3128 = vpop.f32.mrb[0].mxu0
      %v3129 = vadd.f32 0.0, %v3128
      %v3130 = vpop.f32.mrb[0].mxu0
      %3131 = vmatprep.mubr.f32.mxu0 0.0
      %3132 = vmatmul.mubr.f32.gmra.mrb[0].mxu0 %v1222
      %v3133 = vpop.f32.mrb[0].mxu0
      %v3134 = vadd.f32 0.0, %v3133
      %v3135 = vpop.f32.mrb[0].mxu0
      %3136 = vmatprep.mubr.f32.mxu0 0.0
      %3137 = vmatmul.mubr.f32.gmra.mrb[0].mxu0 %v1224
      %v3138 = vpop.f32.mrb[0].mxu0
      %v3139 = vadd.f32 0.0, %v3138
      %v3140 = vpop.f32.mrb[0].mxu0
      %3141 = vmatprep.mubr.f32.mxu0 0.0
      %3142 = vmatmul.mubr.f32.gmra.mrb[0].mxu0 %v1227
      %v3143 = vpop.f32.mrb[0].mxu0
      %v3144 = vadd.f32 0.0, %v3143
      %v3145 = vpop.f32.mrb[0].mxu0
      %3146 = vmatprep.mubr.f32.mxu0 0.0
      %3147 = vmatmul.mubr.f32.gmra.mrb[0].mxu0 %v1229
      %v3148 = vpop.f32.mrb[0].mxu0
      %v3149 = vadd.f32 0.0, %v3148
      %v3150 = vpop.f32.mrb[0].mxu0
      %3151 = vmatprep.mubr.f32.mxu0 0.0
      %3152 = vmatmul.mubr.f32.gmra.mrb[0].mxu0 %v1232
      %v3153 = vpop.f32.mrb[0].mxu0
      %v3154 = vadd.f32 0.0, %v3153
      %v3155 = vpop.f32.mrb[0].mxu0
      %3156 = vmatprep.mubr.f32.mxu0 0.0
      %3157 = vmatmul.mubr.f32.gmra.mrb[0].mxu0 %v1234
      %v3158 = vpop.f32.mrb[0].mxu0
      %v3159 = vadd.f32 0.0, %v3158
      %v3160 = vpop.f32.mrb[0].mxu0
      %3161 = vmatprep.mubr.f32.mxu0 0.0
      %3162 = vmatmul.mubr.f32.gmra.mrb[0].mxu0 %v1237
      %v3163 = vpop.f32.mrb[0].mxu0
      %v3164 = vadd.f32 0.0, %v3163
      %v3165 = vpop.f32.mrb[0].mxu0
      %3166 = vmatprep.mubr.f32.mxu0 0.0
      %3167 = vmatmul.mubr.f32.gmra.mrb[0].mxu0 %v1239
      %v3168 = vpop.f32.mrb[0].mxu0
      %v3169 = vadd.f32 0.0, %v3168
      %v3170 = vpop.f32.mrb[0].mxu0
      %3171 = vmatprep.mubr.f32.mxu0 0.0
      %3172 = vmatmul.mubr.f32.gmra.mrb[0].mxu0 %v2106
      %v3173 = vpop.f32.mrb[0].mxu0
      %v3174 = vadd.f32 0.0, %v3173
      %v3175 = vpop.f32.mrb[0].mxu0
      %3176 = vmatprep.mubr.f32.mxu0 0.0
      %3177 = vmatmul.mubr.f32.gmra.mrb[0].mxu0 %v2108
      %v3178 = vpop.f32.mrb[0].mxu0
      %v3179 = vadd.f32 0.0, %v3178
      %v3180 = vpop.f32.mrb[0].mxu0
      %3181 = vmatprep.mubr.f32.mxu0 0.0
      %3182 = vmatmul.mubr.f32.gmra.mrb[0].mxu0 %v2945
      %v3183 = vpop.f32.mrb[0].mxu0
      %v3184 = vadd.f32 0.0, %v3183
      %v3185 = vpop.f32.mrb[0].mxu0
      %3186 = vmatprep.mubr.f32.mxu0 0.0
      %3187 = vmatmul.mubr.f32.gmra.mrb[0].mxu0 %v2947
      %v3188 = vpop.f32.mrb[0].mxu0
      %v3189 = vadd.f32 0.0, %v3188
      %v3190 = vpop.f32.mrb[0].mxu0
      %3191 = vdwg.mxu0
      %v3192 = vadd.f32 %v2911, %v3034
      %v3193 = vadd.f32 %v2912, %v3039
      %v3194 = vadd.f32 %v2913, %v3044
      %v3195 = vadd.f32 %v2914, %v3049
      %v3196 = vadd.f32 %v2915, %v3054
      %v3197 = vadd.f32 %v2916, %v3059
      %v3198 = vadd.f32 %v2917, %v3064
      %v3199 = vadd.f32 %v2918, %v3069
      %v3200 = vadd.f32 %v2919, %v3074
      %v3201 = vadd.f32 %v2920, %v3079
      %v3202 = vadd.f32 %v2921, %v3084
      %v3203 = vadd.f32 %v2922, %v3089
      %v3204 = vadd.f32 %v2923, %v3094
      %v3205 = vadd.f32 %v2924, %v3099
      %v3206 = vadd.f32 %v2925, %v3104
      %v3207 = vadd.f32 %v2926, %v3109
      %v3208 = vadd.f32 %v2927, %v3114
      %v3209 = vadd.f32 %v2928, %v3119
      %v3210 = vadd.f32 %v2929, %v3124
      %v3211 = vadd.f32 %v2930, %v3129
      %v3212 = vadd.f32 %v2931, %v3134
      %v3213 = vadd.f32 %v2932, %v3139
      %v3214 = vadd.f32 %v2933, %v3144
      %v3215 = vadd.f32 %v2934, %v3149
      %v3216 = vadd.f32 %v2935, %v3154
      %v3217 = vadd.f32 %v2936, %v3159
      %v3218 = vadd.f32 %v2937, %v3164
      %v3219 = vadd.f32 %v2938, %v3169
      %v3220 = vadd.f32 %v2939, %v3174
      %v3221 = vadd.f32 %v2940, %v3179
      %v3222 = vadd.f32 %v2941, %v3184
      %v3223 = vadd.f32 %v2942, %v3189
      %v3224 = vld [vmem:[%s4] sm:$0x1]
      %v3226 = vlaneseq
      %v3227 = vshrl.u32 %v3226, 7
      %v3228 = vsub.s32 0, %v3227
      %v3229 = vrot.slane %v3224, %v3228
      %v3231 = vadd.f32 %v3192, %v3229
      %v3232 = vadd.f32 %v3193, %v3229
      %v3233 = vadd.f32 %v3194, %v3229
      %v3234 = vadd.f32 %v3195, %v3229
      %v3235 = vadd.f32 %v3196, %v3229
      %v3236 = vadd.f32 %v3197, %v3229
      %v3237 = vadd.f32 %v3198, %v3229
      %v3238 = vadd.f32 %v3199, %v3229
      %v3239 = vadd.f32 %v3200, %v3229
      %v3240 = vadd.f32 %v3201, %v3229
      %v3241 = vadd.f32 %v3202, %v3229
      %v3242 = vadd.f32 %v3203, %v3229
      %v3243 = vadd.f32 %v3204, %v3229
      %v3244 = vadd.f32 %v3205, %v3229
      %v3245 = vadd.f32 %v3206, %v3229
      %v3246 = vadd.f32 %v3207, %v3229
      %v3247 = vadd.f32 %v3208, %v3229
      %v3248 = vadd.f32 %v3209, %v3229
      %v3249 = vadd.f32 %v3210, %v3229
      %v3250 = vadd.f32 %v3211, %v3229
      %v3251 = vadd.f32 %v3212, %v3229
      %v3252 = vadd.f32 %v3213, %v3229
      %v3253 = vadd.f32 %v3214, %v3229
      %v3254 = vadd.f32 %v3215, %v3229
      %v3255 = vadd.f32 %v3216, %v3229
      %v3256 = vadd.f32 %v3217, %v3229
      %v3257 = vadd.f32 %v3218, %v3229
      %v3258 = vadd.f32 %v3219, %v3229
      %v3259 = vadd.f32 %v3220, %v3229
      %v3260 = vadd.f32 %v3221, %v3229
      %v3261 = vadd.f32 %v3222, %v3229
      %v3262 = vadd.f32 %v3223, %v3229
      %v3263 = vmax.f32 %v3231, 0.0
      %v3264 = vmax.f32 %v3232, 0.0
      %v3265 = vmax.f32 %v3233, 0.0
      %v3266 = vmax.f32 %v3234, 0.0
      %v3267 = vmax.f32 %v3235, 0.0
      %v3268 = vmax.f32 %v3236, 0.0
      %v3269 = vmax.f32 %v3237, 0.0
      %v3270 = vmax.f32 %v3238, 0.0
      %v3271 = vmax.f32 %v3239, 0.0
      %v3272 = vmax.f32 %v3240, 0.0
      %v3273 = vmax.f32 %v3241, 0.0
      %v3274 = vmax.f32 %v3242, 0.0
      %v3275 = vmax.f32 %v3243, 0.0
      %v3276 = vmax.f32 %v3244, 0.0
      %v3277 = vmax.f32 %v3245, 0.0
      %v3278 = vmax.f32 %v3246, 0.0
      %v3279 = vmax.f32 %v3247, 0.0
      %v3280 = vmax.f32 %v3248, 0.0
      %v3281 = vmax.f32 %v3249, 0.0
      %v3282 = vmax.f32 %v3250, 0.0
      %v3283 = vmax.f32 %v3251, 0.0
      %v3284 = vmax.f32 %v3252, 0.0
      %v3285 = vmax.f32 %v3253, 0.0
      %v3286 = vmax.f32 %v3254, 0.0
      %v3287 = vmax.f32 %v3255, 0.0
      %v3288 = vmax.f32 %v3256, 0.0
      %v3289 = vmax.f32 %v3257, 0.0
      %v3290 = vmax.f32 %v3258, 0.0
      %v3291 = vmax.f32 %v3259, 0.0
      %v3292 = vmax.f32 %v3260, 0.0
      %v3293 = vmax.f32 %v3261, 0.0
      %v3294 = vmax.f32 %v3262, 0.0
      %3295 = vst [vmem:[%s258] sm:$0xff] %v3263
      %3296 = vst [vmem:[%s258 + $0x8] sm:$0xff] %v3264
      %3297 = vst [vmem:[%s258 + $0x10] sm:$0xff] %v3265
      %3298 = vst [vmem:[%s258 + $0x18] sm:$0xff] %v3266
      %3299 = vst [vmem:[%s258 + $0x20] sm:$0xff] %v3267
      %3300 = vst [vmem:[%s258 + $0x28] sm:$0xff] %v3268
      %3301 = vst [vmem:[%s258 + $0x30] sm:$0xff] %v3269
      %3302 = vst [vmem:[%s258 + $0x38] sm:$0xff] %v3270
      %3303 = vst [vmem:[%s258 + $0x40] sm:$0xff] %v3271
      %3304 = vst [vmem:[%s258 + $0x48] sm:$0xff] %v3272
      %3305 = vst [vmem:[%s258 + $0x50] sm:$0xff] %v3273
      %3306 = vst [vmem:[%s258 + $0x58] sm:$0xff] %v3274
      %3307 = vst [vmem:[%s258 + $0x60] sm:$0xff] %v3275
      %3308 = vst [vmem:[%s258 + $0x68] sm:$0xff] %v3276
      %3309 = vst [vmem:[%s258 + $0x70] sm:$0xff] %v3277
      %3310 = vst [vmem:[%s258 + $0x78] sm:$0xff] %v3278
      %3311 = vst [vmem:[%s258 + $0x80] sm:$0xff] %v3279
      %3312 = vst [vmem:[%s258 + $0x88] sm:$0xff] %v3280
      %3313 = vst [vmem:[%s258 + $0x90] sm:$0xff] %v3281
      %3314 = vst [vmem:[%s258 + $0x98] sm:$0xff] %v3282
      %3315 = vst [vmem:[%s258 + $0xa0] sm:$0xff] %v3283
      %3316 = vst [vmem:[%s258 + $0xa8] sm:$0xff] %v3284
      %3317 = vst [vmem:[%s258 + $0xb0] sm:$0xff] %v3285
      %3318 = vst [vmem:[%s258 + $0xb8] sm:$0xff] %v3286
      %3319 = vst [vmem:[%s258 + $0xc0] sm:$0xff] %v3287
      %3320 = vst [vmem:[%s258 + $0xc8] sm:$0xff] %v3288
      %3321 = vst [vmem:[%s258 + $0xd0] sm:$0xff] %v3289
      %3322 = vst [vmem:[%s258 + $0xd8] sm:$0xff] %v3290
      %3323 = vst [vmem:[%s258 + $0xe0] sm:$0xff] %v3291
      %3324 = vst [vmem:[%s258 + $0xe8] sm:$0xff] %v3292
      %3325 = vst [vmem:[%s258 + $0xf0] sm:$0xff] %v3293
      %3326 = vst [vmem:[%s258 + $0xf8] sm:$0xff] %v3294
      %v3327 = vadd.f32 %v3263, %v3264
      %v3328 = vadd.f32 %v3327, %v3265
      %v3329 = vadd.f32 %v3328, %v3266
      %v3330 = vadd.f32 %v3329, %v3267
      %v3331 = vadd.f32 %v3330, %v3268
      %v3332 = vadd.f32 %v3331, %v3269
      %v3333 = vadd.f32 %v3332, %v3270
      %v3334 = vadd.f32 %v3333, %v3271
      %v3335 = vadd.f32 %v3334, %v3272
      %v3336 = vadd.f32 %v3335, %v3273
      %v3337 = vadd.f32 %v3336, %v3274
      %v3338 = vadd.f32 %v3337, %v3275
      %v3339 = vadd.f32 %v3338, %v3276
      %v3340 = vadd.f32 %v3339, %v3277
      %v3341 = vadd.f32 %v3340, %v3278
      %v3342 = vadd.f32 %v3341, %v3279
      %v3343 = vadd.f32 %v3342, %v3280
      %v3344 = vadd.f32 %v3343, %v3281
      %v3345 = vadd.f32 %v3344, %v3282
      %v3346 = vadd.f32 %v3345, %v3283
      %v3347 = vadd.f32 %v3346, %v3284
      %v3348 = vadd.f32 %v3347, %v3285
      %v3349 = vadd.f32 %v3348, %v3286
      %v3350 = vadd.f32 %v3349, %v3287
      %v3351 = vadd.f32 %v3350, %v3288
      %v3352 = vadd.f32 %v3351, %v3289
      %v3353 = vadd.f32 %v3352, %v3290
      %v3354 = vadd.f32 %v3353, %v3291
      %v3355 = vadd.f32 %v3354, %v3292
      %v3356 = vadd.f32 %v3355, %v3293
      %v3357 = vadd.f32 %v3356, %v3294
      %v3358 = vrot.slane %v3357, 4
      %v3359 = vadd.f32 %v3357, %v3358
      %v3360 = vrot.slane %v3359, 2
      %v3361 = vadd.f32 %v3359, %v3360
      %v3362 = vrot.slane %v3361, 1
      %v3363 = vadd.f32 %v3361, %v3362
      %v3364 = vmul.f32 %v3263, %v3263
      %v3365 = vmul.f32 %v3264, %v3264
      %v3366 = vmul.f32 %v3265, %v3265
      %v3367 = vmul.f32 %v3266, %v3266
      %v3368 = vmul.f32 %v3267, %v3267
      %v3369 = vmul.f32 %v3268, %v3268
      %v3370 = vmul.f32 %v3269, %v3269
      %v3371 = vmul.f32 %v3270, %v3270
      %v3372 = vmul.f32 %v3271, %v3271
      %v3373 = vmul.f32 %v3272, %v3272
      %v3374 = vmul.f32 %v3273, %v3273
      %v3375 = vmul.f32 %v3274, %v3274
      %v3376 = vmul.f32 %v3275, %v3275
      %v3377 = vmul.f32 %v3276, %v3276
      %v3378 = vmul.f32 %v3277, %v3277
      %v3379 = vmul.f32 %v3278, %v3278
      %v3380 = vmul.f32 %v3279, %v3279
      %v3381 = vmul.f32 %v3280, %v3280
      %v3382 = vmul.f32 %v3281, %v3281
      %v3383 = vmul.f32 %v3282, %v3282
      %v3384 = vmul.f32 %v3283, %v3283
      %v3385 = vmul.f32 %v3284, %v3284
      %v3386 = vmul.f32 %v3285, %v3285
      %v3387 = vmul.f32 %v3286, %v3286
      %v3388 = vmul.f32 %v3287, %v3287
      %v3389 = vmul.f32 %v3288, %v3288
      %v3390 = vmul.f32 %v3289, %v3289
      %v3391 = vmul.f32 %v3290, %v3290
      %v3392 = vmul.f32 %v3291, %v3291
      %v3393 = vmul.f32 %v3292, %v3292
      %v3394 = vmul.f32 %v3293, %v3293
      %v3395 = vmul.f32 %v3294, %v3294
      %v3396 = vadd.f32 %v3364, %v3365
      %v3397 = vadd.f32 %v3396, %v3366
      %v3398 = vadd.f32 %v3397, %v3367
      %v3399 = vadd.f32 %v3398, %v3368
      %v3400 = vadd.f32 %v3399, %v3369
      %v3401 = vadd.f32 %v3400, %v3370
      %v3402 = vadd.f32 %v3401, %v3371
      %v3403 = vadd.f32 %v3402, %v3372
      %v3404 = vadd.f32 %v3403, %v3373
      %v3405 = vadd.f32 %v3404, %v3374
      %v3406 = vadd.f32 %v3405, %v3375
      %v3407 = vadd.f32 %v3406, %v3376
      %v3408 = vadd.f32 %v3407, %v3377
      %v3409 = vadd.f32 %v3408, %v3378
      %v3410 = vadd.f32 %v3409, %v3379
      %v3411 = vadd.f32 %v3410, %v3380
      %v3412 = vadd.f32 %v3411, %v3381
      %v3413 = vadd.f32 %v3412, %v3382
      %v3414 = vadd.f32 %v3413, %v3383
      %v3415 = vadd.f32 %v3414, %v3384
      %v3416 = vadd.f32 %v3415, %v3385
      %v3417 = vadd.f32 %v3416, %v3386
      %v3418 = vadd.f32 %v3417, %v3387
      %v3419 = vadd.f32 %v3418, %v3388
      %v3420 = vadd.f32 %v3419, %v3389
      %v3421 = vadd.f32 %v3420, %v3390
      %v3422 = vadd.f32 %v3421, %v3391
      %v3423 = vadd.f32 %v3422, %v3392
      %v3424 = vadd.f32 %v3423, %v3393
      %v3425 = vadd.f32 %v3424, %v3394
      %v3426 = vadd.f32 %v3425, %v3395
      %v3427 = vrot.slane %v3426, 4
      %v3428 = vadd.f32 %v3426, %v3427
      %v3429 = vrot.slane %v3428, 2
      %v3430 = vadd.f32 %v3428, %v3429
      %v3431 = vrot.slane %v3430, 1
      %v3432 = vadd.f32 %v3430, %v3431
      %vm3433 = vcmask 1040384
      %v3434 = vsel %vm3433, %v3363, %v3432
      %vm3435 = vcmask 1041408
      %v3436 = vsel %vm3435, %v3434, 0.0
      %3437 = vst [vmem:[%s262] sm:$0xff] %v3436
      %p3438 = scmp.lt.s32.totalorder %s18, 1
      %s3439 = scalar_select %p3438, %s18, 1
      %s3440 = smul.addr %s3439, 32
      %s3441 = smul.addr %s3440, 8
      %s3442 = scalar_lea.vmem %s5, %s3441
      %p3443 = scmp.lt.s32.totalorder %s18, 1
      %s3444 = scalar_select %p3443, %s18, 1
      %s3445 = smul.addr %s3444, 8
      %s3446 = scalar_lea.vmem %s6, %s3445
      // Predicated region
      $region41: #{double_conv_forward.4} parent=39 // pred_check
        %p3447 = pneg %p146
      $region42: #{double_conv_forward.4} parent=39 // pred_check_branch
        %3449 = sbr.rel (%p3447) target = $region44
      $region43: #{double_conv_forward.4} parent=39 // pred_region
        _
      $region44: #{double_conv_forward.4} parent=39 // pred_fallthru
        _
      // Predicated region
      $region45: #{double_conv_forward.4} parent=39 // pred_check
        %p3450 = pneg %p172
      $region46: #{double_conv_forward.4} parent=39 // pred_check_branch
        %3452 = sbr.rel (%p3450) target = $region48
      $region47: #{double_conv_forward.4} parent=39 // pred_region
        _
      $region48: #{double_conv_forward.4} parent=39 // pred_fallthru
        _
    $region40: #{double_conv_forward.4} parent=5 // pred_fallthru
      _
    %p3453 = scmp.le.s32.totalorder 2, %s13
    // Predicated region
    $region49: #{double_conv_forward.4} parent=5 // pred_check
      %p3454 = pneg %p3453
    $region50: #{double_conv_forward.4} parent=5 // pred_check_branch
      %3456 = sbr.rel (%p3454) target = $region52
    $region51: #{double_conv_forward.4} parent=5 // pred_region
      %s3457 = ssub.s32 %s13, 2
      // Predicated region
      $region53: #{double_conv_forward.4} parent=51 // pred_check
        %p3458 = pneg %p152
      $region54: #{double_conv_forward.4} parent=51 // pred_check_branch
        %3460 = sbr.rel (%p3458) target = $region56
      $region55: #{double_conv_forward.4} parent=51 // pred_region
        %p3461 = scmp.lt.s32.totalorder %s19, 1
        %s3462 = scalar_select %p3461, %s19, 1
        %s3463 = smul.addr %s3462, 32
        %s3464 = smul.addr %s3463, 8
        %s3465 = scalar_lea.vmem %s5, %s3464
      $region56: #{double_conv_forward.4} parent=51 // pred_fallthru
        _
      // Predicated region
      $region57: #{double_conv_forward.4} parent=51 // pred_check
        %p3466 = pneg %p178
      $region58: #{double_conv_forward.4} parent=51 // pred_check_branch
        %3468 = sbr.rel (%p3466) target = $region60
      $region59: #{double_conv_forward.4} parent=51 // pred_region
        %p3469 = scmp.lt.s32.totalorder %s19, 1
        %s3470 = scalar_select %p3469, %s19, 1
        %s3471 = smul.addr %s3470, 8
        %s3472 = scalar_lea.vmem %s6, %s3471
      $region60: #{double_conv_forward.4} parent=51 // pred_fallthru
        _
    $region52: #{double_conv_forward.4} parent=5 // pred_fallthru
      _
  $region6: #{double_conv_forward.4} parent=0 // loop_footer
    %s17 = sadd.s32 1, %s13
  $region7: #{double_conv_forward.4} parent=0 // loop_footer_branch
    %12 = sbr.rel target = $region3
  $region8: #{double_conv_forward.4} parent=0 // loop_exit
    _

</llo_original>
